<compile_context>
chip_gen: v5e
topology: v5e:2x2
jax: 0.10.0
libtpu: 0.0.40
codegen_flags: <defaults>
</compile_context>

<pallas_src>
import functools

import jax
import jax.numpy as jnp
from jax.experimental import pallas as pl
from jax.experimental.pallas import tpu as pltpu

EPS = 1e-5
LANES = 128          # every channel dim is zero-padded to the 128-lane vreg width


# ----------------------------- Pallas kernels ------------------------------

def _maxpool_2x2(y, row_ref, H, W):
    """2x2 stride-2 max pool.  y: [H*W, C] f32 in (h, w) raster order.
    row_ref: f32 VMEM scratch (H//2, W, C).  Returns [H//2, W//2, C] f32."""
    C = y.shape[-1]
    y = y.reshape(H // 2, 2, W, C)                      # layout-preserving split
    row_ref[...] = jnp.maximum(y[:, 0], y[:, 1])        # pool along h (leading dim)
    return jnp.maximum(row_ref[:, pl.ds(0, W // 2, 2), :],   # pool along w via
                       row_ref[:, pl.ds(1, W // 2, 2), :])   # strided sublane loads


def _conv_stage_kernel(x_ref, w1_ref, s1_ref, b1_ref, w2_ref, s2_ref, b2_ref,
                       o_ref, row1_ref, pad2_ref, im2_ref, row2_ref, *, H, W, bi):
    """Per grid step (bi images): conv1+BN+ReLU -> pool -> conv2+BN+ReLU -> pool,
    all resident in VMEM.  conv1 = single K=32 matmul (wrapper-built im2col);
    conv2 = single K=1152 matmul over an in-VMEM bf16 im2col built with nine
    lane-aligned 128-wide writes.  Padded lanes stay exactly zero throughout."""
    C = LANES
    H2, W2 = H // 2, W // 2

    # Zero the conv2 staging buffer once per grid step (bf16, small).  The
    # interior is fully overwritten for every image; only the halo must be 0.
    pad2_ref[...] = jnp.zeros_like(pad2_ref)

    for b in range(bi):
        # ---- conv1 + BN + ReLU: one MXU push, K = 9*3 padded to 32 ----
        acc = jnp.dot(x_ref[b], w1_ref[...], preferred_element_type=jnp.float32)
        y = jnp.maximum(acc * s1_ref[...] + b1_ref[...], 0.0)     # [H*W, 128] f32
        y = _maxpool_2x2(y, row1_ref, H, W)                       # [H2, W2, 128] f32

        # ---- stage zero-padded conv2 input (bf16) and build its im2col ----
        pad2_ref[1:1 + H2, 1:1 + W2, :] = y.astype(jnp.bfloat16)
        for t in range(9):
            dy, dx = divmod(t, 3)
            im2_ref[:, t * C:(t + 1) * C] = (
                pad2_ref[dy:dy + H2, dx:dx + W2, :].reshape(H2 * W2, C))

        # ---- conv2 + BN + ReLU: one MXU matmul, K = 9*128 = 1152 ----
        acc = jnp.dot(im2_ref[...], w2_ref[...], preferred_element_type=jnp.float32)
        y = jnp.maximum(acc * s2_ref[...] + b2_ref[...], 0.0)     # [H2*W2, 128] f32
        y = _maxpool_2x2(y, row2_ref, H2, W2)                     # [H//4, W//4, 128]

        o_ref[b] = y.reshape((H // 4) * (W // 4), C).astype(o_ref.dtype)


def conv_stage(x_im2col, w1, s1, b1, w2, s2, b2, *, H, W):
    """x_im2col: [B, H*W, 32] bf16 (conv1 im2col).  Returns [B, (H//4)*(W//4), 128] bf16."""
    B = x_im2col.shape[0]
    assert H % 4 == 0 and W % 4 == 0

    # Images per grid step: amortize per-step overhead / tiny DMAs, but keep at
    # least 2 grid steps so both v7x TensorCores get work on the parallel axis.
    bi = 1
    for cand in (4, 2):
        if B % cand == 0 and B // cand >= 2:
            bi = cand
            break

    def full(a):
        return pl.BlockSpec(a.shape, lambda i, _n=a.ndim: (0,) * _n)

    H2, W2 = H // 2, W // 2
    kernel = functools.partial(_conv_stage_kernel, H=H, W=W, bi=bi)
    return pl.pallas_call(
        kernel,
        out_shape=jax.ShapeDtypeStruct((B, (H // 4) * (W // 4), LANES), jnp.bfloat16),
        grid=(B // bi,),
        in_specs=[pl.BlockSpec((bi, H * W, x_im2col.shape[-1]), lambda i: (i, 0, 0)),
                  full(w1), full(s1), full(b1), full(w2), full(s2), full(b2)],
        out_specs=pl.BlockSpec((bi, (H // 4) * (W // 4), LANES), lambda i: (i, 0, 0)),
        scratch_shapes=[
            pltpu.VMEM((H // 2, W, LANES), jnp.float32),           # conv1 pool rows
            pltpu.VMEM((H2 + 2, W2 + 2, LANES), jnp.bfloat16),     # padded conv2 input
            pltpu.VMEM((H2 * W2, 9 * LANES), jnp.bfloat16),        # conv2 im2col (K=1152)
            pltpu.VMEM((H // 4, W2, LANES), jnp.float32),          # conv2 pool rows
        ],
        compiler_params=pltpu.CompilerParams(dimension_semantics=("parallel",)),
    )(x_im2col, w1, s1, b1, w2, s2, b2)


def _mlp_head_kernel(x_ref, w1_ref, s1_ref, b1_ref, w2_ref, s2_ref, b2_ref,
                     w3_ref, b3_ref, o_ref):
    """fc1+BN+ReLU -> fc2+BN+ReLU -> (dropout=identity) -> fc3, lane-padded to 128."""
    h = jnp.dot(x_ref[...], w1_ref[...], preferred_element_type=jnp.float32)
    h = jnp.maximum(h * s1_ref[...] + b1_ref[...], 0.0)
    h = jnp.dot(h.astype(jnp.bfloat16), w2_ref[...],
                preferred_element_type=jnp.float32)
    h = jnp.maximum(h * s2_ref[...] + b2_ref[...], 0.0)
    # TODO(synk): nn.Dropout(0.5) is inference-mode identity here (no RNG mask).
    o_ref[...] = (jnp.dot(h.astype(jnp.bfloat16), w3_ref[...],
                          preferred_element_type=jnp.float32)
                  + b3_ref[...]).astype(o_ref.dtype)


def mlp_head(x, w1, s1, b1, w2, s2, b2, w3, b3):
    """x: [B, K] bf16.  Weights bf16, lane-padded to 128 output columns.
    Returns [B_pad, 128] f32 (caller slices real rows / logits)."""
    B, K = x.shape
    tb = min(128, ((B + 7) // 8) * 8)       # one big row tile; no 8-row fc1 restream
    Bp = ((B + tb - 1) // tb) * tb
    if Bp != B:
        x = jnp.pad(x, ((0, Bp - B), (0, 0)))
    args = (x, w1, s1, b1, w2, s2, b2, w3, b3)

    def full(a):
        return pl.BlockSpec(a.shape, lambda i, _n=a.ndim: (0,) * _n)

    return pl.pallas_call(
        _mlp_head_kernel,
        out_shape=jax.ShapeDtypeStruct((Bp, LANES), jnp.float32),
        grid=(Bp // tb,),
        in_specs=[pl.BlockSpec((tb, K), lambda i: (i, 0))]
                 + [full(a) for a in args[1:]],
        out_specs=pl.BlockSpec((tb, LANES), lambda i: (i, 0)),
        compiler_params=pltpu.CompilerParams(dimension_semantics=("parallel",)),
    )(*args)


# ------------------------------- glue (JAX) --------------------------------

def _fold_bn(pre_bias, gamma, beta, n_pad):
    """Fold (y + pre_bias) -> inference BN (running mean=0, var=1) into scale/bias,
    zero-padded to n_pad lanes so padded channels stay exactly zero."""
    scale = gamma / jnp.sqrt(1.0 + EPS)
    bias = pre_bias * scale + beta
    scale = jnp.pad(scale, (0, n_pad - scale.shape[0]))
    bias = jnp.pad(bias, (0, n_pad - bias.shape[0]))
    return (scale.reshape(1, n_pad).astype(jnp.float32),
            bias.reshape(1, n_pad).astype(jnp.float32))


def _conv1_taps(w):
    """[Cout, Cin, 3, 3] (PyTorch) -> [32, 128] bf16; row = tap*Cin + cin, tap=kh*3+kw."""
    cout, cin = w.shape[0], w.shape[1]
    w = jnp.transpose(w, (2, 3, 1, 0)).reshape(9 * cin, cout)
    w = jnp.pad(w, ((0, 32 - 9 * cin), (0, LANES - cout)))
    return w.astype(jnp.bfloat16)


def _conv2_taps(w):
    """[Cout, Cin, 3, 3] (PyTorch) -> [9*128, 128] bf16; row = tap*128 + cin_padded."""
    cout, cin = w.shape[0], w.shape[1]
    w = jnp.transpose(w, (2, 3, 1, 0))                      # [3, 3, Cin, Cout]
    w = jnp.pad(w, ((0, 0), (0, 0), (0, LANES - cin), (0, LANES - cout)))
    return w.reshape(9 * LANES, LANES).astype(jnp.bfloat16)


def _conv1_im2col(x_nhwc):
    """Lane-dense conv1 im2col (wrapper-side layout plumbing on a tiny tensor):
    [B, H, W, Cin] -> [B, H*W, 32] bf16, column = tap*Cin + cin (replicate pad)."""
    B, H, W, Cin = x_nhwc.shape
    xp = jnp.pad(x_nhwc, ((0, 0), (1, 1), (1, 1), (0, 0)), mode='edge')
    cols = [xp[:, dy:dy + H, dx:dx + W, :] for dy in range(3) for dx in range(3)]
    im = jnp.concatenate(cols, axis=-1)                     # [B, H, W, 27]
    im = jnp.pad(im, ((0, 0), (0, 0), (0, 0), (0, 32 - 9 * Cin)))
    return im.reshape(B, H * W, 32).astype(jnp.bfloat16)


def net_forward(x_nchw, p):
    B, _, H, W = x_nchw.shape
    x = jnp.transpose(x_nchw, (0, 2, 3, 1)).astype(jnp.float32)       # -> NHWC

    x_im = _conv1_im2col(x)                                 # [B, H*W, 32] bf16
    w1 = _conv1_taps(p['conv1_w'])
    s1, b1 = _fold_bn(p['conv1_b'], p['bn1_g'], p['bn1_b'], LANES)
    w2 = _conv2_taps(p['conv2_w'])
    s2, b2 = _fold_bn(p['conv2_b'], p['bn2_g'], p['bn2_b'], LANES)

    z = conv_stage(x_im, w1, s1, b1, w2, s2, b2, H=H, W=W)  # [B, 64, 128] bf16
    flat = z.reshape(B, -1)                                 # lane-dense flatten (h,w,c)

    # fc1 rows follow PyTorch's NCHW flatten order (c, h, w); re-order the *weight*
    # rows to the kernel's (h, w, c_padded) order and zero-pad the channel rows.
    Hq, Wq = H // 4, W // 4
    C2 = p['conv2_w'].shape[0]
    fw1 = p['fc1_w'].reshape(C2, Hq, Wq, -1)
    fw1 = jnp.transpose(fw1, (1, 2, 0, 3))
    fw1 = jnp.pad(fw1, ((0, 0), (0, 0), (0, LANES - C2), (0, 0)))
    fw1 = fw1.reshape(Hq * Wq * LANES, -1).astype(jnp.bfloat16)        # [8192, 128]
    fs1, fb1 = _fold_bn(p['fc1_b'], p['fbn1_g'], p['fbn1_b'], LANES)

    fw2 = jnp.pad(p['fc2_w'],
                  ((0, 0), (0, LANES - p['fc2_w'].shape[1]))).astype(jnp.bfloat16)
    fs2, fb2 = _fold_bn(p['fc2_b'], p['fbn2_g'], p['fbn2_b'], LANES)

    n_out = p['fc3_w'].shape[1]
    fw3 = jnp.pad(p['fc3_w'], ((0, LANES - p['fc3_w'].shape[0]),
                               (0, LANES - n_out))).astype(jnp.bfloat16)
    fb3 = jnp.pad(p['fc3_b'], (0, LANES - n_out)).reshape(1, LANES).astype(jnp.float32)

    out = mlp_head(flat, fw1, fs1, fb1, fw2, fs2, fb2, fw3, fb3)
    return out[:B, :n_out]                                  # [B, 10]


# ----------------------------- parameter init ------------------------------

def init_params(key):
    ks = jax.random.split(key, 17)
    n = lambda k, shape, s=0.1: (s * jax.random.normal(k, shape)).astype(jnp.float32)
    return {
        'conv1_w': n(ks[0], (16, 3, 3, 3)),    'conv1_b': n(ks[1], (16,)),
        'bn1_g': 1.0 + n(ks[2], (16,)),        'bn1_b': n(ks[3], (16,)),
        'conv2_w': n(ks[4], (32, 16, 3, 3)),   'conv2_b': n(ks[5], (32,)),
        'bn2_g': 1.0 + n(ks[6], (32,)),        'bn2_b': n(ks[7], (32,)),
        'fc1_w': n(ks[8], (32 * 8 * 8, 128), 0.02), 'fc1_b': n(ks[9], (128,)),
        'fbn1_g': 1.0 + n(ks[10], (128,)),     'fbn1_b': n(ks[11], (128,)),
        'fc2_w': n(ks[12], (128, 64), 0.05),   'fc2_b': n(ks[13], (64,)),
        'fbn2_g': 1.0 + n(ks[14], (64,)),      'fbn2_b': n(ks[15], (64,)),
        'fc3_w': n(ks[16], (64, 10), 0.1),     'fc3_b': jnp.zeros((10,), jnp.float32),
    }


if __name__ == "__main__":
    key = jax.random.PRNGKey(0)
    kp, kx = jax.random.split(key)
    params = init_params(kp)
    # Spatial 32x32 is required by fc1 = 32*8*8 (two 2x2 pools); batch=2.
    x = jax.random.normal(kx, (2, 3, 32, 32), jnp.float32)
    out = jax.jit(lambda xx: net_forward(xx, params))(x)
    jax.block_until_ready(out)
    assert out.shape == (2, 10)
    assert bool(jnp.all(jnp.isfinite(out)))
    print("KERNEL_OK")
</pallas_src>

<mosaic_0001>
module attributes {stable_mosaic.version = 11 : i64} {
  func.func @_conv_stage_kernel(%arg0: i32, %arg1: memref<1x1024x32xbf16, #tpu.memory_space<vmem>>, %arg2: memref<32x128xbf16, #tpu.memory_space<vmem>>, %arg3: memref<1x128xf32, #tpu.memory_space<vmem>>, %arg4: memref<1x128xf32, #tpu.memory_space<vmem>>, %arg5: memref<1152x128xbf16, #tpu.memory_space<vmem>>, %arg6: memref<1x128xf32, #tpu.memory_space<vmem>>, %arg7: memref<1x128xf32, #tpu.memory_space<vmem>>, %arg8: memref<1x64x128xbf16, #tpu.memory_space<vmem>>, %arg9: memref<16x32x128xf32, #tpu.memory_space<vmem>>, %arg10: memref<18x18x128xbf16, #tpu.memory_space<vmem>>, %arg11: memref<256x1152xbf16, #tpu.memory_space<vmem>>, %arg12: memref<8x16x128xf32, #tpu.memory_space<vmem>>) attributes {dimension_semantics = [#tpu.dimension_semantics<parallel>], iteration_bounds = array<i64: 2>, scalar_prefetch = 0 : i64, scratch_operands = 4 : i64, tpu.core_type = #tpu.core_type<tc>, window_params = [{transform_indices = @transform_0, window_bounds = array<i64: 1, 1024, 32>}, {pipeline_mode = #tpu.pipeline_mode<synchronous>, transform_indices = @transform_1, window_bounds = array<i64: 32, 128>}, {pipeline_mode = #tpu.pipeline_mode<synchronous>, transform_indices = @transform_2, window_bounds = array<i64: 1, 128>}, {pipeline_mode = #tpu.pipeline_mode<synchronous>, transform_indices = @transform_3, window_bounds = array<i64: 1, 128>}, {pipeline_mode = #tpu.pipeline_mode<synchronous>, transform_indices = @transform_4, window_bounds = array<i64: 1152, 128>}, {pipeline_mode = #tpu.pipeline_mode<synchronous>, transform_indices = @transform_5, window_bounds = array<i64: 1, 128>}, {pipeline_mode = #tpu.pipeline_mode<synchronous>, transform_indices = @transform_6, window_bounds = array<i64: 1, 128>}, {transform_indices = @transform_7, window_bounds = array<i64: 1, 64, 128>}]} {
    %cst = arith.constant 0.000000e+00 : bf16
    %0 = vector.broadcast %cst : bf16 to vector<18x18x128xbf16>
    %c0 = arith.constant 0 : index
    %c0_0 = arith.constant 0 : index
    %c0_1 = arith.constant 0 : index
    %1 = vector.load %arg10[%c0, %c0_0, %c0_1] : memref<18x18x128xbf16, #tpu.memory_space<vmem>>, vector<18x18x128xbf16>
    tpu.vector_store %arg10[%c0, %c0_0, %c0_1], %0 {strides = array<i32>} : memref<18x18x128xbf16, #tpu.memory_space<vmem>>, vector<18x18x128xbf16>,
    %c0_2 = arith.constant 0 : index
    %c0_3 = arith.constant 0 : index
    %c0_4 = arith.constant 0 : index
    %2 = vector.load %arg1[%c0_2, %c0_3, %c0_4] : memref<1x1024x32xbf16, #tpu.memory_space<vmem>>, vector<1x1024x32xbf16>
    %3 = vector.shape_cast %2 : vector<1x1024x32xbf16> to vector<1024x32xbf16>
    %c0_5 = arith.constant 0 : index
    %c0_6 = arith.constant 0 : index
    %4 = vector.load %arg2[%c0_5, %c0_6] : memref<32x128xbf16, #tpu.memory_space<vmem>>, vector<32x128xbf16>
    %cst_7 = arith.constant dense<0.000000e+00> : vector<1024x128xf32>
    %5 = tpu.matmul %3, %4, %cst_7 {dimension_numbers = #tpu.dot_dimension_numbers<[1], [0], [0], [1], [0, 0, 1, 1], [], []>} : vector<1024x32xbf16>, vector<32x128xbf16>, vector<1024x128xf32> -> vector<1024x128xf32>
    %c0_8 = arith.constant 0 : index
    %c0_9 = arith.constant 0 : index
    %6 = vector.load %arg3[%c0_8, %c0_9] : memref<1x128xf32, #tpu.memory_space<vmem>>, vector<1x128xf32>
    %7 = vector.broadcast %6 : vector<1x128xf32> to vector<1024x128xf32>
    %8 = arith.mulf %5, %7 : vector<1024x128xf32>
    %c0_10 = arith.constant 0 : index
    %c0_11 = arith.constant 0 : index
    %9 = vector.load %arg4[%c0_10, %c0_11] : memref<1x128xf32, #tpu.memory_space<vmem>>, vector<1x128xf32>
    %10 = vector.broadcast %9 : vector<1x128xf32> to vector<1024x128xf32>
    %11 = arith.addf %8, %10 : vector<1024x128xf32>
    %cst_12 = arith.constant 0.000000e+00 : f32
    %12 = vector.broadcast %cst_12 : f32 to vector<1024x128xf32>
    %13 = arith.maximumf %11, %12 : vector<1024x128xf32>
    %14 = vector.shape_cast %13 : vector<1024x128xf32> to vector<16x2x32x128xf32>
    %15 = vector.extract_strided_slice %14 {offsets = [0, 0, 0, 0], sizes = [16, 1, 32, 128], strides = [1, 1, 1, 1]} : vector<16x2x32x128xf32> to vector<16x1x32x128xf32>
    %16 = vector.shape_cast %15 : vector<16x1x32x128xf32> to vector<16x32x128xf32>
    %17 = vector.extract_strided_slice %14 {offsets = [0, 1, 0, 0], sizes = [16, 1, 32, 128], strides = [1, 1, 1, 1]} : vector<16x2x32x128xf32> to vector<16x1x32x128xf32>
    %18 = vector.shape_cast %17 : vector<16x1x32x128xf32> to vector<16x32x128xf32>
    %19 = arith.maximumf %16, %18 : vector<16x32x128xf32>
    %c0_13 = arith.constant 0 : index
    %c0_14 = arith.constant 0 : index
    %c0_15 = arith.constant 0 : index
    %20 = vector.load %arg9[%c0_13, %c0_14, %c0_15] : memref<16x32x128xf32, #tpu.memory_space<vmem>>, vector<16x32x128xf32>
    tpu.vector_store %arg9[%c0_13, %c0_14, %c0_15], %19 {strides = array<i32>} : memref<16x32x128xf32, #tpu.memory_space<vmem>>, vector<16x32x128xf32>,
    %c0_16 = arith.constant 0 : index
    %c0_17 = arith.constant 0 : index
    %c0_18 = arith.constant 0 : index
    %21 = tpu.strided_load %arg9[%c0_16, %c0_17, %c0_18] {strides = array<i32: 1, 2, 1>} : memref<16x32x128xf32, #tpu.memory_space<vmem>>, vector<16x16x128xf32>
    %c0_19 = arith.constant 0 : index
    %c1 = arith.constant 1 : index
    %c0_20 = arith.constant 0 : index
    %22 = tpu.strided_load %arg9[%c0_19, %c1, %c0_20] {strides = array<i32: 1, 2, 1>} : memref<16x32x128xf32, #tpu.memory_space<vmem>>, vector<16x16x128xf32>
    %23 = arith.maximumf %21, %22 : vector<16x16x128xf32>
    %24 = arith.truncf %23 : vector<16x16x128xf32> to vector<16x16x128xbf16>
    %c1_21 = arith.constant 1 : index
    %c1_22 = arith.constant 1 : index
    %c0_23 = arith.constant 0 : index
    %25 = vector.load %arg10[%c1_21, %c1_22, %c0_23] : memref<18x18x128xbf16, #tpu.memory_space<vmem>>, vector<16x16x128xbf16>
    tpu.vector_store %arg10[%c1_21, %c1_22, %c0_23], %24 {strides = array<i32>} : memref<18x18x128xbf16, #tpu.memory_space<vmem>>, vector<16x16x128xbf16>,
    %c0_24 = arith.constant 0 : index
    %c0_25 = arith.constant 0 : index
    %c0_26 = arith.constant 0 : index
    %26 = vector.load %arg10[%c0_24, %c0_25, %c0_26] : memref<18x18x128xbf16, #tpu.memory_space<vmem>>, vector<16x16x128xbf16>
    %27 = vector.shape_cast %26 : vector<16x16x128xbf16> to vector<256x128xbf16>
    %c0_27 = arith.constant 0 : index
    %c0_28 = arith.constant 0 : index
    %28 = vector.load %arg11[%c0_27, %c0_28] : memref<256x1152xbf16, #tpu.memory_space<vmem>>, vector<256x128xbf16>
    tpu.vector_store %arg11[%c0_27, %c0_28], %27 {strides = array<i32>} : memref<256x1152xbf16, #tpu.memory_space<vmem>>, vector<256x128xbf16>,
    %c0_29 = arith.constant 0 : index
    %c1_30 = arith.constant 1 : index
    %c0_31 = arith.constant 0 : index
    %29 = vector.load %arg10[%c0_29, %c1_30, %c0_31] : memref<18x18x128xbf16, #tpu.memory_space<vmem>>, vector<16x16x128xbf16>
    %30 = vector.shape_cast %29 : vector<16x16x128xbf16> to vector<256x128xbf16>
    %c0_32 = arith.constant 0 : index
    %c128 = arith.constant 128 : index
    %31 = vector.load %arg11[%c0_32, %c128] : memref<256x1152xbf16, #tpu.memory_space<vmem>>, vector<256x128xbf16>
    tpu.vector_store %arg11[%c0_32, %c128], %30 {strides = array<i32>} : memref<256x1152xbf16, #tpu.memory_space<vmem>>, vector<256x128xbf16>,
    %c0_33 = arith.constant 0 : index
    %c2 = arith.constant 2 : index
    %c0_34 = arith.constant 0 : index
    %32 = vector.load %arg10[%c0_33, %c2, %c0_34] : memref<18x18x128xbf16, #tpu.memory_space<vmem>>, vector<16x16x128xbf16>
    %33 = vector.shape_cast %32 : vector<16x16x128xbf16> to vector<256x128xbf16>
    %c0_35 = arith.constant 0 : index
    %c256 = arith.constant 256 : index
    %34 = vector.load %arg11[%c0_35, %c256] : memref<256x1152xbf16, #tpu.memory_space<vmem>>, vector<256x128xbf16>
    tpu.vector_store %arg11[%c0_35, %c256], %33 {strides = array<i32>} : memref<256x1152xbf16, #tpu.memory_space<vmem>>, vector<256x128xbf16>,
    %c1_36 = arith.constant 1 : index
    %c0_37 = arith.constant 0 : index
    %c0_38 = arith.constant 0 : index
    %35 = vector.load %arg10[%c1_36, %c0_37, %c0_38] : memref<18x18x128xbf16, #tpu.memory_space<vmem>>, vector<16x16x128xbf16>
    %36 = vector.shape_cast %35 : vector<16x16x128xbf16> to vector<256x128xbf16>
    %c0_39 = arith.constant 0 : index
    %c384 = arith.constant 384 : index
    %37 = vector.load %arg11[%c0_39, %c384] : memref<256x1152xbf16, #tpu.memory_space<vmem>>, vector<256x128xbf16>
    tpu.vector_store %arg11[%c0_39, %c384], %36 {strides = array<i32>} : memref<256x1152xbf16, #tpu.memory_space<vmem>>, vector<256x128xbf16>,
    %c1_40 = arith.constant 1 : index
    %c1_41 = arith.constant 1 : index
    %c0_42 = arith.constant 0 : index
    %38 = vector.load %arg10[%c1_40, %c1_41, %c0_42] : memref<18x18x128xbf16, #tpu.memory_space<vmem>>, vector<16x16x128xbf16>
    %39 = vector.shape_cast %38 : vector<16x16x128xbf16> to vector<256x128xbf16>
    %c0_43 = arith.constant 0 : index
    %c512 = arith.constant 512 : index
    %40 = vector.load %arg11[%c0_43, %c512] : memref<256x1152xbf16, #tpu.memory_space<vmem>>, vector<256x128xbf16>
    tpu.vector_store %arg11[%c0_43, %c512], %39 {strides = array<i32>} : memref<256x1152xbf16, #tpu.memory_space<vmem>>, vector<256x128xbf16>,
    %c1_44 = arith.constant 1 : index
    %c2_45 = arith.constant 2 : index
    %c0_46 = arith.constant 0 : index
    %41 = vector.load %arg10[%c1_44, %c2_45, %c0_46] : memref<18x18x128xbf16, #tpu.memory_space<vmem>>, vector<16x16x128xbf16>
    %42 = vector.shape_cast %41 : vector<16x16x128xbf16> to vector<256x128xbf16>
    %c0_47 = arith.constant 0 : index
    %c640 = arith.constant 640 : index
    %43 = vector.load %arg11[%c0_47, %c640] : memref<256x1152xbf16, #tpu.memory_space<vmem>>, vector<256x128xbf16>
    tpu.vector_store %arg11[%c0_47, %c640], %42 {strides = array<i32>} : memref<256x1152xbf16, #tpu.memory_space<vmem>>, vector<256x128xbf16>,
    %c2_48 = arith.constant 2 : index
    %c0_49 = arith.constant 0 : index
    %c0_50 = arith.constant 0 : index
    %44 = vector.load %arg10[%c2_48, %c0_49, %c0_50] : memref<18x18x128xbf16, #tpu.memory_space<vmem>>, vector<16x16x128xbf16>
    %45 = vector.shape_cast %44 : vector<16x16x128xbf16> to vector<256x128xbf16>
    %c0_51 = arith.constant 0 : index
    %c768 = arith.constant 768 : index
    %46 = vector.load %arg11[%c0_51, %c768] : memref<256x1152xbf16, #tpu.memory_space<vmem>>, vector<256x128xbf16>
    tpu.vector_store %arg11[%c0_51, %c768], %45 {strides = array<i32>} : memref<256x1152xbf16, #tpu.memory_space<vmem>>, vector<256x128xbf16>,
    %c2_52 = arith.constant 2 : index
    %c1_53 = arith.constant 1 : index
    %c0_54 = arith.constant 0 : index
    %47 = vector.load %arg10[%c2_52, %c1_53, %c0_54] : memref<18x18x128xbf16, #tpu.memory_space<vmem>>, vector<16x16x128xbf16>
    %48 = vector.shape_cast %47 : vector<16x16x128xbf16> to vector<256x128xbf16>
    %c0_55 = arith.constant 0 : index
    %c896 = arith.constant 896 : index
    %49 = vector.load %arg11[%c0_55, %c896] : memref<256x1152xbf16, #tpu.memory_space<vmem>>, vector<256x128xbf16>
    tpu.vector_store %arg11[%c0_55, %c896], %48 {strides = array<i32>} : memref<256x1152xbf16, #tpu.memory_space<vmem>>, vector<256x128xbf16>,
    %c2_56 = arith.constant 2 : index
    %c2_57 = arith.constant 2 : index
    %c0_58 = arith.constant 0 : index
    %50 = vector.load %arg10[%c2_56, %c2_57, %c0_58] : memref<18x18x128xbf16, #tpu.memory_space<vmem>>, vector<16x16x128xbf16>
    %51 = vector.shape_cast %50 : vector<16x16x128xbf16> to vector<256x128xbf16>
    %c0_59 = arith.constant 0 : index
    %c1024 = arith.constant 1024 : index
    %52 = vector.load %arg11[%c0_59, %c1024] : memref<256x1152xbf16, #tpu.memory_space<vmem>>, vector<256x128xbf16>
    tpu.vector_store %arg11[%c0_59, %c1024], %51 {strides = array<i32>} : memref<256x1152xbf16, #tpu.memory_space<vmem>>, vector<256x128xbf16>,
    %c0_60 = arith.constant 0 : index
    %c0_61 = arith.constant 0 : index
    %53 = vector.load %arg11[%c0_60, %c0_61] : memref<256x1152xbf16, #tpu.memory_space<vmem>>, vector<256x1152xbf16>
    %c0_62 = arith.constant 0 : index
    %c0_63 = arith.constant 0 : index
    %54 = vector.load %arg5[%c0_62, %c0_63] : memref<1152x128xbf16, #tpu.memory_space<vmem>>, vector<1152x128xbf16>
    %cst_64 = arith.constant dense<0.000000e+00> : vector<256x128xf32>
    %55 = tpu.matmul %53, %54, %cst_64 {dimension_numbers = #tpu.dot_dimension_numbers<[1], [0], [0], [1], [0, 0, 1, 1], [], []>} : vector<256x1152xbf16>, vector<1152x128xbf16>, vector<256x128xf32> -> vector<256x128xf32>
    %c0_65 = arith.constant 0 : index
    %c0_66 = arith.constant 0 : index
    %56 = vector.load %arg6[%c0_65, %c0_66] : memref<1x128xf32, #tpu.memory_space<vmem>>, vector<1x128xf32>
    %57 = vector.broadcast %56 : vector<1x128xf32> to vector<256x128xf32>
    %58 = arith.mulf %55, %57 : vector<256x128xf32>
    %c0_67 = arith.constant 0 : index
    %c0_68 = arith.constant 0 : index
    %59 = vector.load %arg7[%c0_67, %c0_68] : memref<1x128xf32, #tpu.memory_space<vmem>>, vector<1x128xf32>
    %60 = vector.broadcast %59 : vector<1x128xf32> to vector<256x128xf32>
    %61 = arith.addf %58, %60 : vector<256x128xf32>
    %cst_69 = arith.constant 0.000000e+00 : f32
    %62 = vector.broadcast %cst_69 : f32 to vector<256x128xf32>
    %63 = arith.maximumf %61, %62 : vector<256x128xf32>
    %64 = vector.shape_cast %63 : vector<256x128xf32> to vector<8x2x16x128xf32>
    %65 = vector.extract_strided_slice %64 {offsets = [0, 0, 0, 0], sizes = [8, 1, 16, 128], strides = [1, 1, 1, 1]} : vector<8x2x16x128xf32> to vector<8x1x16x128xf32>
    %66 = vector.shape_cast %65 : vector<8x1x16x128xf32> to vector<8x16x128xf32>
    %67 = vector.extract_strided_slice %64 {offsets = [0, 1, 0, 0], sizes = [8, 1, 16, 128], strides = [1, 1, 1, 1]} : vector<8x2x16x128xf32> to vector<8x1x16x128xf32>
    %68 = vector.shape_cast %67 : vector<8x1x16x128xf32> to vector<8x16x128xf32>
    %69 = arith.maximumf %66, %68 : vector<8x16x128xf32>
    %c0_70 = arith.constant 0 : index
    %c0_71 = arith.constant 0 : index
    %c0_72 = arith.constant 0 : index
    %70 = vector.load %arg12[%c0_70, %c0_71, %c0_72] : memref<8x16x128xf32, #tpu.memory_space<vmem>>, vector<8x16x128xf32>
    tpu.vector_store %arg12[%c0_70, %c0_71, %c0_72], %69 {strides = array<i32>} : memref<8x16x128xf32, #tpu.memory_space<vmem>>, vector<8x16x128xf32>,
    %c0_73 = arith.constant 0 : index
    %c0_74 = arith.constant 0 : index
    %c0_75 = arith.constant 0 : index
    %71 = tpu.strided_load %arg12[%c0_73, %c0_74, %c0_75] {strides = array<i32: 1, 2, 1>} : memref<8x16x128xf32, #tpu.memory_space<vmem>>, vector<8x8x128xf32>
    %c0_76 = arith.constant 0 : index
    %c1_77 = arith.constant 1 : index
    %c0_78 = arith.constant 0 : index
    %72 = tpu.strided_load %arg12[%c0_76, %c1_77, %c0_78] {strides = array<i32: 1, 2, 1>} : memref<8x16x128xf32, #tpu.memory_space<vmem>>, vector<8x8x128xf32>
    %73 = arith.maximumf %71, %72 : vector<8x8x128xf32>
    %74 = vector.shape_cast %73 : vector<8x8x128xf32> to vector<64x128xf32>
    %75 = arith.truncf %74 : vector<64x128xf32> to vector<64x128xbf16>
    %c0_79 = arith.constant 0 : index
    %c0_80 = arith.constant 0 : index
    %c0_81 = arith.constant 0 : index
    %76 = vector.load %arg8[%c0_79, %c0_80, %c0_81] : memref<1x64x128xbf16, #tpu.memory_space<vmem>>, vector<1x64x128xbf16>
    %77 = vector.shape_cast %76 : vector<1x64x128xbf16> to vector<64x128xbf16>
    %78 = vector.shape_cast %75 : vector<64x128xbf16> to vector<1x64x128xbf16>
    tpu.vector_store %arg8[%c0_79, %c0_80, %c0_81], %78 {strides = array<i32>} : memref<1x64x128xbf16, #tpu.memory_space<vmem>>, vector<1x64x128xbf16>,
    return
  }
  func.func @transform_0(%arg0: i32) -> (i32, i32, i32) {
    %c0_i32 = arith.constant 0 : i32
    %c0_i32_0 = arith.constant 0 : i32
    %c0_i32_1 = arith.constant 0 : i32
    return %arg0, %c0_i32, %c0_i32_0 : i32, i32, i32
  }
  func.func @transform_1(%arg0: i32) -> (i32, i32) {
    %c0_i32 = arith.constant 0 : i32
    %c0_i32_0 = arith.constant 0 : i32
    %c0_i32_1 = arith.constant 0 : i32
    return %c0_i32, %c0_i32_0 : i32, i32
  }
  func.func @transform_2(%arg0: i32) -> (i32, i32) {
    %c0_i32 = arith.constant 0 : i32
    %c0_i32_0 = arith.constant 0 : i32
    %c0_i32_1 = arith.constant 0 : i32
    return %c0_i32, %c0_i32_0 : i32, i32
  }
  func.func @transform_3(%arg0: i32) -> (i32, i32) {
    %c0_i32 = arith.constant 0 : i32
    %c0_i32_0 = arith.constant 0 : i32
    %c0_i32_1 = arith.constant 0 : i32
    return %c0_i32, %c0_i32_0 : i32, i32
  }
  func.func @transform_4(%arg0: i32) -> (i32, i32) {
    %c0_i32 = arith.constant 0 : i32
    %c0_i32_0 = arith.constant 0 : i32
    %c0_i32_1 = arith.constant 0 : i32
    return %c0_i32, %c0_i32_0 : i32, i32
  }
  func.func @transform_5(%arg0: i32) -> (i32, i32) {
    %c0_i32 = arith.constant 0 : i32
    %c0_i32_0 = arith.constant 0 : i32
    %c0_i32_1 = arith.constant 0 : i32
    return %c0_i32, %c0_i32_0 : i32, i32
  }
  func.func @transform_6(%arg0: i32) -> (i32, i32) {
    %c0_i32 = arith.constant 0 : i32
    %c0_i32_0 = arith.constant 0 : i32
    %c0_i32_1 = arith.constant 0 : i32
    return %c0_i32, %c0_i32_0 : i32, i32
  }
  func.func @transform_7(%arg0: i32) -> (i32, i32, i32) {
    %c0_i32 = arith.constant 0 : i32
    %c0_i32_0 = arith.constant 0 : i32
    %c0_i32_1 = arith.constant 0 : i32
    return %arg0, %c0_i32, %c0_i32_0 : i32, i32, i32
  }
}

module attributes {stable_mosaic.version = 11 : i64} {
  func.func @_mlp_head_kernel(%arg0: i32, %arg1: memref<8x8192xbf16, #tpu.memory_space<vmem>>, %arg2: memref<8192x128xbf16, #tpu.memory_space<vmem>>, %arg3: memref<1x128xf32, #tpu.memory_space<vmem>>, %arg4: memref<1x128xf32, #tpu.memory_space<vmem>>, %arg5: memref<128x128xbf16, #tpu.memory_space<vmem>>, %arg6: memref<1x128xf32, #tpu.memory_space<vmem>>, %arg7: memref<1x128xf32, #tpu.memory_space<vmem>>, %arg8: memref<128x128xbf16, #tpu.memory_space<vmem>>, %arg9: memref<1x128xf32, #tpu.memory_space<vmem>>, %arg10: memref<8x128xf32, #tpu.memory_space<vmem>>) attributes {dimension_semantics = [#tpu.dimension_semantics<parallel>], iteration_bounds = array<i64: 1>, scalar_prefetch = 0 : i64, scratch_operands = 0 : i64, tpu.core_type = #tpu.core_type<tc>, window_params = [{transform_indices = @transform_0, window_bounds = array<i64: 8, 8192>}, {pipeline_mode = #tpu.pipeline_mode<synchronous>, transform_indices = @transform_1, window_bounds = array<i64: 8192, 128>}, {pipeline_mode = #tpu.pipeline_mode<synchronous>, transform_indices = @transform_2, window_bounds = array<i64: 1, 128>}, {pipeline_mode = #tpu.pipeline_mode<synchronous>, transform_indices = @transform_3, window_bounds = array<i64: 1, 128>}, {pipeline_mode = #tpu.pipeline_mode<synchronous>, transform_indices = @transform_4, window_bounds = array<i64: 128, 128>}, {pipeline_mode = #tpu.pipeline_mode<synchronous>, transform_indices = @transform_5, window_bounds = array<i64: 1, 128>}, {pipeline_mode = #tpu.pipeline_mode<synchronous>, transform_indices = @transform_6, window_bounds = array<i64: 1, 128>}, {pipeline_mode = #tpu.pipeline_mode<synchronous>, transform_indices = @transform_7, window_bounds = array<i64: 128, 128>}, {pipeline_mode = #tpu.pipeline_mode<synchronous>, transform_indices = @transform_8, window_bounds = array<i64: 1, 128>}, {transform_indices = @transform_9, window_bounds = array<i64: 8, 128>}]} {
    %c0 = arith.constant 0 : index
    %c0_0 = arith.constant 0 : index
    %0 = vector.load %arg1[%c0, %c0_0] : memref<8x8192xbf16, #tpu.memory_space<vmem>>, vector<8x8192xbf16>
    %c0_1 = arith.constant 0 : index
    %c0_2 = arith.constant 0 : index
    %1 = vector.load %arg2[%c0_1, %c0_2] : memref<8192x128xbf16, #tpu.memory_space<vmem>>, vector<8192x128xbf16>
    %cst = arith.constant dense<0.000000e+00> : vector<8x128xf32>
    %2 = tpu.matmul %0, %1, %cst {dimension_numbers = #tpu.dot_dimension_numbers<[1], [0], [0], [1], [0, 0, 1, 1], [], []>} : vector<8x8192xbf16>, vector<8192x128xbf16>, vector<8x128xf32> -> vector<8x128xf32>
    %c0_3 = arith.constant 0 : index
    %c0_4 = arith.constant 0 : index
    %3 = vector.load %arg3[%c0_3, %c0_4] : memref<1x128xf32, #tpu.memory_space<vmem>>, vector<1x128xf32>
    %4 = vector.broadcast %3 : vector<1x128xf32> to vector<8x128xf32>
    %5 = arith.mulf %2, %4 : vector<8x128xf32>
    %c0_5 = arith.constant 0 : index
    %c0_6 = arith.constant 0 : index
    %6 = vector.load %arg4[%c0_5, %c0_6] : memref<1x128xf32, #tpu.memory_space<vmem>>, vector<1x128xf32>
    %7 = vector.broadcast %6 : vector<1x128xf32> to vector<8x128xf32>
    %8 = arith.addf %5, %7 : vector<8x128xf32>
    %cst_7 = arith.constant 0.000000e+00 : f32
    %9 = vector.broadcast %cst_7 : f32 to vector<8x128xf32>
    %10 = arith.maximumf %8, %9 : vector<8x128xf32>
    %11 = arith.truncf %10 : vector<8x128xf32> to vector<8x128xbf16>
    %c0_8 = arith.constant 0 : index
    %c0_9 = arith.constant 0 : index
    %12 = vector.load %arg5[%c0_8, %c0_9] : memref<128x128xbf16, #tpu.memory_space<vmem>>, vector<128x128xbf16>
    %cst_10 = arith.constant dense<0.000000e+00> : vector<8x128xf32>
    %13 = tpu.matmul %11, %12, %cst_10 {dimension_numbers = #tpu.dot_dimension_numbers<[1], [0], [0], [1], [0, 0, 1, 1], [], []>} : vector<8x128xbf16>, vector<128x128xbf16>, vector<8x128xf32> -> vector<8x128xf32>
    %c0_11 = arith.constant 0 : index
    %c0_12 = arith.constant 0 : index
    %14 = vector.load %arg6[%c0_11, %c0_12] : memref<1x128xf32, #tpu.memory_space<vmem>>, vector<1x128xf32>
    %15 = vector.broadcast %14 : vector<1x128xf32> to vector<8x128xf32>
    %16 = arith.mulf %13, %15 : vector<8x128xf32>
    %c0_13 = arith.constant 0 : index
    %c0_14 = arith.constant 0 : index
    %17 = vector.load %arg7[%c0_13, %c0_14] : memref<1x128xf32, #tpu.memory_space<vmem>>, vector<1x128xf32>
    %18 = vector.broadcast %17 : vector<1x128xf32> to vector<8x128xf32>
    %19 = arith.addf %16, %18 : vector<8x128xf32>
    %cst_15 = arith.constant 0.000000e+00 : f32
    %20 = vector.broadcast %cst_15 : f32 to vector<8x128xf32>
    %21 = arith.maximumf %19, %20 : vector<8x128xf32>
    %22 = arith.truncf %21 : vector<8x128xf32> to vector<8x128xbf16>
    %c0_16 = arith.constant 0 : index
    %c0_17 = arith.constant 0 : index
    %23 = vector.load %arg8[%c0_16, %c0_17] : memref<128x128xbf16, #tpu.memory_space<vmem>>, vector<128x128xbf16>
    %cst_18 = arith.constant dense<0.000000e+00> : vector<8x128xf32>
    %24 = tpu.matmul %22, %23, %cst_18 {dimension_numbers = #tpu.dot_dimension_numbers<[1], [0], [0], [1], [0, 0, 1, 1], [], []>} : vector<8x128xbf16>, vector<128x128xbf16>, vector<8x128xf32> -> vector<8x128xf32>
    %c0_19 = arith.constant 0 : index
    %c0_20 = arith.constant 0 : index
    %25 = vector.load %arg9[%c0_19, %c0_20] : memref<1x128xf32, #tpu.memory_space<vmem>>, vector<1x128xf32>
    %26 = vector.broadcast %25 : vector<1x128xf32> to vector<8x128xf32>
    %27 = arith.addf %24, %26 : vector<8x128xf32>
    %c0_21 = arith.constant 0 : index
    %c0_22 = arith.constant 0 : index
    %28 = vector.load %arg10[%c0_21, %c0_22] : memref<8x128xf32, #tpu.memory_space<vmem>>, vector<8x128xf32>
    tpu.vector_store %arg10[%c0_21, %c0_22], %27 {strides = array<i32>} : memref<8x128xf32, #tpu.memory_space<vmem>>, vector<8x128xf32>,
    return
  }
  func.func @transform_0(%arg0: i32) -> (i32, i32) {
    %c0_i32 = arith.constant 0 : i32
    %c0_i32_0 = arith.constant 0 : i32
    return %arg0, %c0_i32 : i32, i32
  }
  func.func @transform_1(%arg0: i32) -> (i32, i32) {
    %c0_i32 = arith.constant 0 : i32
    %c0_i32_0 = arith.constant 0 : i32
    %c0_i32_1 = arith.constant 0 : i32
    return %c0_i32, %c0_i32_0 : i32, i32
  }
  func.func @transform_2(%arg0: i32) -> (i32, i32) {
    %c0_i32 = arith.constant 0 : i32
    %c0_i32_0 = arith.constant 0 : i32
    %c0_i32_1 = arith.constant 0 : i32
    return %c0_i32, %c0_i32_0 : i32, i32
  }
  func.func @transform_3(%arg0: i32) -> (i32, i32) {
    %c0_i32 = arith.constant 0 : i32
    %c0_i32_0 = arith.constant 0 : i32
    %c0_i32_1 = arith.constant 0 : i32
    return %c0_i32, %c0_i32_0 : i32, i32
  }
  func.func @transform_4(%arg0: i32) -> (i32, i32) {
    %c0_i32 = arith.constant 0 : i32
    %c0_i32_0 = arith.constant 0 : i32
    %c0_i32_1 = arith.constant 0 : i32
    return %c0_i32, %c0_i32_0 : i32, i32
  }
  func.func @transform_5(%arg0: i32) -> (i32, i32) {
    %c0_i32 = arith.constant 0 : i32
    %c0_i32_0 = arith.constant 0 : i32
    %c0_i32_1 = arith.constant 0 : i32
    return %c0_i32, %c0_i32_0 : i32, i32
  }
  func.func @transform_6(%arg0: i32) -> (i32, i32) {
    %c0_i32 = arith.constant 0 : i32
    %c0_i32_0 = arith.constant 0 : i32
    %c0_i32_1 = arith.constant 0 : i32
    return %c0_i32, %c0_i32_0 : i32, i32
  }
  func.func @transform_7(%arg0: i32) -> (i32, i32) {
    %c0_i32 = arith.constant 0 : i32
    %c0_i32_0 = arith.constant 0 : i32
    %c0_i32_1 = arith.constant 0 : i32
    return %c0_i32, %c0_i32_0 : i32, i32
  }
  func.func @transform_8(%arg0: i32) -> (i32, i32) {
    %c0_i32 = arith.constant 0 : i32
    %c0_i32_0 = arith.constant 0 : i32
    %c0_i32_1 = arith.constant 0 : i32
    return %c0_i32, %c0_i32_0 : i32, i32
  }
  func.func @transform_9(%arg0: i32) -> (i32, i32) {
    %c0_i32 = arith.constant 0 : i32
    %c0_i32_0 = arith.constant 0 : i32
    return %arg0, %c0_i32 : i32, i32
  }
}

</mosaic_0001>

<llo_original>
// kernel: _lambda_.3
$region0: #{_lambda_.3}
  #allocation0 [shape = 'u32[]', space=smem, size = 0x4, offset = 0x4, fixed_abs, tag = 'smem constant byte address 0x4 - core index']
  #allocation1 [shape = 'u32[72,128]{1,0:T(1,128)}', space=vmem, size = 0x9000, scoped, tag = 'internal scratch']
  %s0 = inlined_call_operand.vmem [shape: bf16[8,8192], index: 0, kind: input, shape index: {}]
  %s1 = inlined_call_operand.vmem [shape: bf16[8192,128], index: 1, kind: input, shape index: {}]
  %s2 = inlined_call_operand.vmem [shape: f32[1,128], index: 2, kind: input, shape index: {}]
  %s3 = inlined_call_operand.vmem [shape: f32[1,128], index: 3, kind: input, shape index: {}]
  %s4 = inlined_call_operand.vmem [shape: bf16[128,128], index: 4, kind: input, shape index: {}]
  %s5 = inlined_call_operand.vmem [shape: f32[1,128], index: 5, kind: input, shape index: {}]
  %s6 = inlined_call_operand.vmem [shape: f32[1,128], index: 6, kind: input, shape index: {}]
  %s7 = inlined_call_operand.vmem [shape: bf16[128,128], index: 7, kind: input, shape index: {}]
  %s8 = inlined_call_operand.vmem [shape: f32[1,128], index: 8, kind: input, shape index: {}]
  %s9 = inlined_call_operand.vmem [shape: f32[8,128], index: 9, kind: output, shape index: {}]
  %s10 = sld [smem:[#allocation0]]
  $region46: #{_lambda_.3} parent=0
    _
  %s12 = ssub.s32 1, %s10
  %s13 = scalar_select 0, %s12, %s10
  // Predicated region
  $region2: #{_lambda_.3} parent=0 // pred_check
    _
  $region3: #{_lambda_.3} parent=0 // pred_check_branch
    %15 = sbr.rel (0) target = $region5
  $region4: #{_lambda_.3} parent=0 // pred_region
    _
  $region5: #{_lambda_.3} parent=0 // pred_fallthru
    _
  // Predicated region
  $region6: #{_lambda_.3} parent=0 // pred_check
    _
  $region7: #{_lambda_.3} parent=0 // pred_check_branch
    %17 = sbr.rel (0) target = $region9
  $region8: #{_lambda_.3} parent=0 // pred_region
    _
  $region9: #{_lambda_.3} parent=0 // pred_fallthru
    _
  // Predicated region
  $region10: #{_lambda_.3} parent=0 // pred_check
    _
  $region11: #{_lambda_.3} parent=0 // pred_check_branch
    %19 = sbr.rel (0) target = $region13
  $region12: #{_lambda_.3} parent=0 // pred_region
    _
  $region13: #{_lambda_.3} parent=0 // pred_fallthru
    _
  // Predicated region
  $region14: #{_lambda_.3} parent=0 // pred_check
    _
  $region15: #{_lambda_.3} parent=0 // pred_check_branch
    %21 = sbr.rel (0) target = $region17
  $region16: #{_lambda_.3} parent=0 // pred_region
    _
  $region17: #{_lambda_.3} parent=0 // pred_fallthru
    _
  // Predicated region
  $region18: #{_lambda_.3} parent=0 // pred_check
    _
  $region19: #{_lambda_.3} parent=0 // pred_check_branch
    %23 = sbr.rel (0) target = $region21
  $region20: #{_lambda_.3} parent=0 // pred_region
    _
  $region21: #{_lambda_.3} parent=0 // pred_fallthru
    _
  // Predicated region
  $region22: #{_lambda_.3} parent=0 // pred_check
    _
  $region23: #{_lambda_.3} parent=0 // pred_check_branch
    %25 = sbr.rel (0) target = $region25
  $region24: #{_lambda_.3} parent=0 // pred_region
    _
  $region25: #{_lambda_.3} parent=0 // pred_fallthru
    _
  // Predicated region
  $region26: #{_lambda_.3} parent=0 // pred_check
    _
  $region27: #{_lambda_.3} parent=0 // pred_check_branch
    %27 = sbr.rel (0) target = $region29
  $region28: #{_lambda_.3} parent=0 // pred_region
    _
  $region29: #{_lambda_.3} parent=0 // pred_fallthru
    _
  // Predicated region
  $region30: #{_lambda_.3} parent=0 // pred_check
    _
  $region31: #{_lambda_.3} parent=0 // pred_check_branch
    %29 = sbr.rel (0) target = $region33
  $region32: #{_lambda_.3} parent=0 // pred_region
    _
  $region33: #{_lambda_.3} parent=0 // pred_fallthru
    _
  // Predicated region
  $region34: #{_lambda_.3} parent=0 // pred_check
    _
  $region35: #{_lambda_.3} parent=0 // pred_check_branch
    %31 = sbr.rel (0) target = $region37
  $region36: #{_lambda_.3} parent=0 // pred_region
    _
  $region37: #{_lambda_.3} parent=0 // pred_fallthru
    _
  %v32 = vld [vmem:[%s0] sm:$0xff]
  %v33 = vld [vmem:[%s0 + $0x8] sm:$0xff]
  %v34 = vld [vmem:[%s0 + $0x10] sm:$0xff]
  %v35 = vld [vmem:[%s0 + $0x18] sm:$0xff]
  %v36 = vld [vmem:[%s0 + $0x20] sm:$0xff]
  %v37 = vld [vmem:[%s0 + $0x28] sm:$0xff]
  %v38 = vld [vmem:[%s0 + $0x30] sm:$0xff]
  %v39 = vld [vmem:[%s0 + $0x38] sm:$0xff]
  %v40 = vld [vmem:[%s0 + $0x40] sm:$0xff]
  %v41 = vld [vmem:[%s0 + $0x48] sm:$0xff]
  %v42 = vld [vmem:[%s0 + $0x50] sm:$0xff]
  %v43 = vld [vmem:[%s0 + $0x58] sm:$0xff]
  %v44 = vld [vmem:[%s0 + $0x60] sm:$0xff]
  %v45 = vld [vmem:[%s0 + $0x68] sm:$0xff]
  %v46 = vld [vmem:[%s0 + $0x70] sm:$0xff]
  %v47 = vld [vmem:[%s0 + $0x78] sm:$0xff]
  %v48 = vld [vmem:[%s0 + $0x80] sm:$0xff]
  %v49 = vld [vmem:[%s0 + $0x88] sm:$0xff]
  %v50 = vld [vmem:[%s0 + $0x90] sm:$0xff]
  %v51 = vld [vmem:[%s0 + $0x98] sm:$0xff]
  %v52 = vld [vmem:[%s0 + $0xa0] sm:$0xff]
  %v53 = vld [vmem:[%s0 + $0xa8] sm:$0xff]
  %v54 = vld [vmem:[%s0 + $0xb0] sm:$0xff]
  %v55 = vld [vmem:[%s0 + $0xb8] sm:$0xff]
  %v56 = vld [vmem:[%s0 + $0xc0] sm:$0xff]
  %v57 = vld [vmem:[%s0 + $0xc8] sm:$0xff]
  %v58 = vld [vmem:[%s0 + $0xd0] sm:$0xff]
  %v59 = vld [vmem:[%s0 + $0xd8] sm:$0xff]
  %v60 = vld [vmem:[%s0 + $0xe0] sm:$0xff]
  %v61 = vld [vmem:[%s0 + $0xe8] sm:$0xff]
  %v62 = vld [vmem:[%s0 + $0xf0] sm:$0xff]
  %v63 = vld [vmem:[%s0 + $0xf8] sm:$0xff]
  %v64 = vld [vmem:[%s1] sm:$0xf]
  %v65 = vld [vmem:[%s1 + $0x4] sm:$0xf]
  %v66 = vld [vmem:[%s1 + $0x8] sm:$0xf]
  %v67 = vld [vmem:[%s1 + $0xc] sm:$0xf]
  %v68 = vld [vmem:[%s1 + $0x10] sm:$0xf]
  %v69 = vld [vmem:[%s1 + $0x14] sm:$0xf]
  %v70 = vld [vmem:[%s1 + $0x18] sm:$0xf]
  %v71 = vld [vmem:[%s1 + $0x1c] sm:$0xf]
  %v72 = vld [vmem:[%s1 + $0x20] sm:$0xf]
  %v73 = vld [vmem:[%s1 + $0x24] sm:$0xf]
  %v74 = vld [vmem:[%s1 + $0x28] sm:$0xf]
  %v75 = vld [vmem:[%s1 + $0x2c] sm:$0xf]
  %v76 = vld [vmem:[%s1 + $0x30] sm:$0xf]
  %v77 = vld [vmem:[%s1 + $0x34] sm:$0xf]
  %v78 = vld [vmem:[%s1 + $0x38] sm:$0xf]
  %v79 = vld [vmem:[%s1 + $0x3c] sm:$0xf]
  %v80 = vld [vmem:[%s1 + $0x40] sm:$0xf]
  %v81 = vld [vmem:[%s1 + $0x44] sm:$0xf]
  %v82 = vld [vmem:[%s1 + $0x48] sm:$0xf]
  %v83 = vld [vmem:[%s1 + $0x4c] sm:$0xf]
  %v84 = vld [vmem:[%s1 + $0x50] sm:$0xf]
  %v85 = vld [vmem:[%s1 + $0x54] sm:$0xf]
  %v86 = vld [vmem:[%s1 + $0x58] sm:$0xf]
  %v87 = vld [vmem:[%s1 + $0x5c] sm:$0xf]
  %v88 = vld [vmem:[%s1 + $0x60] sm:$0xf]
  %v89 = vld [vmem:[%s1 + $0x64] sm:$0xf]
  %v90 = vld [vmem:[%s1 + $0x68] sm:$0xf]
  %v91 = vld [vmem:[%s1 + $0x6c] sm:$0xf]
  %v92 = vld [vmem:[%s1 + $0x70] sm:$0xf]
  %v93 = vld [vmem:[%s1 + $0x74] sm:$0xf]
  %v94 = vld [vmem:[%s1 + $0x78] sm:$0xf]
  %v95 = vld [vmem:[%s1 + $0x7c] sm:$0xf]
  %v96 = vld [vmem:[%s1 + $0x80] sm:$0xf]
  %v97 = vld [vmem:[%s1 + $0x84] sm:$0xf]
  %v98 = vld [vmem:[%s1 + $0x88] sm:$0xf]
  %v99 = vld [vmem:[%s1 + $0x8c] sm:$0xf]
  %v100 = vld [vmem:[%s1 + $0x90] sm:$0xf]
  %v101 = vld [vmem:[%s1 + $0x94] sm:$0xf]
  %v102 = vld [vmem:[%s1 + $0x98] sm:$0xf]
  %v103 = vld [vmem:[%s1 + $0x9c] sm:$0xf]
  %v104 = vld [vmem:[%s1 + $0xa0] sm:$0xf]
  %v105 = vld [vmem:[%s1 + $0xa4] sm:$0xf]
  %v106 = vld [vmem:[%s1 + $0xa8] sm:$0xf]
  %v107 = vld [vmem:[%s1 + $0xac] sm:$0xf]
  %v108 = vld [vmem:[%s1 + $0xb0] sm:$0xf]
  %v109 = vld [vmem:[%s1 + $0xb4] sm:$0xf]
  %v110 = vld [vmem:[%s1 + $0xb8] sm:$0xf]
  %v111 = vld [vmem:[%s1 + $0xbc] sm:$0xf]
  %v112 = vld [vmem:[%s1 + $0xc0] sm:$0xf]
  %v113 = vld [vmem:[%s1 + $0xc4] sm:$0xf]
  %v114 = vld [vmem:[%s1 + $0xc8] sm:$0xf]
  %v115 = vld [vmem:[%s1 + $0xcc] sm:$0xf]
  %v116 = vld [vmem:[%s1 + $0xd0] sm:$0xf]
  %v117 = vld [vmem:[%s1 + $0xd4] sm:$0xf]
  %v118 = vld [vmem:[%s1 + $0xd8] sm:$0xf]
  %v119 = vld [vmem:[%s1 + $0xdc] sm:$0xf]
  %v120 = vld [vmem:[%s1 + $0xe0] sm:$0xf]
  %v121 = vld [vmem:[%s1 + $0xe4] sm:$0xf]
  %v122 = vld [vmem:[%s1 + $0xe8] sm:$0xf]
  %v123 = vld [vmem:[%s1 + $0xec] sm:$0xf]
  %v124 = vld [vmem:[%s1 + $0xf0] sm:$0xf]
  %v125 = vld [vmem:[%s1 + $0xf4] sm:$0xf]
  %v126 = vld [vmem:[%s1 + $0xf8] sm:$0xf]
  %v127 = vld [vmem:[%s1 + $0xfc] sm:$0xf]
  %v128 = vld [vmem:[%s1 + $0x100] sm:$0xf]
  %v129 = vld [vmem:[%s1 + $0x104] sm:$0xf]
  %v130 = vld [vmem:[%s1 + $0x108] sm:$0xf]
  %v131 = vld [vmem:[%s1 + $0x10c] sm:$0xf]
  %v132 = vld [vmem:[%s1 + $0x110] sm:$0xf]
  %v133 = vld [vmem:[%s1 + $0x114] sm:$0xf]
  %v134 = vld [vmem:[%s1 + $0x118] sm:$0xf]
  %v135 = vld [vmem:[%s1 + $0x11c] sm:$0xf]
  %v136 = vld [vmem:[%s1 + $0x120] sm:$0xf]
  %v137 = vld [vmem:[%s1 + $0x124] sm:$0xf]
  %v138 = vld [vmem:[%s1 + $0x128] sm:$0xf]
  %v139 = vld [vmem:[%s1 + $0x12c] sm:$0xf]
  %v140 = vld [vmem:[%s1 + $0x130] sm:$0xf]
  %v141 = vld [vmem:[%s1 + $0x134] sm:$0xf]
  %v142 = vld [vmem:[%s1 + $0x138] sm:$0xf]
  %v143 = vld [vmem:[%s1 + $0x13c] sm:$0xf]
  %v144 = vld [vmem:[%s1 + $0x140] sm:$0xf]
  %v145 = vld [vmem:[%s1 + $0x144] sm:$0xf]
  %v146 = vld [vmem:[%s1 + $0x148] sm:$0xf]
  %v147 = vld [vmem:[%s1 + $0x14c] sm:$0xf]
  %v148 = vld [vmem:[%s1 + $0x150] sm:$0xf]
  %v149 = vld [vmem:[%s1 + $0x154] sm:$0xf]
  %v150 = vld [vmem:[%s1 + $0x158] sm:$0xf]
  %v151 = vld [vmem:[%s1 + $0x15c] sm:$0xf]
  %v152 = vld [vmem:[%s1 + $0x160] sm:$0xf]
  %v153 = vld [vmem:[%s1 + $0x164] sm:$0xf]
  %v154 = vld [vmem:[%s1 + $0x168] sm:$0xf]
  %v155 = vld [vmem:[%s1 + $0x16c] sm:$0xf]
  %v156 = vld [vmem:[%s1 + $0x170] sm:$0xf]
  %v157 = vld [vmem:[%s1 + $0x174] sm:$0xf]
  %v158 = vld [vmem:[%s1 + $0x178] sm:$0xf]
  %v159 = vld [vmem:[%s1 + $0x17c] sm:$0xf]
  %v160 = vld [vmem:[%s1 + $0x180] sm:$0xf]
  %v161 = vld [vmem:[%s1 + $0x184] sm:$0xf]
  %v162 = vld [vmem:[%s1 + $0x188] sm:$0xf]
  %v163 = vld [vmem:[%s1 + $0x18c] sm:$0xf]
  %v164 = vld [vmem:[%s1 + $0x190] sm:$0xf]
  %v165 = vld [vmem:[%s1 + $0x194] sm:$0xf]
  %v166 = vld [vmem:[%s1 + $0x198] sm:$0xf]
  %v167 = vld [vmem:[%s1 + $0x19c] sm:$0xf]
  %v168 = vld [vmem:[%s1 + $0x1a0] sm:$0xf]
  %v169 = vld [vmem:[%s1 + $0x1a4] sm:$0xf]
  %v170 = vld [vmem:[%s1 + $0x1a8] sm:$0xf]
  %v171 = vld [vmem:[%s1 + $0x1ac] sm:$0xf]
  %v172 = vld [vmem:[%s1 + $0x1b0] sm:$0xf]
  %v173 = vld [vmem:[%s1 + $0x1b4] sm:$0xf]
  %v174 = vld [vmem:[%s1 + $0x1b8] sm:$0xf]
  %v175 = vld [vmem:[%s1 + $0x1bc] sm:$0xf]
  %v176 = vld [vmem:[%s1 + $0x1c0] sm:$0xf]
  %v177 = vld [vmem:[%s1 + $0x1c4] sm:$0xf]
  %v178 = vld [vmem:[%s1 + $0x1c8] sm:$0xf]
  %v179 = vld [vmem:[%s1 + $0x1cc] sm:$0xf]
  %v180 = vld [vmem:[%s1 + $0x1d0] sm:$0xf]
  %v181 = vld [vmem:[%s1 + $0x1d4] sm:$0xf]
  %v182 = vld [vmem:[%s1 + $0x1d8] sm:$0xf]
  %v183 = vld [vmem:[%s1 + $0x1dc] sm:$0xf]
  %v184 = vld [vmem:[%s1 + $0x1e0] sm:$0xf]
  %v185 = vld [vmem:[%s1 + $0x1e4] sm:$0xf]
  %v186 = vld [vmem:[%s1 + $0x1e8] sm:$0xf]
  %v187 = vld [vmem:[%s1 + $0x1ec] sm:$0xf]
  %v188 = vld [vmem:[%s1 + $0x1f0] sm:$0xf]
  %v189 = vld [vmem:[%s1 + $0x1f4] sm:$0xf]
  %v190 = vld [vmem:[%s1 + $0x1f8] sm:$0xf]
  %v191 = vld [vmem:[%s1 + $0x1fc] sm:$0xf]
  %v192 = vld [vmem:[%s1 + $0x200] sm:$0xf]
  %v193 = vld [vmem:[%s1 + $0x204] sm:$0xf]
  %v194 = vld [vmem:[%s1 + $0x208] sm:$0xf]
  %v195 = vld [vmem:[%s1 + $0x20c] sm:$0xf]
  %v196 = vld [vmem:[%s1 + $0x210] sm:$0xf]
  %v197 = vld [vmem:[%s1 + $0x214] sm:$0xf]
  %v198 = vld [vmem:[%s1 + $0x218] sm:$0xf]
  %v199 = vld [vmem:[%s1 + $0x21c] sm:$0xf]
  %v200 = vld [vmem:[%s1 + $0x220] sm:$0xf]
  %v201 = vld [vmem:[%s1 + $0x224] sm:$0xf]
  %v202 = vld [vmem:[%s1 + $0x228] sm:$0xf]
  %v203 = vld [vmem:[%s1 + $0x22c] sm:$0xf]
  %v204 = vld [vmem:[%s1 + $0x230] sm:$0xf]
  %v205 = vld [vmem:[%s1 + $0x234] sm:$0xf]
  %v206 = vld [vmem:[%s1 + $0x238] sm:$0xf]
  %v207 = vld [vmem:[%s1 + $0x23c] sm:$0xf]
  %v208 = vld [vmem:[%s1 + $0x240] sm:$0xf]
  %v209 = vld [vmem:[%s1 + $0x244] sm:$0xf]
  %v210 = vld [vmem:[%s1 + $0x248] sm:$0xf]
  %v211 = vld [vmem:[%s1 + $0x24c] sm:$0xf]
  %v212 = vld [vmem:[%s1 + $0x250] sm:$0xf]
  %v213 = vld [vmem:[%s1 + $0x254] sm:$0xf]
  %v214 = vld [vmem:[%s1 + $0x258] sm:$0xf]
  %v215 = vld [vmem:[%s1 + $0x25c] sm:$0xf]
  %v216 = vld [vmem:[%s1 + $0x260] sm:$0xf]
  %v217 = vld [vmem:[%s1 + $0x264] sm:$0xf]
  %v218 = vld [vmem:[%s1 + $0x268] sm:$0xf]
  %v219 = vld [vmem:[%s1 + $0x26c] sm:$0xf]
  %v220 = vld [vmem:[%s1 + $0x270] sm:$0xf]
  %v221 = vld [vmem:[%s1 + $0x274] sm:$0xf]
  %v222 = vld [vmem:[%s1 + $0x278] sm:$0xf]
  %v223 = vld [vmem:[%s1 + $0x27c] sm:$0xf]
  %v224 = vld [vmem:[%s1 + $0x280] sm:$0xf]
  %v225 = vld [vmem:[%s1 + $0x284] sm:$0xf]
  %v226 = vld [vmem:[%s1 + $0x288] sm:$0xf]
  %v227 = vld [vmem:[%s1 + $0x28c] sm:$0xf]
  %v228 = vld [vmem:[%s1 + $0x290] sm:$0xf]
  %v229 = vld [vmem:[%s1 + $0x294] sm:$0xf]
  %v230 = vld [vmem:[%s1 + $0x298] sm:$0xf]
  %v231 = vld [vmem:[%s1 + $0x29c] sm:$0xf]
  %v232 = vld [vmem:[%s1 + $0x2a0] sm:$0xf]
  %v233 = vld [vmem:[%s1 + $0x2a4] sm:$0xf]
  %v234 = vld [vmem:[%s1 + $0x2a8] sm:$0xf]
  %v235 = vld [vmem:[%s1 + $0x2ac] sm:$0xf]
  %v236 = vld [vmem:[%s1 + $0x2b0] sm:$0xf]
  %v237 = vld [vmem:[%s1 + $0x2b4] sm:$0xf]
  %v238 = vld [vmem:[%s1 + $0x2b8] sm:$0xf]
  %v239 = vld [vmem:[%s1 + $0x2bc] sm:$0xf]
  %v240 = vld [vmem:[%s1 + $0x2c0] sm:$0xf]
  %v241 = vld [vmem:[%s1 + $0x2c4] sm:$0xf]
  %v242 = vld [vmem:[%s1 + $0x2c8] sm:$0xf]
  %v243 = vld [vmem:[%s1 + $0x2cc] sm:$0xf]
  %v244 = vld [vmem:[%s1 + $0x2d0] sm:$0xf]
  %v245 = vld [vmem:[%s1 + $0x2d4] sm:$0xf]
  %v246 = vld [vmem:[%s1 + $0x2d8] sm:$0xf]
  %v247 = vld [vmem:[%s1 + $0x2dc] sm:$0xf]
  %v248 = vld [vmem:[%s1 + $0x2e0] sm:$0xf]
  %v249 = vld [vmem:[%s1 + $0x2e4] sm:$0xf]
  %v250 = vld [vmem:[%s1 + $0x2e8] sm:$0xf]
  %v251 = vld [vmem:[%s1 + $0x2ec] sm:$0xf]
  %v252 = vld [vmem:[%s1 + $0x2f0] sm:$0xf]
  %v253 = vld [vmem:[%s1 + $0x2f4] sm:$0xf]
  %v254 = vld [vmem:[%s1 + $0x2f8] sm:$0xf]
  %v255 = vld [vmem:[%s1 + $0x2fc] sm:$0xf]
  %v256 = vld [vmem:[%s1 + $0x300] sm:$0xf]
  %v257 = vld [vmem:[%s1 + $0x304] sm:$0xf]
  %v258 = vld [vmem:[%s1 + $0x308] sm:$0xf]
  %v259 = vld [vmem:[%s1 + $0x30c] sm:$0xf]
  %v260 = vld [vmem:[%s1 + $0x310] sm:$0xf]
  %v261 = vld [vmem:[%s1 + $0x314] sm:$0xf]
  %v262 = vld [vmem:[%s1 + $0x318] sm:$0xf]
  %v263 = vld [vmem:[%s1 + $0x31c] sm:$0xf]
  %v264 = vld [vmem:[%s1 + $0x320] sm:$0xf]
  %v265 = vld [vmem:[%s1 + $0x324] sm:$0xf]
  %v266 = vld [vmem:[%s1 + $0x328] sm:$0xf]
  %v267 = vld [vmem:[%s1 + $0x32c] sm:$0xf]
  %v268 = vld [vmem:[%s1 + $0x330] sm:$0xf]
  %v269 = vld [vmem:[%s1 + $0x334] sm:$0xf]
  %v270 = vld [vmem:[%s1 + $0x338] sm:$0xf]
  %v271 = vld [vmem:[%s1 + $0x33c] sm:$0xf]
  %v272 = vld [vmem:[%s1 + $0x340] sm:$0xf]
  %v273 = vld [vmem:[%s1 + $0x344] sm:$0xf]
  %v274 = vld [vmem:[%s1 + $0x348] sm:$0xf]
  %v275 = vld [vmem:[%s1 + $0x34c] sm:$0xf]
  %v276 = vld [vmem:[%s1 + $0x350] sm:$0xf]
  %v277 = vld [vmem:[%s1 + $0x354] sm:$0xf]
  %v278 = vld [vmem:[%s1 + $0x358] sm:$0xf]
  %v279 = vld [vmem:[%s1 + $0x35c] sm:$0xf]
  %v280 = vld [vmem:[%s1 + $0x360] sm:$0xf]
  %v281 = vld [vmem:[%s1 + $0x364] sm:$0xf]
  %v282 = vld [vmem:[%s1 + $0x368] sm:$0xf]
  %v283 = vld [vmem:[%s1 + $0x36c] sm:$0xf]
  %v284 = vld [vmem:[%s1 + $0x370] sm:$0xf]
  %v285 = vld [vmem:[%s1 + $0x374] sm:$0xf]
  %v286 = vld [vmem:[%s1 + $0x378] sm:$0xf]
  %v287 = vld [vmem:[%s1 + $0x37c] sm:$0xf]
  %v288 = vld [vmem:[%s1 + $0x380] sm:$0xf]
  %v289 = vld [vmem:[%s1 + $0x384] sm:$0xf]
  %v290 = vld [vmem:[%s1 + $0x388] sm:$0xf]
  %v291 = vld [vmem:[%s1 + $0x38c] sm:$0xf]
  %v292 = vld [vmem:[%s1 + $0x390] sm:$0xf]
  %v293 = vld [vmem:[%s1 + $0x394] sm:$0xf]
  %v294 = vld [vmem:[%s1 + $0x398] sm:$0xf]
  %v295 = vld [vmem:[%s1 + $0x39c] sm:$0xf]
  %v296 = vld [vmem:[%s1 + $0x3a0] sm:$0xf]
  %v297 = vld [vmem:[%s1 + $0x3a4] sm:$0xf]
  %v298 = vld [vmem:[%s1 + $0x3a8] sm:$0xf]
  %v299 = vld [vmem:[%s1 + $0x3ac] sm:$0xf]
  %v300 = vld [vmem:[%s1 + $0x3b0] sm:$0xf]
  %v301 = vld [vmem:[%s1 + $0x3b4] sm:$0xf]
  %v302 = vld [vmem:[%s1 + $0x3b8] sm:$0xf]
  %v303 = vld [vmem:[%s1 + $0x3bc] sm:$0xf]
  %v304 = vld [vmem:[%s1 + $0x3c0] sm:$0xf]
  %v305 = vld [vmem:[%s1 + $0x3c4] sm:$0xf]
  %v306 = vld [vmem:[%s1 + $0x3c8] sm:$0xf]
  %v307 = vld [vmem:[%s1 + $0x3cc] sm:$0xf]
  %v308 = vld [vmem:[%s1 + $0x3d0] sm:$0xf]
  %v309 = vld [vmem:[%s1 + $0x3d4] sm:$0xf]
  %v310 = vld [vmem:[%s1 + $0x3d8] sm:$0xf]
  %v311 = vld [vmem:[%s1 + $0x3dc] sm:$0xf]
  %v312 = vld [vmem:[%s1 + $0x3e0] sm:$0xf]
  %v313 = vld [vmem:[%s1 + $0x3e4] sm:$0xf]
  %v314 = vld [vmem:[%s1 + $0x3e8] sm:$0xf]
  %v315 = vld [vmem:[%s1 + $0x3ec] sm:$0xf]
  %v316 = vld [vmem:[%s1 + $0x3f0] sm:$0xf]
  %v317 = vld [vmem:[%s1 + $0x3f4] sm:$0xf]
  %v318 = vld [vmem:[%s1 + $0x3f8] sm:$0xf]
  %v319 = vld [vmem:[%s1 + $0x3fc] sm:$0xf]
  %v320 = vld [vmem:[%s1 + $0x400] sm:$0xf]
  %v321 = vld [vmem:[%s1 + $0x404] sm:$0xf]
  %v322 = vld [vmem:[%s1 + $0x408] sm:$0xf]
  %v323 = vld [vmem:[%s1 + $0x40c] sm:$0xf]
  %v324 = vld [vmem:[%s1 + $0x410] sm:$0xf]
  %v325 = vld [vmem:[%s1 + $0x414] sm:$0xf]
  %v326 = vld [vmem:[%s1 + $0x418] sm:$0xf]
  %v327 = vld [vmem:[%s1 + $0x41c] sm:$0xf]
  %v328 = vld [vmem:[%s1 + $0x420] sm:$0xf]
  %v329 = vld [vmem:[%s1 + $0x424] sm:$0xf]
  %v330 = vld [vmem:[%s1 + $0x428] sm:$0xf]
  %v331 = vld [vmem:[%s1 + $0x42c] sm:$0xf]
  %v332 = vld [vmem:[%s1 + $0x430] sm:$0xf]
  %v333 = vld [vmem:[%s1 + $0x434] sm:$0xf]
  %v334 = vld [vmem:[%s1 + $0x438] sm:$0xf]
  %v335 = vld [vmem:[%s1 + $0x43c] sm:$0xf]
  %v336 = vld [vmem:[%s1 + $0x440] sm:$0xf]
  %v337 = vld [vmem:[%s1 + $0x444] sm:$0xf]
  %v338 = vld [vmem:[%s1 + $0x448] sm:$0xf]
  %v339 = vld [vmem:[%s1 + $0x44c] sm:$0xf]
  %v340 = vld [vmem:[%s1 + $0x450] sm:$0xf]
  %v341 = vld [vmem:[%s1 + $0x454] sm:$0xf]
  %v342 = vld [vmem:[%s1 + $0x458] sm:$0xf]
  %v343 = vld [vmem:[%s1 + $0x45c] sm:$0xf]
  %v344 = vld [vmem:[%s1 + $0x460] sm:$0xf]
  %v345 = vld [vmem:[%s1 + $0x464] sm:$0xf]
  %v346 = vld [vmem:[%s1 + $0x468] sm:$0xf]
  %v347 = vld [vmem:[%s1 + $0x46c] sm:$0xf]
  %v348 = vld [vmem:[%s1 + $0x470] sm:$0xf]
  %v349 = vld [vmem:[%s1 + $0x474] sm:$0xf]
  %v350 = vld [vmem:[%s1 + $0x478] sm:$0xf]
  %v351 = vld [vmem:[%s1 + $0x47c] sm:$0xf]
  %v352 = vld [vmem:[%s1 + $0x480] sm:$0xf]
  %v353 = vld [vmem:[%s1 + $0x484] sm:$0xf]
  %v354 = vld [vmem:[%s1 + $0x488] sm:$0xf]
  %v355 = vld [vmem:[%s1 + $0x48c] sm:$0xf]
  %v356 = vld [vmem:[%s1 + $0x490] sm:$0xf]
  %v357 = vld [vmem:[%s1 + $0x494] sm:$0xf]
  %v358 = vld [vmem:[%s1 + $0x498] sm:$0xf]
  %v359 = vld [vmem:[%s1 + $0x49c] sm:$0xf]
  %v360 = vld [vmem:[%s1 + $0x4a0] sm:$0xf]
  %v361 = vld [vmem:[%s1 + $0x4a4] sm:$0xf]
  %v362 = vld [vmem:[%s1 + $0x4a8] sm:$0xf]
  %v363 = vld [vmem:[%s1 + $0x4ac] sm:$0xf]
  %v364 = vld [vmem:[%s1 + $0x4b0] sm:$0xf]
  %v365 = vld [vmem:[%s1 + $0x4b4] sm:$0xf]
  %v366 = vld [vmem:[%s1 + $0x4b8] sm:$0xf]
  %v367 = vld [vmem:[%s1 + $0x4bc] sm:$0xf]
  %v368 = vld [vmem:[%s1 + $0x4c0] sm:$0xf]
  %v369 = vld [vmem:[%s1 + $0x4c4] sm:$0xf]
  %v370 = vld [vmem:[%s1 + $0x4c8] sm:$0xf]
  %v371 = vld [vmem:[%s1 + $0x4cc] sm:$0xf]
  %v372 = vld [vmem:[%s1 + $0x4d0] sm:$0xf]
  %v373 = vld [vmem:[%s1 + $0x4d4] sm:$0xf]
  %v374 = vld [vmem:[%s1 + $0x4d8] sm:$0xf]
  %v375 = vld [vmem:[%s1 + $0x4dc] sm:$0xf]
  %v376 = vld [vmem:[%s1 + $0x4e0] sm:$0xf]
  %v377 = vld [vmem:[%s1 + $0x4e4] sm:$0xf]
  %v378 = vld [vmem:[%s1 + $0x4e8] sm:$0xf]
  %v379 = vld [vmem:[%s1 + $0x4ec] sm:$0xf]
  %v380 = vld [vmem:[%s1 + $0x4f0] sm:$0xf]
  %v381 = vld [vmem:[%s1 + $0x4f4] sm:$0xf]
  %v382 = vld [vmem:[%s1 + $0x4f8] sm:$0xf]
  %v383 = vld [vmem:[%s1 + $0x4fc] sm:$0xf]
  %v384 = vld [vmem:[%s1 + $0x500] sm:$0xf]
  %v385 = vld [vmem:[%s1 + $0x504] sm:$0xf]
  %v386 = vld [vmem:[%s1 + $0x508] sm:$0xf]
  %v387 = vld [vmem:[%s1 + $0x50c] sm:$0xf]
  %v388 = vld [vmem:[%s1 + $0x510] sm:$0xf]
  %v389 = vld [vmem:[%s1 + $0x514] sm:$0xf]
  %v390 = vld [vmem:[%s1 + $0x518] sm:$0xf]
  %v391 = vld [vmem:[%s1 + $0x51c] sm:$0xf]
  %v392 = vld [vmem:[%s1 + $0x520] sm:$0xf]
  %v393 = vld [vmem:[%s1 + $0x524] sm:$0xf]
  %v394 = vld [vmem:[%s1 + $0x528] sm:$0xf]
  %v395 = vld [vmem:[%s1 + $0x52c] sm:$0xf]
  %v396 = vld [vmem:[%s1 + $0x530] sm:$0xf]
  %v397 = vld [vmem:[%s1 + $0x534] sm:$0xf]
  %v398 = vld [vmem:[%s1 + $0x538] sm:$0xf]
  %v399 = vld [vmem:[%s1 + $0x53c] sm:$0xf]
  %v400 = vld [vmem:[%s1 + $0x540] sm:$0xf]
  %v401 = vld [vmem:[%s1 + $0x544] sm:$0xf]
  %v402 = vld [vmem:[%s1 + $0x548] sm:$0xf]
  %v403 = vld [vmem:[%s1 + $0x54c] sm:$0xf]
  %v404 = vld [vmem:[%s1 + $0x550] sm:$0xf]
  %v405 = vld [vmem:[%s1 + $0x554] sm:$0xf]
  %v406 = vld [vmem:[%s1 + $0x558] sm:$0xf]
  %v407 = vld [vmem:[%s1 + $0x55c] sm:$0xf]
  %v408 = vld [vmem:[%s1 + $0x560] sm:$0xf]
  %v409 = vld [vmem:[%s1 + $0x564] sm:$0xf]
  %v410 = vld [vmem:[%s1 + $0x568] sm:$0xf]
  %v411 = vld [vmem:[%s1 + $0x56c] sm:$0xf]
  %v412 = vld [vmem:[%s1 + $0x570] sm:$0xf]
  %v413 = vld [vmem:[%s1 + $0x574] sm:$0xf]
  %v414 = vld [vmem:[%s1 + $0x578] sm:$0xf]
  %v415 = vld [vmem:[%s1 + $0x57c] sm:$0xf]
  %v416 = vld [vmem:[%s1 + $0x580] sm:$0xf]
  %v417 = vld [vmem:[%s1 + $0x584] sm:$0xf]
  %v418 = vld [vmem:[%s1 + $0x588] sm:$0xf]
  %v419 = vld [vmem:[%s1 + $0x58c] sm:$0xf]
  %v420 = vld [vmem:[%s1 + $0x590] sm:$0xf]
  %v421 = vld [vmem:[%s1 + $0x594] sm:$0xf]
  %v422 = vld [vmem:[%s1 + $0x598] sm:$0xf]
  %v423 = vld [vmem:[%s1 + $0x59c] sm:$0xf]
  %v424 = vld [vmem:[%s1 + $0x5a0] sm:$0xf]
  %v425 = vld [vmem:[%s1 + $0x5a4] sm:$0xf]
  %v426 = vld [vmem:[%s1 + $0x5a8] sm:$0xf]
  %v427 = vld [vmem:[%s1 + $0x5ac] sm:$0xf]
  %v428 = vld [vmem:[%s1 + $0x5b0] sm:$0xf]
  %v429 = vld [vmem:[%s1 + $0x5b4] sm:$0xf]
  %v430 = vld [vmem:[%s1 + $0x5b8] sm:$0xf]
  %v431 = vld [vmem:[%s1 + $0x5bc] sm:$0xf]
  %v432 = vld [vmem:[%s1 + $0x5c0] sm:$0xf]
  %v433 = vld [vmem:[%s1 + $0x5c4] sm:$0xf]
  %v434 = vld [vmem:[%s1 + $0x5c8] sm:$0xf]
  %v435 = vld [vmem:[%s1 + $0x5cc] sm:$0xf]
  %v436 = vld [vmem:[%s1 + $0x5d0] sm:$0xf]
  %v437 = vld [vmem:[%s1 + $0x5d4] sm:$0xf]
  %v438 = vld [vmem:[%s1 + $0x5d8] sm:$0xf]
  %v439 = vld [vmem:[%s1 + $0x5dc] sm:$0xf]
  %v440 = vld [vmem:[%s1 + $0x5e0] sm:$0xf]
  %v441 = vld [vmem:[%s1 + $0x5e4] sm:$0xf]
  %v442 = vld [vmem:[%s1 + $0x5e8] sm:$0xf]
  %v443 = vld [vmem:[%s1 + $0x5ec] sm:$0xf]
  %v444 = vld [vmem:[%s1 + $0x5f0] sm:$0xf]
  %v445 = vld [vmem:[%s1 + $0x5f4] sm:$0xf]
  %v446 = vld [vmem:[%s1 + $0x5f8] sm:$0xf]
  %v447 = vld [vmem:[%s1 + $0x5fc] sm:$0xf]
  %v448 = vld [vmem:[%s1 + $0x600] sm:$0xf]
  %v449 = vld [vmem:[%s1 + $0x604] sm:$0xf]
  %v450 = vld [vmem:[%s1 + $0x608] sm:$0xf]
  %v451 = vld [vmem:[%s1 + $0x60c] sm:$0xf]
  %v452 = vld [vmem:[%s1 + $0x610] sm:$0xf]
  %v453 = vld [vmem:[%s1 + $0x614] sm:$0xf]
  %v454 = vld [vmem:[%s1 + $0x618] sm:$0xf]
  %v455 = vld [vmem:[%s1 + $0x61c] sm:$0xf]
  %v456 = vld [vmem:[%s1 + $0x620] sm:$0xf]
  %v457 = vld [vmem:[%s1 + $0x624] sm:$0xf]
  %v458 = vld [vmem:[%s1 + $0x628] sm:$0xf]
  %v459 = vld [vmem:[%s1 + $0x62c] sm:$0xf]
  %v460 = vld [vmem:[%s1 + $0x630] sm:$0xf]
  %v461 = vld [vmem:[%s1 + $0x634] sm:$0xf]
  %v462 = vld [vmem:[%s1 + $0x638] sm:$0xf]
  %v463 = vld [vmem:[%s1 + $0x63c] sm:$0xf]
  %v464 = vld [vmem:[%s1 + $0x640] sm:$0xf]
  %v465 = vld [vmem:[%s1 + $0x644] sm:$0xf]
  %v466 = vld [vmem:[%s1 + $0x648] sm:$0xf]
  %v467 = vld [vmem:[%s1 + $0x64c] sm:$0xf]
  %v468 = vld [vmem:[%s1 + $0x650] sm:$0xf]
  %v469 = vld [vmem:[%s1 + $0x654] sm:$0xf]
  %v470 = vld [vmem:[%s1 + $0x658] sm:$0xf]
  %v471 = vld [vmem:[%s1 + $0x65c] sm:$0xf]
  %v472 = vld [vmem:[%s1 + $0x660] sm:$0xf]
  %v473 = vld [vmem:[%s1 + $0x664] sm:$0xf]
  %v474 = vld [vmem:[%s1 + $0x668] sm:$0xf]
  %v475 = vld [vmem:[%s1 + $0x66c] sm:$0xf]
  %v476 = vld [vmem:[%s1 + $0x670] sm:$0xf]
  %v477 = vld [vmem:[%s1 + $0x674] sm:$0xf]
  %v478 = vld [vmem:[%s1 + $0x678] sm:$0xf]
  %v479 = vld [vmem:[%s1 + $0x67c] sm:$0xf]
  %v480 = vld [vmem:[%s1 + $0x680] sm:$0xf]
  %v481 = vld [vmem:[%s1 + $0x684] sm:$0xf]
  %v482 = vld [vmem:[%s1 + $0x688] sm:$0xf]
  %v483 = vld [vmem:[%s1 + $0x68c] sm:$0xf]
  %v484 = vld [vmem:[%s1 + $0x690] sm:$0xf]
  %v485 = vld [vmem:[%s1 + $0x694] sm:$0xf]
  %v486 = vld [vmem:[%s1 + $0x698] sm:$0xf]
  %v487 = vld [vmem:[%s1 + $0x69c] sm:$0xf]
  %v488 = vld [vmem:[%s1 + $0x6a0] sm:$0xf]
  %v489 = vld [vmem:[%s1 + $0x6a4] sm:$0xf]
  %v490 = vld [vmem:[%s1 + $0x6a8] sm:$0xf]
  %v491 = vld [vmem:[%s1 + $0x6ac] sm:$0xf]
  %v492 = vld [vmem:[%s1 + $0x6b0] sm:$0xf]
  %v493 = vld [vmem:[%s1 + $0x6b4] sm:$0xf]
  %v494 = vld [vmem:[%s1 + $0x6b8] sm:$0xf]
  %v495 = vld [vmem:[%s1 + $0x6bc] sm:$0xf]
  %v496 = vld [vmem:[%s1 + $0x6c0] sm:$0xf]
  %v497 = vld [vmem:[%s1 + $0x6c4] sm:$0xf]
  %v498 = vld [vmem:[%s1 + $0x6c8] sm:$0xf]
  %v499 = vld [vmem:[%s1 + $0x6cc] sm:$0xf]
  %v500 = vld [vmem:[%s1 + $0x6d0] sm:$0xf]
  %v501 = vld [vmem:[%s1 + $0x6d4] sm:$0xf]
  %v502 = vld [vmem:[%s1 + $0x6d8] sm:$0xf]
  %v503 = vld [vmem:[%s1 + $0x6dc] sm:$0xf]
  %v504 = vld [vmem:[%s1 + $0x6e0] sm:$0xf]
  %v505 = vld [vmem:[%s1 + $0x6e4] sm:$0xf]
  %v506 = vld [vmem:[%s1 + $0x6e8] sm:$0xf]
  %v507 = vld [vmem:[%s1 + $0x6ec] sm:$0xf]
  %v508 = vld [vmem:[%s1 + $0x6f0] sm:$0xf]
  %v509 = vld [vmem:[%s1 + $0x6f4] sm:$0xf]
  %v510 = vld [vmem:[%s1 + $0x6f8] sm:$0xf]
  %v511 = vld [vmem:[%s1 + $0x6fc] sm:$0xf]
  %v512 = vld [vmem:[%s1 + $0x700] sm:$0xf]
  %v513 = vld [vmem:[%s1 + $0x704] sm:$0xf]
  %v514 = vld [vmem:[%s1 + $0x708] sm:$0xf]
  %v515 = vld [vmem:[%s1 + $0x70c] sm:$0xf]
  %v516 = vld [vmem:[%s1 + $0x710] sm:$0xf]
  %v517 = vld [vmem:[%s1 + $0x714] sm:$0xf]
  %v518 = vld [vmem:[%s1 + $0x718] sm:$0xf]
  %v519 = vld [vmem:[%s1 + $0x71c] sm:$0xf]
  %v520 = vld [vmem:[%s1 + $0x720] sm:$0xf]
  %v521 = vld [vmem:[%s1 + $0x724] sm:$0xf]
  %v522 = vld [vmem:[%s1 + $0x728] sm:$0xf]
  %v523 = vld [vmem:[%s1 + $0x72c] sm:$0xf]
  %v524 = vld [vmem:[%s1 + $0x730] sm:$0xf]
  %v525 = vld [vmem:[%s1 + $0x734] sm:$0xf]
  %v526 = vld [vmem:[%s1 + $0x738] sm:$0xf]
  %v527 = vld [vmem:[%s1 + $0x73c] sm:$0xf]
  %v528 = vld [vmem:[%s1 + $0x740] sm:$0xf]
  %v529 = vld [vmem:[%s1 + $0x744] sm:$0xf]
  %v530 = vld [vmem:[%s1 + $0x748] sm:$0xf]
  %v531 = vld [vmem:[%s1 + $0x74c] sm:$0xf]
  %v532 = vld [vmem:[%s1 + $0x750] sm:$0xf]
  %v533 = vld [vmem:[%s1 + $0x754] sm:$0xf]
  %v534 = vld [vmem:[%s1 + $0x758] sm:$0xf]
  %v535 = vld [vmem:[%s1 + $0x75c] sm:$0xf]
  %v536 = vld [vmem:[%s1 + $0x760] sm:$0xf]
  %v537 = vld [vmem:[%s1 + $0x764] sm:$0xf]
  %v538 = vld [vmem:[%s1 + $0x768] sm:$0xf]
  %v539 = vld [vmem:[%s1 + $0x76c] sm:$0xf]
  %v540 = vld [vmem:[%s1 + $0x770] sm:$0xf]
  %v541 = vld [vmem:[%s1 + $0x774] sm:$0xf]
  %v542 = vld [vmem:[%s1 + $0x778] sm:$0xf]
  %v543 = vld [vmem:[%s1 + $0x77c] sm:$0xf]
  %v544 = vld [vmem:[%s1 + $0x780] sm:$0xf]
  %v545 = vld [vmem:[%s1 + $0x784] sm:$0xf]
  %v546 = vld [vmem:[%s1 + $0x788] sm:$0xf]
  %v547 = vld [vmem:[%s1 + $0x78c] sm:$0xf]
  %v548 = vld [vmem:[%s1 + $0x790] sm:$0xf]
  %v549 = vld [vmem:[%s1 + $0x794] sm:$0xf]
  %v550 = vld [vmem:[%s1 + $0x798] sm:$0xf]
  %v551 = vld [vmem:[%s1 + $0x79c] sm:$0xf]
  %v552 = vld [vmem:[%s1 + $0x7a0] sm:$0xf]
  %v553 = vld [vmem:[%s1 + $0x7a4] sm:$0xf]
  %v554 = vld [vmem:[%s1 + $0x7a8] sm:$0xf]
  %v555 = vld [vmem:[%s1 + $0x7ac] sm:$0xf]
  %v556 = vld [vmem:[%s1 + $0x7b0] sm:$0xf]
  %v557 = vld [vmem:[%s1 + $0x7b4] sm:$0xf]
  %v558 = vld [vmem:[%s1 + $0x7b8] sm:$0xf]
  %v559 = vld [vmem:[%s1 + $0x7bc] sm:$0xf]
  %v560 = vld [vmem:[%s1 + $0x7c0] sm:$0xf]
  %v561 = vld [vmem:[%s1 + $0x7c4] sm:$0xf]
  %v562 = vld [vmem:[%s1 + $0x7c8] sm:$0xf]
  %v563 = vld [vmem:[%s1 + $0x7cc] sm:$0xf]
  %v564 = vld [vmem:[%s1 + $0x7d0] sm:$0xf]
  %v565 = vld [vmem:[%s1 + $0x7d4] sm:$0xf]
  %v566 = vld [vmem:[%s1 + $0x7d8] sm:$0xf]
  %v567 = vld [vmem:[%s1 + $0x7dc] sm:$0xf]
  %v568 = vld [vmem:[%s1 + $0x7e0] sm:$0xf]
  %v569 = vld [vmem:[%s1 + $0x7e4] sm:$0xf]
  %v570 = vld [vmem:[%s1 + $0x7e8] sm:$0xf]
  %v571 = vld [vmem:[%s1 + $0x7ec] sm:$0xf]
  %v572 = vld [vmem:[%s1 + $0x7f0] sm:$0xf]
  %v573 = vld [vmem:[%s1 + $0x7f4] sm:$0xf]
  %v574 = vld [vmem:[%s1 + $0x7f8] sm:$0xf]
  %v575 = vld [vmem:[%s1 + $0x7fc] sm:$0xf]
  %v576 = vld [vmem:[%s1 + $0x800] sm:$0xf]
  %v577 = vld [vmem:[%s1 + $0x804] sm:$0xf]
  %v578 = vld [vmem:[%s1 + $0x808] sm:$0xf]
  %v579 = vld [vmem:[%s1 + $0x80c] sm:$0xf]
  %v580 = vld [vmem:[%s1 + $0x810] sm:$0xf]
  %v581 = vld [vmem:[%s1 + $0x814] sm:$0xf]
  %v582 = vld [vmem:[%s1 + $0x818] sm:$0xf]
  %v583 = vld [vmem:[%s1 + $0x81c] sm:$0xf]
  %v584 = vld [vmem:[%s1 + $0x820] sm:$0xf]
  %v585 = vld [vmem:[%s1 + $0x824] sm:$0xf]
  %v586 = vld [vmem:[%s1 + $0x828] sm:$0xf]
  %v587 = vld [vmem:[%s1 + $0x82c] sm:$0xf]
  %v588 = vld [vmem:[%s1 + $0x830] sm:$0xf]
  %v589 = vld [vmem:[%s1 + $0x834] sm:$0xf]
  %v590 = vld [vmem:[%s1 + $0x838] sm:$0xf]
  %v591 = vld [vmem:[%s1 + $0x83c] sm:$0xf]
  %v592 = vld [vmem:[%s1 + $0x840] sm:$0xf]
  %v593 = vld [vmem:[%s1 + $0x844] sm:$0xf]
  %v594 = vld [vmem:[%s1 + $0x848] sm:$0xf]
  %v595 = vld [vmem:[%s1 + $0x84c] sm:$0xf]
  %v596 = vld [vmem:[%s1 + $0x850] sm:$0xf]
  %v597 = vld [vmem:[%s1 + $0x854] sm:$0xf]
  %v598 = vld [vmem:[%s1 + $0x858] sm:$0xf]
  %v599 = vld [vmem:[%s1 + $0x85c] sm:$0xf]
  %v600 = vld [vmem:[%s1 + $0x860] sm:$0xf]
  %v601 = vld [vmem:[%s1 + $0x864] sm:$0xf]
  %v602 = vld [vmem:[%s1 + $0x868] sm:$0xf]
  %v603 = vld [vmem:[%s1 + $0x86c] sm:$0xf]
  %v604 = vld [vmem:[%s1 + $0x870] sm:$0xf]
  %v605 = vld [vmem:[%s1 + $0x874] sm:$0xf]
  %v606 = vld [vmem:[%s1 + $0x878] sm:$0xf]
  %v607 = vld [vmem:[%s1 + $0x87c] sm:$0xf]
  %v608 = vld [vmem:[%s1 + $0x880] sm:$0xf]
  %v609 = vld [vmem:[%s1 + $0x884] sm:$0xf]
  %v610 = vld [vmem:[%s1 + $0x888] sm:$0xf]
  %v611 = vld [vmem:[%s1 + $0x88c] sm:$0xf]
  %v612 = vld [vmem:[%s1 + $0x890] sm:$0xf]
  %v613 = vld [vmem:[%s1 + $0x894] sm:$0xf]
  %v614 = vld [vmem:[%s1 + $0x898] sm:$0xf]
  %v615 = vld [vmem:[%s1 + $0x89c] sm:$0xf]
  %v616 = vld [vmem:[%s1 + $0x8a0] sm:$0xf]
  %v617 = vld [vmem:[%s1 + $0x8a4] sm:$0xf]
  %v618 = vld [vmem:[%s1 + $0x8a8] sm:$0xf]
  %v619 = vld [vmem:[%s1 + $0x8ac] sm:$0xf]
  %v620 = vld [vmem:[%s1 + $0x8b0] sm:$0xf]
  %v621 = vld [vmem:[%s1 + $0x8b4] sm:$0xf]
  %v622 = vld [vmem:[%s1 + $0x8b8] sm:$0xf]
  %v623 = vld [vmem:[%s1 + $0x8bc] sm:$0xf]
  %v624 = vld [vmem:[%s1 + $0x8c0] sm:$0xf]
  %v625 = vld [vmem:[%s1 + $0x8c4] sm:$0xf]
  %v626 = vld [vmem:[%s1 + $0x8c8] sm:$0xf]
  %v627 = vld [vmem:[%s1 + $0x8cc] sm:$0xf]
  %v628 = vld [vmem:[%s1 + $0x8d0] sm:$0xf]
  %v629 = vld [vmem:[%s1 + $0x8d4] sm:$0xf]
  %v630 = vld [vmem:[%s1 + $0x8d8] sm:$0xf]
  %v631 = vld [vmem:[%s1 + $0x8dc] sm:$0xf]
  %v632 = vld [vmem:[%s1 + $0x8e0] sm:$0xf]
  %v633 = vld [vmem:[%s1 + $0x8e4] sm:$0xf]
  %v634 = vld [vmem:[%s1 + $0x8e8] sm:$0xf]
  %v635 = vld [vmem:[%s1 + $0x8ec] sm:$0xf]
  %v636 = vld [vmem:[%s1 + $0x8f0] sm:$0xf]
  %v637 = vld [vmem:[%s1 + $0x8f4] sm:$0xf]
  %v638 = vld [vmem:[%s1 + $0x8f8] sm:$0xf]
  %v639 = vld [vmem:[%s1 + $0x8fc] sm:$0xf]
  %v640 = vld [vmem:[%s1 + $0x900] sm:$0xf]
  %v641 = vld [vmem:[%s1 + $0x904] sm:$0xf]
  %v642 = vld [vmem:[%s1 + $0x908] sm:$0xf]
  %v643 = vld [vmem:[%s1 + $0x90c] sm:$0xf]
  %v644 = vld [vmem:[%s1 + $0x910] sm:$0xf]
  %v645 = vld [vmem:[%s1 + $0x914] sm:$0xf]
  %v646 = vld [vmem:[%s1 + $0x918] sm:$0xf]
  %v647 = vld [vmem:[%s1 + $0x91c] sm:$0xf]
  %v648 = vld [vmem:[%s1 + $0x920] sm:$0xf]
  %v649 = vld [vmem:[%s1 + $0x924] sm:$0xf]
  %v650 = vld [vmem:[%s1 + $0x928] sm:$0xf]
  %v651 = vld [vmem:[%s1 + $0x92c] sm:$0xf]
  %v652 = vld [vmem:[%s1 + $0x930] sm:$0xf]
  %v653 = vld [vmem:[%s1 + $0x934] sm:$0xf]
  %v654 = vld [vmem:[%s1 + $0x938] sm:$0xf]
  %v655 = vld [vmem:[%s1 + $0x93c] sm:$0xf]
  %v656 = vld [vmem:[%s1 + $0x940] sm:$0xf]
  %v657 = vld [vmem:[%s1 + $0x944] sm:$0xf]
  %v658 = vld [vmem:[%s1 + $0x948] sm:$0xf]
  %v659 = vld [vmem:[%s1 + $0x94c] sm:$0xf]
  %v660 = vld [vmem:[%s1 + $0x950] sm:$0xf]
  %v661 = vld [vmem:[%s1 + $0x954] sm:$0xf]
  %v662 = vld [vmem:[%s1 + $0x958] sm:$0xf]
  %v663 = vld [vmem:[%s1 + $0x95c] sm:$0xf]
  %v664 = vld [vmem:[%s1 + $0x960] sm:$0xf]
  %v665 = vld [vmem:[%s1 + $0x964] sm:$0xf]
  %v666 = vld [vmem:[%s1 + $0x968] sm:$0xf]
  %v667 = vld [vmem:[%s1 + $0x96c] sm:$0xf]
  %v668 = vld [vmem:[%s1 + $0x970] sm:$0xf]
  %v669 = vld [vmem:[%s1 + $0x974] sm:$0xf]
  %v670 = vld [vmem:[%s1 + $0x978] sm:$0xf]
  %v671 = vld [vmem:[%s1 + $0x97c] sm:$0xf]
  %v672 = vld [vmem:[%s1 + $0x980] sm:$0xf]
  %v673 = vld [vmem:[%s1 + $0x984] sm:$0xf]
  %v674 = vld [vmem:[%s1 + $0x988] sm:$0xf]
  %v675 = vld [vmem:[%s1 + $0x98c] sm:$0xf]
  %v676 = vld [vmem:[%s1 + $0x990] sm:$0xf]
  %v677 = vld [vmem:[%s1 + $0x994] sm:$0xf]
  %v678 = vld [vmem:[%s1 + $0x998] sm:$0xf]
  %v679 = vld [vmem:[%s1 + $0x99c] sm:$0xf]
  %v680 = vld [vmem:[%s1 + $0x9a0] sm:$0xf]
  %v681 = vld [vmem:[%s1 + $0x9a4] sm:$0xf]
  %v682 = vld [vmem:[%s1 + $0x9a8] sm:$0xf]
  %v683 = vld [vmem:[%s1 + $0x9ac] sm:$0xf]
  %v684 = vld [vmem:[%s1 + $0x9b0] sm:$0xf]
  %v685 = vld [vmem:[%s1 + $0x9b4] sm:$0xf]
  %v686 = vld [vmem:[%s1 + $0x9b8] sm:$0xf]
  %v687 = vld [vmem:[%s1 + $0x9bc] sm:$0xf]
  %v688 = vld [vmem:[%s1 + $0x9c0] sm:$0xf]
  %v689 = vld [vmem:[%s1 + $0x9c4] sm:$0xf]
  %v690 = vld [vmem:[%s1 + $0x9c8] sm:$0xf]
  %v691 = vld [vmem:[%s1 + $0x9cc] sm:$0xf]
  %v692 = vld [vmem:[%s1 + $0x9d0] sm:$0xf]
  %v693 = vld [vmem:[%s1 + $0x9d4] sm:$0xf]
  %v694 = vld [vmem:[%s1 + $0x9d8] sm:$0xf]
  %v695 = vld [vmem:[%s1 + $0x9dc] sm:$0xf]
  %v696 = vld [vmem:[%s1 + $0x9e0] sm:$0xf]
  %v697 = vld [vmem:[%s1 + $0x9e4] sm:$0xf]
  %v698 = vld [vmem:[%s1 + $0x9e8] sm:$0xf]
  %v699 = vld [vmem:[%s1 + $0x9ec] sm:$0xf]
  %v700 = vld [vmem:[%s1 + $0x9f0] sm:$0xf]
  %v701 = vld [vmem:[%s1 + $0x9f4] sm:$0xf]
  %v702 = vld [vmem:[%s1 + $0x9f8] sm:$0xf]
  %v703 = vld [vmem:[%s1 + $0x9fc] sm:$0xf]
  %v704 = vld [vmem:[%s1 + $0xa00] sm:$0xf]
  %v705 = vld [vmem:[%s1 + $0xa04] sm:$0xf]
  %v706 = vld [vmem:[%s1 + $0xa08] sm:$0xf]
  %v707 = vld [vmem:[%s1 + $0xa0c] sm:$0xf]
  %v708 = vld [vmem:[%s1 + $0xa10] sm:$0xf]
  %v709 = vld [vmem:[%s1 + $0xa14] sm:$0xf]
  %v710 = vld [vmem:[%s1 + $0xa18] sm:$0xf]
  %v711 = vld [vmem:[%s1 + $0xa1c] sm:$0xf]
  %v712 = vld [vmem:[%s1 + $0xa20] sm:$0xf]
  %v713 = vld [vmem:[%s1 + $0xa24] sm:$0xf]
  %v714 = vld [vmem:[%s1 + $0xa28] sm:$0xf]
  %v715 = vld [vmem:[%s1 + $0xa2c] sm:$0xf]
  %v716 = vld [vmem:[%s1 + $0xa30] sm:$0xf]
  %v717 = vld [vmem:[%s1 + $0xa34] sm:$0xf]
  %v718 = vld [vmem:[%s1 + $0xa38] sm:$0xf]
  %v719 = vld [vmem:[%s1 + $0xa3c] sm:$0xf]
  %v720 = vld [vmem:[%s1 + $0xa40] sm:$0xf]
  %v721 = vld [vmem:[%s1 + $0xa44] sm:$0xf]
  %v722 = vld [vmem:[%s1 + $0xa48] sm:$0xf]
  %v723 = vld [vmem:[%s1 + $0xa4c] sm:$0xf]
  %v724 = vld [vmem:[%s1 + $0xa50] sm:$0xf]
  %v725 = vld [vmem:[%s1 + $0xa54] sm:$0xf]
  %v726 = vld [vmem:[%s1 + $0xa58] sm:$0xf]
  %v727 = vld [vmem:[%s1 + $0xa5c] sm:$0xf]
  %v728 = vld [vmem:[%s1 + $0xa60] sm:$0xf]
  %v729 = vld [vmem:[%s1 + $0xa64] sm:$0xf]
  %v730 = vld [vmem:[%s1 + $0xa68] sm:$0xf]
  %v731 = vld [vmem:[%s1 + $0xa6c] sm:$0xf]
  %v732 = vld [vmem:[%s1 + $0xa70] sm:$0xf]
  %v733 = vld [vmem:[%s1 + $0xa74] sm:$0xf]
  %v734 = vld [vmem:[%s1 + $0xa78] sm:$0xf]
  %v735 = vld [vmem:[%s1 + $0xa7c] sm:$0xf]
  %v736 = vld [vmem:[%s1 + $0xa80] sm:$0xf]
  %v737 = vld [vmem:[%s1 + $0xa84] sm:$0xf]
  %v738 = vld [vmem:[%s1 + $0xa88] sm:$0xf]
  %v739 = vld [vmem:[%s1 + $0xa8c] sm:$0xf]
  %v740 = vld [vmem:[%s1 + $0xa90] sm:$0xf]
  %v741 = vld [vmem:[%s1 + $0xa94] sm:$0xf]
  %v742 = vld [vmem:[%s1 + $0xa98] sm:$0xf]
  %v743 = vld [vmem:[%s1 + $0xa9c] sm:$0xf]
  %v744 = vld [vmem:[%s1 + $0xaa0] sm:$0xf]
  %v745 = vld [vmem:[%s1 + $0xaa4] sm:$0xf]
  %v746 = vld [vmem:[%s1 + $0xaa8] sm:$0xf]
  %v747 = vld [vmem:[%s1 + $0xaac] sm:$0xf]
  %v748 = vld [vmem:[%s1 + $0xab0] sm:$0xf]
  %v749 = vld [vmem:[%s1 + $0xab4] sm:$0xf]
  %v750 = vld [vmem:[%s1 + $0xab8] sm:$0xf]
  %v751 = vld [vmem:[%s1 + $0xabc] sm:$0xf]
  %v752 = vld [vmem:[%s1 + $0xac0] sm:$0xf]
  %v753 = vld [vmem:[%s1 + $0xac4] sm:$0xf]
  %v754 = vld [vmem:[%s1 + $0xac8] sm:$0xf]
  %v755 = vld [vmem:[%s1 + $0xacc] sm:$0xf]
  %v756 = vld [vmem:[%s1 + $0xad0] sm:$0xf]
  %v757 = vld [vmem:[%s1 + $0xad4] sm:$0xf]
  %v758 = vld [vmem:[%s1 + $0xad8] sm:$0xf]
  %v759 = vld [vmem:[%s1 + $0xadc] sm:$0xf]
  %v760 = vld [vmem:[%s1 + $0xae0] sm:$0xf]
  %v761 = vld [vmem:[%s1 + $0xae4] sm:$0xf]
  %v762 = vld [vmem:[%s1 + $0xae8] sm:$0xf]
  %v763 = vld [vmem:[%s1 + $0xaec] sm:$0xf]
  %v764 = vld [vmem:[%s1 + $0xaf0] sm:$0xf]
  %v765 = vld [vmem:[%s1 + $0xaf4] sm:$0xf]
  %v766 = vld [vmem:[%s1 + $0xaf8] sm:$0xf]
  %v767 = vld [vmem:[%s1 + $0xafc] sm:$0xf]
  %v768 = vld [vmem:[%s1 + $0xb00] sm:$0xf]
  %v769 = vld [vmem:[%s1 + $0xb04] sm:$0xf]
  %v770 = vld [vmem:[%s1 + $0xb08] sm:$0xf]
  %v771 = vld [vmem:[%s1 + $0xb0c] sm:$0xf]
  %v772 = vld [vmem:[%s1 + $0xb10] sm:$0xf]
  %v773 = vld [vmem:[%s1 + $0xb14] sm:$0xf]
  %v774 = vld [vmem:[%s1 + $0xb18] sm:$0xf]
  %v775 = vld [vmem:[%s1 + $0xb1c] sm:$0xf]
  %v776 = vld [vmem:[%s1 + $0xb20] sm:$0xf]
  %v777 = vld [vmem:[%s1 + $0xb24] sm:$0xf]
  %v778 = vld [vmem:[%s1 + $0xb28] sm:$0xf]
  %v779 = vld [vmem:[%s1 + $0xb2c] sm:$0xf]
  %v780 = vld [vmem:[%s1 + $0xb30] sm:$0xf]
  %v781 = vld [vmem:[%s1 + $0xb34] sm:$0xf]
  %v782 = vld [vmem:[%s1 + $0xb38] sm:$0xf]
  %v783 = vld [vmem:[%s1 + $0xb3c] sm:$0xf]
  %v784 = vld [vmem:[%s1 + $0xb40] sm:$0xf]
  %v785 = vld [vmem:[%s1 + $0xb44] sm:$0xf]
  %v786 = vld [vmem:[%s1 + $0xb48] sm:$0xf]
  %v787 = vld [vmem:[%s1 + $0xb4c] sm:$0xf]
  %v788 = vld [vmem:[%s1 + $0xb50] sm:$0xf]
  %v789 = vld [vmem:[%s1 + $0xb54] sm:$0xf]
  %v790 = vld [vmem:[%s1 + $0xb58] sm:$0xf]
  %v791 = vld [vmem:[%s1 + $0xb5c] sm:$0xf]
  %v792 = vld [vmem:[%s1 + $0xb60] sm:$0xf]
  %v793 = vld [vmem:[%s1 + $0xb64] sm:$0xf]
  %v794 = vld [vmem:[%s1 + $0xb68] sm:$0xf]
  %v795 = vld [vmem:[%s1 + $0xb6c] sm:$0xf]
  %v796 = vld [vmem:[%s1 + $0xb70] sm:$0xf]
  %v797 = vld [vmem:[%s1 + $0xb74] sm:$0xf]
  %v798 = vld [vmem:[%s1 + $0xb78] sm:$0xf]
  %v799 = vld [vmem:[%s1 + $0xb7c] sm:$0xf]
  %v800 = vld [vmem:[%s1 + $0xb80] sm:$0xf]
  %v801 = vld [vmem:[%s1 + $0xb84] sm:$0xf]
  %v802 = vld [vmem:[%s1 + $0xb88] sm:$0xf]
  %v803 = vld [vmem:[%s1 + $0xb8c] sm:$0xf]
  %v804 = vld [vmem:[%s1 + $0xb90] sm:$0xf]
  %v805 = vld [vmem:[%s1 + $0xb94] sm:$0xf]
  %v806 = vld [vmem:[%s1 + $0xb98] sm:$0xf]
  %v807 = vld [vmem:[%s1 + $0xb9c] sm:$0xf]
  %v808 = vld [vmem:[%s1 + $0xba0] sm:$0xf]
  %v809 = vld [vmem:[%s1 + $0xba4] sm:$0xf]
  %v810 = vld [vmem:[%s1 + $0xba8] sm:$0xf]
  %v811 = vld [vmem:[%s1 + $0xbac] sm:$0xf]
  %v812 = vld [vmem:[%s1 + $0xbb0] sm:$0xf]
  %v813 = vld [vmem:[%s1 + $0xbb4] sm:$0xf]
  %v814 = vld [vmem:[%s1 + $0xbb8] sm:$0xf]
  %v815 = vld [vmem:[%s1 + $0xbbc] sm:$0xf]
  %v816 = vld [vmem:[%s1 + $0xbc0] sm:$0xf]
  %v817 = vld [vmem:[%s1 + $0xbc4] sm:$0xf]
  %v818 = vld [vmem:[%s1 + $0xbc8] sm:$0xf]
  %v819 = vld [vmem:[%s1 + $0xbcc] sm:$0xf]
  %v820 = vld [vmem:[%s1 + $0xbd0] sm:$0xf]
  %v821 = vld [vmem:[%s1 + $0xbd4] sm:$0xf]
  %v822 = vld [vmem:[%s1 + $0xbd8] sm:$0xf]
  %v823 = vld [vmem:[%s1 + $0xbdc] sm:$0xf]
  %v824 = vld [vmem:[%s1 + $0xbe0] sm:$0xf]
  %v825 = vld [vmem:[%s1 + $0xbe4] sm:$0xf]
  %v826 = vld [vmem:[%s1 + $0xbe8] sm:$0xf]
  %v827 = vld [vmem:[%s1 + $0xbec] sm:$0xf]
  %v828 = vld [vmem:[%s1 + $0xbf0] sm:$0xf]
  %v829 = vld [vmem:[%s1 + $0xbf4] sm:$0xf]
  %v830 = vld [vmem:[%s1 + $0xbf8] sm:$0xf]
  %v831 = vld [vmem:[%s1 + $0xbfc] sm:$0xf]
  %v832 = vld [vmem:[%s1 + $0xc00] sm:$0xf]
  %v833 = vld [vmem:[%s1 + $0xc04] sm:$0xf]
  %v834 = vld [vmem:[%s1 + $0xc08] sm:$0xf]
  %v835 = vld [vmem:[%s1 + $0xc0c] sm:$0xf]
  %v836 = vld [vmem:[%s1 + $0xc10] sm:$0xf]
  %v837 = vld [vmem:[%s1 + $0xc14] sm:$0xf]
  %v838 = vld [vmem:[%s1 + $0xc18] sm:$0xf]
  %v839 = vld [vmem:[%s1 + $0xc1c] sm:$0xf]
  %v840 = vld [vmem:[%s1 + $0xc20] sm:$0xf]
  %v841 = vld [vmem:[%s1 + $0xc24] sm:$0xf]
  %v842 = vld [vmem:[%s1 + $0xc28] sm:$0xf]
  %v843 = vld [vmem:[%s1 + $0xc2c] sm:$0xf]
  %v844 = vld [vmem:[%s1 + $0xc30] sm:$0xf]
  %v845 = vld [vmem:[%s1 + $0xc34] sm:$0xf]
  %v846 = vld [vmem:[%s1 + $0xc38] sm:$0xf]
  %v847 = vld [vmem:[%s1 + $0xc3c] sm:$0xf]
  %v848 = vld [vmem:[%s1 + $0xc40] sm:$0xf]
  %v849 = vld [vmem:[%s1 + $0xc44] sm:$0xf]
  %v850 = vld [vmem:[%s1 + $0xc48] sm:$0xf]
  %v851 = vld [vmem:[%s1 + $0xc4c] sm:$0xf]
  %v852 = vld [vmem:[%s1 + $0xc50] sm:$0xf]
  %v853 = vld [vmem:[%s1 + $0xc54] sm:$0xf]
  %v854 = vld [vmem:[%s1 + $0xc58] sm:$0xf]
  %v855 = vld [vmem:[%s1 + $0xc5c] sm:$0xf]
  %v856 = vld [vmem:[%s1 + $0xc60] sm:$0xf]
  %v857 = vld [vmem:[%s1 + $0xc64] sm:$0xf]
  %v858 = vld [vmem:[%s1 + $0xc68] sm:$0xf]
  %v859 = vld [vmem:[%s1 + $0xc6c] sm:$0xf]
  %v860 = vld [vmem:[%s1 + $0xc70] sm:$0xf]
  %v861 = vld [vmem:[%s1 + $0xc74] sm:$0xf]
  %v862 = vld [vmem:[%s1 + $0xc78] sm:$0xf]
  %v863 = vld [vmem:[%s1 + $0xc7c] sm:$0xf]
  %v864 = vld [vmem:[%s1 + $0xc80] sm:$0xf]
  %v865 = vld [vmem:[%s1 + $0xc84] sm:$0xf]
  %v866 = vld [vmem:[%s1 + $0xc88] sm:$0xf]
  %v867 = vld [vmem:[%s1 + $0xc8c] sm:$0xf]
  %v868 = vld [vmem:[%s1 + $0xc90] sm:$0xf]
  %v869 = vld [vmem:[%s1 + $0xc94] sm:$0xf]
  %v870 = vld [vmem:[%s1 + $0xc98] sm:$0xf]
  %v871 = vld [vmem:[%s1 + $0xc9c] sm:$0xf]
  %v872 = vld [vmem:[%s1 + $0xca0] sm:$0xf]
  %v873 = vld [vmem:[%s1 + $0xca4] sm:$0xf]
  %v874 = vld [vmem:[%s1 + $0xca8] sm:$0xf]
  %v875 = vld [vmem:[%s1 + $0xcac] sm:$0xf]
  %v876 = vld [vmem:[%s1 + $0xcb0] sm:$0xf]
  %v877 = vld [vmem:[%s1 + $0xcb4] sm:$0xf]
  %v878 = vld [vmem:[%s1 + $0xcb8] sm:$0xf]
  %v879 = vld [vmem:[%s1 + $0xcbc] sm:$0xf]
  %v880 = vld [vmem:[%s1 + $0xcc0] sm:$0xf]
  %v881 = vld [vmem:[%s1 + $0xcc4] sm:$0xf]
  %v882 = vld [vmem:[%s1 + $0xcc8] sm:$0xf]
  %v883 = vld [vmem:[%s1 + $0xccc] sm:$0xf]
  %v884 = vld [vmem:[%s1 + $0xcd0] sm:$0xf]
  %v885 = vld [vmem:[%s1 + $0xcd4] sm:$0xf]
  %v886 = vld [vmem:[%s1 + $0xcd8] sm:$0xf]
  %v887 = vld [vmem:[%s1 + $0xcdc] sm:$0xf]
  %v888 = vld [vmem:[%s1 + $0xce0] sm:$0xf]
  %v889 = vld [vmem:[%s1 + $0xce4] sm:$0xf]
  %v890 = vld [vmem:[%s1 + $0xce8] sm:$0xf]
  %v891 = vld [vmem:[%s1 + $0xcec] sm:$0xf]
  %v892 = vld [vmem:[%s1 + $0xcf0] sm:$0xf]
  %v893 = vld [vmem:[%s1 + $0xcf4] sm:$0xf]
  %v894 = vld [vmem:[%s1 + $0xcf8] sm:$0xf]
  %v895 = vld [vmem:[%s1 + $0xcfc] sm:$0xf]
  %v896 = vld [vmem:[%s1 + $0xd00] sm:$0xf]
  %v897 = vld [vmem:[%s1 + $0xd04] sm:$0xf]
  %v898 = vld [vmem:[%s1 + $0xd08] sm:$0xf]
  %v899 = vld [vmem:[%s1 + $0xd0c] sm:$0xf]
  %v900 = vld [vmem:[%s1 + $0xd10] sm:$0xf]
  %v901 = vld [vmem:[%s1 + $0xd14] sm:$0xf]
  %v902 = vld [vmem:[%s1 + $0xd18] sm:$0xf]
  %v903 = vld [vmem:[%s1 + $0xd1c] sm:$0xf]
  %v904 = vld [vmem:[%s1 + $0xd20] sm:$0xf]
  %v905 = vld [vmem:[%s1 + $0xd24] sm:$0xf]
  %v906 = vld [vmem:[%s1 + $0xd28] sm:$0xf]
  %v907 = vld [vmem:[%s1 + $0xd2c] sm:$0xf]
  %v908 = vld [vmem:[%s1 + $0xd30] sm:$0xf]
  %v909 = vld [vmem:[%s1 + $0xd34] sm:$0xf]
  %v910 = vld [vmem:[%s1 + $0xd38] sm:$0xf]
  %v911 = vld [vmem:[%s1 + $0xd3c] sm:$0xf]
  %v912 = vld [vmem:[%s1 + $0xd40] sm:$0xf]
  %v913 = vld [vmem:[%s1 + $0xd44] sm:$0xf]
  %v914 = vld [vmem:[%s1 + $0xd48] sm:$0xf]
  %v915 = vld [vmem:[%s1 + $0xd4c] sm:$0xf]
  %v916 = vld [vmem:[%s1 + $0xd50] sm:$0xf]
  %v917 = vld [vmem:[%s1 + $0xd54] sm:$0xf]
  %v918 = vld [vmem:[%s1 + $0xd58] sm:$0xf]
  %v919 = vld [vmem:[%s1 + $0xd5c] sm:$0xf]
  %v920 = vld [vmem:[%s1 + $0xd60] sm:$0xf]
  %v921 = vld [vmem:[%s1 + $0xd64] sm:$0xf]
  %v922 = vld [vmem:[%s1 + $0xd68] sm:$0xf]
  %v923 = vld [vmem:[%s1 + $0xd6c] sm:$0xf]
  %v924 = vld [vmem:[%s1 + $0xd70] sm:$0xf]
  %v925 = vld [vmem:[%s1 + $0xd74] sm:$0xf]
  %v926 = vld [vmem:[%s1 + $0xd78] sm:$0xf]
  %v927 = vld [vmem:[%s1 + $0xd7c] sm:$0xf]
  %v928 = vld [vmem:[%s1 + $0xd80] sm:$0xf]
  %v929 = vld [vmem:[%s1 + $0xd84] sm:$0xf]
  %v930 = vld [vmem:[%s1 + $0xd88] sm:$0xf]
  %v931 = vld [vmem:[%s1 + $0xd8c] sm:$0xf]
  %v932 = vld [vmem:[%s1 + $0xd90] sm:$0xf]
  %v933 = vld [vmem:[%s1 + $0xd94] sm:$0xf]
  %v934 = vld [vmem:[%s1 + $0xd98] sm:$0xf]
  %v935 = vld [vmem:[%s1 + $0xd9c] sm:$0xf]
  %v936 = vld [vmem:[%s1 + $0xda0] sm:$0xf]
  %v937 = vld [vmem:[%s1 + $0xda4] sm:$0xf]
  %v938 = vld [vmem:[%s1 + $0xda8] sm:$0xf]
  %v939 = vld [vmem:[%s1 + $0xdac] sm:$0xf]
  %v940 = vld [vmem:[%s1 + $0xdb0] sm:$0xf]
  %v941 = vld [vmem:[%s1 + $0xdb4] sm:$0xf]
  %v942 = vld [vmem:[%s1 + $0xdb8] sm:$0xf]
  %v943 = vld [vmem:[%s1 + $0xdbc] sm:$0xf]
  %v944 = vld [vmem:[%s1 + $0xdc0] sm:$0xf]
  %v945 = vld [vmem:[%s1 + $0xdc4] sm:$0xf]
  %v946 = vld [vmem:[%s1 + $0xdc8] sm:$0xf]
  %v947 = vld [vmem:[%s1 + $0xdcc] sm:$0xf]
  %v948 = vld [vmem:[%s1 + $0xdd0] sm:$0xf]
  %v949 = vld [vmem:[%s1 + $0xdd4] sm:$0xf]
  %v950 = vld [vmem:[%s1 + $0xdd8] sm:$0xf]
  %v951 = vld [vmem:[%s1 + $0xddc] sm:$0xf]
  %v952 = vld [vmem:[%s1 + $0xde0] sm:$0xf]
  %v953 = vld [vmem:[%s1 + $0xde4] sm:$0xf]
  %v954 = vld [vmem:[%s1 + $0xde8] sm:$0xf]
  %v955 = vld [vmem:[%s1 + $0xdec] sm:$0xf]
  %v956 = vld [vmem:[%s1 + $0xdf0] sm:$0xf]
  %v957 = vld [vmem:[%s1 + $0xdf4] sm:$0xf]
  %v958 = vld [vmem:[%s1 + $0xdf8] sm:$0xf]
  %v959 = vld [vmem:[%s1 + $0xdfc] sm:$0xf]
  %v960 = vld [vmem:[%s1 + $0xe00] sm:$0xf]
  %v961 = vld [vmem:[%s1 + $0xe04] sm:$0xf]
  %v962 = vld [vmem:[%s1 + $0xe08] sm:$0xf]
  %v963 = vld [vmem:[%s1 + $0xe0c] sm:$0xf]
  %v964 = vld [vmem:[%s1 + $0xe10] sm:$0xf]
  %v965 = vld [vmem:[%s1 + $0xe14] sm:$0xf]
  %v966 = vld [vmem:[%s1 + $0xe18] sm:$0xf]
  %v967 = vld [vmem:[%s1 + $0xe1c] sm:$0xf]
  %v968 = vld [vmem:[%s1 + $0xe20] sm:$0xf]
  %v969 = vld [vmem:[%s1 + $0xe24] sm:$0xf]
  %v970 = vld [vmem:[%s1 + $0xe28] sm:$0xf]
  %v971 = vld [vmem:[%s1 + $0xe2c] sm:$0xf]
  %v972 = vld [vmem:[%s1 + $0xe30] sm:$0xf]
  %v973 = vld [vmem:[%s1 + $0xe34] sm:$0xf]
  %v974 = vld [vmem:[%s1 + $0xe38] sm:$0xf]
  %v975 = vld [vmem:[%s1 + $0xe3c] sm:$0xf]
  %v976 = vld [vmem:[%s1 + $0xe40] sm:$0xf]
  %v977 = vld [vmem:[%s1 + $0xe44] sm:$0xf]
  %v978 = vld [vmem:[%s1 + $0xe48] sm:$0xf]
  %v979 = vld [vmem:[%s1 + $0xe4c] sm:$0xf]
  %v980 = vld [vmem:[%s1 + $0xe50] sm:$0xf]
  %v981 = vld [vmem:[%s1 + $0xe54] sm:$0xf]
  %v982 = vld [vmem:[%s1 + $0xe58] sm:$0xf]
  %v983 = vld [vmem:[%s1 + $0xe5c] sm:$0xf]
  %v984 = vld [vmem:[%s1 + $0xe60] sm:$0xf]
  %v985 = vld [vmem:[%s1 + $0xe64] sm:$0xf]
  %v986 = vld [vmem:[%s1 + $0xe68] sm:$0xf]
  %v987 = vld [vmem:[%s1 + $0xe6c] sm:$0xf]
  %v988 = vld [vmem:[%s1 + $0xe70] sm:$0xf]
  %v989 = vld [vmem:[%s1 + $0xe74] sm:$0xf]
  %v990 = vld [vmem:[%s1 + $0xe78] sm:$0xf]
  %v991 = vld [vmem:[%s1 + $0xe7c] sm:$0xf]
  %v992 = vld [vmem:[%s1 + $0xe80] sm:$0xf]
  %v993 = vld [vmem:[%s1 + $0xe84] sm:$0xf]
  %v994 = vld [vmem:[%s1 + $0xe88] sm:$0xf]
  %v995 = vld [vmem:[%s1 + $0xe8c] sm:$0xf]
  %v996 = vld [vmem:[%s1 + $0xe90] sm:$0xf]
  %v997 = vld [vmem:[%s1 + $0xe94] sm:$0xf]
  %v998 = vld [vmem:[%s1 + $0xe98] sm:$0xf]
  %v999 = vld [vmem:[%s1 + $0xe9c] sm:$0xf]
  %v1000 = vld [vmem:[%s1 + $0xea0] sm:$0xf]
  %v1001 = vld [vmem:[%s1 + $0xea4] sm:$0xf]
  %v1002 = vld [vmem:[%s1 + $0xea8] sm:$0xf]
  %v1003 = vld [vmem:[%s1 + $0xeac] sm:$0xf]
  %v1004 = vld [vmem:[%s1 + $0xeb0] sm:$0xf]
  %v1005 = vld [vmem:[%s1 + $0xeb4] sm:$0xf]
  %v1006 = vld [vmem:[%s1 + $0xeb8] sm:$0xf]
  %v1007 = vld [vmem:[%s1 + $0xebc] sm:$0xf]
  %v1008 = vld [vmem:[%s1 + $0xec0] sm:$0xf]
  %v1009 = vld [vmem:[%s1 + $0xec4] sm:$0xf]
  %v1010 = vld [vmem:[%s1 + $0xec8] sm:$0xf]
  %v1011 = vld [vmem:[%s1 + $0xecc] sm:$0xf]
  %v1012 = vld [vmem:[%s1 + $0xed0] sm:$0xf]
  %v1013 = vld [vmem:[%s1 + $0xed4] sm:$0xf]
  %v1014 = vld [vmem:[%s1 + $0xed8] sm:$0xf]
  %v1015 = vld [vmem:[%s1 + $0xedc] sm:$0xf]
  %v1016 = vld [vmem:[%s1 + $0xee0] sm:$0xf]
  %v1017 = vld [vmem:[%s1 + $0xee4] sm:$0xf]
  %v1018 = vld [vmem:[%s1 + $0xee8] sm:$0xf]
  %v1019 = vld [vmem:[%s1 + $0xeec] sm:$0xf]
  %v1020 = vld [vmem:[%s1 + $0xef0] sm:$0xf]
  %v1021 = vld [vmem:[%s1 + $0xef4] sm:$0xf]
  %v1022 = vld [vmem:[%s1 + $0xef8] sm:$0xf]
  %v1023 = vld [vmem:[%s1 + $0xefc] sm:$0xf]
  %v1024 = vld [vmem:[%s1 + $0xf00] sm:$0xf]
  %v1025 = vld [vmem:[%s1 + $0xf04] sm:$0xf]
  %v1026 = vld [vmem:[%s1 + $0xf08] sm:$0xf]
  %v1027 = vld [vmem:[%s1 + $0xf0c] sm:$0xf]
  %v1028 = vld [vmem:[%s1 + $0xf10] sm:$0xf]
  %v1029 = vld [vmem:[%s1 + $0xf14] sm:$0xf]
  %v1030 = vld [vmem:[%s1 + $0xf18] sm:$0xf]
  %v1031 = vld [vmem:[%s1 + $0xf1c] sm:$0xf]
  %v1032 = vld [vmem:[%s1 + $0xf20] sm:$0xf]
  %v1033 = vld [vmem:[%s1 + $0xf24] sm:$0xf]
  %v1034 = vld [vmem:[%s1 + $0xf28] sm:$0xf]
  %v1035 = vld [vmem:[%s1 + $0xf2c] sm:$0xf]
  %v1036 = vld [vmem:[%s1 + $0xf30] sm:$0xf]
  %v1037 = vld [vmem:[%s1 + $0xf34] sm:$0xf]
  %v1038 = vld [vmem:[%s1 + $0xf38] sm:$0xf]
  %v1039 = vld [vmem:[%s1 + $0xf3c] sm:$0xf]
  %v1040 = vld [vmem:[%s1 + $0xf40] sm:$0xf]
  %v1041 = vld [vmem:[%s1 + $0xf44] sm:$0xf]
  %v1042 = vld [vmem:[%s1 + $0xf48] sm:$0xf]
  %v1043 = vld [vmem:[%s1 + $0xf4c] sm:$0xf]
  %v1044 = vld [vmem:[%s1 + $0xf50] sm:$0xf]
  %v1045 = vld [vmem:[%s1 + $0xf54] sm:$0xf]
  %v1046 = vld [vmem:[%s1 + $0xf58] sm:$0xf]
  %v1047 = vld [vmem:[%s1 + $0xf5c] sm:$0xf]
  %v1048 = vld [vmem:[%s1 + $0xf60] sm:$0xf]
  %v1049 = vld [vmem:[%s1 + $0xf64] sm:$0xf]
  %v1050 = vld [vmem:[%s1 + $0xf68] sm:$0xf]
  %v1051 = vld [vmem:[%s1 + $0xf6c] sm:$0xf]
  %v1052 = vld [vmem:[%s1 + $0xf70] sm:$0xf]
  %v1053 = vld [vmem:[%s1 + $0xf74] sm:$0xf]
  %v1054 = vld [vmem:[%s1 + $0xf78] sm:$0xf]
  %v1055 = vld [vmem:[%s1 + $0xf7c] sm:$0xf]
  %v1056 = vld [vmem:[%s1 + $0xf80] sm:$0xf]
  %v1057 = vld [vmem:[%s1 + $0xf84] sm:$0xf]
  %v1058 = vld [vmem:[%s1 + $0xf88] sm:$0xf]
  %v1059 = vld [vmem:[%s1 + $0xf8c] sm:$0xf]
  %v1060 = vld [vmem:[%s1 + $0xf90] sm:$0xf]
  %v1061 = vld [vmem:[%s1 + $0xf94] sm:$0xf]
  %v1062 = vld [vmem:[%s1 + $0xf98] sm:$0xf]
  %v1063 = vld [vmem:[%s1 + $0xf9c] sm:$0xf]
  %v1064 = vld [vmem:[%s1 + $0xfa0] sm:$0xf]
  %v1065 = vld [vmem:[%s1 + $0xfa4] sm:$0xf]
  %v1066 = vld [vmem:[%s1 + $0xfa8] sm:$0xf]
  %v1067 = vld [vmem:[%s1 + $0xfac] sm:$0xf]
  %v1068 = vld [vmem:[%s1 + $0xfb0] sm:$0xf]
  %v1069 = vld [vmem:[%s1 + $0xfb4] sm:$0xf]
  %v1070 = vld [vmem:[%s1 + $0xfb8] sm:$0xf]
  %v1071 = vld [vmem:[%s1 + $0xfbc] sm:$0xf]
  %v1072 = vld [vmem:[%s1 + $0xfc0] sm:$0xf]
  %v1073 = vld [vmem:[%s1 + $0xfc4] sm:$0xf]
  %v1074 = vld [vmem:[%s1 + $0xfc8] sm:$0xf]
  %v1075 = vld [vmem:[%s1 + $0xfcc] sm:$0xf]
  %v1076 = vld [vmem:[%s1 + $0xfd0] sm:$0xf]
  %v1077 = vld [vmem:[%s1 + $0xfd4] sm:$0xf]
  %v1078 = vld [vmem:[%s1 + $0xfd8] sm:$0xf]
  %v1079 = vld [vmem:[%s1 + $0xfdc] sm:$0xf]
  %v1080 = vld [vmem:[%s1 + $0xfe0] sm:$0xf]
  %v1081 = vld [vmem:[%s1 + $0xfe4] sm:$0xf]
  %v1082 = vld [vmem:[%s1 + $0xfe8] sm:$0xf]
  %v1083 = vld [vmem:[%s1 + $0xfec] sm:$0xf]
  %v1084 = vld [vmem:[%s1 + $0xff0] sm:$0xf]
  %v1085 = vld [vmem:[%s1 + $0xff4] sm:$0xf]
  %v1086 = vld [vmem:[%s1 + $0xff8] sm:$0xf]
  %v1087 = vld [vmem:[%s1 + $0xffc] sm:$0xf]
  %v1120 = vunpack.c.l.b16 %v32
  %v1121 = vunpack.c.h.b16 %v32
  %v1122 = vunpack.c.l.b16 %v33
  %v1123 = vunpack.c.h.b16 %v33
  %v1124 = vunpack.c.l.b16 %v34
  %v1125 = vunpack.c.h.b16 %v34
  %v1126 = vunpack.c.l.b16 %v35
  %v1127 = vunpack.c.h.b16 %v35
  %v1128 = vunpack.c.l.b16 %v36
  %v1129 = vunpack.c.h.b16 %v36
  %v1130 = vunpack.c.l.b16 %v37
  %v1131 = vunpack.c.h.b16 %v37
  %v1132 = vunpack.c.l.b16 %v38
  %v1133 = vunpack.c.h.b16 %v38
  %v1134 = vunpack.c.l.b16 %v39
  %v1135 = vunpack.c.h.b16 %v39
  %v1136 = vunpack.c.l.b16 %v40
  %v1137 = vunpack.c.h.b16 %v40
  %v1138 = vunpack.c.l.b16 %v41
  %v1139 = vunpack.c.h.b16 %v41
  %v1140 = vunpack.c.l.b16 %v42
  %v1141 = vunpack.c.h.b16 %v42
  %v1142 = vunpack.c.l.b16 %v43
  %v1143 = vunpack.c.h.b16 %v43
  %v1144 = vunpack.c.l.b16 %v44
  %v1145 = vunpack.c.h.b16 %v44
  %v1146 = vunpack.c.l.b16 %v45
  %v1147 = vunpack.c.h.b16 %v45
  %v1148 = vunpack.c.l.b16 %v46
  %v1149 = vunpack.c.h.b16 %v46
  %v1150 = vunpack.c.l.b16 %v47
  %v1151 = vunpack.c.h.b16 %v47
  %v1152 = vunpack.c.l.b16 %v48
  %v1153 = vunpack.c.h.b16 %v48
  %v1154 = vunpack.c.l.b16 %v49
  %v1155 = vunpack.c.h.b16 %v49
  %v1156 = vunpack.c.l.b16 %v50
  %v1157 = vunpack.c.h.b16 %v50
  %v1158 = vunpack.c.l.b16 %v51
  %v1159 = vunpack.c.h.b16 %v51
  %v1160 = vunpack.c.l.b16 %v52
  %v1161 = vunpack.c.h.b16 %v52
  %v1162 = vunpack.c.l.b16 %v53
  %v1163 = vunpack.c.h.b16 %v53
  %v1164 = vunpack.c.l.b16 %v54
  %v1165 = vunpack.c.h.b16 %v54
  %v1166 = vunpack.c.l.b16 %v55
  %v1167 = vunpack.c.h.b16 %v55
  %v1168 = vunpack.c.l.b16 %v56
  %v1169 = vunpack.c.h.b16 %v56
  %v1170 = vunpack.c.l.b16 %v57
  %v1171 = vunpack.c.h.b16 %v57
  %v1172 = vunpack.c.l.b16 %v58
  %v1173 = vunpack.c.h.b16 %v58
  %v1174 = vunpack.c.l.b16 %v59
  %v1175 = vunpack.c.h.b16 %v59
  %v1176 = vunpack.c.l.b16 %v60
  %v1177 = vunpack.c.h.b16 %v60
  %v1178 = vunpack.c.l.b16 %v61
  %v1179 = vunpack.c.h.b16 %v61
  %v1180 = vunpack.c.l.b16 %v62
  %v1181 = vunpack.c.h.b16 %v62
  %v1182 = vunpack.c.l.b16 %v63
  %v1183 = vunpack.c.h.b16 %v63
  %v1184 = vpack.c.b16 %v1120, %v1120
  %v1185 = vpack.c.b16 %v1121, %v1121
  %v1186 = vpack.c.b16 %v1122, %v1122
  %v1187 = vpack.c.b16 %v1123, %v1123
  %v1188 = vpack.c.b16 %v1124, %v1124
  %v1189 = vpack.c.b16 %v1125, %v1125
  %v1190 = vpack.c.b16 %v1126, %v1126
  %v1191 = vpack.c.b16 %v1127, %v1127
  %v1192 = vpack.c.b16 %v1128, %v1128
  %v1193 = vpack.c.b16 %v1129, %v1129
  %v1194 = vpack.c.b16 %v1130, %v1130
  %v1195 = vpack.c.b16 %v1131, %v1131
  %v1196 = vpack.c.b16 %v1132, %v1132
  %v1197 = vpack.c.b16 %v1133, %v1133
  %v1198 = vpack.c.b16 %v1134, %v1134
  %v1199 = vpack.c.b16 %v1135, %v1135
  %v1200 = vpack.c.b16 %v1136, %v1136
  %v1201 = vpack.c.b16 %v1137, %v1137
  %v1202 = vpack.c.b16 %v1138, %v1138
  %v1203 = vpack.c.b16 %v1139, %v1139
  %v1204 = vpack.c.b16 %v1140, %v1140
  %v1205 = vpack.c.b16 %v1141, %v1141
  %v1206 = vpack.c.b16 %v1142, %v1142
  %v1207 = vpack.c.b16 %v1143, %v1143
  %v1208 = vpack.c.b16 %v1144, %v1144
  %v1209 = vpack.c.b16 %v1145, %v1145
  %v1210 = vpack.c.b16 %v1146, %v1146
  %v1211 = vpack.c.b16 %v1147, %v1147
  %v1212 = vpack.c.b16 %v1148, %v1148
  %v1213 = vpack.c.b16 %v1149, %v1149
  %v1214 = vpack.c.b16 %v1150, %v1150
  %v1215 = vpack.c.b16 %v1151, %v1151
  %v1216 = vpack.c.b16 %v1152, %v1152
  %v1217 = vpack.c.b16 %v1153, %v1153
  %v1218 = vpack.c.b16 %v1154, %v1154
  %v1219 = vpack.c.b16 %v1155, %v1155
  %v1220 = vpack.c.b16 %v1156, %v1156
  %v1221 = vpack.c.b16 %v1157, %v1157
  %v1222 = vpack.c.b16 %v1158, %v1158
  %v1223 = vpack.c.b16 %v1159, %v1159
  %v1224 = vpack.c.b16 %v1160, %v1160
  %v1225 = vpack.c.b16 %v1161, %v1161
  %v1226 = vpack.c.b16 %v1162, %v1162
  %v1227 = vpack.c.b16 %v1163, %v1163
  %v1228 = vpack.c.b16 %v1164, %v1164
  %v1229 = vpack.c.b16 %v1165, %v1165
  %v1230 = vpack.c.b16 %v1166, %v1166
  %v1231 = vpack.c.b16 %v1167, %v1167
  %v1232 = vpack.c.b16 %v1168, %v1168
  %v1233 = vpack.c.b16 %v1169, %v1169
  %v1234 = vpack.c.b16 %v1170, %v1170
  %v1235 = vpack.c.b16 %v1171, %v1171
  %v1236 = vpack.c.b16 %v1172, %v1172
  %v1237 = vpack.c.b16 %v1173, %v1173
  %v1238 = vpack.c.b16 %v1174, %v1174
  %v1239 = vpack.c.b16 %v1175, %v1175
  %v1240 = vpack.c.b16 %v1176, %v1176
  %v1241 = vpack.c.b16 %v1177, %v1177
  %v1242 = vpack.c.b16 %v1178, %v1178
  %v1243 = vpack.c.b16 %v1179, %v1179
  %v1244 = vpack.c.b16 %v1180, %v1180
  %v1245 = vpack.c.b16 %v1181, %v1181
  %v1246 = vpack.c.b16 %v1182, %v1182
  %v1247 = vpack.c.b16 %v1183, %v1183
  %v2336 = vunpack.c.l.b16 %v64
  %v2337 = vunpack.c.l.b16 %v65
  %v2338 = vunpack.c.l.b16 %v66
  %v2339 = vunpack.c.l.b16 %v67
  %v2340 = vunpack.c.l.b16 %v68
  %v2341 = vunpack.c.l.b16 %v69
  %v2342 = vunpack.c.l.b16 %v70
  %v2343 = vunpack.c.l.b16 %v71
  %v2344 = vunpack.c.l.b16 %v72
  %v2345 = vunpack.c.l.b16 %v73
  %v2346 = vunpack.c.l.b16 %v74
  %v2347 = vunpack.c.l.b16 %v75
  %v2348 = vunpack.c.l.b16 %v76
  %v2349 = vunpack.c.l.b16 %v77
  %v2350 = vunpack.c.l.b16 %v78
  %v2351 = vunpack.c.l.b16 %v79
  %v2352 = vunpack.c.l.b16 %v80
  %v2353 = vunpack.c.l.b16 %v81
  %v2354 = vunpack.c.l.b16 %v82
  %v2355 = vunpack.c.l.b16 %v83
  %v2356 = vunpack.c.l.b16 %v84
  %v2357 = vunpack.c.l.b16 %v85
  %v2358 = vunpack.c.l.b16 %v86
  %v2359 = vunpack.c.l.b16 %v87
  %v2360 = vunpack.c.l.b16 %v88
  %v2361 = vunpack.c.l.b16 %v89
  %v2362 = vunpack.c.l.b16 %v90
  %v2363 = vunpack.c.l.b16 %v91
  %v2364 = vunpack.c.l.b16 %v92
  %v2365 = vunpack.c.l.b16 %v93
  %v2366 = vunpack.c.l.b16 %v94
  %v2367 = vunpack.c.l.b16 %v95
  %v2368 = vunpack.c.l.b16 %v96
  %v2369 = vunpack.c.l.b16 %v97
  %v2370 = vunpack.c.l.b16 %v98
  %v2371 = vunpack.c.l.b16 %v99
  %v2372 = vunpack.c.l.b16 %v100
  %v2373 = vunpack.c.l.b16 %v101
  %v2374 = vunpack.c.l.b16 %v102
  %v2375 = vunpack.c.l.b16 %v103
  %v2376 = vunpack.c.l.b16 %v104
  %v2377 = vunpack.c.l.b16 %v105
  %v2378 = vunpack.c.l.b16 %v106
  %v2379 = vunpack.c.l.b16 %v107
  %v2380 = vunpack.c.l.b16 %v108
  %v2381 = vunpack.c.l.b16 %v109
  %v2382 = vunpack.c.l.b16 %v110
  %v2383 = vunpack.c.l.b16 %v111
  %v2384 = vunpack.c.l.b16 %v112
  %v2385 = vunpack.c.l.b16 %v113
  %v2386 = vunpack.c.l.b16 %v114
  %v2387 = vunpack.c.l.b16 %v115
  %v2388 = vunpack.c.l.b16 %v116
  %v2389 = vunpack.c.l.b16 %v117
  %v2390 = vunpack.c.l.b16 %v118
  %v2391 = vunpack.c.l.b16 %v119
  %v2392 = vunpack.c.l.b16 %v120
  %v2393 = vunpack.c.l.b16 %v121
  %v2394 = vunpack.c.l.b16 %v122
  %v2395 = vunpack.c.l.b16 %v123
  %v2396 = vunpack.c.l.b16 %v124
  %v2397 = vunpack.c.l.b16 %v125
  %v2398 = vunpack.c.l.b16 %v126
  %v2399 = vunpack.c.l.b16 %v127
  %v2400 = vunpack.c.l.b16 %v128
  %v2401 = vunpack.c.l.b16 %v129
  %v2402 = vunpack.c.l.b16 %v130
  %v2403 = vunpack.c.l.b16 %v131
  %v2404 = vunpack.c.l.b16 %v132
  %v2405 = vunpack.c.l.b16 %v133
  %v2406 = vunpack.c.l.b16 %v134
  %v2407 = vunpack.c.l.b16 %v135
  %v2408 = vunpack.c.l.b16 %v136
  %v2409 = vunpack.c.l.b16 %v137
  %v2410 = vunpack.c.l.b16 %v138
  %v2411 = vunpack.c.l.b16 %v139
  %v2412 = vunpack.c.l.b16 %v140
  %v2413 = vunpack.c.l.b16 %v141
  %v2414 = vunpack.c.l.b16 %v142
  %v2415 = vunpack.c.l.b16 %v143
  %v2416 = vunpack.c.l.b16 %v144
  %v2417 = vunpack.c.l.b16 %v145
  %v2418 = vunpack.c.l.b16 %v146
  %v2419 = vunpack.c.l.b16 %v147
  %v2420 = vunpack.c.l.b16 %v148
  %v2421 = vunpack.c.l.b16 %v149
  %v2422 = vunpack.c.l.b16 %v150
  %v2423 = vunpack.c.l.b16 %v151
  %v2424 = vunpack.c.l.b16 %v152
  %v2425 = vunpack.c.l.b16 %v153
  %v2426 = vunpack.c.l.b16 %v154
  %v2427 = vunpack.c.l.b16 %v155
  %v2428 = vunpack.c.l.b16 %v156
  %v2429 = vunpack.c.l.b16 %v157
  %v2430 = vunpack.c.l.b16 %v158
  %v2431 = vunpack.c.l.b16 %v159
  %v2432 = vunpack.c.l.b16 %v160
  %v2433 = vunpack.c.l.b16 %v161
  %v2434 = vunpack.c.l.b16 %v162
  %v2435 = vunpack.c.l.b16 %v163
  %v2436 = vunpack.c.l.b16 %v164
  %v2437 = vunpack.c.l.b16 %v165
  %v2438 = vunpack.c.l.b16 %v166
  %v2439 = vunpack.c.l.b16 %v167
  %v2440 = vunpack.c.l.b16 %v168
  %v2441 = vunpack.c.l.b16 %v169
  %v2442 = vunpack.c.l.b16 %v170
  %v2443 = vunpack.c.l.b16 %v171
  %v2444 = vunpack.c.l.b16 %v172
  %v2445 = vunpack.c.l.b16 %v173
  %v2446 = vunpack.c.l.b16 %v174
  %v2447 = vunpack.c.l.b16 %v175
  %v2448 = vunpack.c.l.b16 %v176
  %v2449 = vunpack.c.l.b16 %v177
  %v2450 = vunpack.c.l.b16 %v178
  %v2451 = vunpack.c.l.b16 %v179
  %v2452 = vunpack.c.l.b16 %v180
  %v2453 = vunpack.c.l.b16 %v181
  %v2454 = vunpack.c.l.b16 %v182
  %v2455 = vunpack.c.l.b16 %v183
  %v2456 = vunpack.c.l.b16 %v184
  %v2457 = vunpack.c.l.b16 %v185
  %v2458 = vunpack.c.l.b16 %v186
  %v2459 = vunpack.c.l.b16 %v187
  %v2460 = vunpack.c.l.b16 %v188
  %v2461 = vunpack.c.l.b16 %v189
  %v2462 = vunpack.c.l.b16 %v190
  %v2463 = vunpack.c.l.b16 %v191
  %v2464 = vunpack.c.l.b16 %v192
  %v2465 = vunpack.c.l.b16 %v193
  %v2466 = vunpack.c.l.b16 %v194
  %v2467 = vunpack.c.l.b16 %v195
  %v2468 = vunpack.c.l.b16 %v196
  %v2469 = vunpack.c.l.b16 %v197
  %v2470 = vunpack.c.l.b16 %v198
  %v2471 = vunpack.c.l.b16 %v199
  %v2472 = vunpack.c.l.b16 %v200
  %v2473 = vunpack.c.l.b16 %v201
  %v2474 = vunpack.c.l.b16 %v202
  %v2475 = vunpack.c.l.b16 %v203
  %v2476 = vunpack.c.l.b16 %v204
  %v2477 = vunpack.c.l.b16 %v205
  %v2478 = vunpack.c.l.b16 %v206
  %v2479 = vunpack.c.l.b16 %v207
  %v2480 = vunpack.c.l.b16 %v208
  %v2481 = vunpack.c.l.b16 %v209
  %v2482 = vunpack.c.l.b16 %v210
  %v2483 = vunpack.c.l.b16 %v211
  %v2484 = vunpack.c.l.b16 %v212
  %v2485 = vunpack.c.l.b16 %v213
  %v2486 = vunpack.c.l.b16 %v214
  %v2487 = vunpack.c.l.b16 %v215
  %v2488 = vunpack.c.l.b16 %v216
  %v2489 = vunpack.c.l.b16 %v217
  %v2490 = vunpack.c.l.b16 %v218
  %v2491 = vunpack.c.l.b16 %v219
  %v2492 = vunpack.c.l.b16 %v220
  %v2493 = vunpack.c.l.b16 %v221
  %v2494 = vunpack.c.l.b16 %v222
  %v2495 = vunpack.c.l.b16 %v223
  %v2496 = vunpack.c.l.b16 %v224
  %v2497 = vunpack.c.l.b16 %v225
  %v2498 = vunpack.c.l.b16 %v226
  %v2499 = vunpack.c.l.b16 %v227
  %v2500 = vunpack.c.l.b16 %v228
  %v2501 = vunpack.c.l.b16 %v229
  %v2502 = vunpack.c.l.b16 %v230
  %v2503 = vunpack.c.l.b16 %v231
  %v2504 = vunpack.c.l.b16 %v232
  %v2505 = vunpack.c.l.b16 %v233
  %v2506 = vunpack.c.l.b16 %v234
  %v2507 = vunpack.c.l.b16 %v235
  %v2508 = vunpack.c.l.b16 %v236
  %v2509 = vunpack.c.l.b16 %v237
  %v2510 = vunpack.c.l.b16 %v238
  %v2511 = vunpack.c.l.b16 %v239
  %v2512 = vunpack.c.l.b16 %v240
  %v2513 = vunpack.c.l.b16 %v241
  %v2514 = vunpack.c.l.b16 %v242
  %v2515 = vunpack.c.l.b16 %v243
  %v2516 = vunpack.c.l.b16 %v244
  %v2517 = vunpack.c.l.b16 %v245
  %v2518 = vunpack.c.l.b16 %v246
  %v2519 = vunpack.c.l.b16 %v247
  %v2520 = vunpack.c.l.b16 %v248
  %v2521 = vunpack.c.l.b16 %v249
  %v2522 = vunpack.c.l.b16 %v250
  %v2523 = vunpack.c.l.b16 %v251
  %v2524 = vunpack.c.l.b16 %v252
  %v2525 = vunpack.c.l.b16 %v253
  %v2526 = vunpack.c.l.b16 %v254
  %v2527 = vunpack.c.l.b16 %v255
  %v2528 = vunpack.c.l.b16 %v256
  %v2529 = vunpack.c.l.b16 %v257
  %v2530 = vunpack.c.l.b16 %v258
  %v2531 = vunpack.c.l.b16 %v259
  %v2532 = vunpack.c.l.b16 %v260
  %v2533 = vunpack.c.l.b16 %v261
  %v2534 = vunpack.c.l.b16 %v262
  %v2535 = vunpack.c.l.b16 %v263
  %v2536 = vunpack.c.l.b16 %v264
  %v2537 = vunpack.c.l.b16 %v265
  %v2538 = vunpack.c.l.b16 %v266
  %v2539 = vunpack.c.l.b16 %v267
  %v2540 = vunpack.c.l.b16 %v268
  %v2541 = vunpack.c.l.b16 %v269
  %v2542 = vunpack.c.l.b16 %v270
  %v2543 = vunpack.c.l.b16 %v271
  %v2544 = vunpack.c.l.b16 %v272
  %v2545 = vunpack.c.l.b16 %v273
  %v2546 = vunpack.c.l.b16 %v274
  %v2547 = vunpack.c.l.b16 %v275
  %v2548 = vunpack.c.l.b16 %v276
  %v2549 = vunpack.c.l.b16 %v277
  %v2550 = vunpack.c.l.b16 %v278
  %v2551 = vunpack.c.l.b16 %v279
  %v2552 = vunpack.c.l.b16 %v280
  %v2553 = vunpack.c.l.b16 %v281
  %v2554 = vunpack.c.l.b16 %v282
  %v2555 = vunpack.c.l.b16 %v283
  %v2556 = vunpack.c.l.b16 %v284
  %v2557 = vunpack.c.l.b16 %v285
  %v2558 = vunpack.c.l.b16 %v286
  %v2559 = vunpack.c.l.b16 %v287
  %v2560 = vunpack.c.l.b16 %v288
  %v2561 = vunpack.c.l.b16 %v289
  %v2562 = vunpack.c.l.b16 %v290
  %v2563 = vunpack.c.l.b16 %v291
  %v2564 = vunpack.c.l.b16 %v292
  %v2565 = vunpack.c.l.b16 %v293
  %v2566 = vunpack.c.l.b16 %v294
  %v2567 = vunpack.c.l.b16 %v295
  %v2568 = vunpack.c.l.b16 %v296
  %v2569 = vunpack.c.l.b16 %v297
  %v2570 = vunpack.c.l.b16 %v298
  %v2571 = vunpack.c.l.b16 %v299
  %v2572 = vunpack.c.l.b16 %v300
  %v2573 = vunpack.c.l.b16 %v301
  %v2574 = vunpack.c.l.b16 %v302
  %v2575 = vunpack.c.l.b16 %v303
  %v2576 = vunpack.c.l.b16 %v304
  %v2577 = vunpack.c.l.b16 %v305
  %v2578 = vunpack.c.l.b16 %v306
  %v2579 = vunpack.c.l.b16 %v307
  %v2580 = vunpack.c.l.b16 %v308
  %v2581 = vunpack.c.l.b16 %v309
  %v2582 = vunpack.c.l.b16 %v310
  %v2583 = vunpack.c.l.b16 %v311
  %v2584 = vunpack.c.l.b16 %v312
  %v2585 = vunpack.c.l.b16 %v313
  %v2586 = vunpack.c.l.b16 %v314
  %v2587 = vunpack.c.l.b16 %v315
  %v2588 = vunpack.c.l.b16 %v316
  %v2589 = vunpack.c.l.b16 %v317
  %v2590 = vunpack.c.l.b16 %v318
  %v2591 = vunpack.c.l.b16 %v319
  %v2592 = vunpack.c.l.b16 %v320
  %v2593 = vunpack.c.l.b16 %v321
  %v2594 = vunpack.c.l.b16 %v322
  %v2595 = vunpack.c.l.b16 %v323
  %v2596 = vunpack.c.l.b16 %v324
  %v2597 = vunpack.c.l.b16 %v325
  %v2598 = vunpack.c.l.b16 %v326
  %v2599 = vunpack.c.l.b16 %v327
  %v2600 = vunpack.c.l.b16 %v328
  %v2601 = vunpack.c.l.b16 %v329
  %v2602 = vunpack.c.l.b16 %v330
  %v2603 = vunpack.c.l.b16 %v331
  %v2604 = vunpack.c.l.b16 %v332
  %v2605 = vunpack.c.l.b16 %v333
  %v2606 = vunpack.c.l.b16 %v334
  %v2607 = vunpack.c.l.b16 %v335
  %v2608 = vunpack.c.l.b16 %v336
  %v2609 = vunpack.c.l.b16 %v337
  %v2610 = vunpack.c.l.b16 %v338
  %v2611 = vunpack.c.l.b16 %v339
  %v2612 = vunpack.c.l.b16 %v340
  %v2613 = vunpack.c.l.b16 %v341
  %v2614 = vunpack.c.l.b16 %v342
  %v2615 = vunpack.c.l.b16 %v343
  %v2616 = vunpack.c.l.b16 %v344
  %v2617 = vunpack.c.l.b16 %v345
  %v2618 = vunpack.c.l.b16 %v346
  %v2619 = vunpack.c.l.b16 %v347
  %v2620 = vunpack.c.l.b16 %v348
  %v2621 = vunpack.c.l.b16 %v349
  %v2622 = vunpack.c.l.b16 %v350
  %v2623 = vunpack.c.l.b16 %v351
  %v2624 = vunpack.c.l.b16 %v352
  %v2625 = vunpack.c.l.b16 %v353
  %v2626 = vunpack.c.l.b16 %v354
  %v2627 = vunpack.c.l.b16 %v355
  %v2628 = vunpack.c.l.b16 %v356
  %v2629 = vunpack.c.l.b16 %v357
  %v2630 = vunpack.c.l.b16 %v358
  %v2631 = vunpack.c.l.b16 %v359
  %v2632 = vunpack.c.l.b16 %v360
  %v2633 = vunpack.c.l.b16 %v361
  %v2634 = vunpack.c.l.b16 %v362
  %v2635 = vunpack.c.l.b16 %v363
  %v2636 = vunpack.c.l.b16 %v364
  %v2637 = vunpack.c.l.b16 %v365
  %v2638 = vunpack.c.l.b16 %v366
  %v2639 = vunpack.c.l.b16 %v367
  %v2640 = vunpack.c.l.b16 %v368
  %v2641 = vunpack.c.l.b16 %v369
  %v2642 = vunpack.c.l.b16 %v370
  %v2643 = vunpack.c.l.b16 %v371
  %v2644 = vunpack.c.l.b16 %v372
  %v2645 = vunpack.c.l.b16 %v373
  %v2646 = vunpack.c.l.b16 %v374
  %v2647 = vunpack.c.l.b16 %v375
  %v2648 = vunpack.c.l.b16 %v376
  %v2649 = vunpack.c.l.b16 %v377
  %v2650 = vunpack.c.l.b16 %v378
  %v2651 = vunpack.c.l.b16 %v379
  %v2652 = vunpack.c.l.b16 %v380
  %v2653 = vunpack.c.l.b16 %v381
  %v2654 = vunpack.c.l.b16 %v382
  %v2655 = vunpack.c.l.b16 %v383
  %v2656 = vunpack.c.l.b16 %v384
  %v2657 = vunpack.c.l.b16 %v385
  %v2658 = vunpack.c.l.b16 %v386
  %v2659 = vunpack.c.l.b16 %v387
  %v2660 = vunpack.c.l.b16 %v388
  %v2661 = vunpack.c.l.b16 %v389
  %v2662 = vunpack.c.l.b16 %v390
  %v2663 = vunpack.c.l.b16 %v391
  %v2664 = vunpack.c.l.b16 %v392
  %v2665 = vunpack.c.l.b16 %v393
  %v2666 = vunpack.c.l.b16 %v394
  %v2667 = vunpack.c.l.b16 %v395
  %v2668 = vunpack.c.l.b16 %v396
  %v2669 = vunpack.c.l.b16 %v397
  %v2670 = vunpack.c.l.b16 %v398
  %v2671 = vunpack.c.l.b16 %v399
  %v2672 = vunpack.c.l.b16 %v400
  %v2673 = vunpack.c.l.b16 %v401
  %v2674 = vunpack.c.l.b16 %v402
  %v2675 = vunpack.c.l.b16 %v403
  %v2676 = vunpack.c.l.b16 %v404
  %v2677 = vunpack.c.l.b16 %v405
  %v2678 = vunpack.c.l.b16 %v406
  %v2679 = vunpack.c.l.b16 %v407
  %v2680 = vunpack.c.l.b16 %v408
  %v2681 = vunpack.c.l.b16 %v409
  %v2682 = vunpack.c.l.b16 %v410
  %v2683 = vunpack.c.l.b16 %v411
  %v2684 = vunpack.c.l.b16 %v412
  %v2685 = vunpack.c.l.b16 %v413
  %v2686 = vunpack.c.l.b16 %v414
  %v2687 = vunpack.c.l.b16 %v415
  %v2688 = vunpack.c.l.b16 %v416
  %v2689 = vunpack.c.l.b16 %v417
  %v2690 = vunpack.c.l.b16 %v418
  %v2691 = vunpack.c.l.b16 %v419
  %v2692 = vunpack.c.l.b16 %v420
  %v2693 = vunpack.c.l.b16 %v421
  %v2694 = vunpack.c.l.b16 %v422
  %v2695 = vunpack.c.l.b16 %v423
  %v2696 = vunpack.c.l.b16 %v424
  %v2697 = vunpack.c.l.b16 %v425
  %v2698 = vunpack.c.l.b16 %v426
  %v2699 = vunpack.c.l.b16 %v427
  %v2700 = vunpack.c.l.b16 %v428
  %v2701 = vunpack.c.l.b16 %v429
  %v2702 = vunpack.c.l.b16 %v430
  %v2703 = vunpack.c.l.b16 %v431
  %v2704 = vunpack.c.l.b16 %v432
  %v2705 = vunpack.c.l.b16 %v433
  %v2706 = vunpack.c.l.b16 %v434
  %v2707 = vunpack.c.l.b16 %v435
  %v2708 = vunpack.c.l.b16 %v436
  %v2709 = vunpack.c.l.b16 %v437
  %v2710 = vunpack.c.l.b16 %v438
  %v2711 = vunpack.c.l.b16 %v439
  %v2712 = vunpack.c.l.b16 %v440
  %v2713 = vunpack.c.l.b16 %v441
  %v2714 = vunpack.c.l.b16 %v442
  %v2715 = vunpack.c.l.b16 %v443
  %v2716 = vunpack.c.l.b16 %v444
  %v2717 = vunpack.c.l.b16 %v445
  %v2718 = vunpack.c.l.b16 %v446
  %v2719 = vunpack.c.l.b16 %v447
  %v2720 = vunpack.c.l.b16 %v448
  %v2721 = vunpack.c.l.b16 %v449
  %v2722 = vunpack.c.l.b16 %v450
  %v2723 = vunpack.c.l.b16 %v451
  %v2724 = vunpack.c.l.b16 %v452
  %v2725 = vunpack.c.l.b16 %v453
  %v2726 = vunpack.c.l.b16 %v454
  %v2727 = vunpack.c.l.b16 %v455
  %v2728 = vunpack.c.l.b16 %v456
  %v2729 = vunpack.c.l.b16 %v457
  %v2730 = vunpack.c.l.b16 %v458
  %v2731 = vunpack.c.l.b16 %v459
  %v2732 = vunpack.c.l.b16 %v460
  %v2733 = vunpack.c.l.b16 %v461
  %v2734 = vunpack.c.l.b16 %v462
  %v2735 = vunpack.c.l.b16 %v463
  %v2736 = vunpack.c.l.b16 %v464
  %v2737 = vunpack.c.l.b16 %v465
  %v2738 = vunpack.c.l.b16 %v466
  %v2739 = vunpack.c.l.b16 %v467
  %v2740 = vunpack.c.l.b16 %v468
  %v2741 = vunpack.c.l.b16 %v469
  %v2742 = vunpack.c.l.b16 %v470
  %v2743 = vunpack.c.l.b16 %v471
  %v2744 = vunpack.c.l.b16 %v472
  %v2745 = vunpack.c.l.b16 %v473
  %v2746 = vunpack.c.l.b16 %v474
  %v2747 = vunpack.c.l.b16 %v475
  %v2748 = vunpack.c.l.b16 %v476
  %v2749 = vunpack.c.l.b16 %v477
  %v2750 = vunpack.c.l.b16 %v478
  %v2751 = vunpack.c.l.b16 %v479
  %v2752 = vunpack.c.l.b16 %v480
  %v2753 = vunpack.c.l.b16 %v481
  %v2754 = vunpack.c.l.b16 %v482
  %v2755 = vunpack.c.l.b16 %v483
  %v2756 = vunpack.c.l.b16 %v484
  %v2757 = vunpack.c.l.b16 %v485
  %v2758 = vunpack.c.l.b16 %v486
  %v2759 = vunpack.c.l.b16 %v487
  %v2760 = vunpack.c.l.b16 %v488
  %v2761 = vunpack.c.l.b16 %v489
  %v2762 = vunpack.c.l.b16 %v490
  %v2763 = vunpack.c.l.b16 %v491
  %v2764 = vunpack.c.l.b16 %v492
  %v2765 = vunpack.c.l.b16 %v493
  %v2766 = vunpack.c.l.b16 %v494
  %v2767 = vunpack.c.l.b16 %v495
  %v2768 = vunpack.c.l.b16 %v496
  %v2769 = vunpack.c.l.b16 %v497
  %v2770 = vunpack.c.l.b16 %v498
  %v2771 = vunpack.c.l.b16 %v499
  %v2772 = vunpack.c.l.b16 %v500
  %v2773 = vunpack.c.l.b16 %v501
  %v2774 = vunpack.c.l.b16 %v502
  %v2775 = vunpack.c.l.b16 %v503
  %v2776 = vunpack.c.l.b16 %v504
  %v2777 = vunpack.c.l.b16 %v505
  %v2778 = vunpack.c.l.b16 %v506
  %v2779 = vunpack.c.l.b16 %v507
  %v2780 = vunpack.c.l.b16 %v508
  %v2781 = vunpack.c.l.b16 %v509
  %v2782 = vunpack.c.l.b16 %v510
  %v2783 = vunpack.c.l.b16 %v511
  %v2784 = vunpack.c.l.b16 %v512
  %v2785 = vunpack.c.l.b16 %v513
  %v2786 = vunpack.c.l.b16 %v514
  %v2787 = vunpack.c.l.b16 %v515
  %v2788 = vunpack.c.l.b16 %v516
  %v2789 = vunpack.c.l.b16 %v517
  %v2790 = vunpack.c.l.b16 %v518
  %v2791 = vunpack.c.l.b16 %v519
  %v2792 = vunpack.c.l.b16 %v520
  %v2793 = vunpack.c.l.b16 %v521
  %v2794 = vunpack.c.l.b16 %v522
  %v2795 = vunpack.c.l.b16 %v523
  %v2796 = vunpack.c.l.b16 %v524
  %v2797 = vunpack.c.l.b16 %v525
  %v2798 = vunpack.c.l.b16 %v526
  %v2799 = vunpack.c.l.b16 %v527
  %v2800 = vunpack.c.l.b16 %v528
  %v2801 = vunpack.c.l.b16 %v529
  %v2802 = vunpack.c.l.b16 %v530
  %v2803 = vunpack.c.l.b16 %v531
  %v2804 = vunpack.c.l.b16 %v532
  %v2805 = vunpack.c.l.b16 %v533
  %v2806 = vunpack.c.l.b16 %v534
  %v2807 = vunpack.c.l.b16 %v535
  %v2808 = vunpack.c.l.b16 %v536
  %v2809 = vunpack.c.l.b16 %v537
  %v2810 = vunpack.c.l.b16 %v538
  %v2811 = vunpack.c.l.b16 %v539
  %v2812 = vunpack.c.l.b16 %v540
  %v2813 = vunpack.c.l.b16 %v541
  %v2814 = vunpack.c.l.b16 %v542
  %v2815 = vunpack.c.l.b16 %v543
  %v2816 = vunpack.c.l.b16 %v544
  %v2817 = vunpack.c.l.b16 %v545
  %v2818 = vunpack.c.l.b16 %v546
  %v2819 = vunpack.c.l.b16 %v547
  %v2820 = vunpack.c.l.b16 %v548
  %v2821 = vunpack.c.l.b16 %v549
  %v2822 = vunpack.c.l.b16 %v550
  %v2823 = vunpack.c.l.b16 %v551
  %v2824 = vunpack.c.l.b16 %v552
  %v2825 = vunpack.c.l.b16 %v553
  %v2826 = vunpack.c.l.b16 %v554
  %v2827 = vunpack.c.l.b16 %v555
  %v2828 = vunpack.c.l.b16 %v556
  %v2829 = vunpack.c.l.b16 %v557
  %v2830 = vunpack.c.l.b16 %v558
  %v2831 = vunpack.c.l.b16 %v559
  %v2832 = vunpack.c.l.b16 %v560
  %v2833 = vunpack.c.l.b16 %v561
  %v2834 = vunpack.c.l.b16 %v562
  %v2835 = vunpack.c.l.b16 %v563
  %v2836 = vunpack.c.l.b16 %v564
  %v2837 = vunpack.c.l.b16 %v565
  %v2838 = vunpack.c.l.b16 %v566
  %v2839 = vunpack.c.l.b16 %v567
  %v2840 = vunpack.c.l.b16 %v568
  %v2841 = vunpack.c.l.b16 %v569
  %v2842 = vunpack.c.l.b16 %v570
  %v2843 = vunpack.c.l.b16 %v571
  %v2844 = vunpack.c.l.b16 %v572
  %v2845 = vunpack.c.l.b16 %v573
  %v2846 = vunpack.c.l.b16 %v574
  %v2847 = vunpack.c.l.b16 %v575
  %v2848 = vunpack.c.l.b16 %v576
  %v2849 = vunpack.c.l.b16 %v577
  %v2850 = vunpack.c.l.b16 %v578
  %v2851 = vunpack.c.l.b16 %v579
  %v2852 = vunpack.c.l.b16 %v580
  %v2853 = vunpack.c.l.b16 %v581
  %v2854 = vunpack.c.l.b16 %v582
  %v2855 = vunpack.c.l.b16 %v583
  %v2856 = vunpack.c.l.b16 %v584
  %v2857 = vunpack.c.l.b16 %v585
  %v2858 = vunpack.c.l.b16 %v586
  %v2859 = vunpack.c.l.b16 %v587
  %v2860 = vunpack.c.l.b16 %v588
  %v2861 = vunpack.c.l.b16 %v589
  %v2862 = vunpack.c.l.b16 %v590
  %v2863 = vunpack.c.l.b16 %v591
  %v2864 = vunpack.c.l.b16 %v592
  %v2865 = vunpack.c.l.b16 %v593
  %v2866 = vunpack.c.l.b16 %v594
  %v2867 = vunpack.c.l.b16 %v595
  %v2868 = vunpack.c.l.b16 %v596
  %v2869 = vunpack.c.l.b16 %v597
  %v2870 = vunpack.c.l.b16 %v598
  %v2871 = vunpack.c.l.b16 %v599
  %v2872 = vunpack.c.l.b16 %v600
  %v2873 = vunpack.c.l.b16 %v601
  %v2874 = vunpack.c.l.b16 %v602
  %v2875 = vunpack.c.l.b16 %v603
  %v2876 = vunpack.c.l.b16 %v604
  %v2877 = vunpack.c.l.b16 %v605
  %v2878 = vunpack.c.l.b16 %v606
  %v2879 = vunpack.c.l.b16 %v607
  %v2880 = vunpack.c.l.b16 %v608
  %v2881 = vunpack.c.l.b16 %v609
  %v2882 = vunpack.c.l.b16 %v610
  %v2883 = vunpack.c.l.b16 %v611
  %v2884 = vunpack.c.l.b16 %v612
  %v2885 = vunpack.c.l.b16 %v613
  %v2886 = vunpack.c.l.b16 %v614
  %v2887 = vunpack.c.l.b16 %v615
  %v2888 = vunpack.c.l.b16 %v616
  %v2889 = vunpack.c.l.b16 %v617
  %v2890 = vunpack.c.l.b16 %v618
  %v2891 = vunpack.c.l.b16 %v619
  %v2892 = vunpack.c.l.b16 %v620
  %v2893 = vunpack.c.l.b16 %v621
  %v2894 = vunpack.c.l.b16 %v622
  %v2895 = vunpack.c.l.b16 %v623
  %v2896 = vunpack.c.l.b16 %v624
  %v2897 = vunpack.c.l.b16 %v625
  %v2898 = vunpack.c.l.b16 %v626
  %v2899 = vunpack.c.l.b16 %v627
  %v2900 = vunpack.c.l.b16 %v628
  %v2901 = vunpack.c.l.b16 %v629
  %v2902 = vunpack.c.l.b16 %v630
  %v2903 = vunpack.c.l.b16 %v631
  %v2904 = vunpack.c.l.b16 %v632
  %v2905 = vunpack.c.l.b16 %v633
  %v2906 = vunpack.c.l.b16 %v634
  %v2907 = vunpack.c.l.b16 %v635
  %v2908 = vunpack.c.l.b16 %v636
  %v2909 = vunpack.c.l.b16 %v637
  %v2910 = vunpack.c.l.b16 %v638
  %v2911 = vunpack.c.l.b16 %v639
  %v2912 = vunpack.c.l.b16 %v640
  %v2913 = vunpack.c.l.b16 %v641
  %v2914 = vunpack.c.l.b16 %v642
  %v2915 = vunpack.c.l.b16 %v643
  %v2916 = vunpack.c.l.b16 %v644
  %v2917 = vunpack.c.l.b16 %v645
  %v2918 = vunpack.c.l.b16 %v646
  %v2919 = vunpack.c.l.b16 %v647
  %v2920 = vunpack.c.l.b16 %v648
  %v2921 = vunpack.c.l.b16 %v649
  %v2922 = vunpack.c.l.b16 %v650
  %v2923 = vunpack.c.l.b16 %v651
  %v2924 = vunpack.c.l.b16 %v652
  %v2925 = vunpack.c.l.b16 %v653
  %v2926 = vunpack.c.l.b16 %v654
  %v2927 = vunpack.c.l.b16 %v655
  %v2928 = vunpack.c.l.b16 %v656
  %v2929 = vunpack.c.l.b16 %v657
  %v2930 = vunpack.c.l.b16 %v658
  %v2931 = vunpack.c.l.b16 %v659
  %v2932 = vunpack.c.l.b16 %v660
  %v2933 = vunpack.c.l.b16 %v661
  %v2934 = vunpack.c.l.b16 %v662
  %v2935 = vunpack.c.l.b16 %v663
  %v2936 = vunpack.c.l.b16 %v664
  %v2937 = vunpack.c.l.b16 %v665
  %v2938 = vunpack.c.l.b16 %v666
  %v2939 = vunpack.c.l.b16 %v667
  %v2940 = vunpack.c.l.b16 %v668
  %v2941 = vunpack.c.l.b16 %v669
  %v2942 = vunpack.c.l.b16 %v670
  %v2943 = vunpack.c.l.b16 %v671
  %v2944 = vunpack.c.l.b16 %v672
  %v2945 = vunpack.c.l.b16 %v673
  %v2946 = vunpack.c.l.b16 %v674
  %v2947 = vunpack.c.l.b16 %v675
  %v2948 = vunpack.c.l.b16 %v676
  %v2949 = vunpack.c.l.b16 %v677
  %v2950 = vunpack.c.l.b16 %v678
  %v2951 = vunpack.c.l.b16 %v679
  %v2952 = vunpack.c.l.b16 %v680
  %v2953 = vunpack.c.l.b16 %v681
  %v2954 = vunpack.c.l.b16 %v682
  %v2955 = vunpack.c.l.b16 %v683
  %v2956 = vunpack.c.l.b16 %v684
  %v2957 = vunpack.c.l.b16 %v685
  %v2958 = vunpack.c.l.b16 %v686
  %v2959 = vunpack.c.l.b16 %v687
  %v2960 = vunpack.c.l.b16 %v688
  %v2961 = vunpack.c.l.b16 %v689
  %v2962 = vunpack.c.l.b16 %v690
  %v2963 = vunpack.c.l.b16 %v691
  %v2964 = vunpack.c.l.b16 %v692
  %v2965 = vunpack.c.l.b16 %v693
  %v2966 = vunpack.c.l.b16 %v694
  %v2967 = vunpack.c.l.b16 %v695
  %v2968 = vunpack.c.l.b16 %v696
  %v2969 = vunpack.c.l.b16 %v697
  %v2970 = vunpack.c.l.b16 %v698
  %v2971 = vunpack.c.l.b16 %v699
  %v2972 = vunpack.c.l.b16 %v700
  %v2973 = vunpack.c.l.b16 %v701
  %v2974 = vunpack.c.l.b16 %v702
  %v2975 = vunpack.c.l.b16 %v703
  %v2976 = vunpack.c.l.b16 %v704
  %v2977 = vunpack.c.l.b16 %v705
  %v2978 = vunpack.c.l.b16 %v706
  %v2979 = vunpack.c.l.b16 %v707
  %v2980 = vunpack.c.l.b16 %v708
  %v2981 = vunpack.c.l.b16 %v709
  %v2982 = vunpack.c.l.b16 %v710
  %v2983 = vunpack.c.l.b16 %v711
  %v2984 = vunpack.c.l.b16 %v712
  %v2985 = vunpack.c.l.b16 %v713
  %v2986 = vunpack.c.l.b16 %v714
  %v2987 = vunpack.c.l.b16 %v715
  %v2988 = vunpack.c.l.b16 %v716
  %v2989 = vunpack.c.l.b16 %v717
  %v2990 = vunpack.c.l.b16 %v718
  %v2991 = vunpack.c.l.b16 %v719
  %v2992 = vunpack.c.l.b16 %v720
  %v2993 = vunpack.c.l.b16 %v721
  %v2994 = vunpack.c.l.b16 %v722
  %v2995 = vunpack.c.l.b16 %v723
  %v2996 = vunpack.c.l.b16 %v724
  %v2997 = vunpack.c.l.b16 %v725
  %v2998 = vunpack.c.l.b16 %v726
  %v2999 = vunpack.c.l.b16 %v727
  %v3000 = vunpack.c.l.b16 %v728
  %v3001 = vunpack.c.l.b16 %v729
  %v3002 = vunpack.c.l.b16 %v730
  %v3003 = vunpack.c.l.b16 %v731
  %v3004 = vunpack.c.l.b16 %v732
  %v3005 = vunpack.c.l.b16 %v733
  %v3006 = vunpack.c.l.b16 %v734
  %v3007 = vunpack.c.l.b16 %v735
  %v3008 = vunpack.c.l.b16 %v736
  %v3009 = vunpack.c.l.b16 %v737
  %v3010 = vunpack.c.l.b16 %v738
  %v3011 = vunpack.c.l.b16 %v739
  %v3012 = vunpack.c.l.b16 %v740
  %v3013 = vunpack.c.l.b16 %v741
  %v3014 = vunpack.c.l.b16 %v742
  %v3015 = vunpack.c.l.b16 %v743
  %v3016 = vunpack.c.l.b16 %v744
  %v3017 = vunpack.c.l.b16 %v745
  %v3018 = vunpack.c.l.b16 %v746
  %v3019 = vunpack.c.l.b16 %v747
  %v3020 = vunpack.c.l.b16 %v748
  %v3021 = vunpack.c.l.b16 %v749
  %v3022 = vunpack.c.l.b16 %v750
  %v3023 = vunpack.c.l.b16 %v751
  %v3024 = vunpack.c.l.b16 %v752
  %v3025 = vunpack.c.l.b16 %v753
  %v3026 = vunpack.c.l.b16 %v754
  %v3027 = vunpack.c.l.b16 %v755
  %v3028 = vunpack.c.l.b16 %v756
  %v3029 = vunpack.c.l.b16 %v757
  %v3030 = vunpack.c.l.b16 %v758
  %v3031 = vunpack.c.l.b16 %v759
  %v3032 = vunpack.c.l.b16 %v760
  %v3033 = vunpack.c.l.b16 %v761
  %v3034 = vunpack.c.l.b16 %v762
  %v3035 = vunpack.c.l.b16 %v763
  %v3036 = vunpack.c.l.b16 %v764
  %v3037 = vunpack.c.l.b16 %v765
  %v3038 = vunpack.c.l.b16 %v766
  %v3039 = vunpack.c.l.b16 %v767
  %v3040 = vunpack.c.l.b16 %v768
  %v3041 = vunpack.c.l.b16 %v769
  %v3042 = vunpack.c.l.b16 %v770
  %v3043 = vunpack.c.l.b16 %v771
  %v3044 = vunpack.c.l.b16 %v772
  %v3045 = vunpack.c.l.b16 %v773
  %v3046 = vunpack.c.l.b16 %v774
  %v3047 = vunpack.c.l.b16 %v775
  %v3048 = vunpack.c.l.b16 %v776
  %v3049 = vunpack.c.l.b16 %v777
  %v3050 = vunpack.c.l.b16 %v778
  %v3051 = vunpack.c.l.b16 %v779
  %v3052 = vunpack.c.l.b16 %v780
  %v3053 = vunpack.c.l.b16 %v781
  %v3054 = vunpack.c.l.b16 %v782
  %v3055 = vunpack.c.l.b16 %v783
  %v3056 = vunpack.c.l.b16 %v784
  %v3057 = vunpack.c.l.b16 %v785
  %v3058 = vunpack.c.l.b16 %v786
  %v3059 = vunpack.c.l.b16 %v787
  %v3060 = vunpack.c.l.b16 %v788
  %v3061 = vunpack.c.l.b16 %v789
  %v3062 = vunpack.c.l.b16 %v790
  %v3063 = vunpack.c.l.b16 %v791
  %v3064 = vunpack.c.l.b16 %v792
  %v3065 = vunpack.c.l.b16 %v793
  %v3066 = vunpack.c.l.b16 %v794
  %v3067 = vunpack.c.l.b16 %v795
  %v3068 = vunpack.c.l.b16 %v796
  %v3069 = vunpack.c.l.b16 %v797
  %v3070 = vunpack.c.l.b16 %v798
  %v3071 = vunpack.c.l.b16 %v799
  %v3072 = vunpack.c.l.b16 %v800
  %v3073 = vunpack.c.l.b16 %v801
  %v3074 = vunpack.c.l.b16 %v802
  %v3075 = vunpack.c.l.b16 %v803
  %v3076 = vunpack.c.l.b16 %v804
  %v3077 = vunpack.c.l.b16 %v805
  %v3078 = vunpack.c.l.b16 %v806
  %v3079 = vunpack.c.l.b16 %v807
  %v3080 = vunpack.c.l.b16 %v808
  %v3081 = vunpack.c.l.b16 %v809
  %v3082 = vunpack.c.l.b16 %v810
  %v3083 = vunpack.c.l.b16 %v811
  %v3084 = vunpack.c.l.b16 %v812
  %v3085 = vunpack.c.l.b16 %v813
  %v3086 = vunpack.c.l.b16 %v814
  %v3087 = vunpack.c.l.b16 %v815
  %v3088 = vunpack.c.l.b16 %v816
  %v3089 = vunpack.c.l.b16 %v817
  %v3090 = vunpack.c.l.b16 %v818
  %v3091 = vunpack.c.l.b16 %v819
  %v3092 = vunpack.c.l.b16 %v820
  %v3093 = vunpack.c.l.b16 %v821
  %v3094 = vunpack.c.l.b16 %v822
  %v3095 = vunpack.c.l.b16 %v823
  %v3096 = vunpack.c.l.b16 %v824
  %v3097 = vunpack.c.l.b16 %v825
  %v3098 = vunpack.c.l.b16 %v826
  %v3099 = vunpack.c.l.b16 %v827
  %v3100 = vunpack.c.l.b16 %v828
  %v3101 = vunpack.c.l.b16 %v829
  %v3102 = vunpack.c.l.b16 %v830
  %v3103 = vunpack.c.l.b16 %v831
  %v3104 = vunpack.c.l.b16 %v832
  %v3105 = vunpack.c.l.b16 %v833
  %v3106 = vunpack.c.l.b16 %v834
  %v3107 = vunpack.c.l.b16 %v835
  %v3108 = vunpack.c.l.b16 %v836
  %v3109 = vunpack.c.l.b16 %v837
  %v3110 = vunpack.c.l.b16 %v838
  %v3111 = vunpack.c.l.b16 %v839
  %v3112 = vunpack.c.l.b16 %v840
  %v3113 = vunpack.c.l.b16 %v841
  %v3114 = vunpack.c.l.b16 %v842
  %v3115 = vunpack.c.l.b16 %v843
  %v3116 = vunpack.c.l.b16 %v844
  %v3117 = vunpack.c.l.b16 %v845
  %v3118 = vunpack.c.l.b16 %v846
  %v3119 = vunpack.c.l.b16 %v847
  %v3120 = vunpack.c.l.b16 %v848
  %v3121 = vunpack.c.l.b16 %v849
  %v3122 = vunpack.c.l.b16 %v850
  %v3123 = vunpack.c.l.b16 %v851
  %v3124 = vunpack.c.l.b16 %v852
  %v3125 = vunpack.c.l.b16 %v853
  %v3126 = vunpack.c.l.b16 %v854
  %v3127 = vunpack.c.l.b16 %v855
  %v3128 = vunpack.c.l.b16 %v856
  %v3129 = vunpack.c.l.b16 %v857
  %v3130 = vunpack.c.l.b16 %v858
  %v3131 = vunpack.c.l.b16 %v859
  %v3132 = vunpack.c.l.b16 %v860
  %v3133 = vunpack.c.l.b16 %v861
  %v3134 = vunpack.c.l.b16 %v862
  %v3135 = vunpack.c.l.b16 %v863
  %v3136 = vunpack.c.l.b16 %v864
  %v3137 = vunpack.c.l.b16 %v865
  %v3138 = vunpack.c.l.b16 %v866
  %v3139 = vunpack.c.l.b16 %v867
  %v3140 = vunpack.c.l.b16 %v868
  %v3141 = vunpack.c.l.b16 %v869
  %v3142 = vunpack.c.l.b16 %v870
  %v3143 = vunpack.c.l.b16 %v871
  %v3144 = vunpack.c.l.b16 %v872
  %v3145 = vunpack.c.l.b16 %v873
  %v3146 = vunpack.c.l.b16 %v874
  %v3147 = vunpack.c.l.b16 %v875
  %v3148 = vunpack.c.l.b16 %v876
  %v3149 = vunpack.c.l.b16 %v877
  %v3150 = vunpack.c.l.b16 %v878
  %v3151 = vunpack.c.l.b16 %v879
  %v3152 = vunpack.c.l.b16 %v880
  %v3153 = vunpack.c.l.b16 %v881
  %v3154 = vunpack.c.l.b16 %v882
  %v3155 = vunpack.c.l.b16 %v883
  %v3156 = vunpack.c.l.b16 %v884
  %v3157 = vunpack.c.l.b16 %v885
  %v3158 = vunpack.c.l.b16 %v886
  %v3159 = vunpack.c.l.b16 %v887
  %v3160 = vunpack.c.l.b16 %v888
  %v3161 = vunpack.c.l.b16 %v889
  %v3162 = vunpack.c.l.b16 %v890
  %v3163 = vunpack.c.l.b16 %v891
  %v3164 = vunpack.c.l.b16 %v892
  %v3165 = vunpack.c.l.b16 %v893
  %v3166 = vunpack.c.l.b16 %v894
  %v3167 = vunpack.c.l.b16 %v895
  %v3168 = vunpack.c.l.b16 %v896
  %v3169 = vunpack.c.l.b16 %v897
  %v3170 = vunpack.c.l.b16 %v898
  %v3171 = vunpack.c.l.b16 %v899
  %v3172 = vunpack.c.l.b16 %v900
  %v3173 = vunpack.c.l.b16 %v901
  %v3174 = vunpack.c.l.b16 %v902
  %v3175 = vunpack.c.l.b16 %v903
  %v3176 = vunpack.c.l.b16 %v904
  %v3177 = vunpack.c.l.b16 %v905
  %v3178 = vunpack.c.l.b16 %v906
  %v3179 = vunpack.c.l.b16 %v907
  %v3180 = vunpack.c.l.b16 %v908
  %v3181 = vunpack.c.l.b16 %v909
  %v3182 = vunpack.c.l.b16 %v910
  %v3183 = vunpack.c.l.b16 %v911
  %v3184 = vunpack.c.l.b16 %v912
  %v3185 = vunpack.c.l.b16 %v913
  %v3186 = vunpack.c.l.b16 %v914
  %v3187 = vunpack.c.l.b16 %v915
  %v3188 = vunpack.c.l.b16 %v916
  %v3189 = vunpack.c.l.b16 %v917
  %v3190 = vunpack.c.l.b16 %v918
  %v3191 = vunpack.c.l.b16 %v919
  %v3192 = vunpack.c.l.b16 %v920
  %v3193 = vunpack.c.l.b16 %v921
  %v3194 = vunpack.c.l.b16 %v922
  %v3195 = vunpack.c.l.b16 %v923
  %v3196 = vunpack.c.l.b16 %v924
  %v3197 = vunpack.c.l.b16 %v925
  %v3198 = vunpack.c.l.b16 %v926
  %v3199 = vunpack.c.l.b16 %v927
  %v3200 = vunpack.c.l.b16 %v928
  %v3201 = vunpack.c.l.b16 %v929
  %v3202 = vunpack.c.l.b16 %v930
  %v3203 = vunpack.c.l.b16 %v931
  %v3204 = vunpack.c.l.b16 %v932
  %v3205 = vunpack.c.l.b16 %v933
  %v3206 = vunpack.c.l.b16 %v934
  %v3207 = vunpack.c.l.b16 %v935
  %v3208 = vunpack.c.l.b16 %v936
  %v3209 = vunpack.c.l.b16 %v937
  %v3210 = vunpack.c.l.b16 %v938
  %v3211 = vunpack.c.l.b16 %v939
  %v3212 = vunpack.c.l.b16 %v940
  %v3213 = vunpack.c.l.b16 %v941
  %v3214 = vunpack.c.l.b16 %v942
  %v3215 = vunpack.c.l.b16 %v943
  %v3216 = vunpack.c.l.b16 %v944
  %v3217 = vunpack.c.l.b16 %v945
  %v3218 = vunpack.c.l.b16 %v946
  %v3219 = vunpack.c.l.b16 %v947
  %v3220 = vunpack.c.l.b16 %v948
  %v3221 = vunpack.c.l.b16 %v949
  %v3222 = vunpack.c.l.b16 %v950
  %v3223 = vunpack.c.l.b16 %v951
  %v3224 = vunpack.c.l.b16 %v952
  %v3225 = vunpack.c.l.b16 %v953
  %v3226 = vunpack.c.l.b16 %v954
  %v3227 = vunpack.c.l.b16 %v955
  %v3228 = vunpack.c.l.b16 %v956
  %v3229 = vunpack.c.l.b16 %v957
  %v3230 = vunpack.c.l.b16 %v958
  %v3231 = vunpack.c.l.b16 %v959
  %v3232 = vunpack.c.l.b16 %v960
  %v3233 = vunpack.c.l.b16 %v961
  %v3234 = vunpack.c.l.b16 %v962
  %v3235 = vunpack.c.l.b16 %v963
  %v3236 = vunpack.c.l.b16 %v964
  %v3237 = vunpack.c.l.b16 %v965
  %v3238 = vunpack.c.l.b16 %v966
  %v3239 = vunpack.c.l.b16 %v967
  %v3240 = vunpack.c.l.b16 %v968
  %v3241 = vunpack.c.l.b16 %v969
  %v3242 = vunpack.c.l.b16 %v970
  %v3243 = vunpack.c.l.b16 %v971
  %v3244 = vunpack.c.l.b16 %v972
  %v3245 = vunpack.c.l.b16 %v973
  %v3246 = vunpack.c.l.b16 %v974
  %v3247 = vunpack.c.l.b16 %v975
  %v3248 = vunpack.c.l.b16 %v976
  %v3249 = vunpack.c.l.b16 %v977
  %v3250 = vunpack.c.l.b16 %v978
  %v3251 = vunpack.c.l.b16 %v979
  %v3252 = vunpack.c.l.b16 %v980
  %v3253 = vunpack.c.l.b16 %v981
  %v3254 = vunpack.c.l.b16 %v982
  %v3255 = vunpack.c.l.b16 %v983
  %v3256 = vunpack.c.l.b16 %v984
  %v3257 = vunpack.c.l.b16 %v985
  %v3258 = vunpack.c.l.b16 %v986
  %v3259 = vunpack.c.l.b16 %v987
  %v3260 = vunpack.c.l.b16 %v988
  %v3261 = vunpack.c.l.b16 %v989
  %v3262 = vunpack.c.l.b16 %v990
  %v3263 = vunpack.c.l.b16 %v991
  %v3264 = vunpack.c.l.b16 %v992
  %v3265 = vunpack.c.l.b16 %v993
  %v3266 = vunpack.c.l.b16 %v994
  %v3267 = vunpack.c.l.b16 %v995
  %v3268 = vunpack.c.l.b16 %v996
  %v3269 = vunpack.c.l.b16 %v997
  %v3270 = vunpack.c.l.b16 %v998
  %v3271 = vunpack.c.l.b16 %v999
  %v3272 = vunpack.c.l.b16 %v1000
  %v3273 = vunpack.c.l.b16 %v1001
  %v3274 = vunpack.c.l.b16 %v1002
  %v3275 = vunpack.c.l.b16 %v1003
  %v3276 = vunpack.c.l.b16 %v1004
  %v3277 = vunpack.c.l.b16 %v1005
  %v3278 = vunpack.c.l.b16 %v1006
  %v3279 = vunpack.c.l.b16 %v1007
  %v3280 = vunpack.c.l.b16 %v1008
  %v3281 = vunpack.c.l.b16 %v1009
  %v3282 = vunpack.c.l.b16 %v1010
  %v3283 = vunpack.c.l.b16 %v1011
  %v3284 = vunpack.c.l.b16 %v1012
  %v3285 = vunpack.c.l.b16 %v1013
  %v3286 = vunpack.c.l.b16 %v1014
  %v3287 = vunpack.c.l.b16 %v1015
  %v3288 = vunpack.c.l.b16 %v1016
  %v3289 = vunpack.c.l.b16 %v1017
  %v3290 = vunpack.c.l.b16 %v1018
  %v3291 = vunpack.c.l.b16 %v1019
  %v3292 = vunpack.c.l.b16 %v1020
  %v3293 = vunpack.c.l.b16 %v1021
  %v3294 = vunpack.c.l.b16 %v1022
  %v3295 = vunpack.c.l.b16 %v1023
  %v3296 = vunpack.c.l.b16 %v1024
  %v3297 = vunpack.c.l.b16 %v1025
  %v3298 = vunpack.c.l.b16 %v1026
  %v3299 = vunpack.c.l.b16 %v1027
  %v3300 = vunpack.c.l.b16 %v1028
  %v3301 = vunpack.c.l.b16 %v1029
  %v3302 = vunpack.c.l.b16 %v1030
  %v3303 = vunpack.c.l.b16 %v1031
  %v3304 = vunpack.c.l.b16 %v1032
  %v3305 = vunpack.c.l.b16 %v1033
  %v3306 = vunpack.c.l.b16 %v1034
  %v3307 = vunpack.c.l.b16 %v1035
  %v3308 = vunpack.c.l.b16 %v1036
  %v3309 = vunpack.c.l.b16 %v1037
  %v3310 = vunpack.c.l.b16 %v1038
  %v3311 = vunpack.c.l.b16 %v1039
  %v3312 = vunpack.c.l.b16 %v1040
  %v3313 = vunpack.c.l.b16 %v1041
  %v3314 = vunpack.c.l.b16 %v1042
  %v3315 = vunpack.c.l.b16 %v1043
  %v3316 = vunpack.c.l.b16 %v1044
  %v3317 = vunpack.c.l.b16 %v1045
  %v3318 = vunpack.c.l.b16 %v1046
  %v3319 = vunpack.c.l.b16 %v1047
  %v3320 = vunpack.c.l.b16 %v1048
  %v3321 = vunpack.c.l.b16 %v1049
  %v3322 = vunpack.c.l.b16 %v1050
  %v3323 = vunpack.c.l.b16 %v1051
  %v3324 = vunpack.c.l.b16 %v1052
  %v3325 = vunpack.c.l.b16 %v1053
  %v3326 = vunpack.c.l.b16 %v1054
  %v3327 = vunpack.c.l.b16 %v1055
  %v3328 = vunpack.c.l.b16 %v1056
  %v3329 = vunpack.c.l.b16 %v1057
  %v3330 = vunpack.c.l.b16 %v1058
  %v3331 = vunpack.c.l.b16 %v1059
  %v3332 = vunpack.c.l.b16 %v1060
  %v3333 = vunpack.c.l.b16 %v1061
  %v3334 = vunpack.c.l.b16 %v1062
  %v3335 = vunpack.c.l.b16 %v1063
  %v3336 = vunpack.c.l.b16 %v1064
  %v3337 = vunpack.c.l.b16 %v1065
  %v3338 = vunpack.c.l.b16 %v1066
  %v3339 = vunpack.c.l.b16 %v1067
  %v3340 = vunpack.c.l.b16 %v1068
  %v3341 = vunpack.c.l.b16 %v1069
  %v3342 = vunpack.c.l.b16 %v1070
  %v3343 = vunpack.c.l.b16 %v1071
  %v3344 = vunpack.c.l.b16 %v1072
  %v3345 = vunpack.c.l.b16 %v1073
  %v3346 = vunpack.c.l.b16 %v1074
  %v3347 = vunpack.c.l.b16 %v1075
  %v3348 = vunpack.c.l.b16 %v1076
  %v3349 = vunpack.c.l.b16 %v1077
  %v3350 = vunpack.c.l.b16 %v1078
  %v3351 = vunpack.c.l.b16 %v1079
  %v3352 = vunpack.c.l.b16 %v1080
  %v3353 = vunpack.c.l.b16 %v1081
  %v3354 = vunpack.c.l.b16 %v1082
  %v3355 = vunpack.c.l.b16 %v1083
  %v3356 = vunpack.c.l.b16 %v1084
  %v3357 = vunpack.c.l.b16 %v1085
  %v3358 = vunpack.c.l.b16 %v1086
  %v3359 = vunpack.c.l.b16 %v1087
  %v3360 = vpack.c.b16 %v2337, %v2336
  %v3361 = vpack.c.b16 %v2339, %v2338
  %v3362 = vpack.c.b16 %v2341, %v2340
  %v3363 = vpack.c.b16 %v2343, %v2342
  %v3364 = vpack.c.b16 %v2345, %v2344
  %v3365 = vpack.c.b16 %v2347, %v2346
  %v3366 = vpack.c.b16 %v2349, %v2348
  %v3367 = vpack.c.b16 %v2351, %v2350
  %v3368 = vpack.c.b16 %v2353, %v2352
  %v3369 = vpack.c.b16 %v2355, %v2354
  %v3370 = vpack.c.b16 %v2357, %v2356
  %v3371 = vpack.c.b16 %v2359, %v2358
  %v3372 = vpack.c.b16 %v2361, %v2360
  %v3373 = vpack.c.b16 %v2363, %v2362
  %v3374 = vpack.c.b16 %v2365, %v2364
  %v3375 = vpack.c.b16 %v2367, %v2366
  %v3376 = vpack.c.b16 %v2369, %v2368
  %v3377 = vpack.c.b16 %v2371, %v2370
  %v3378 = vpack.c.b16 %v2373, %v2372
  %v3379 = vpack.c.b16 %v2375, %v2374
  %v3380 = vpack.c.b16 %v2377, %v2376
  %v3381 = vpack.c.b16 %v2379, %v2378
  %v3382 = vpack.c.b16 %v2381, %v2380
  %v3383 = vpack.c.b16 %v2383, %v2382
  %v3384 = vpack.c.b16 %v2385, %v2384
  %v3385 = vpack.c.b16 %v2387, %v2386
  %v3386 = vpack.c.b16 %v2389, %v2388
  %v3387 = vpack.c.b16 %v2391, %v2390
  %v3388 = vpack.c.b16 %v2393, %v2392
  %v3389 = vpack.c.b16 %v2395, %v2394
  %v3390 = vpack.c.b16 %v2397, %v2396
  %v3391 = vpack.c.b16 %v2399, %v2398
  %v3392 = vpack.c.b16 %v2401, %v2400
  %v3393 = vpack.c.b16 %v2403, %v2402
  %v3394 = vpack.c.b16 %v2405, %v2404
  %v3395 = vpack.c.b16 %v2407, %v2406
  %v3396 = vpack.c.b16 %v2409, %v2408
  %v3397 = vpack.c.b16 %v2411, %v2410
  %v3398 = vpack.c.b16 %v2413, %v2412
  %v3399 = vpack.c.b16 %v2415, %v2414
  %v3400 = vpack.c.b16 %v2417, %v2416
  %v3401 = vpack.c.b16 %v2419, %v2418
  %v3402 = vpack.c.b16 %v2421, %v2420
  %v3403 = vpack.c.b16 %v2423, %v2422
  %v3404 = vpack.c.b16 %v2425, %v2424
  %v3405 = vpack.c.b16 %v2427, %v2426
  %v3406 = vpack.c.b16 %v2429, %v2428
  %v3407 = vpack.c.b16 %v2431, %v2430
  %v3408 = vpack.c.b16 %v2433, %v2432
  %v3409 = vpack.c.b16 %v2435, %v2434
  %v3410 = vpack.c.b16 %v2437, %v2436
  %v3411 = vpack.c.b16 %v2439, %v2438
  %v3412 = vpack.c.b16 %v2441, %v2440
  %v3413 = vpack.c.b16 %v2443, %v2442
  %v3414 = vpack.c.b16 %v2445, %v2444
  %v3415 = vpack.c.b16 %v2447, %v2446
  %v3416 = vpack.c.b16 %v2449, %v2448
  %v3417 = vpack.c.b16 %v2451, %v2450
  %v3418 = vpack.c.b16 %v2453, %v2452
  %v3419 = vpack.c.b16 %v2455, %v2454
  %v3420 = vpack.c.b16 %v2457, %v2456
  %v3421 = vpack.c.b16 %v2459, %v2458
  %v3422 = vpack.c.b16 %v2461, %v2460
  %v3423 = vpack.c.b16 %v2463, %v2462
  %v3424 = vpack.c.b16 %v2465, %v2464
  %v3425 = vpack.c.b16 %v2467, %v2466
  %v3426 = vpack.c.b16 %v2469, %v2468
  %v3427 = vpack.c.b16 %v2471, %v2470
  %v3428 = vpack.c.b16 %v2473, %v2472
  %v3429 = vpack.c.b16 %v2475, %v2474
  %v3430 = vpack.c.b16 %v2477, %v2476
  %v3431 = vpack.c.b16 %v2479, %v2478
  %v3432 = vpack.c.b16 %v2481, %v2480
  %v3433 = vpack.c.b16 %v2483, %v2482
  %v3434 = vpack.c.b16 %v2485, %v2484
  %v3435 = vpack.c.b16 %v2487, %v2486
  %v3436 = vpack.c.b16 %v2489, %v2488
  %v3437 = vpack.c.b16 %v2491, %v2490
  %v3438 = vpack.c.b16 %v2493, %v2492
  %v3439 = vpack.c.b16 %v2495, %v2494
  %v3440 = vpack.c.b16 %v2497, %v2496
  %v3441 = vpack.c.b16 %v2499, %v2498
  %v3442 = vpack.c.b16 %v2501, %v2500
  %v3443 = vpack.c.b16 %v2503, %v2502
  %v3444 = vpack.c.b16 %v2505, %v2504
  %v3445 = vpack.c.b16 %v2507, %v2506
  %v3446 = vpack.c.b16 %v2509, %v2508
  %v3447 = vpack.c.b16 %v2511, %v2510
  %v3448 = vpack.c.b16 %v2513, %v2512
  %v3449 = vpack.c.b16 %v2515, %v2514
  %v3450 = vpack.c.b16 %v2517, %v2516
  %v3451 = vpack.c.b16 %v2519, %v2518
  %v3452 = vpack.c.b16 %v2521, %v2520
  %v3453 = vpack.c.b16 %v2523, %v2522
  %v3454 = vpack.c.b16 %v2525, %v2524
  %v3455 = vpack.c.b16 %v2527, %v2526
  %v3456 = vpack.c.b16 %v2529, %v2528
  %v3457 = vpack.c.b16 %v2531, %v2530
  %v3458 = vpack.c.b16 %v2533, %v2532
  %v3459 = vpack.c.b16 %v2535, %v2534
  %v3460 = vpack.c.b16 %v2537, %v2536
  %v3461 = vpack.c.b16 %v2539, %v2538
  %v3462 = vpack.c.b16 %v2541, %v2540
  %v3463 = vpack.c.b16 %v2543, %v2542
  %v3464 = vpack.c.b16 %v2545, %v2544
  %v3465 = vpack.c.b16 %v2547, %v2546
  %v3466 = vpack.c.b16 %v2549, %v2548
  %v3467 = vpack.c.b16 %v2551, %v2550
  %v3468 = vpack.c.b16 %v2553, %v2552
  %v3469 = vpack.c.b16 %v2555, %v2554
  %v3470 = vpack.c.b16 %v2557, %v2556
  %v3471 = vpack.c.b16 %v2559, %v2558
  %v3472 = vpack.c.b16 %v2561, %v2560
  %v3473 = vpack.c.b16 %v2563, %v2562
  %v3474 = vpack.c.b16 %v2565, %v2564
  %v3475 = vpack.c.b16 %v2567, %v2566
  %v3476 = vpack.c.b16 %v2569, %v2568
  %v3477 = vpack.c.b16 %v2571, %v2570
  %v3478 = vpack.c.b16 %v2573, %v2572
  %v3479 = vpack.c.b16 %v2575, %v2574
  %v3480 = vpack.c.b16 %v2577, %v2576
  %v3481 = vpack.c.b16 %v2579, %v2578
  %v3482 = vpack.c.b16 %v2581, %v2580
  %v3483 = vpack.c.b16 %v2583, %v2582
  %v3484 = vpack.c.b16 %v2585, %v2584
  %v3485 = vpack.c.b16 %v2587, %v2586
  %v3486 = vpack.c.b16 %v2589, %v2588
  %v3487 = vpack.c.b16 %v2591, %v2590
  %v3488 = vpack.c.b16 %v2593, %v2592
  %v3489 = vpack.c.b16 %v2595, %v2594
  %v3490 = vpack.c.b16 %v2597, %v2596
  %v3491 = vpack.c.b16 %v2599, %v2598
  %v3492 = vpack.c.b16 %v2601, %v2600
  %v3493 = vpack.c.b16 %v2603, %v2602
  %v3494 = vpack.c.b16 %v2605, %v2604
  %v3495 = vpack.c.b16 %v2607, %v2606
  %v3496 = vpack.c.b16 %v2609, %v2608
  %v3497 = vpack.c.b16 %v2611, %v2610
  %v3498 = vpack.c.b16 %v2613, %v2612
  %v3499 = vpack.c.b16 %v2615, %v2614
  %v3500 = vpack.c.b16 %v2617, %v2616
  %v3501 = vpack.c.b16 %v2619, %v2618
  %v3502 = vpack.c.b16 %v2621, %v2620
  %v3503 = vpack.c.b16 %v2623, %v2622
  %v3504 = vpack.c.b16 %v2625, %v2624
  %v3505 = vpack.c.b16 %v2627, %v2626
  %v3506 = vpack.c.b16 %v2629, %v2628
  %v3507 = vpack.c.b16 %v2631, %v2630
  %v3508 = vpack.c.b16 %v2633, %v2632
  %v3509 = vpack.c.b16 %v2635, %v2634
  %v3510 = vpack.c.b16 %v2637, %v2636
  %v3511 = vpack.c.b16 %v2639, %v2638
  %v3512 = vpack.c.b16 %v2641, %v2640
  %v3513 = vpack.c.b16 %v2643, %v2642
  %v3514 = vpack.c.b16 %v2645, %v2644
  %v3515 = vpack.c.b16 %v2647, %v2646
  %v3516 = vpack.c.b16 %v2649, %v2648
  %v3517 = vpack.c.b16 %v2651, %v2650
  %v3518 = vpack.c.b16 %v2653, %v2652
  %v3519 = vpack.c.b16 %v2655, %v2654
  %v3520 = vpack.c.b16 %v2657, %v2656
  %v3521 = vpack.c.b16 %v2659, %v2658
  %v3522 = vpack.c.b16 %v2661, %v2660
  %v3523 = vpack.c.b16 %v2663, %v2662
  %v3524 = vpack.c.b16 %v2665, %v2664
  %v3525 = vpack.c.b16 %v2667, %v2666
  %v3526 = vpack.c.b16 %v2669, %v2668
  %v3527 = vpack.c.b16 %v2671, %v2670
  %v3528 = vpack.c.b16 %v2673, %v2672
  %v3529 = vpack.c.b16 %v2675, %v2674
  %v3530 = vpack.c.b16 %v2677, %v2676
  %v3531 = vpack.c.b16 %v2679, %v2678
  %v3532 = vpack.c.b16 %v2681, %v2680
  %v3533 = vpack.c.b16 %v2683, %v2682
  %v3534 = vpack.c.b16 %v2685, %v2684
  %v3535 = vpack.c.b16 %v2687, %v2686
  %v3536 = vpack.c.b16 %v2689, %v2688
  %v3537 = vpack.c.b16 %v2691, %v2690
  %v3538 = vpack.c.b16 %v2693, %v2692
  %v3539 = vpack.c.b16 %v2695, %v2694
  %v3540 = vpack.c.b16 %v2697, %v2696
  %v3541 = vpack.c.b16 %v2699, %v2698
  %v3542 = vpack.c.b16 %v2701, %v2700
  %v3543 = vpack.c.b16 %v2703, %v2702
  %v3544 = vpack.c.b16 %v2705, %v2704
  %v3545 = vpack.c.b16 %v2707, %v2706
  %v3546 = vpack.c.b16 %v2709, %v2708
  %v3547 = vpack.c.b16 %v2711, %v2710
  %v3548 = vpack.c.b16 %v2713, %v2712
  %v3549 = vpack.c.b16 %v2715, %v2714
  %v3550 = vpack.c.b16 %v2717, %v2716
  %v3551 = vpack.c.b16 %v2719, %v2718
  %v3552 = vpack.c.b16 %v2721, %v2720
  %v3553 = vpack.c.b16 %v2723, %v2722
  %v3554 = vpack.c.b16 %v2725, %v2724
  %v3555 = vpack.c.b16 %v2727, %v2726
  %v3556 = vpack.c.b16 %v2729, %v2728
  %v3557 = vpack.c.b16 %v2731, %v2730
  %v3558 = vpack.c.b16 %v2733, %v2732
  %v3559 = vpack.c.b16 %v2735, %v2734
  %v3560 = vpack.c.b16 %v2737, %v2736
  %v3561 = vpack.c.b16 %v2739, %v2738
  %v3562 = vpack.c.b16 %v2741, %v2740
  %v3563 = vpack.c.b16 %v2743, %v2742
  %v3564 = vpack.c.b16 %v2745, %v2744
  %v3565 = vpack.c.b16 %v2747, %v2746
  %v3566 = vpack.c.b16 %v2749, %v2748
  %v3567 = vpack.c.b16 %v2751, %v2750
  %v3568 = vpack.c.b16 %v2753, %v2752
  %v3569 = vpack.c.b16 %v2755, %v2754
  %v3570 = vpack.c.b16 %v2757, %v2756
  %v3571 = vpack.c.b16 %v2759, %v2758
  %v3572 = vpack.c.b16 %v2761, %v2760
  %v3573 = vpack.c.b16 %v2763, %v2762
  %v3574 = vpack.c.b16 %v2765, %v2764
  %v3575 = vpack.c.b16 %v2767, %v2766
  %v3576 = vpack.c.b16 %v2769, %v2768
  %v3577 = vpack.c.b16 %v2771, %v2770
  %v3578 = vpack.c.b16 %v2773, %v2772
  %v3579 = vpack.c.b16 %v2775, %v2774
  %v3580 = vpack.c.b16 %v2777, %v2776
  %v3581 = vpack.c.b16 %v2779, %v2778
  %v3582 = vpack.c.b16 %v2781, %v2780
  %v3583 = vpack.c.b16 %v2783, %v2782
  %v3584 = vpack.c.b16 %v2785, %v2784
  %v3585 = vpack.c.b16 %v2787, %v2786
  %v3586 = vpack.c.b16 %v2789, %v2788
  %v3587 = vpack.c.b16 %v2791, %v2790
  %v3588 = vpack.c.b16 %v2793, %v2792
  %v3589 = vpack.c.b16 %v2795, %v2794
  %v3590 = vpack.c.b16 %v2797, %v2796
  %v3591 = vpack.c.b16 %v2799, %v2798
  %v3592 = vpack.c.b16 %v2801, %v2800
  %v3593 = vpack.c.b16 %v2803, %v2802
  %v3594 = vpack.c.b16 %v2805, %v2804
  %v3595 = vpack.c.b16 %v2807, %v2806
  %v3596 = vpack.c.b16 %v2809, %v2808
  %v3597 = vpack.c.b16 %v2811, %v2810
  %v3598 = vpack.c.b16 %v2813, %v2812
  %v3599 = vpack.c.b16 %v2815, %v2814
  %v3600 = vpack.c.b16 %v2817, %v2816
  %v3601 = vpack.c.b16 %v2819, %v2818
  %v3602 = vpack.c.b16 %v2821, %v2820
  %v3603 = vpack.c.b16 %v2823, %v2822
  %v3604 = vpack.c.b16 %v2825, %v2824
  %v3605 = vpack.c.b16 %v2827, %v2826
  %v3606 = vpack.c.b16 %v2829, %v2828
  %v3607 = vpack.c.b16 %v2831, %v2830
  %v3608 = vpack.c.b16 %v2833, %v2832
  %v3609 = vpack.c.b16 %v2835, %v2834
  %v3610 = vpack.c.b16 %v2837, %v2836
  %v3611 = vpack.c.b16 %v2839, %v2838
  %v3612 = vpack.c.b16 %v2841, %v2840
  %v3613 = vpack.c.b16 %v2843, %v2842
  %v3614 = vpack.c.b16 %v2845, %v2844
  %v3615 = vpack.c.b16 %v2847, %v2846
  %v3616 = vpack.c.b16 %v2849, %v2848
  %v3617 = vpack.c.b16 %v2851, %v2850
  %v3618 = vpack.c.b16 %v2853, %v2852
  %v3619 = vpack.c.b16 %v2855, %v2854
  %v3620 = vpack.c.b16 %v2857, %v2856
  %v3621 = vpack.c.b16 %v2859, %v2858
  %v3622 = vpack.c.b16 %v2861, %v2860
  %v3623 = vpack.c.b16 %v2863, %v2862
  %v3624 = vpack.c.b16 %v2865, %v2864
  %v3625 = vpack.c.b16 %v2867, %v2866
  %v3626 = vpack.c.b16 %v2869, %v2868
  %v3627 = vpack.c.b16 %v2871, %v2870
  %v3628 = vpack.c.b16 %v2873, %v2872
  %v3629 = vpack.c.b16 %v2875, %v2874
  %v3630 = vpack.c.b16 %v2877, %v2876
  %v3631 = vpack.c.b16 %v2879, %v2878
  %v3632 = vpack.c.b16 %v2881, %v2880
  %v3633 = vpack.c.b16 %v2883, %v2882
  %v3634 = vpack.c.b16 %v2885, %v2884
  %v3635 = vpack.c.b16 %v2887, %v2886
  %v3636 = vpack.c.b16 %v2889, %v2888
  %v3637 = vpack.c.b16 %v2891, %v2890
  %v3638 = vpack.c.b16 %v2893, %v2892
  %v3639 = vpack.c.b16 %v2895, %v2894
  %v3640 = vpack.c.b16 %v2897, %v2896
  %v3641 = vpack.c.b16 %v2899, %v2898
  %v3642 = vpack.c.b16 %v2901, %v2900
  %v3643 = vpack.c.b16 %v2903, %v2902
  %v3644 = vpack.c.b16 %v2905, %v2904
  %v3645 = vpack.c.b16 %v2907, %v2906
  %v3646 = vpack.c.b16 %v2909, %v2908
  %v3647 = vpack.c.b16 %v2911, %v2910
  %v3648 = vpack.c.b16 %v2913, %v2912
  %v3649 = vpack.c.b16 %v2915, %v2914
  %v3650 = vpack.c.b16 %v2917, %v2916
  %v3651 = vpack.c.b16 %v2919, %v2918
  %v3652 = vpack.c.b16 %v2921, %v2920
  %v3653 = vpack.c.b16 %v2923, %v2922
  %v3654 = vpack.c.b16 %v2925, %v2924
  %v3655 = vpack.c.b16 %v2927, %v2926
  %v3656 = vpack.c.b16 %v2929, %v2928
  %v3657 = vpack.c.b16 %v2931, %v2930
  %v3658 = vpack.c.b16 %v2933, %v2932
  %v3659 = vpack.c.b16 %v2935, %v2934
  %v3660 = vpack.c.b16 %v2937, %v2936
  %v3661 = vpack.c.b16 %v2939, %v2938
  %v3662 = vpack.c.b16 %v2941, %v2940
  %v3663 = vpack.c.b16 %v2943, %v2942
  %v3664 = vpack.c.b16 %v2945, %v2944
  %v3665 = vpack.c.b16 %v2947, %v2946
  %v3666 = vpack.c.b16 %v2949, %v2948
  %v3667 = vpack.c.b16 %v2951, %v2950
  %v3668 = vpack.c.b16 %v2953, %v2952
  %v3669 = vpack.c.b16 %v2955, %v2954
  %v3670 = vpack.c.b16 %v2957, %v2956
  %v3671 = vpack.c.b16 %v2959, %v2958
  %v3672 = vpack.c.b16 %v2961, %v2960
  %v3673 = vpack.c.b16 %v2963, %v2962
  %v3674 = vpack.c.b16 %v2965, %v2964
  %v3675 = vpack.c.b16 %v2967, %v2966
  %v3676 = vpack.c.b16 %v2969, %v2968
  %v3677 = vpack.c.b16 %v2971, %v2970
  %v3678 = vpack.c.b16 %v2973, %v2972
  %v3679 = vpack.c.b16 %v2975, %v2974
  %v3680 = vpack.c.b16 %v2977, %v2976
  %v3681 = vpack.c.b16 %v2979, %v2978
  %v3682 = vpack.c.b16 %v2981, %v2980
  %v3683 = vpack.c.b16 %v2983, %v2982
  %v3684 = vpack.c.b16 %v2985, %v2984
  %v3685 = vpack.c.b16 %v2987, %v2986
  %v3686 = vpack.c.b16 %v2989, %v2988
  %v3687 = vpack.c.b16 %v2991, %v2990
  %v3688 = vpack.c.b16 %v2993, %v2992
  %v3689 = vpack.c.b16 %v2995, %v2994
  %v3690 = vpack.c.b16 %v2997, %v2996
  %v3691 = vpack.c.b16 %v2999, %v2998
  %v3692 = vpack.c.b16 %v3001, %v3000
  %v3693 = vpack.c.b16 %v3003, %v3002
  %v3694 = vpack.c.b16 %v3005, %v3004
  %v3695 = vpack.c.b16 %v3007, %v3006
  %v3696 = vpack.c.b16 %v3009, %v3008
  %v3697 = vpack.c.b16 %v3011, %v3010
  %v3698 = vpack.c.b16 %v3013, %v3012
  %v3699 = vpack.c.b16 %v3015, %v3014
  %v3700 = vpack.c.b16 %v3017, %v3016
  %v3701 = vpack.c.b16 %v3019, %v3018
  %v3702 = vpack.c.b16 %v3021, %v3020
  %v3703 = vpack.c.b16 %v3023, %v3022
  %v3704 = vpack.c.b16 %v3025, %v3024
  %v3705 = vpack.c.b16 %v3027, %v3026
  %v3706 = vpack.c.b16 %v3029, %v3028
  %v3707 = vpack.c.b16 %v3031, %v3030
  %v3708 = vpack.c.b16 %v3033, %v3032
  %v3709 = vpack.c.b16 %v3035, %v3034
  %v3710 = vpack.c.b16 %v3037, %v3036
  %v3711 = vpack.c.b16 %v3039, %v3038
  %v3712 = vpack.c.b16 %v3041, %v3040
  %v3713 = vpack.c.b16 %v3043, %v3042
  %v3714 = vpack.c.b16 %v3045, %v3044
  %v3715 = vpack.c.b16 %v3047, %v3046
  %v3716 = vpack.c.b16 %v3049, %v3048
  %v3717 = vpack.c.b16 %v3051, %v3050
  %v3718 = vpack.c.b16 %v3053, %v3052
  %v3719 = vpack.c.b16 %v3055, %v3054
  %v3720 = vpack.c.b16 %v3057, %v3056
  %v3721 = vpack.c.b16 %v3059, %v3058
  %v3722 = vpack.c.b16 %v3061, %v3060
  %v3723 = vpack.c.b16 %v3063, %v3062
  %v3724 = vpack.c.b16 %v3065, %v3064
  %v3725 = vpack.c.b16 %v3067, %v3066
  %v3726 = vpack.c.b16 %v3069, %v3068
  %v3727 = vpack.c.b16 %v3071, %v3070
  %v3728 = vpack.c.b16 %v3073, %v3072
  %v3729 = vpack.c.b16 %v3075, %v3074
  %v3730 = vpack.c.b16 %v3077, %v3076
  %v3731 = vpack.c.b16 %v3079, %v3078
  %v3732 = vpack.c.b16 %v3081, %v3080
  %v3733 = vpack.c.b16 %v3083, %v3082
  %v3734 = vpack.c.b16 %v3085, %v3084
  %v3735 = vpack.c.b16 %v3087, %v3086
  %v3736 = vpack.c.b16 %v3089, %v3088
  %v3737 = vpack.c.b16 %v3091, %v3090
  %v3738 = vpack.c.b16 %v3093, %v3092
  %v3739 = vpack.c.b16 %v3095, %v3094
  %v3740 = vpack.c.b16 %v3097, %v3096
  %v3741 = vpack.c.b16 %v3099, %v3098
  %v3742 = vpack.c.b16 %v3101, %v3100
  %v3743 = vpack.c.b16 %v3103, %v3102
  %v3744 = vpack.c.b16 %v3105, %v3104
  %v3745 = vpack.c.b16 %v3107, %v3106
  %v3746 = vpack.c.b16 %v3109, %v3108
  %v3747 = vpack.c.b16 %v3111, %v3110
  %v3748 = vpack.c.b16 %v3113, %v3112
  %v3749 = vpack.c.b16 %v3115, %v3114
  %v3750 = vpack.c.b16 %v3117, %v3116
  %v3751 = vpack.c.b16 %v3119, %v3118
  %v3752 = vpack.c.b16 %v3121, %v3120
  %v3753 = vpack.c.b16 %v3123, %v3122
  %v3754 = vpack.c.b16 %v3125, %v3124
  %v3755 = vpack.c.b16 %v3127, %v3126
  %v3756 = vpack.c.b16 %v3129, %v3128
  %v3757 = vpack.c.b16 %v3131, %v3130
  %v3758 = vpack.c.b16 %v3133, %v3132
  %v3759 = vpack.c.b16 %v3135, %v3134
  %v3760 = vpack.c.b16 %v3137, %v3136
  %v3761 = vpack.c.b16 %v3139, %v3138
  %v3762 = vpack.c.b16 %v3141, %v3140
  %v3763 = vpack.c.b16 %v3143, %v3142
  %v3764 = vpack.c.b16 %v3145, %v3144
  %v3765 = vpack.c.b16 %v3147, %v3146
  %v3766 = vpack.c.b16 %v3149, %v3148
  %v3767 = vpack.c.b16 %v3151, %v3150
  %v3768 = vpack.c.b16 %v3153, %v3152
  %v3769 = vpack.c.b16 %v3155, %v3154
  %v3770 = vpack.c.b16 %v3157, %v3156
  %v3771 = vpack.c.b16 %v3159, %v3158
  %v3772 = vpack.c.b16 %v3161, %v3160
  %v3773 = vpack.c.b16 %v3163, %v3162
  %v3774 = vpack.c.b16 %v3165, %v3164
  %v3775 = vpack.c.b16 %v3167, %v3166
  %v3776 = vpack.c.b16 %v3169, %v3168
  %v3777 = vpack.c.b16 %v3171, %v3170
  %v3778 = vpack.c.b16 %v3173, %v3172
  %v3779 = vpack.c.b16 %v3175, %v3174
  %v3780 = vpack.c.b16 %v3177, %v3176
  %v3781 = vpack.c.b16 %v3179, %v3178
  %v3782 = vpack.c.b16 %v3181, %v3180
  %v3783 = vpack.c.b16 %v3183, %v3182
  %v3784 = vpack.c.b16 %v3185, %v3184
  %v3785 = vpack.c.b16 %v3187, %v3186
  %v3786 = vpack.c.b16 %v3189, %v3188
  %v3787 = vpack.c.b16 %v3191, %v3190
  %v3788 = vpack.c.b16 %v3193, %v3192
  %v3789 = vpack.c.b16 %v3195, %v3194
  %v3790 = vpack.c.b16 %v3197, %v3196
  %v3791 = vpack.c.b16 %v3199, %v3198
  %v3792 = vpack.c.b16 %v3201, %v3200
  %v3793 = vpack.c.b16 %v3203, %v3202
  %v3794 = vpack.c.b16 %v3205, %v3204
  %v3795 = vpack.c.b16 %v3207, %v3206
  %v3796 = vpack.c.b16 %v3209, %v3208
  %v3797 = vpack.c.b16 %v3211, %v3210
  %v3798 = vpack.c.b16 %v3213, %v3212
  %v3799 = vpack.c.b16 %v3215, %v3214
  %v3800 = vpack.c.b16 %v3217, %v3216
  %v3801 = vpack.c.b16 %v3219, %v3218
  %v3802 = vpack.c.b16 %v3221, %v3220
  %v3803 = vpack.c.b16 %v3223, %v3222
  %v3804 = vpack.c.b16 %v3225, %v3224
  %v3805 = vpack.c.b16 %v3227, %v3226
  %v3806 = vpack.c.b16 %v3229, %v3228
  %v3807 = vpack.c.b16 %v3231, %v3230
  %v3808 = vpack.c.b16 %v3233, %v3232
  %v3809 = vpack.c.b16 %v3235, %v3234
  %v3810 = vpack.c.b16 %v3237, %v3236
  %v3811 = vpack.c.b16 %v3239, %v3238
  %v3812 = vpack.c.b16 %v3241, %v3240
  %v3813 = vpack.c.b16 %v3243, %v3242
  %v3814 = vpack.c.b16 %v3245, %v3244
  %v3815 = vpack.c.b16 %v3247, %v3246
  %v3816 = vpack.c.b16 %v3249, %v3248
  %v3817 = vpack.c.b16 %v3251, %v3250
  %v3818 = vpack.c.b16 %v3253, %v3252
  %v3819 = vpack.c.b16 %v3255, %v3254
  %v3820 = vpack.c.b16 %v3257, %v3256
  %v3821 = vpack.c.b16 %v3259, %v3258
  %v3822 = vpack.c.b16 %v3261, %v3260
  %v3823 = vpack.c.b16 %v3263, %v3262
  %v3824 = vpack.c.b16 %v3265, %v3264
  %v3825 = vpack.c.b16 %v3267, %v3266
  %v3826 = vpack.c.b16 %v3269, %v3268
  %v3827 = vpack.c.b16 %v3271, %v3270
  %v3828 = vpack.c.b16 %v3273, %v3272
  %v3829 = vpack.c.b16 %v3275, %v3274
  %v3830 = vpack.c.b16 %v3277, %v3276
  %v3831 = vpack.c.b16 %v3279, %v3278
  %v3832 = vpack.c.b16 %v3281, %v3280
  %v3833 = vpack.c.b16 %v3283, %v3282
  %v3834 = vpack.c.b16 %v3285, %v3284
  %v3835 = vpack.c.b16 %v3287, %v3286
  %v3836 = vpack.c.b16 %v3289, %v3288
  %v3837 = vpack.c.b16 %v3291, %v3290
  %v3838 = vpack.c.b16 %v3293, %v3292
  %v3839 = vpack.c.b16 %v3295, %v3294
  %v3840 = vpack.c.b16 %v3297, %v3296
  %v3841 = vpack.c.b16 %v3299, %v3298
  %v3842 = vpack.c.b16 %v3301, %v3300
  %v3843 = vpack.c.b16 %v3303, %v3302
  %v3844 = vpack.c.b16 %v3305, %v3304
  %v3845 = vpack.c.b16 %v3307, %v3306
  %v3846 = vpack.c.b16 %v3309, %v3308
  %v3847 = vpack.c.b16 %v3311, %v3310
  %v3848 = vpack.c.b16 %v3313, %v3312
  %v3849 = vpack.c.b16 %v3315, %v3314
  %v3850 = vpack.c.b16 %v3317, %v3316
  %v3851 = vpack.c.b16 %v3319, %v3318
  %v3852 = vpack.c.b16 %v3321, %v3320
  %v3853 = vpack.c.b16 %v3323, %v3322
  %v3854 = vpack.c.b16 %v3325, %v3324
  %v3855 = vpack.c.b16 %v3327, %v3326
  %v3856 = vpack.c.b16 %v3329, %v3328
  %v3857 = vpack.c.b16 %v3331, %v3330
  %v3858 = vpack.c.b16 %v3333, %v3332
  %v3859 = vpack.c.b16 %v3335, %v3334
  %v3860 = vpack.c.b16 %v3337, %v3336
  %v3861 = vpack.c.b16 %v3339, %v3338
  %v3862 = vpack.c.b16 %v3341, %v3340
  %v3863 = vpack.c.b16 %v3343, %v3342
  %v3864 = vpack.c.b16 %v3345, %v3344
  %v3865 = vpack.c.b16 %v3347, %v3346
  %v3866 = vpack.c.b16 %v3349, %v3348
  %v3867 = vpack.c.b16 %v3351, %v3350
  %v3868 = vpack.c.b16 %v3353, %v3352
  %v3869 = vpack.c.b16 %v3355, %v3354
  %v3870 = vpack.c.b16 %v3357, %v3356
  %v3871 = vpack.c.b16 %v3359, %v3358
  %4384 = vmatpush.bf16.msra.mxu0 %v3367
  %4385 = vmatpush.bf16.msra.mxu0 %v3366
  %4386 = vmatpush.bf16.msra.mxu0 %v3365
  %4387 = vmatpush.bf16.msra.mxu0 %v3364
  %4388 = vmatpush.bf16.msra.mxu0 %v3363
  %4389 = vmatpush.bf16.msra.mxu0 %v3362
  %4390 = vmatpush.bf16.msra.mxu0 %v3361
  %4391 = vmatpush.bf16.msra.mxu0 %v3360
  %4392 = vmatmul.bf16.gmra.mxu0 %v1184
  %v4393 = vpop.f32.mrf.mxu0
  %v4394 = vadd.f32 0.0, %v4393
  %v4395 = vpop.f32.mrf.mxu0
  %4396 = vdwg.mxu0
  %4397 = vmatpush.bf16.msra.mxu0 %v3375
  %4398 = vmatpush.bf16.msra.mxu0 %v3374
  %4399 = vmatpush.bf16.msra.mxu0 %v3373
  %4400 = vmatpush.bf16.msra.mxu0 %v3372
  %4401 = vmatpush.bf16.msra.mxu0 %v3371
  %4402 = vmatpush.bf16.msra.mxu0 %v3370
  %4403 = vmatpush.bf16.msra.mxu0 %v3369
  %4404 = vmatpush.bf16.msra.mxu0 %v3368
  %4405 = vmatmul.bf16.gmra.mxu0 %v1185
  %v4406 = vpop.f32.mrf.mxu0
  %v4407 = vadd.f32 %v4394, %v4406
  %v4408 = vpop.f32.mrf.mxu0
  %4409 = vdwg.mxu0
  %4410 = vmatpush.bf16.msra.mxu0 %v3383
  %4411 = vmatpush.bf16.msra.mxu0 %v3382
  %4412 = vmatpush.bf16.msra.mxu0 %v3381
  %4413 = vmatpush.bf16.msra.mxu0 %v3380
  %4414 = vmatpush.bf16.msra.mxu0 %v3379
  %4415 = vmatpush.bf16.msra.mxu0 %v3378
  %4416 = vmatpush.bf16.msra.mxu0 %v3377
  %4417 = vmatpush.bf16.msra.mxu0 %v3376
  %4418 = vmatmul.bf16.gmra.mxu0 %v1186
  %v4419 = vpop.f32.mrf.mxu0
  %v4420 = vadd.f32 %v4407, %v4419
  %v4421 = vpop.f32.mrf.mxu0
  %4422 = vdwg.mxu0
  %4423 = vmatpush.bf16.msra.mxu0 %v3391
  %4424 = vmatpush.bf16.msra.mxu0 %v3390
  %4425 = vmatpush.bf16.msra.mxu0 %v3389
  %4426 = vmatpush.bf16.msra.mxu0 %v3388
  %4427 = vmatpush.bf16.msra.mxu0 %v3387
  %4428 = vmatpush.bf16.msra.mxu0 %v3386
  %4429 = vmatpush.bf16.msra.mxu0 %v3385
  %4430 = vmatpush.bf16.msra.mxu0 %v3384
  %4431 = vmatmul.bf16.gmra.mxu0 %v1187
  %v4432 = vpop.f32.mrf.mxu0
  %v4433 = vadd.f32 %v4420, %v4432
  %v4434 = vpop.f32.mrf.mxu0
  %4435 = vdwg.mxu0
  %4436 = vmatpush.bf16.msra.mxu0 %v3399
  %4437 = vmatpush.bf16.msra.mxu0 %v3398
  %4438 = vmatpush.bf16.msra.mxu0 %v3397
  %4439 = vmatpush.bf16.msra.mxu0 %v3396
  %4440 = vmatpush.bf16.msra.mxu0 %v3395
  %4441 = vmatpush.bf16.msra.mxu0 %v3394
  %4442 = vmatpush.bf16.msra.mxu0 %v3393
  %4443 = vmatpush.bf16.msra.mxu0 %v3392
  %4444 = vmatmul.bf16.gmra.mxu0 %v1188
  %v4445 = vpop.f32.mrf.mxu0
  %v4446 = vadd.f32 %v4433, %v4445
  %v4447 = vpop.f32.mrf.mxu0
  %4448 = vdwg.mxu0
  %4449 = vmatpush.bf16.msra.mxu0 %v3407
  %4450 = vmatpush.bf16.msra.mxu0 %v3406
  %4451 = vmatpush.bf16.msra.mxu0 %v3405
  %4452 = vmatpush.bf16.msra.mxu0 %v3404
  %4453 = vmatpush.bf16.msra.mxu0 %v3403
  %4454 = vmatpush.bf16.msra.mxu0 %v3402
  %4455 = vmatpush.bf16.msra.mxu0 %v3401
  %4456 = vmatpush.bf16.msra.mxu0 %v3400
  %4457 = vmatmul.bf16.gmra.mxu0 %v1189
  %v4458 = vpop.f32.mrf.mxu0
  %v4459 = vadd.f32 %v4446, %v4458
  %v4460 = vpop.f32.mrf.mxu0
  %4461 = vdwg.mxu0
  %4462 = vmatpush.bf16.msra.mxu0 %v3415
  %4463 = vmatpush.bf16.msra.mxu0 %v3414
  %4464 = vmatpush.bf16.msra.mxu0 %v3413
  %4465 = vmatpush.bf16.msra.mxu0 %v3412
  %4466 = vmatpush.bf16.msra.mxu0 %v3411
  %4467 = vmatpush.bf16.msra.mxu0 %v3410
  %4468 = vmatpush.bf16.msra.mxu0 %v3409
  %4469 = vmatpush.bf16.msra.mxu0 %v3408
  %4470 = vmatmul.bf16.gmra.mxu0 %v1190
  %v4471 = vpop.f32.mrf.mxu0
  %v4472 = vadd.f32 %v4459, %v4471
  %v4473 = vpop.f32.mrf.mxu0
  %4474 = vdwg.mxu0
  %4475 = vmatpush.bf16.msra.mxu0 %v3423
  %4476 = vmatpush.bf16.msra.mxu0 %v3422
  %4477 = vmatpush.bf16.msra.mxu0 %v3421
  %4478 = vmatpush.bf16.msra.mxu0 %v3420
  %4479 = vmatpush.bf16.msra.mxu0 %v3419
  %4480 = vmatpush.bf16.msra.mxu0 %v3418
  %4481 = vmatpush.bf16.msra.mxu0 %v3417
  %4482 = vmatpush.bf16.msra.mxu0 %v3416
  %4483 = vmatmul.bf16.gmra.mxu0 %v1191
  %v4484 = vpop.f32.mrf.mxu0
  %v4485 = vadd.f32 %v4472, %v4484
  %v4486 = vpop.f32.mrf.mxu0
  %4487 = vdwg.mxu0
  %4488 = vmatpush.bf16.msra.mxu0 %v3431
  %4489 = vmatpush.bf16.msra.mxu0 %v3430
  %4490 = vmatpush.bf16.msra.mxu0 %v3429
  %4491 = vmatpush.bf16.msra.mxu0 %v3428
  %4492 = vmatpush.bf16.msra.mxu0 %v3427
  %4493 = vmatpush.bf16.msra.mxu0 %v3426
  %4494 = vmatpush.bf16.msra.mxu0 %v3425
  %4495 = vmatpush.bf16.msra.mxu0 %v3424
  %4496 = vmatmul.bf16.gmra.mxu0 %v1192
  %v4497 = vpop.f32.mrf.mxu0
  %v4498 = vadd.f32 %v4485, %v4497
  %v4499 = vpop.f32.mrf.mxu0
  %4500 = vdwg.mxu0
  %4501 = vmatpush.bf16.msra.mxu0 %v3439
  %4502 = vmatpush.bf16.msra.mxu0 %v3438
  %4503 = vmatpush.bf16.msra.mxu0 %v3437
  %4504 = vmatpush.bf16.msra.mxu0 %v3436
  %4505 = vmatpush.bf16.msra.mxu0 %v3435
  %4506 = vmatpush.bf16.msra.mxu0 %v3434
  %4507 = vmatpush.bf16.msra.mxu0 %v3433
  %4508 = vmatpush.bf16.msra.mxu0 %v3432
  %4509 = vmatmul.bf16.gmra.mxu0 %v1193
  %v4510 = vpop.f32.mrf.mxu0
  %v4511 = vadd.f32 %v4498, %v4510
  %v4512 = vpop.f32.mrf.mxu0
  %4513 = vdwg.mxu0
  %4514 = vmatpush.bf16.msra.mxu0 %v3447
  %4515 = vmatpush.bf16.msra.mxu0 %v3446
  %4516 = vmatpush.bf16.msra.mxu0 %v3445
  %4517 = vmatpush.bf16.msra.mxu0 %v3444
  %4518 = vmatpush.bf16.msra.mxu0 %v3443
  %4519 = vmatpush.bf16.msra.mxu0 %v3442
  %4520 = vmatpush.bf16.msra.mxu0 %v3441
  %4521 = vmatpush.bf16.msra.mxu0 %v3440
  %4522 = vmatmul.bf16.gmra.mxu0 %v1194
  %v4523 = vpop.f32.mrf.mxu0
  %v4524 = vadd.f32 %v4511, %v4523
  %v4525 = vpop.f32.mrf.mxu0
  %4526 = vdwg.mxu0
  %4527 = vmatpush.bf16.msra.mxu0 %v3455
  %4528 = vmatpush.bf16.msra.mxu0 %v3454
  %4529 = vmatpush.bf16.msra.mxu0 %v3453
  %4530 = vmatpush.bf16.msra.mxu0 %v3452
  %4531 = vmatpush.bf16.msra.mxu0 %v3451
  %4532 = vmatpush.bf16.msra.mxu0 %v3450
  %4533 = vmatpush.bf16.msra.mxu0 %v3449
  %4534 = vmatpush.bf16.msra.mxu0 %v3448
  %4535 = vmatmul.bf16.gmra.mxu0 %v1195
  %v4536 = vpop.f32.mrf.mxu0
  %v4537 = vadd.f32 %v4524, %v4536
  %v4538 = vpop.f32.mrf.mxu0
  %4539 = vdwg.mxu0
  %4540 = vmatpush.bf16.msra.mxu0 %v3463
  %4541 = vmatpush.bf16.msra.mxu0 %v3462
  %4542 = vmatpush.bf16.msra.mxu0 %v3461
  %4543 = vmatpush.bf16.msra.mxu0 %v3460
  %4544 = vmatpush.bf16.msra.mxu0 %v3459
  %4545 = vmatpush.bf16.msra.mxu0 %v3458
  %4546 = vmatpush.bf16.msra.mxu0 %v3457
  %4547 = vmatpush.bf16.msra.mxu0 %v3456
  %4548 = vmatmul.bf16.gmra.mxu0 %v1196
  %v4549 = vpop.f32.mrf.mxu0
  %v4550 = vadd.f32 %v4537, %v4549
  %v4551 = vpop.f32.mrf.mxu0
  %4552 = vdwg.mxu0
  %4553 = vmatpush.bf16.msra.mxu0 %v3471
  %4554 = vmatpush.bf16.msra.mxu0 %v3470
  %4555 = vmatpush.bf16.msra.mxu0 %v3469
  %4556 = vmatpush.bf16.msra.mxu0 %v3468
  %4557 = vmatpush.bf16.msra.mxu0 %v3467
  %4558 = vmatpush.bf16.msra.mxu0 %v3466
  %4559 = vmatpush.bf16.msra.mxu0 %v3465
  %4560 = vmatpush.bf16.msra.mxu0 %v3464
  %4561 = vmatmul.bf16.gmra.mxu0 %v1197
  %v4562 = vpop.f32.mrf.mxu0
  %v4563 = vadd.f32 %v4550, %v4562
  %v4564 = vpop.f32.mrf.mxu0
  %4565 = vdwg.mxu0
  %4566 = vmatpush.bf16.msra.mxu0 %v3479
  %4567 = vmatpush.bf16.msra.mxu0 %v3478
  %4568 = vmatpush.bf16.msra.mxu0 %v3477
  %4569 = vmatpush.bf16.msra.mxu0 %v3476
  %4570 = vmatpush.bf16.msra.mxu0 %v3475
  %4571 = vmatpush.bf16.msra.mxu0 %v3474
  %4572 = vmatpush.bf16.msra.mxu0 %v3473
  %4573 = vmatpush.bf16.msra.mxu0 %v3472
  %4574 = vmatmul.bf16.gmra.mxu0 %v1198
  %v4575 = vpop.f32.mrf.mxu0
  %v4576 = vadd.f32 %v4563, %v4575
  %v4577 = vpop.f32.mrf.mxu0
  %4578 = vdwg.mxu0
  %4579 = vmatpush.bf16.msra.mxu0 %v3487
  %4580 = vmatpush.bf16.msra.mxu0 %v3486
  %4581 = vmatpush.bf16.msra.mxu0 %v3485
  %4582 = vmatpush.bf16.msra.mxu0 %v3484
  %4583 = vmatpush.bf16.msra.mxu0 %v3483
  %4584 = vmatpush.bf16.msra.mxu0 %v3482
  %4585 = vmatpush.bf16.msra.mxu0 %v3481
  %4586 = vmatpush.bf16.msra.mxu0 %v3480
  %4587 = vmatmul.bf16.gmra.mxu0 %v1199
  %v4588 = vpop.f32.mrf.mxu0
  %v4589 = vadd.f32 %v4576, %v4588
  %v4590 = vpop.f32.mrf.mxu0
  %4591 = vdwg.mxu0
  %4592 = vmatpush.bf16.msra.mxu0 %v3495
  %4593 = vmatpush.bf16.msra.mxu0 %v3494
  %4594 = vmatpush.bf16.msra.mxu0 %v3493
  %4595 = vmatpush.bf16.msra.mxu0 %v3492
  %4596 = vmatpush.bf16.msra.mxu0 %v3491
  %4597 = vmatpush.bf16.msra.mxu0 %v3490
  %4598 = vmatpush.bf16.msra.mxu0 %v3489
  %4599 = vmatpush.bf16.msra.mxu0 %v3488
  %4600 = vmatmul.bf16.gmra.mxu0 %v1200
  %v4601 = vpop.f32.mrf.mxu0
  %v4602 = vadd.f32 %v4589, %v4601
  %v4603 = vpop.f32.mrf.mxu0
  %4604 = vdwg.mxu0
  %4605 = vmatpush.bf16.msra.mxu0 %v3503
  %4606 = vmatpush.bf16.msra.mxu0 %v3502
  %4607 = vmatpush.bf16.msra.mxu0 %v3501
  %4608 = vmatpush.bf16.msra.mxu0 %v3500
  %4609 = vmatpush.bf16.msra.mxu0 %v3499
  %4610 = vmatpush.bf16.msra.mxu0 %v3498
  %4611 = vmatpush.bf16.msra.mxu0 %v3497
  %4612 = vmatpush.bf16.msra.mxu0 %v3496
  %4613 = vmatmul.bf16.gmra.mxu0 %v1201
  %v4614 = vpop.f32.mrf.mxu0
  %v4615 = vadd.f32 %v4602, %v4614
  %v4616 = vpop.f32.mrf.mxu0
  %4617 = vdwg.mxu0
  %4618 = vmatpush.bf16.msra.mxu0 %v3511
  %4619 = vmatpush.bf16.msra.mxu0 %v3510
  %4620 = vmatpush.bf16.msra.mxu0 %v3509
  %4621 = vmatpush.bf16.msra.mxu0 %v3508
  %4622 = vmatpush.bf16.msra.mxu0 %v3507
  %4623 = vmatpush.bf16.msra.mxu0 %v3506
  %4624 = vmatpush.bf16.msra.mxu0 %v3505
  %4625 = vmatpush.bf16.msra.mxu0 %v3504
  %4626 = vmatmul.bf16.gmra.mxu0 %v1202
  %v4627 = vpop.f32.mrf.mxu0
  %v4628 = vadd.f32 %v4615, %v4627
  %v4629 = vpop.f32.mrf.mxu0
  %4630 = vdwg.mxu0
  %4631 = vmatpush.bf16.msra.mxu0 %v3519
  %4632 = vmatpush.bf16.msra.mxu0 %v3518
  %4633 = vmatpush.bf16.msra.mxu0 %v3517
  %4634 = vmatpush.bf16.msra.mxu0 %v3516
  %4635 = vmatpush.bf16.msra.mxu0 %v3515
  %4636 = vmatpush.bf16.msra.mxu0 %v3514
  %4637 = vmatpush.bf16.msra.mxu0 %v3513
  %4638 = vmatpush.bf16.msra.mxu0 %v3512
  %4639 = vmatmul.bf16.gmra.mxu0 %v1203
  %v4640 = vpop.f32.mrf.mxu0
  %v4641 = vadd.f32 %v4628, %v4640
  %v4642 = vpop.f32.mrf.mxu0
  %4643 = vdwg.mxu0
  %4644 = vmatpush.bf16.msra.mxu0 %v3527
  %4645 = vmatpush.bf16.msra.mxu0 %v3526
  %4646 = vmatpush.bf16.msra.mxu0 %v3525
  %4647 = vmatpush.bf16.msra.mxu0 %v3524
  %4648 = vmatpush.bf16.msra.mxu0 %v3523
  %4649 = vmatpush.bf16.msra.mxu0 %v3522
  %4650 = vmatpush.bf16.msra.mxu0 %v3521
  %4651 = vmatpush.bf16.msra.mxu0 %v3520
  %4652 = vmatmul.bf16.gmra.mxu0 %v1204
  %v4653 = vpop.f32.mrf.mxu0
  %v4654 = vadd.f32 %v4641, %v4653
  %v4655 = vpop.f32.mrf.mxu0
  %4656 = vdwg.mxu0
  %4657 = vmatpush.bf16.msra.mxu0 %v3535
  %4658 = vmatpush.bf16.msra.mxu0 %v3534
  %4659 = vmatpush.bf16.msra.mxu0 %v3533
  %4660 = vmatpush.bf16.msra.mxu0 %v3532
  %4661 = vmatpush.bf16.msra.mxu0 %v3531
  %4662 = vmatpush.bf16.msra.mxu0 %v3530
  %4663 = vmatpush.bf16.msra.mxu0 %v3529
  %4664 = vmatpush.bf16.msra.mxu0 %v3528
  %4665 = vmatmul.bf16.gmra.mxu0 %v1205
  %v4666 = vpop.f32.mrf.mxu0
  %v4667 = vadd.f32 %v4654, %v4666
  %v4668 = vpop.f32.mrf.mxu0
  %4669 = vdwg.mxu0
  %4670 = vmatpush.bf16.msra.mxu0 %v3543
  %4671 = vmatpush.bf16.msra.mxu0 %v3542
  %4672 = vmatpush.bf16.msra.mxu0 %v3541
  %4673 = vmatpush.bf16.msra.mxu0 %v3540
  %4674 = vmatpush.bf16.msra.mxu0 %v3539
  %4675 = vmatpush.bf16.msra.mxu0 %v3538
  %4676 = vmatpush.bf16.msra.mxu0 %v3537
  %4677 = vmatpush.bf16.msra.mxu0 %v3536
  %4678 = vmatmul.bf16.gmra.mxu0 %v1206
  %v4679 = vpop.f32.mrf.mxu0
  %v4680 = vadd.f32 %v4667, %v4679
  %v4681 = vpop.f32.mrf.mxu0
  %4682 = vdwg.mxu0
  %4683 = vmatpush.bf16.msra.mxu0 %v3551
  %4684 = vmatpush.bf16.msra.mxu0 %v3550
  %4685 = vmatpush.bf16.msra.mxu0 %v3549
  %4686 = vmatpush.bf16.msra.mxu0 %v3548
  %4687 = vmatpush.bf16.msra.mxu0 %v3547
  %4688 = vmatpush.bf16.msra.mxu0 %v3546
  %4689 = vmatpush.bf16.msra.mxu0 %v3545
  %4690 = vmatpush.bf16.msra.mxu0 %v3544
  %4691 = vmatmul.bf16.gmra.mxu0 %v1207
  %v4692 = vpop.f32.mrf.mxu0
  %v4693 = vadd.f32 %v4680, %v4692
  %v4694 = vpop.f32.mrf.mxu0
  %4695 = vdwg.mxu0
  %4696 = vmatpush.bf16.msra.mxu0 %v3559
  %4697 = vmatpush.bf16.msra.mxu0 %v3558
  %4698 = vmatpush.bf16.msra.mxu0 %v3557
  %4699 = vmatpush.bf16.msra.mxu0 %v3556
  %4700 = vmatpush.bf16.msra.mxu0 %v3555
  %4701 = vmatpush.bf16.msra.mxu0 %v3554
  %4702 = vmatpush.bf16.msra.mxu0 %v3553
  %4703 = vmatpush.bf16.msra.mxu0 %v3552
  %4704 = vmatmul.bf16.gmra.mxu0 %v1208
  %v4705 = vpop.f32.mrf.mxu0
  %v4706 = vadd.f32 %v4693, %v4705
  %v4707 = vpop.f32.mrf.mxu0
  %4708 = vdwg.mxu0
  %4709 = vmatpush.bf16.msra.mxu0 %v3567
  %4710 = vmatpush.bf16.msra.mxu0 %v3566
  %4711 = vmatpush.bf16.msra.mxu0 %v3565
  %4712 = vmatpush.bf16.msra.mxu0 %v3564
  %4713 = vmatpush.bf16.msra.mxu0 %v3563
  %4714 = vmatpush.bf16.msra.mxu0 %v3562
  %4715 = vmatpush.bf16.msra.mxu0 %v3561
  %4716 = vmatpush.bf16.msra.mxu0 %v3560
  %4717 = vmatmul.bf16.gmra.mxu0 %v1209
  %v4718 = vpop.f32.mrf.mxu0
  %v4719 = vadd.f32 %v4706, %v4718
  %v4720 = vpop.f32.mrf.mxu0
  %4721 = vdwg.mxu0
  %4722 = vmatpush.bf16.msra.mxu0 %v3575
  %4723 = vmatpush.bf16.msra.mxu0 %v3574
  %4724 = vmatpush.bf16.msra.mxu0 %v3573
  %4725 = vmatpush.bf16.msra.mxu0 %v3572
  %4726 = vmatpush.bf16.msra.mxu0 %v3571
  %4727 = vmatpush.bf16.msra.mxu0 %v3570
  %4728 = vmatpush.bf16.msra.mxu0 %v3569
  %4729 = vmatpush.bf16.msra.mxu0 %v3568
  %4730 = vmatmul.bf16.gmra.mxu0 %v1210
  %v4731 = vpop.f32.mrf.mxu0
  %v4732 = vadd.f32 %v4719, %v4731
  %v4733 = vpop.f32.mrf.mxu0
  %4734 = vdwg.mxu0
  %4735 = vmatpush.bf16.msra.mxu0 %v3583
  %4736 = vmatpush.bf16.msra.mxu0 %v3582
  %4737 = vmatpush.bf16.msra.mxu0 %v3581
  %4738 = vmatpush.bf16.msra.mxu0 %v3580
  %4739 = vmatpush.bf16.msra.mxu0 %v3579
  %4740 = vmatpush.bf16.msra.mxu0 %v3578
  %4741 = vmatpush.bf16.msra.mxu0 %v3577
  %4742 = vmatpush.bf16.msra.mxu0 %v3576
  %4743 = vmatmul.bf16.gmra.mxu0 %v1211
  %v4744 = vpop.f32.mrf.mxu0
  %v4745 = vadd.f32 %v4732, %v4744
  %v4746 = vpop.f32.mrf.mxu0
  %4747 = vdwg.mxu0
  %4748 = vmatpush.bf16.msra.mxu0 %v3591
  %4749 = vmatpush.bf16.msra.mxu0 %v3590
  %4750 = vmatpush.bf16.msra.mxu0 %v3589
  %4751 = vmatpush.bf16.msra.mxu0 %v3588
  %4752 = vmatpush.bf16.msra.mxu0 %v3587
  %4753 = vmatpush.bf16.msra.mxu0 %v3586
  %4754 = vmatpush.bf16.msra.mxu0 %v3585
  %4755 = vmatpush.bf16.msra.mxu0 %v3584
  %4756 = vmatmul.bf16.gmra.mxu0 %v1212
  %v4757 = vpop.f32.mrf.mxu0
  %v4758 = vadd.f32 %v4745, %v4757
  %v4759 = vpop.f32.mrf.mxu0
  %4760 = vdwg.mxu0
  %4761 = vmatpush.bf16.msra.mxu0 %v3599
  %4762 = vmatpush.bf16.msra.mxu0 %v3598
  %4763 = vmatpush.bf16.msra.mxu0 %v3597
  %4764 = vmatpush.bf16.msra.mxu0 %v3596
  %4765 = vmatpush.bf16.msra.mxu0 %v3595
  %4766 = vmatpush.bf16.msra.mxu0 %v3594
  %4767 = vmatpush.bf16.msra.mxu0 %v3593
  %4768 = vmatpush.bf16.msra.mxu0 %v3592
  %4769 = vmatmul.bf16.gmra.mxu0 %v1213
  %v4770 = vpop.f32.mrf.mxu0
  %v4771 = vadd.f32 %v4758, %v4770
  %v4772 = vpop.f32.mrf.mxu0
  %4773 = vdwg.mxu0
  %4774 = vmatpush.bf16.msra.mxu0 %v3607
  %4775 = vmatpush.bf16.msra.mxu0 %v3606
  %4776 = vmatpush.bf16.msra.mxu0 %v3605
  %4777 = vmatpush.bf16.msra.mxu0 %v3604
  %4778 = vmatpush.bf16.msra.mxu0 %v3603
  %4779 = vmatpush.bf16.msra.mxu0 %v3602
  %4780 = vmatpush.bf16.msra.mxu0 %v3601
  %4781 = vmatpush.bf16.msra.mxu0 %v3600
  %4782 = vmatmul.bf16.gmra.mxu0 %v1214
  %v4783 = vpop.f32.mrf.mxu0
  %v4784 = vadd.f32 %v4771, %v4783
  %v4785 = vpop.f32.mrf.mxu0
  %4786 = vdwg.mxu0
  %4787 = vmatpush.bf16.msra.mxu0 %v3615
  %4788 = vmatpush.bf16.msra.mxu0 %v3614
  %4789 = vmatpush.bf16.msra.mxu0 %v3613
  %4790 = vmatpush.bf16.msra.mxu0 %v3612
  %4791 = vmatpush.bf16.msra.mxu0 %v3611
  %4792 = vmatpush.bf16.msra.mxu0 %v3610
  %4793 = vmatpush.bf16.msra.mxu0 %v3609
  %4794 = vmatpush.bf16.msra.mxu0 %v3608
  %4795 = vmatmul.bf16.gmra.mxu0 %v1215
  %v4796 = vpop.f32.mrf.mxu0
  %v4797 = vadd.f32 %v4784, %v4796
  %v4798 = vpop.f32.mrf.mxu0
  %4799 = vdwg.mxu0
  %4800 = vmatpush.bf16.msra.mxu0 %v3623
  %4801 = vmatpush.bf16.msra.mxu0 %v3622
  %4802 = vmatpush.bf16.msra.mxu0 %v3621
  %4803 = vmatpush.bf16.msra.mxu0 %v3620
  %4804 = vmatpush.bf16.msra.mxu0 %v3619
  %4805 = vmatpush.bf16.msra.mxu0 %v3618
  %4806 = vmatpush.bf16.msra.mxu0 %v3617
  %4807 = vmatpush.bf16.msra.mxu0 %v3616
  %4808 = vmatmul.bf16.gmra.mxu0 %v1216
  %v4809 = vpop.f32.mrf.mxu0
  %v4810 = vadd.f32 %v4797, %v4809
  %v4811 = vpop.f32.mrf.mxu0
  %4812 = vdwg.mxu0
  %4813 = vmatpush.bf16.msra.mxu0 %v3631
  %4814 = vmatpush.bf16.msra.mxu0 %v3630
  %4815 = vmatpush.bf16.msra.mxu0 %v3629
  %4816 = vmatpush.bf16.msra.mxu0 %v3628
  %4817 = vmatpush.bf16.msra.mxu0 %v3627
  %4818 = vmatpush.bf16.msra.mxu0 %v3626
  %4819 = vmatpush.bf16.msra.mxu0 %v3625
  %4820 = vmatpush.bf16.msra.mxu0 %v3624
  %4821 = vmatmul.bf16.gmra.mxu0 %v1217
  %v4822 = vpop.f32.mrf.mxu0
  %v4823 = vadd.f32 %v4810, %v4822
  %v4824 = vpop.f32.mrf.mxu0
  %4825 = vdwg.mxu0
  %4826 = vmatpush.bf16.msra.mxu0 %v3639
  %4827 = vmatpush.bf16.msra.mxu0 %v3638
  %4828 = vmatpush.bf16.msra.mxu0 %v3637
  %4829 = vmatpush.bf16.msra.mxu0 %v3636
  %4830 = vmatpush.bf16.msra.mxu0 %v3635
  %4831 = vmatpush.bf16.msra.mxu0 %v3634
  %4832 = vmatpush.bf16.msra.mxu0 %v3633
  %4833 = vmatpush.bf16.msra.mxu0 %v3632
  %4834 = vmatmul.bf16.gmra.mxu0 %v1218
  %v4835 = vpop.f32.mrf.mxu0
  %v4836 = vadd.f32 %v4823, %v4835
  %v4837 = vpop.f32.mrf.mxu0
  %4838 = vdwg.mxu0
  %4839 = vmatpush.bf16.msra.mxu0 %v3647
  %4840 = vmatpush.bf16.msra.mxu0 %v3646
  %4841 = vmatpush.bf16.msra.mxu0 %v3645
  %4842 = vmatpush.bf16.msra.mxu0 %v3644
  %4843 = vmatpush.bf16.msra.mxu0 %v3643
  %4844 = vmatpush.bf16.msra.mxu0 %v3642
  %4845 = vmatpush.bf16.msra.mxu0 %v3641
  %4846 = vmatpush.bf16.msra.mxu0 %v3640
  %4847 = vmatmul.bf16.gmra.mxu0 %v1219
  %v4848 = vpop.f32.mrf.mxu0
  %v4849 = vadd.f32 %v4836, %v4848
  %v4850 = vpop.f32.mrf.mxu0
  %4851 = vdwg.mxu0
  %4852 = vmatpush.bf16.msra.mxu0 %v3655
  %4853 = vmatpush.bf16.msra.mxu0 %v3654
  %4854 = vmatpush.bf16.msra.mxu0 %v3653
  %4855 = vmatpush.bf16.msra.mxu0 %v3652
  %4856 = vmatpush.bf16.msra.mxu0 %v3651
  %4857 = vmatpush.bf16.msra.mxu0 %v3650
  %4858 = vmatpush.bf16.msra.mxu0 %v3649
  %4859 = vmatpush.bf16.msra.mxu0 %v3648
  %4860 = vmatmul.bf16.gmra.mxu0 %v1220
  %v4861 = vpop.f32.mrf.mxu0
  %v4862 = vadd.f32 %v4849, %v4861
  %v4863 = vpop.f32.mrf.mxu0
  %4864 = vdwg.mxu0
  %4865 = vmatpush.bf16.msra.mxu0 %v3663
  %4866 = vmatpush.bf16.msra.mxu0 %v3662
  %4867 = vmatpush.bf16.msra.mxu0 %v3661
  %4868 = vmatpush.bf16.msra.mxu0 %v3660
  %4869 = vmatpush.bf16.msra.mxu0 %v3659
  %4870 = vmatpush.bf16.msra.mxu0 %v3658
  %4871 = vmatpush.bf16.msra.mxu0 %v3657
  %4872 = vmatpush.bf16.msra.mxu0 %v3656
  %4873 = vmatmul.bf16.gmra.mxu0 %v1221
  %v4874 = vpop.f32.mrf.mxu0
  %v4875 = vadd.f32 %v4862, %v4874
  %v4876 = vpop.f32.mrf.mxu0
  %4877 = vdwg.mxu0
  %4878 = vmatpush.bf16.msra.mxu0 %v3671
  %4879 = vmatpush.bf16.msra.mxu0 %v3670
  %4880 = vmatpush.bf16.msra.mxu0 %v3669
  %4881 = vmatpush.bf16.msra.mxu0 %v3668
  %4882 = vmatpush.bf16.msra.mxu0 %v3667
  %4883 = vmatpush.bf16.msra.mxu0 %v3666
  %4884 = vmatpush.bf16.msra.mxu0 %v3665
  %4885 = vmatpush.bf16.msra.mxu0 %v3664
  %4886 = vmatmul.bf16.gmra.mxu0 %v1222
  %v4887 = vpop.f32.mrf.mxu0
  %v4888 = vadd.f32 %v4875, %v4887
  %v4889 = vpop.f32.mrf.mxu0
  %4890 = vdwg.mxu0
  %4891 = vmatpush.bf16.msra.mxu0 %v3679
  %4892 = vmatpush.bf16.msra.mxu0 %v3678
  %4893 = vmatpush.bf16.msra.mxu0 %v3677
  %4894 = vmatpush.bf16.msra.mxu0 %v3676
  %4895 = vmatpush.bf16.msra.mxu0 %v3675
  %4896 = vmatpush.bf16.msra.mxu0 %v3674
  %4897 = vmatpush.bf16.msra.mxu0 %v3673
  %4898 = vmatpush.bf16.msra.mxu0 %v3672
  %4899 = vmatmul.bf16.gmra.mxu0 %v1223
  %v4900 = vpop.f32.mrf.mxu0
  %v4901 = vadd.f32 %v4888, %v4900
  %v4902 = vpop.f32.mrf.mxu0
  %4903 = vdwg.mxu0
  %4904 = vmatpush.bf16.msra.mxu0 %v3687
  %4905 = vmatpush.bf16.msra.mxu0 %v3686
  %4906 = vmatpush.bf16.msra.mxu0 %v3685
  %4907 = vmatpush.bf16.msra.mxu0 %v3684
  %4908 = vmatpush.bf16.msra.mxu0 %v3683
  %4909 = vmatpush.bf16.msra.mxu0 %v3682
  %4910 = vmatpush.bf16.msra.mxu0 %v3681
  %4911 = vmatpush.bf16.msra.mxu0 %v3680
  %4912 = vmatmul.bf16.gmra.mxu0 %v1224
  %v4913 = vpop.f32.mrf.mxu0
  %v4914 = vadd.f32 %v4901, %v4913
  %v4915 = vpop.f32.mrf.mxu0
  %4916 = vdwg.mxu0
  %4917 = vmatpush.bf16.msra.mxu0 %v3695
  %4918 = vmatpush.bf16.msra.mxu0 %v3694
  %4919 = vmatpush.bf16.msra.mxu0 %v3693
  %4920 = vmatpush.bf16.msra.mxu0 %v3692
  %4921 = vmatpush.bf16.msra.mxu0 %v3691
  %4922 = vmatpush.bf16.msra.mxu0 %v3690
  %4923 = vmatpush.bf16.msra.mxu0 %v3689
  %4924 = vmatpush.bf16.msra.mxu0 %v3688
  %4925 = vmatmul.bf16.gmra.mxu0 %v1225
  %v4926 = vpop.f32.mrf.mxu0
  %v4927 = vadd.f32 %v4914, %v4926
  %v4928 = vpop.f32.mrf.mxu0
  %4929 = vdwg.mxu0
  %4930 = vmatpush.bf16.msra.mxu0 %v3703
  %4931 = vmatpush.bf16.msra.mxu0 %v3702
  %4932 = vmatpush.bf16.msra.mxu0 %v3701
  %4933 = vmatpush.bf16.msra.mxu0 %v3700
  %4934 = vmatpush.bf16.msra.mxu0 %v3699
  %4935 = vmatpush.bf16.msra.mxu0 %v3698
  %4936 = vmatpush.bf16.msra.mxu0 %v3697
  %4937 = vmatpush.bf16.msra.mxu0 %v3696
  %4938 = vmatmul.bf16.gmra.mxu0 %v1226
  %v4939 = vpop.f32.mrf.mxu0
  %v4940 = vadd.f32 %v4927, %v4939
  %v4941 = vpop.f32.mrf.mxu0
  %4942 = vdwg.mxu0
  %4943 = vmatpush.bf16.msra.mxu0 %v3711
  %4944 = vmatpush.bf16.msra.mxu0 %v3710
  %4945 = vmatpush.bf16.msra.mxu0 %v3709
  %4946 = vmatpush.bf16.msra.mxu0 %v3708
  %4947 = vmatpush.bf16.msra.mxu0 %v3707
  %4948 = vmatpush.bf16.msra.mxu0 %v3706
  %4949 = vmatpush.bf16.msra.mxu0 %v3705
  %4950 = vmatpush.bf16.msra.mxu0 %v3704
  %4951 = vmatmul.bf16.gmra.mxu0 %v1227
  %v4952 = vpop.f32.mrf.mxu0
  %v4953 = vadd.f32 %v4940, %v4952
  %v4954 = vpop.f32.mrf.mxu0
  %4955 = vdwg.mxu0
  %4956 = vmatpush.bf16.msra.mxu0 %v3719
  %4957 = vmatpush.bf16.msra.mxu0 %v3718
  %4958 = vmatpush.bf16.msra.mxu0 %v3717
  %4959 = vmatpush.bf16.msra.mxu0 %v3716
  %4960 = vmatpush.bf16.msra.mxu0 %v3715
  %4961 = vmatpush.bf16.msra.mxu0 %v3714
  %4962 = vmatpush.bf16.msra.mxu0 %v3713
  %4963 = vmatpush.bf16.msra.mxu0 %v3712
  %4964 = vmatmul.bf16.gmra.mxu0 %v1228
  %v4965 = vpop.f32.mrf.mxu0
  %v4966 = vadd.f32 %v4953, %v4965
  %v4967 = vpop.f32.mrf.mxu0
  %4968 = vdwg.mxu0
  %4969 = vmatpush.bf16.msra.mxu0 %v3727
  %4970 = vmatpush.bf16.msra.mxu0 %v3726
  %4971 = vmatpush.bf16.msra.mxu0 %v3725
  %4972 = vmatpush.bf16.msra.mxu0 %v3724
  %4973 = vmatpush.bf16.msra.mxu0 %v3723
  %4974 = vmatpush.bf16.msra.mxu0 %v3722
  %4975 = vmatpush.bf16.msra.mxu0 %v3721
  %4976 = vmatpush.bf16.msra.mxu0 %v3720
  %4977 = vmatmul.bf16.gmra.mxu0 %v1229
  %v4978 = vpop.f32.mrf.mxu0
  %v4979 = vadd.f32 %v4966, %v4978
  %v4980 = vpop.f32.mrf.mxu0
  %4981 = vdwg.mxu0
  %4982 = vmatpush.bf16.msra.mxu0 %v3735
  %4983 = vmatpush.bf16.msra.mxu0 %v3734
  %4984 = vmatpush.bf16.msra.mxu0 %v3733
  %4985 = vmatpush.bf16.msra.mxu0 %v3732
  %4986 = vmatpush.bf16.msra.mxu0 %v3731
  %4987 = vmatpush.bf16.msra.mxu0 %v3730
  %4988 = vmatpush.bf16.msra.mxu0 %v3729
  %4989 = vmatpush.bf16.msra.mxu0 %v3728
  %4990 = vmatmul.bf16.gmra.mxu0 %v1230
  %v4991 = vpop.f32.mrf.mxu0
  %v4992 = vadd.f32 %v4979, %v4991
  %v4993 = vpop.f32.mrf.mxu0
  %4994 = vdwg.mxu0
  %4995 = vmatpush.bf16.msra.mxu0 %v3743
  %4996 = vmatpush.bf16.msra.mxu0 %v3742
  %4997 = vmatpush.bf16.msra.mxu0 %v3741
  %4998 = vmatpush.bf16.msra.mxu0 %v3740
  %4999 = vmatpush.bf16.msra.mxu0 %v3739
  %5000 = vmatpush.bf16.msra.mxu0 %v3738
  %5001 = vmatpush.bf16.msra.mxu0 %v3737
  %5002 = vmatpush.bf16.msra.mxu0 %v3736
  %5003 = vmatmul.bf16.gmra.mxu0 %v1231
  %v5004 = vpop.f32.mrf.mxu0
  %v5005 = vadd.f32 %v4992, %v5004
  %v5006 = vpop.f32.mrf.mxu0
  %5007 = vdwg.mxu0
  %5008 = vmatpush.bf16.msra.mxu0 %v3751
  %5009 = vmatpush.bf16.msra.mxu0 %v3750
  %5010 = vmatpush.bf16.msra.mxu0 %v3749
  %5011 = vmatpush.bf16.msra.mxu0 %v3748
  %5012 = vmatpush.bf16.msra.mxu0 %v3747
  %5013 = vmatpush.bf16.msra.mxu0 %v3746
  %5014 = vmatpush.bf16.msra.mxu0 %v3745
  %5015 = vmatpush.bf16.msra.mxu0 %v3744
  %5016 = vmatmul.bf16.gmra.mxu0 %v1232
  %v5017 = vpop.f32.mrf.mxu0
  %v5018 = vadd.f32 %v5005, %v5017
  %v5019 = vpop.f32.mrf.mxu0
  %5020 = vdwg.mxu0
  %5021 = vmatpush.bf16.msra.mxu0 %v3759
  %5022 = vmatpush.bf16.msra.mxu0 %v3758
  %5023 = vmatpush.bf16.msra.mxu0 %v3757
  %5024 = vmatpush.bf16.msra.mxu0 %v3756
  %5025 = vmatpush.bf16.msra.mxu0 %v3755
  %5026 = vmatpush.bf16.msra.mxu0 %v3754
  %5027 = vmatpush.bf16.msra.mxu0 %v3753
  %5028 = vmatpush.bf16.msra.mxu0 %v3752
  %5029 = vmatmul.bf16.gmra.mxu0 %v1233
  %v5030 = vpop.f32.mrf.mxu0
  %v5031 = vadd.f32 %v5018, %v5030
  %v5032 = vpop.f32.mrf.mxu0
  %5033 = vdwg.mxu0
  %5034 = vmatpush.bf16.msra.mxu0 %v3767
  %5035 = vmatpush.bf16.msra.mxu0 %v3766
  %5036 = vmatpush.bf16.msra.mxu0 %v3765
  %5037 = vmatpush.bf16.msra.mxu0 %v3764
  %5038 = vmatpush.bf16.msra.mxu0 %v3763
  %5039 = vmatpush.bf16.msra.mxu0 %v3762
  %5040 = vmatpush.bf16.msra.mxu0 %v3761
  %5041 = vmatpush.bf16.msra.mxu0 %v3760
  %5042 = vmatmul.bf16.gmra.mxu0 %v1234
  %v5043 = vpop.f32.mrf.mxu0
  %v5044 = vadd.f32 %v5031, %v5043
  %v5045 = vpop.f32.mrf.mxu0
  %5046 = vdwg.mxu0
  %5047 = vmatpush.bf16.msra.mxu0 %v3775
  %5048 = vmatpush.bf16.msra.mxu0 %v3774
  %5049 = vmatpush.bf16.msra.mxu0 %v3773
  %5050 = vmatpush.bf16.msra.mxu0 %v3772
  %5051 = vmatpush.bf16.msra.mxu0 %v3771
  %5052 = vmatpush.bf16.msra.mxu0 %v3770
  %5053 = vmatpush.bf16.msra.mxu0 %v3769
  %5054 = vmatpush.bf16.msra.mxu0 %v3768
  %5055 = vmatmul.bf16.gmra.mxu0 %v1235
  %v5056 = vpop.f32.mrf.mxu0
  %v5057 = vadd.f32 %v5044, %v5056
  %v5058 = vpop.f32.mrf.mxu0
  %5059 = vdwg.mxu0
  %5060 = vmatpush.bf16.msra.mxu0 %v3783
  %5061 = vmatpush.bf16.msra.mxu0 %v3782
  %5062 = vmatpush.bf16.msra.mxu0 %v3781
  %5063 = vmatpush.bf16.msra.mxu0 %v3780
  %5064 = vmatpush.bf16.msra.mxu0 %v3779
  %5065 = vmatpush.bf16.msra.mxu0 %v3778
  %5066 = vmatpush.bf16.msra.mxu0 %v3777
  %5067 = vmatpush.bf16.msra.mxu0 %v3776
  %5068 = vmatmul.bf16.gmra.mxu0 %v1236
  %v5069 = vpop.f32.mrf.mxu0
  %v5070 = vadd.f32 %v5057, %v5069
  %v5071 = vpop.f32.mrf.mxu0
  %5072 = vdwg.mxu0
  %5073 = vmatpush.bf16.msra.mxu0 %v3791
  %5074 = vmatpush.bf16.msra.mxu0 %v3790
  %5075 = vmatpush.bf16.msra.mxu0 %v3789
  %5076 = vmatpush.bf16.msra.mxu0 %v3788
  %5077 = vmatpush.bf16.msra.mxu0 %v3787
  %5078 = vmatpush.bf16.msra.mxu0 %v3786
  %5079 = vmatpush.bf16.msra.mxu0 %v3785
  %5080 = vmatpush.bf16.msra.mxu0 %v3784
  %5081 = vmatmul.bf16.gmra.mxu0 %v1237
  %v5082 = vpop.f32.mrf.mxu0
  %v5083 = vadd.f32 %v5070, %v5082
  %v5084 = vpop.f32.mrf.mxu0
  %5085 = vdwg.mxu0
  %5086 = vmatpush.bf16.msra.mxu0 %v3799
  %5087 = vmatpush.bf16.msra.mxu0 %v3798
  %5088 = vmatpush.bf16.msra.mxu0 %v3797
  %5089 = vmatpush.bf16.msra.mxu0 %v3796
  %5090 = vmatpush.bf16.msra.mxu0 %v3795
  %5091 = vmatpush.bf16.msra.mxu0 %v3794
  %5092 = vmatpush.bf16.msra.mxu0 %v3793
  %5093 = vmatpush.bf16.msra.mxu0 %v3792
  %5094 = vmatmul.bf16.gmra.mxu0 %v1238
  %v5095 = vpop.f32.mrf.mxu0
  %v5096 = vadd.f32 %v5083, %v5095
  %v5097 = vpop.f32.mrf.mxu0
  %5098 = vdwg.mxu0
  %5099 = vmatpush.bf16.msra.mxu0 %v3807
  %5100 = vmatpush.bf16.msra.mxu0 %v3806
  %5101 = vmatpush.bf16.msra.mxu0 %v3805
  %5102 = vmatpush.bf16.msra.mxu0 %v3804
  %5103 = vmatpush.bf16.msra.mxu0 %v3803
  %5104 = vmatpush.bf16.msra.mxu0 %v3802
  %5105 = vmatpush.bf16.msra.mxu0 %v3801
  %5106 = vmatpush.bf16.msra.mxu0 %v3800
  %5107 = vmatmul.bf16.gmra.mxu0 %v1239
  %v5108 = vpop.f32.mrf.mxu0
  %v5109 = vadd.f32 %v5096, %v5108
  %v5110 = vpop.f32.mrf.mxu0
  %5111 = vdwg.mxu0
  %5112 = vmatpush.bf16.msra.mxu0 %v3815
  %5113 = vmatpush.bf16.msra.mxu0 %v3814
  %5114 = vmatpush.bf16.msra.mxu0 %v3813
  %5115 = vmatpush.bf16.msra.mxu0 %v3812
  %5116 = vmatpush.bf16.msra.mxu0 %v3811
  %5117 = vmatpush.bf16.msra.mxu0 %v3810
  %5118 = vmatpush.bf16.msra.mxu0 %v3809
  %5119 = vmatpush.bf16.msra.mxu0 %v3808
  %5120 = vmatmul.bf16.gmra.mxu0 %v1240
  %v5121 = vpop.f32.mrf.mxu0
  %v5122 = vadd.f32 %v5109, %v5121
  %v5123 = vpop.f32.mrf.mxu0
  %5124 = vdwg.mxu0
  %5125 = vmatpush.bf16.msra.mxu0 %v3823
  %5126 = vmatpush.bf16.msra.mxu0 %v3822
  %5127 = vmatpush.bf16.msra.mxu0 %v3821
  %5128 = vmatpush.bf16.msra.mxu0 %v3820
  %5129 = vmatpush.bf16.msra.mxu0 %v3819
  %5130 = vmatpush.bf16.msra.mxu0 %v3818
  %5131 = vmatpush.bf16.msra.mxu0 %v3817
  %5132 = vmatpush.bf16.msra.mxu0 %v3816
  %5133 = vmatmul.bf16.gmra.mxu0 %v1241
  %v5134 = vpop.f32.mrf.mxu0
  %v5135 = vadd.f32 %v5122, %v5134
  %v5136 = vpop.f32.mrf.mxu0
  %5137 = vdwg.mxu0
  %5138 = vmatpush.bf16.msra.mxu0 %v3831
  %5139 = vmatpush.bf16.msra.mxu0 %v3830
  %5140 = vmatpush.bf16.msra.mxu0 %v3829
  %5141 = vmatpush.bf16.msra.mxu0 %v3828
  %5142 = vmatpush.bf16.msra.mxu0 %v3827
  %5143 = vmatpush.bf16.msra.mxu0 %v3826
  %5144 = vmatpush.bf16.msra.mxu0 %v3825
  %5145 = vmatpush.bf16.msra.mxu0 %v3824
  %5146 = vmatmul.bf16.gmra.mxu0 %v1242
  %v5147 = vpop.f32.mrf.mxu0
  %v5148 = vadd.f32 %v5135, %v5147
  %v5149 = vpop.f32.mrf.mxu0
  %5150 = vdwg.mxu0
  %5151 = vmatpush.bf16.msra.mxu0 %v3839
  %5152 = vmatpush.bf16.msra.mxu0 %v3838
  %5153 = vmatpush.bf16.msra.mxu0 %v3837
  %5154 = vmatpush.bf16.msra.mxu0 %v3836
  %5155 = vmatpush.bf16.msra.mxu0 %v3835
  %5156 = vmatpush.bf16.msra.mxu0 %v3834
  %5157 = vmatpush.bf16.msra.mxu0 %v3833
  %5158 = vmatpush.bf16.msra.mxu0 %v3832
  %5159 = vmatmul.bf16.gmra.mxu0 %v1243
  %v5160 = vpop.f32.mrf.mxu0
  %v5161 = vadd.f32 %v5148, %v5160
  %v5162 = vpop.f32.mrf.mxu0
  %5163 = vdwg.mxu0
  %5164 = vmatpush.bf16.msra.mxu0 %v3847
  %5165 = vmatpush.bf16.msra.mxu0 %v3846
  %5166 = vmatpush.bf16.msra.mxu0 %v3845
  %5167 = vmatpush.bf16.msra.mxu0 %v3844
  %5168 = vmatpush.bf16.msra.mxu0 %v3843
  %5169 = vmatpush.bf16.msra.mxu0 %v3842
  %5170 = vmatpush.bf16.msra.mxu0 %v3841
  %5171 = vmatpush.bf16.msra.mxu0 %v3840
  %5172 = vmatmul.bf16.gmra.mxu0 %v1244
  %v5173 = vpop.f32.mrf.mxu0
  %v5174 = vadd.f32 %v5161, %v5173
  %v5175 = vpop.f32.mrf.mxu0
  %5176 = vdwg.mxu0
  %5177 = vmatpush.bf16.msra.mxu0 %v3855
  %5178 = vmatpush.bf16.msra.mxu0 %v3854
  %5179 = vmatpush.bf16.msra.mxu0 %v3853
  %5180 = vmatpush.bf16.msra.mxu0 %v3852
  %5181 = vmatpush.bf16.msra.mxu0 %v3851
  %5182 = vmatpush.bf16.msra.mxu0 %v3850
  %5183 = vmatpush.bf16.msra.mxu0 %v3849
  %5184 = vmatpush.bf16.msra.mxu0 %v3848
  %5185 = vmatmul.bf16.gmra.mxu0 %v1245
  %v5186 = vpop.f32.mrf.mxu0
  %v5187 = vadd.f32 %v5174, %v5186
  %v5188 = vpop.f32.mrf.mxu0
  %5189 = vdwg.mxu0
  %5190 = vmatpush.bf16.msra.mxu0 %v3863
  %5191 = vmatpush.bf16.msra.mxu0 %v3862
  %5192 = vmatpush.bf16.msra.mxu0 %v3861
  %5193 = vmatpush.bf16.msra.mxu0 %v3860
  %5194 = vmatpush.bf16.msra.mxu0 %v3859
  %5195 = vmatpush.bf16.msra.mxu0 %v3858
  %5196 = vmatpush.bf16.msra.mxu0 %v3857
  %5197 = vmatpush.bf16.msra.mxu0 %v3856
  %5198 = vmatmul.bf16.gmra.mxu0 %v1246
  %v5199 = vpop.f32.mrf.mxu0
  %v5200 = vadd.f32 %v5187, %v5199
  %v5201 = vpop.f32.mrf.mxu0
  %5202 = vdwg.mxu0
  %5203 = vmatpush.bf16.msra.mxu0 %v3871
  %5204 = vmatpush.bf16.msra.mxu0 %v3870
  %5205 = vmatpush.bf16.msra.mxu0 %v3869
  %5206 = vmatpush.bf16.msra.mxu0 %v3868
  %5207 = vmatpush.bf16.msra.mxu0 %v3867
  %5208 = vmatpush.bf16.msra.mxu0 %v3866
  %5209 = vmatpush.bf16.msra.mxu0 %v3865
  %5210 = vmatpush.bf16.msra.mxu0 %v3864
  %5211 = vmatmul.bf16.gmra.mxu0 %v1247
  %v5212 = vpop.f32.mrf.mxu0
  %v5213 = vadd.f32 %v5200, %v5212
  %v5214 = vpop.f32.mrf.mxu0
  %5215 = vdwg.mxu0
  %v5216 = vld [vmem:[%s2] sm:$0x1]
  %v5218 = vperm.slane %v5216, 0
  %v5220 = vmul.f32 %v5213, %v5218
  %v5221 = vld [vmem:[%s3] sm:$0x1]
  %v5223 = vperm.slane %v5221, 0
  %v5225 = vadd.f32 %v5220, %v5223
  %v5226 = vmax.f32 %v5225, 0.0
  %v5227 = vpack.c.bf16 %v5226, %v5226
  %v5228 = vld [vmem:[%s4] sm:$0xf]
  %v5229 = vld [vmem:[%s4 + $0x4] sm:$0xf]
  %v5230 = vld [vmem:[%s4 + $0x8] sm:$0xf]
  %v5231 = vld [vmem:[%s4 + $0xc] sm:$0xf]
  %v5232 = vld [vmem:[%s4 + $0x10] sm:$0xf]
  %v5233 = vld [vmem:[%s4 + $0x14] sm:$0xf]
  %v5234 = vld [vmem:[%s4 + $0x18] sm:$0xf]
  %v5235 = vld [vmem:[%s4 + $0x1c] sm:$0xf]
  %v5236 = vld [vmem:[%s4 + $0x20] sm:$0xf]
  %v5237 = vld [vmem:[%s4 + $0x24] sm:$0xf]
  %v5238 = vld [vmem:[%s4 + $0x28] sm:$0xf]
  %v5239 = vld [vmem:[%s4 + $0x2c] sm:$0xf]
  %v5240 = vld [vmem:[%s4 + $0x30] sm:$0xf]
  %v5241 = vld [vmem:[%s4 + $0x34] sm:$0xf]
  %v5242 = vld [vmem:[%s4 + $0x38] sm:$0xf]
  %v5243 = vld [vmem:[%s4 + $0x3c] sm:$0xf]
  %v5260 = vunpack.c.l.b16 %v5228
  %v5261 = vunpack.c.l.b16 %v5229
  %v5262 = vunpack.c.l.b16 %v5230
  %v5263 = vunpack.c.l.b16 %v5231
  %v5264 = vunpack.c.l.b16 %v5232
  %v5265 = vunpack.c.l.b16 %v5233
  %v5266 = vunpack.c.l.b16 %v5234
  %v5267 = vunpack.c.l.b16 %v5235
  %v5268 = vunpack.c.l.b16 %v5236
  %v5269 = vunpack.c.l.b16 %v5237
  %v5270 = vunpack.c.l.b16 %v5238
  %v5271 = vunpack.c.l.b16 %v5239
  %v5272 = vunpack.c.l.b16 %v5240
  %v5273 = vunpack.c.l.b16 %v5241
  %v5274 = vunpack.c.l.b16 %v5242
  %v5275 = vunpack.c.l.b16 %v5243
  %v5276 = vpack.c.b16 %v5261, %v5260
  %v5277 = vpack.c.b16 %v5263, %v5262
  %v5278 = vpack.c.b16 %v5265, %v5264
  %v5279 = vpack.c.b16 %v5267, %v5266
  %v5280 = vpack.c.b16 %v5269, %v5268
  %v5281 = vpack.c.b16 %v5271, %v5270
  %v5282 = vpack.c.b16 %v5273, %v5272
  %v5283 = vpack.c.b16 %v5275, %v5274
  %5292 = vmatpush.bf16.msra.mxu0 %v5283
  %5293 = vmatpush.bf16.msra.mxu0 %v5282
  %5294 = vmatpush.bf16.msra.mxu0 %v5281
  %5295 = vmatpush.bf16.msra.mxu0 %v5280
  %5296 = vmatpush.bf16.msra.mxu0 %v5279
  %5297 = vmatpush.bf16.msra.mxu0 %v5278
  %5298 = vmatpush.bf16.msra.mxu0 %v5277
  %5299 = vmatpush.bf16.msra.mxu0 %v5276
  %5300 = vmatmul.bf16.gmra.mxu0 %v5227
  %v5301 = vpop.f32.mrf.mxu0
  %v5302 = vadd.f32 0.0, %v5301
  %v5303 = vpop.f32.mrf.mxu0
  %5304 = vdwg.mxu0
  %v5305 = vld [vmem:[%s5] sm:$0x1]
  %v5307 = vperm.slane %v5305, 0
  %v5309 = vmul.f32 %v5302, %v5307
  %v5310 = vld [vmem:[%s6] sm:$0x1]
  %v5312 = vperm.slane %v5310, 0
  %v5314 = vadd.f32 %v5309, %v5312
  %v5315 = vmax.f32 %v5314, 0.0
  %v5316 = vpack.c.bf16 %v5315, %v5315
  %v5317 = vld [vmem:[%s7] sm:$0xf]
  %v5318 = vld [vmem:[%s7 + $0x4] sm:$0xf]
  %v5319 = vld [vmem:[%s7 + $0x8] sm:$0xf]
  %v5320 = vld [vmem:[%s7 + $0xc] sm:$0xf]
  %v5321 = vld [vmem:[%s7 + $0x10] sm:$0xf]
  %v5322 = vld [vmem:[%s7 + $0x14] sm:$0xf]
  %v5323 = vld [vmem:[%s7 + $0x18] sm:$0xf]
  %v5324 = vld [vmem:[%s7 + $0x1c] sm:$0xf]
  %v5325 = vld [vmem:[%s7 + $0x20] sm:$0xf]
  %v5326 = vld [vmem:[%s7 + $0x24] sm:$0xf]
  %v5327 = vld [vmem:[%s7 + $0x28] sm:$0xf]
  %v5328 = vld [vmem:[%s7 + $0x2c] sm:$0xf]
  %v5329 = vld [vmem:[%s7 + $0x30] sm:$0xf]
  %v5330 = vld [vmem:[%s7 + $0x34] sm:$0xf]
  %v5331 = vld [vmem:[%s7 + $0x38] sm:$0xf]
  %v5332 = vld [vmem:[%s7 + $0x3c] sm:$0xf]
  %v5333 = vld [vmem:[%s8] sm:$0x1]
  %v5335 = vperm.slane %v5333, 0
  %v5353 = vunpack.c.l.b16 %v5317
  %v5354 = vunpack.c.l.b16 %v5318
  %v5355 = vunpack.c.l.b16 %v5319
  %v5356 = vunpack.c.l.b16 %v5320
  %v5357 = vunpack.c.l.b16 %v5321
  %v5358 = vunpack.c.l.b16 %v5322
  %v5359 = vunpack.c.l.b16 %v5323
  %v5360 = vunpack.c.l.b16 %v5324
  %v5361 = vunpack.c.l.b16 %v5325
  %v5362 = vunpack.c.l.b16 %v5326
  %v5363 = vunpack.c.l.b16 %v5327
  %v5364 = vunpack.c.l.b16 %v5328
  %v5365 = vunpack.c.l.b16 %v5329
  %v5366 = vunpack.c.l.b16 %v5330
  %v5367 = vunpack.c.l.b16 %v5331
  %v5368 = vunpack.c.l.b16 %v5332
  %v5369 = vpack.c.b16 %v5354, %v5353
  %v5370 = vpack.c.b16 %v5356, %v5355
  %v5371 = vpack.c.b16 %v5358, %v5357
  %v5372 = vpack.c.b16 %v5360, %v5359
  %v5373 = vpack.c.b16 %v5362, %v5361
  %v5374 = vpack.c.b16 %v5364, %v5363
  %v5375 = vpack.c.b16 %v5366, %v5365
  %v5376 = vpack.c.b16 %v5368, %v5367
  %5385 = vmatpush.bf16.msra.mxu0 %v5376
  %5386 = vmatpush.bf16.msra.mxu0 %v5375
  %5387 = vmatpush.bf16.msra.mxu0 %v5374
  %5388 = vmatpush.bf16.msra.mxu0 %v5373
  %5389 = vmatpush.bf16.msra.mxu0 %v5372
  %5390 = vmatpush.bf16.msra.mxu0 %v5371
  %5391 = vmatpush.bf16.msra.mxu0 %v5370
  %5392 = vmatpush.bf16.msra.mxu0 %v5369
  %5393 = vmatmul.bf16.gmra.mxu0 %v5316
  %v5394 = vpop.f32.mrf.mxu0
  %v5395 = vadd.f32 %v5335, %v5394
  %v5396 = vpop.f32.mrf.mxu0
  %5397 = vdwg.mxu0
  %5398 = vst [vmem:[%s9] sm:$0xff] %v5395
  // Predicated region
  $region38: #{_lambda_.3} parent=0 // pred_check
    _
  $region39: #{_lambda_.3} parent=0 // pred_check_branch
    %5400 = sbr.rel (0) target = $region41
  $region40: #{_lambda_.3} parent=0 // pred_region
    _
  $region41: #{_lambda_.3} parent=0 // pred_fallthru
    _
  // Predicated region
  $region42: #{_lambda_.3} parent=0 // pred_check
    _
  $region43: #{_lambda_.3} parent=0 // pred_check_branch
    %5402 = sbr.rel (0) target = $region45
  $region44: #{_lambda_.3} parent=0 // pred_region
    _
  $region45: #{_lambda_.3} parent=0 // pred_fallthru
    _

// kernel: _lambda_.2
$region0: #{_lambda_.2}
  #allocation0 [shape = 'u32[]', space=smem, size = 0x4, offset = 0x4, fixed_abs, tag = 'smem constant byte address 0x4 - core index']
  #allocation1 [shape = 'u32[72,128]{1,0:T(1,128)}', space=vmem, size = 0x9000, scoped, tag = 'internal scratch']
  #allocation2 [shape = 'f32[16,32,128]{2,1,0:T(8,128)}', space=vmem, size = 0x40000, scoped, tag = 'scratch operand']
  #allocation3 [shape = 'bf16[18,18,128]{2,1,0:T(8,128)(2,1)}', space=vmem, size = 0x1b000, scoped, tag = 'scratch operand']
  #allocation4 [shape = 'bf16[256,1152]{1,0:T(8,128)(2,1)}', space=vmem, size = 0x90000, scoped, tag = 'scratch operand']
  #allocation5 [shape = 'f32[8,16,128]{2,1,0:T(8,128)}', space=vmem, size = 0x10000, scoped, tag = 'scratch operand']
  %s0 = inlined_call_operand.vmem [shape: bf16[2,1024,32], index: 0, kind: input, shape index: {}]
  %s1 = inlined_call_operand.vmem [shape: bf16[32,128], index: 1, kind: input, shape index: {}]
  %s2 = inlined_call_operand.vmem [shape: f32[1,128], index: 2, kind: input, shape index: {}]
  %s3 = inlined_call_operand.vmem [shape: f32[1,128], index: 3, kind: input, shape index: {}]
  %s4 = inlined_call_operand.vmem [shape: bf16[1152,128], index: 4, kind: input, shape index: {}]
  %s5 = inlined_call_operand.vmem [shape: f32[1,128], index: 5, kind: input, shape index: {}]
  %s6 = inlined_call_operand.vmem [shape: f32[1,128], index: 6, kind: input, shape index: {}]
  %s7 = inlined_call_operand.vmem [shape: bf16[2,64,128], index: 7, kind: output, shape index: {}]
  %s8 = sld [smem:[#allocation0]]
  $region61: #{_lambda_.2} parent=0
    _
  %s10 = ssub.s32 1, %s8
  %s11 = scalar_select 0, %s10, %s8
  loop: start=0, step=1, limit=4
  $region2: #{_lambda_.2} parent=0 // loop_pre_header
    _
  $region3: #{_lambda_.2} parent=0 // loop_header
    %s13 = sphi 0, %s17
    %p14 = scmp.ge.s32.totalorder %s13, 4
    %s23 = sphi 0, %s25
    %s26 = sphi 0, %s23
    %s27 = sphi 0, %s26
    %s43 = sphi 0, %s27
    %s47 = sphi 0, %s47
    %s49 = sphi 0, %s47
    %s50 = sphi 0, %s49
    %s64 = sphi 0, %s50
    %s68 = sphi 0, %s68
    %s70 = sphi 0, %s68
    %s71 = sphi 0, %s70
    %s85 = sphi 0, %s71
    %s89 = sphi 0, %s89
    %s91 = sphi 0, %s89
    %s92 = sphi 0, %s91
    %s106 = sphi 0, %s92
    %s110 = sphi 0, %s110
    %s112 = sphi 0, %s110
    %s113 = sphi 0, %s112
    %s127 = sphi 0, %s113
    %s131 = sphi 0, %s131
    %s133 = sphi 0, %s131
    %s134 = sphi 0, %s133
    %s148 = sphi 0, %s134
    %s152 = sphi 0, %s152
    %s154 = sphi 0, %s152
    %s155 = sphi 0, %s154
    %s169 = sphi 0, %s155
    %s175 = sphi 0, %s177
    %s178 = sphi 0, %s175
    %s179 = sphi 0, %s178
    %s195 = sphi 0, %s179
  $region4: #{_lambda_.2} parent=0 // loop_header_branch
    %16 = sbr.rel (%p14) target = $region8
  $region5: #{_lambda_.2} parent=0 // loop_body
    %s18 = ssub.s32 %s13, 1
    %s19 = ssub.s32 %s13, 2
    %s20 = sadd.s32 %s13, 1
    %s21 = ssub.s32 %s13, %s20
    %p22 = scmp.eq.s32.totalorder %s21, 0
    %s24 = sadd.s32 %s23, 1
    %s25 = scalar_select %p22, %s23, %s24
    %p28 = pneg %p22
    %p29 = scmp.eq.s32.totalorder %s13, 1
    %p30 = por %p28, %p29
    %p31 = scmp.ne.s32.totalorder %s23, %s26
    %p32 = scmp.eq.s32.totalorder %s13, 0
    %p33 = por %p31, %p32
    %p34 = scmp.ne.s32.totalorder %s23, %s26
    %p35 = scmp.eq.s32.totalorder %s18, 1
    %p36 = por %p34, %p35
    %p37 = scmp.ne.s32.totalorder %s26, %s27
    %p38 = scmp.eq.s32.totalorder %s18, 0
    %p39 = por %p37, %p38
    %p40 = scmp.ne.s32.totalorder %s26, %s27
    %p41 = scmp.eq.s32.totalorder %s19, 1
    %p42 = por %p40, %p41
    %p44 = scmp.ne.s32.totalorder %s27, %s43
    %p45 = scmp.eq.s32.totalorder %s19, 0
    %p46 = por %p44, %p45
    %s48 = sadd.s32 %s47, 1
    %p51 = scmp.eq.s32.totalorder %s13, 1
    %p52 = scmp.ne.s32.totalorder %s47, %s49
    %p53 = scmp.eq.s32.totalorder %s13, 0
    %p54 = por %p52, %p53
    %p55 = scmp.ne.s32.totalorder %s47, %s49
    %p56 = scmp.eq.s32.totalorder %s18, 1
    %p57 = por %p55, %p56
    %p58 = scmp.ne.s32.totalorder %s49, %s50
    %p59 = scmp.eq.s32.totalorder %s18, 0
    %p60 = por %p58, %p59
    %p61 = scmp.ne.s32.totalorder %s49, %s50
    %p62 = scmp.eq.s32.totalorder %s19, 1
    %p63 = por %p61, %p62
    %p65 = scmp.ne.s32.totalorder %s50, %s64
    %p66 = scmp.eq.s32.totalorder %s19, 0
    %p67 = por %p65, %p66
    %s69 = sadd.s32 %s68, 1
    %p72 = scmp.eq.s32.totalorder %s13, 1
    %p73 = scmp.ne.s32.totalorder %s68, %s70
    %p74 = scmp.eq.s32.totalorder %s13, 0
    %p75 = por %p73, %p74
    %p76 = scmp.ne.s32.totalorder %s68, %s70
    %p77 = scmp.eq.s32.totalorder %s18, 1
    %p78 = por %p76, %p77
    %p79 = scmp.ne.s32.totalorder %s70, %s71
    %p80 = scmp.eq.s32.totalorder %s18, 0
    %p81 = por %p79, %p80
    %p82 = scmp.ne.s32.totalorder %s70, %s71
    %p83 = scmp.eq.s32.totalorder %s19, 1
    %p84 = por %p82, %p83
    %p86 = scmp.ne.s32.totalorder %s71, %s85
    %p87 = scmp.eq.s32.totalorder %s19, 0
    %p88 = por %p86, %p87
    %s90 = sadd.s32 %s89, 1
    %p93 = scmp.eq.s32.totalorder %s13, 1
    %p94 = scmp.ne.s32.totalorder %s89, %s91
    %p95 = scmp.eq.s32.totalorder %s13, 0
    %p96 = por %p94, %p95
    %p97 = scmp.ne.s32.totalorder %s89, %s91
    %p98 = scmp.eq.s32.totalorder %s18, 1
    %p99 = por %p97, %p98
    %p100 = scmp.ne.s32.totalorder %s91, %s92
    %p101 = scmp.eq.s32.totalorder %s18, 0
    %p102 = por %p100, %p101
    %p103 = scmp.ne.s32.totalorder %s91, %s92
    %p104 = scmp.eq.s32.totalorder %s19, 1
    %p105 = por %p103, %p104
    %p107 = scmp.ne.s32.totalorder %s92, %s106
    %p108 = scmp.eq.s32.totalorder %s19, 0
    %p109 = por %p107, %p108
    %s111 = sadd.s32 %s110, 1
    %p114 = scmp.eq.s32.totalorder %s13, 1
    %p115 = scmp.ne.s32.totalorder %s110, %s112
    %p116 = scmp.eq.s32.totalorder %s13, 0
    %p117 = por %p115, %p116
    %p118 = scmp.ne.s32.totalorder %s110, %s112
    %p119 = scmp.eq.s32.totalorder %s18, 1
    %p120 = por %p118, %p119
    %p121 = scmp.ne.s32.totalorder %s112, %s113
    %p122 = scmp.eq.s32.totalorder %s18, 0
    %p123 = por %p121, %p122
    %p124 = scmp.ne.s32.totalorder %s112, %s113
    %p125 = scmp.eq.s32.totalorder %s19, 1
    %p126 = por %p124, %p125
    %p128 = scmp.ne.s32.totalorder %s113, %s127
    %p129 = scmp.eq.s32.totalorder %s19, 0
    %p130 = por %p128, %p129
    %s132 = sadd.s32 %s131, 1
    %p135 = scmp.eq.s32.totalorder %s13, 1
    %p136 = scmp.ne.s32.totalorder %s131, %s133
    %p137 = scmp.eq.s32.totalorder %s13, 0
    %p138 = por %p136, %p137
    %p139 = scmp.ne.s32.totalorder %s131, %s133
    %p140 = scmp.eq.s32.totalorder %s18, 1
    %p141 = por %p139, %p140
    %p142 = scmp.ne.s32.totalorder %s133, %s134
    %p143 = scmp.eq.s32.totalorder %s18, 0
    %p144 = por %p142, %p143
    %p145 = scmp.ne.s32.totalorder %s133, %s134
    %p146 = scmp.eq.s32.totalorder %s19, 1
    %p147 = por %p145, %p146
    %p149 = scmp.ne.s32.totalorder %s134, %s148
    %p150 = scmp.eq.s32.totalorder %s19, 0
    %p151 = por %p149, %p150
    %s153 = sadd.s32 %s152, 1
    %p156 = scmp.eq.s32.totalorder %s13, 1
    %p157 = scmp.ne.s32.totalorder %s152, %s154
    %p158 = scmp.eq.s32.totalorder %s13, 0
    %p159 = por %p157, %p158
    %p160 = scmp.ne.s32.totalorder %s152, %s154
    %p161 = scmp.eq.s32.totalorder %s18, 1
    %p162 = por %p160, %p161
    %p163 = scmp.ne.s32.totalorder %s154, %s155
    %p164 = scmp.eq.s32.totalorder %s18, 0
    %p165 = por %p163, %p164
    %p166 = scmp.ne.s32.totalorder %s154, %s155
    %p167 = scmp.eq.s32.totalorder %s19, 1
    %p168 = por %p166, %p167
    %p170 = scmp.ne.s32.totalorder %s155, %s169
    %p171 = scmp.eq.s32.totalorder %s19, 0
    %p172 = por %p170, %p171
    %s173 = ssub.s32 %s13, %s20
    %p174 = scmp.eq.s32.totalorder %s173, 0
    %s176 = sadd.s32 %s175, 1
    %s177 = scalar_select %p174, %s175, %s176
    %p180 = pneg %p174
    %p181 = scmp.eq.s32.totalorder %s13, 1
    %p182 = por %p180, %p181
    %p183 = scmp.ne.s32.totalorder %s175, %s178
    %p184 = scmp.eq.s32.totalorder %s13, 0
    %p185 = por %p183, %p184
    %p186 = scmp.ne.s32.totalorder %s175, %s178
    %p187 = scmp.eq.s32.totalorder %s18, 1
    %p188 = por %p186, %p187
    %p189 = scmp.ne.s32.totalorder %s178, %s179
    %p190 = scmp.eq.s32.totalorder %s18, 0
    %p191 = por %p189, %p190
    %p192 = scmp.ne.s32.totalorder %s178, %s179
    %p193 = scmp.eq.s32.totalorder %s19, 1
    %p194 = por %p192, %p193
    %p196 = scmp.ne.s32.totalorder %s179, %s195
    %p197 = scmp.eq.s32.totalorder %s19, 0
    %p198 = por %p196, %p197
    %p199 = scmp.le.s32.totalorder 1, %s13
    %p200 = scmp.lt.s32.totalorder %s13, 3
    %p201 = pnand %p199, %p200
    %p202 = pneg %p201
    // Predicated region
    $region9: #{_lambda_.2} parent=5 // pred_check
      _
    $region10: #{_lambda_.2} parent=5 // pred_check_branch
      %204 = sbr.rel (%p201) target = $region12
    $region11: #{_lambda_.2} parent=5 // pred_region
      %s205 = ssub.s32 %s13, 1
      // Predicated region
      $region13: #{_lambda_.2} parent=11 // pred_check
        %p206 = pneg %p60
      $region14: #{_lambda_.2} parent=11 // pred_check_branch
        %208 = sbr.rel (%p206) target = $region16
      $region15: #{_lambda_.2} parent=11 // pred_region
        _
      $region16: #{_lambda_.2} parent=11 // pred_fallthru
        _
      // Predicated region
      $region17: #{_lambda_.2} parent=11 // pred_check
        %p209 = pneg %p81
      $region18: #{_lambda_.2} parent=11 // pred_check_branch
        %211 = sbr.rel (%p209) target = $region20
      $region19: #{_lambda_.2} parent=11 // pred_region
        _
      $region20: #{_lambda_.2} parent=11 // pred_fallthru
        _
      // Predicated region
      $region21: #{_lambda_.2} parent=11 // pred_check
        %p212 = pneg %p102
      $region22: #{_lambda_.2} parent=11 // pred_check_branch
        %214 = sbr.rel (%p212) target = $region24
      $region23: #{_lambda_.2} parent=11 // pred_region
        _
      $region24: #{_lambda_.2} parent=11 // pred_fallthru
        _
      // Predicated region
      $region25: #{_lambda_.2} parent=11 // pred_check
        %p215 = pneg %p123
      $region26: #{_lambda_.2} parent=11 // pred_check_branch
        %217 = sbr.rel (%p215) target = $region28
      $region27: #{_lambda_.2} parent=11 // pred_region
        _
      $region28: #{_lambda_.2} parent=11 // pred_fallthru
        _
      // Predicated region
      $region29: #{_lambda_.2} parent=11 // pred_check
        %p218 = pneg %p144
      $region30: #{_lambda_.2} parent=11 // pred_check_branch
        %220 = sbr.rel (%p218) target = $region32
      $region31: #{_lambda_.2} parent=11 // pred_region
        _
      $region32: #{_lambda_.2} parent=11 // pred_fallthru
        _
      // Predicated region
      $region33: #{_lambda_.2} parent=11 // pred_check
        %p221 = pneg %p165
      $region34: #{_lambda_.2} parent=11 // pred_check_branch
        %223 = sbr.rel (%p221) target = $region36
      $region35: #{_lambda_.2} parent=11 // pred_region
        _
      $region36: #{_lambda_.2} parent=11 // pred_fallthru
        _
    $region12: #{_lambda_.2} parent=5 // pred_fallthru
      _
    %p224 = scmp.lt.s32.totalorder %s13, 2
    // Predicated region
    $region37: #{_lambda_.2} parent=5 // pred_check
      %p225 = pneg %p224
    $region38: #{_lambda_.2} parent=5 // pred_check_branch
      %227 = sbr.rel (%p225) target = $region40
    $region39: #{_lambda_.2} parent=5 // pred_region
      // Predicated region
      $region41: #{_lambda_.2} parent=39 // pred_check
        %p228 = pneg %p33
      $region42: #{_lambda_.2} parent=39 // pred_check_branch
        %230 = sbr.rel (%p228) target = $region44
      $region43: #{_lambda_.2} parent=39 // pred_region
        %p231 = scmp.lt.s32.totalorder %s13, 1
        %s232 = scalar_select %p231, %s13, 1
        %s233 = smul.addr %s232, 128
        %s234 = smul.addr %s233, 4
        %s235 = scalar_lea.vmem %s0, %s234
      $region44: #{_lambda_.2} parent=39 // pred_fallthru
        _
    $region40: #{_lambda_.2} parent=5 // pred_fallthru
      _
    %p236 = scmp.le.s32.totalorder 1, %s13
    %p237 = scmp.lt.s32.totalorder %s13, 3
    %p238 = pnand %p236, %p237
    %p239 = pneg %p238
    // Predicated region
    $region45: #{_lambda_.2} parent=5 // pred_check
      _
    $region46: #{_lambda_.2} parent=5 // pred_check_branch
      %241 = sbr.rel (%p238) target = $region48
    $region47: #{_lambda_.2} parent=5 // pred_region
      %s242 = ssub.s32 %s13, 1
      %p243 = scmp.lt.s32.totalorder %s18, 1
      %s244 = scalar_select %p243, %s18, 1
      %s245 = smul.addr %s244, 128
      %s246 = smul.addr %s245, 4
      %s247 = scalar_lea.vmem %s0, %s246
      %p248 = pneg %p39
      %p249 = pneg %p36
      %p250 = pneg %p60
      %p251 = pneg %p57
      %p252 = pneg %p81
      %p253 = pneg %p78
      %p254 = pneg %p102
      %p255 = pneg %p99
      %p256 = pneg %p123
      %p257 = pneg %p120
      %p258 = pneg %p144
      %p259 = pneg %p141
      %p260 = pneg %p165
      %p261 = pneg %p162
      %p262 = pneg %p191
      %p263 = pneg %p188
      %p264 = scmp.lt.s32.totalorder %s18, 1
      %s265 = scalar_select %p264, %s18, 1
      %s266 = smul.addr %s265, 8
      %s267 = smul.addr %s266, 4
      %s268 = scalar_lea.vmem %s7, %s267
      %p269 = scmp.lt.s32.totalorder %s18, 1
      %s270 = scalar_select %p269, %s18, 1
      %s271 = smul.addr %s270, 128
      %s272 = smul.addr %s271, 4
      %s273 = scalar_lea.vmem %s0, %s272
      %p274 = scmp.lt.s32.totalorder %s18, 1
      %s275 = scalar_select %p274, %s18, 1
      %s276 = smul.addr %s275, 8
      %s277 = smul.addr %s276, 4
      %s278 = scalar_lea.vmem %s7, %s277
      %280 = vst [vmem:[#allocation3] sm:$0xf] 0
      %281 = vst [vmem:[#allocation3 + $0x4] sm:$0xf] 0
      %282 = vst [vmem:[#allocation3 + $0x8] sm:$0x1] 0
      %283 = vst [vmem:[#allocation3 + $0xc] sm:$0xf] 0
      %284 = vst [vmem:[#allocation3 + $0x10] sm:$0xf] 0
      %285 = vst [vmem:[#allocation3 + $0x14] sm:$0x1] 0
      %286 = vst [vmem:[#allocation3 + $0x18] sm:$0xf] 0
      %287 = vst [vmem:[#allocation3 + $0x1c] sm:$0xf] 0
      %288 = vst [vmem:[#allocation3 + $0x20] sm:$0x1] 0
      %289 = vst [vmem:[#allocation3 + $0x24] sm:$0xf] 0
      %290 = vst [vmem:[#allocation3 + $0x28] sm:$0xf] 0
      %291 = vst [vmem:[#allocation3 + $0x2c] sm:$0x1] 0
      %292 = vst [vmem:[#allocation3 + $0x30] sm:$0xf] 0
      %293 = vst [vmem:[#allocation3 + $0x34] sm:$0xf] 0
      %294 = vst [vmem:[#allocation3 + $0x38] sm:$0x1] 0
      %295 = vst [vmem:[#allocation3 + $0x3c] sm:$0xf] 0
      %296 = vst [vmem:[#allocation3 + $0x40] sm:$0xf] 0
      %297 = vst [vmem:[#allocation3 + $0x44] sm:$0x1] 0
      %298 = vst [vmem:[#allocation3 + $0x48] sm:$0xf] 0
      %299 = vst [vmem:[#allocation3 + $0x4c] sm:$0xf] 0
      %300 = vst [vmem:[#allocation3 + $0x50] sm:$0x1] 0
      %301 = vst [vmem:[#allocation3 + $0x54] sm:$0xf] 0
      %302 = vst [vmem:[#allocation3 + $0x58] sm:$0xf] 0
      %303 = vst [vmem:[#allocation3 + $0x5c] sm:$0x1] 0
      %304 = vst [vmem:[#allocation3 + $0x60] sm:$0xf] 0
      %305 = vst [vmem:[#allocation3 + $0x64] sm:$0xf] 0
      %306 = vst [vmem:[#allocation3 + $0x68] sm:$0x1] 0
      %307 = vst [vmem:[#allocation3 + $0x6c] sm:$0xf] 0
      %308 = vst [vmem:[#allocation3 + $0x70] sm:$0xf] 0
      %309 = vst [vmem:[#allocation3 + $0x74] sm:$0x1] 0
      %310 = vst [vmem:[#allocation3 + $0x78] sm:$0xf] 0
      %311 = vst [vmem:[#allocation3 + $0x7c] sm:$0xf] 0
      %312 = vst [vmem:[#allocation3 + $0x80] sm:$0x1] 0
      %313 = vst [vmem:[#allocation3 + $0x84] sm:$0xf] 0
      %314 = vst [vmem:[#allocation3 + $0x88] sm:$0xf] 0
      %315 = vst [vmem:[#allocation3 + $0x8c] sm:$0x1] 0
      %316 = vst [vmem:[#allocation3 + $0x90] sm:$0xf] 0
      %317 = vst [vmem:[#allocation3 + $0x94] sm:$0xf] 0
      %318 = vst [vmem:[#allocation3 + $0x98] sm:$0x1] 0
      %319 = vst [vmem:[#allocation3 + $0x9c] sm:$0xf] 0
      %320 = vst [vmem:[#allocation3 + $0xa0] sm:$0xf] 0
      %321 = vst [vmem:[#allocation3 + $0xa4] sm:$0x1] 0
      %322 = vst [vmem:[#allocation3 + $0xa8] sm:$0xf] 0
      %323 = vst [vmem:[#allocation3 + $0xac] sm:$0xf] 0
      %324 = vst [vmem:[#allocation3 + $0xb0] sm:$0x1] 0
      %325 = vst [vmem:[#allocation3 + $0xb4] sm:$0xf] 0
      %326 = vst [vmem:[#allocation3 + $0xb8] sm:$0xf] 0
      %327 = vst [vmem:[#allocation3 + $0xbc] sm:$0x1] 0
      %328 = vst [vmem:[#allocation3 + $0xc0] sm:$0xf] 0
      %329 = vst [vmem:[#allocation3 + $0xc4] sm:$0xf] 0
      %330 = vst [vmem:[#allocation3 + $0xc8] sm:$0x1] 0
      %331 = vst [vmem:[#allocation3 + $0xcc] sm:$0xf] 0
      %332 = vst [vmem:[#allocation3 + $0xd0] sm:$0xf] 0
      %333 = vst [vmem:[#allocation3 + $0xd4] sm:$0x1] 0
      %v334 = vld [vmem:[%s273] sm:$0xf]
      %v335 = vld [vmem:[%s273 + $0x4] sm:$0xf]
      %v336 = vld [vmem:[%s273 + $0x8] sm:$0xf]
      %v337 = vld [vmem:[%s273 + $0xc] sm:$0xf]
      %v338 = vld [vmem:[%s273 + $0x10] sm:$0xf]
      %v339 = vld [vmem:[%s273 + $0x14] sm:$0xf]
      %v340 = vld [vmem:[%s273 + $0x18] sm:$0xf]
      %v341 = vld [vmem:[%s273 + $0x1c] sm:$0xf]
      %v342 = vld [vmem:[%s273 + $0x20] sm:$0xf]
      %v343 = vld [vmem:[%s273 + $0x24] sm:$0xf]
      %v344 = vld [vmem:[%s273 + $0x28] sm:$0xf]
      %v345 = vld [vmem:[%s273 + $0x2c] sm:$0xf]
      %v346 = vld [vmem:[%s273 + $0x30] sm:$0xf]
      %v347 = vld [vmem:[%s273 + $0x34] sm:$0xf]
      %v348 = vld [vmem:[%s273 + $0x38] sm:$0xf]
      %v349 = vld [vmem:[%s273 + $0x3c] sm:$0xf]
      %v350 = vld [vmem:[%s273 + $0x40] sm:$0xf]
      %v351 = vld [vmem:[%s273 + $0x44] sm:$0xf]
      %v352 = vld [vmem:[%s273 + $0x48] sm:$0xf]
      %v353 = vld [vmem:[%s273 + $0x4c] sm:$0xf]
      %v354 = vld [vmem:[%s273 + $0x50] sm:$0xf]
      %v355 = vld [vmem:[%s273 + $0x54] sm:$0xf]
      %v356 = vld [vmem:[%s273 + $0x58] sm:$0xf]
      %v357 = vld [vmem:[%s273 + $0x5c] sm:$0xf]
      %v358 = vld [vmem:[%s273 + $0x60] sm:$0xf]
      %v359 = vld [vmem:[%s273 + $0x64] sm:$0xf]
      %v360 = vld [vmem:[%s273 + $0x68] sm:$0xf]
      %v361 = vld [vmem:[%s273 + $0x6c] sm:$0xf]
      %v362 = vld [vmem:[%s273 + $0x70] sm:$0xf]
      %v363 = vld [vmem:[%s273 + $0x74] sm:$0xf]
      %v364 = vld [vmem:[%s273 + $0x78] sm:$0xf]
      %v365 = vld [vmem:[%s273 + $0x7c] sm:$0xf]
      %v366 = vld [vmem:[%s273 + $0x80] sm:$0xf]
      %v367 = vld [vmem:[%s273 + $0x84] sm:$0xf]
      %v368 = vld [vmem:[%s273 + $0x88] sm:$0xf]
      %v369 = vld [vmem:[%s273 + $0x8c] sm:$0xf]
      %v370 = vld [vmem:[%s273 + $0x90] sm:$0xf]
      %v371 = vld [vmem:[%s273 + $0x94] sm:$0xf]
      %v372 = vld [vmem:[%s273 + $0x98] sm:$0xf]
      %v373 = vld [vmem:[%s273 + $0x9c] sm:$0xf]
      %v374 = vld [vmem:[%s273 + $0xa0] sm:$0xf]
      %v375 = vld [vmem:[%s273 + $0xa4] sm:$0xf]
      %v376 = vld [vmem:[%s273 + $0xa8] sm:$0xf]
      %v377 = vld [vmem:[%s273 + $0xac] sm:$0xf]
      %v378 = vld [vmem:[%s273 + $0xb0] sm:$0xf]
      %v379 = vld [vmem:[%s273 + $0xb4] sm:$0xf]
      %v380 = vld [vmem:[%s273 + $0xb8] sm:$0xf]
      %v381 = vld [vmem:[%s273 + $0xbc] sm:$0xf]
      %v382 = vld [vmem:[%s273 + $0xc0] sm:$0xf]
      %v383 = vld [vmem:[%s273 + $0xc4] sm:$0xf]
      %v384 = vld [vmem:[%s273 + $0xc8] sm:$0xf]
      %v385 = vld [vmem:[%s273 + $0xcc] sm:$0xf]
      %v386 = vld [vmem:[%s273 + $0xd0] sm:$0xf]
      %v387 = vld [vmem:[%s273 + $0xd4] sm:$0xf]
      %v388 = vld [vmem:[%s273 + $0xd8] sm:$0xf]
      %v389 = vld [vmem:[%s273 + $0xdc] sm:$0xf]
      %v390 = vld [vmem:[%s273 + $0xe0] sm:$0xf]
      %v391 = vld [vmem:[%s273 + $0xe4] sm:$0xf]
      %v392 = vld [vmem:[%s273 + $0xe8] sm:$0xf]
      %v393 = vld [vmem:[%s273 + $0xec] sm:$0xf]
      %v394 = vld [vmem:[%s273 + $0xf0] sm:$0xf]
      %v395 = vld [vmem:[%s273 + $0xf4] sm:$0xf]
      %v396 = vld [vmem:[%s273 + $0xf8] sm:$0xf]
      %v397 = vld [vmem:[%s273 + $0xfc] sm:$0xf]
      %v398 = vld [vmem:[%s273 + $0x100] sm:$0xf]
      %v399 = vld [vmem:[%s273 + $0x104] sm:$0xf]
      %v400 = vld [vmem:[%s273 + $0x108] sm:$0xf]
      %v401 = vld [vmem:[%s273 + $0x10c] sm:$0xf]
      %v402 = vld [vmem:[%s273 + $0x110] sm:$0xf]
      %v403 = vld [vmem:[%s273 + $0x114] sm:$0xf]
      %v404 = vld [vmem:[%s273 + $0x118] sm:$0xf]
      %v405 = vld [vmem:[%s273 + $0x11c] sm:$0xf]
      %v406 = vld [vmem:[%s273 + $0x120] sm:$0xf]
      %v407 = vld [vmem:[%s273 + $0x124] sm:$0xf]
      %v408 = vld [vmem:[%s273 + $0x128] sm:$0xf]
      %v409 = vld [vmem:[%s273 + $0x12c] sm:$0xf]
      %v410 = vld [vmem:[%s273 + $0x130] sm:$0xf]
      %v411 = vld [vmem:[%s273 + $0x134] sm:$0xf]
      %v412 = vld [vmem:[%s273 + $0x138] sm:$0xf]
      %v413 = vld [vmem:[%s273 + $0x13c] sm:$0xf]
      %v414 = vld [vmem:[%s273 + $0x140] sm:$0xf]
      %v415 = vld [vmem:[%s273 + $0x144] sm:$0xf]
      %v416 = vld [vmem:[%s273 + $0x148] sm:$0xf]
      %v417 = vld [vmem:[%s273 + $0x14c] sm:$0xf]
      %v418 = vld [vmem:[%s273 + $0x150] sm:$0xf]
      %v419 = vld [vmem:[%s273 + $0x154] sm:$0xf]
      %v420 = vld [vmem:[%s273 + $0x158] sm:$0xf]
      %v421 = vld [vmem:[%s273 + $0x15c] sm:$0xf]
      %v422 = vld [vmem:[%s273 + $0x160] sm:$0xf]
      %v423 = vld [vmem:[%s273 + $0x164] sm:$0xf]
      %v424 = vld [vmem:[%s273 + $0x168] sm:$0xf]
      %v425 = vld [vmem:[%s273 + $0x16c] sm:$0xf]
      %v426 = vld [vmem:[%s273 + $0x170] sm:$0xf]
      %v427 = vld [vmem:[%s273 + $0x174] sm:$0xf]
      %v428 = vld [vmem:[%s273 + $0x178] sm:$0xf]
      %v429 = vld [vmem:[%s273 + $0x17c] sm:$0xf]
      %v430 = vld [vmem:[%s273 + $0x180] sm:$0xf]
      %v431 = vld [vmem:[%s273 + $0x184] sm:$0xf]
      %v432 = vld [vmem:[%s273 + $0x188] sm:$0xf]
      %v433 = vld [vmem:[%s273 + $0x18c] sm:$0xf]
      %v434 = vld [vmem:[%s273 + $0x190] sm:$0xf]
      %v435 = vld [vmem:[%s273 + $0x194] sm:$0xf]
      %v436 = vld [vmem:[%s273 + $0x198] sm:$0xf]
      %v437 = vld [vmem:[%s273 + $0x19c] sm:$0xf]
      %v438 = vld [vmem:[%s273 + $0x1a0] sm:$0xf]
      %v439 = vld [vmem:[%s273 + $0x1a4] sm:$0xf]
      %v440 = vld [vmem:[%s273 + $0x1a8] sm:$0xf]
      %v441 = vld [vmem:[%s273 + $0x1ac] sm:$0xf]
      %v442 = vld [vmem:[%s273 + $0x1b0] sm:$0xf]
      %v443 = vld [vmem:[%s273 + $0x1b4] sm:$0xf]
      %v444 = vld [vmem:[%s273 + $0x1b8] sm:$0xf]
      %v445 = vld [vmem:[%s273 + $0x1bc] sm:$0xf]
      %v446 = vld [vmem:[%s273 + $0x1c0] sm:$0xf]
      %v447 = vld [vmem:[%s273 + $0x1c4] sm:$0xf]
      %v448 = vld [vmem:[%s273 + $0x1c8] sm:$0xf]
      %v449 = vld [vmem:[%s273 + $0x1cc] sm:$0xf]
      %v450 = vld [vmem:[%s273 + $0x1d0] sm:$0xf]
      %v451 = vld [vmem:[%s273 + $0x1d4] sm:$0xf]
      %v452 = vld [vmem:[%s273 + $0x1d8] sm:$0xf]
      %v453 = vld [vmem:[%s273 + $0x1dc] sm:$0xf]
      %v454 = vld [vmem:[%s273 + $0x1e0] sm:$0xf]
      %v455 = vld [vmem:[%s273 + $0x1e4] sm:$0xf]
      %v456 = vld [vmem:[%s273 + $0x1e8] sm:$0xf]
      %v457 = vld [vmem:[%s273 + $0x1ec] sm:$0xf]
      %v458 = vld [vmem:[%s273 + $0x1f0] sm:$0xf]
      %v459 = vld [vmem:[%s273 + $0x1f4] sm:$0xf]
      %v460 = vld [vmem:[%s273 + $0x1f8] sm:$0xf]
      %v461 = vld [vmem:[%s273 + $0x1fc] sm:$0xf]
      %v462 = vld [vmem:[%s1] sm:$0xf]
      %v463 = vld [vmem:[%s1 + $0x4] sm:$0xf]
      %v464 = vld [vmem:[%s1 + $0x8] sm:$0xf]
      %v465 = vld [vmem:[%s1 + $0xc] sm:$0xf]
      %v594 = vunpack.c.l.b16 %v334
      %v595 = vunpack.c.l.b16 %v335
      %v596 = vunpack.c.l.b16 %v336
      %v597 = vunpack.c.l.b16 %v337
      %v598 = vunpack.c.l.b16 %v338
      %v599 = vunpack.c.l.b16 %v339
      %v600 = vunpack.c.l.b16 %v340
      %v601 = vunpack.c.l.b16 %v341
      %v602 = vunpack.c.l.b16 %v342
      %v603 = vunpack.c.l.b16 %v343
      %v604 = vunpack.c.l.b16 %v344
      %v605 = vunpack.c.l.b16 %v345
      %v606 = vunpack.c.l.b16 %v346
      %v607 = vunpack.c.l.b16 %v347
      %v608 = vunpack.c.l.b16 %v348
      %v609 = vunpack.c.l.b16 %v349
      %v610 = vunpack.c.l.b16 %v350
      %v611 = vunpack.c.l.b16 %v351
      %v612 = vunpack.c.l.b16 %v352
      %v613 = vunpack.c.l.b16 %v353
      %v614 = vunpack.c.l.b16 %v354
      %v615 = vunpack.c.l.b16 %v355
      %v616 = vunpack.c.l.b16 %v356
      %v617 = vunpack.c.l.b16 %v357
      %v618 = vunpack.c.l.b16 %v358
      %v619 = vunpack.c.l.b16 %v359
      %v620 = vunpack.c.l.b16 %v360
      %v621 = vunpack.c.l.b16 %v361
      %v622 = vunpack.c.l.b16 %v362
      %v623 = vunpack.c.l.b16 %v363
      %v624 = vunpack.c.l.b16 %v364
      %v625 = vunpack.c.l.b16 %v365
      %v626 = vunpack.c.l.b16 %v366
      %v627 = vunpack.c.l.b16 %v367
      %v628 = vunpack.c.l.b16 %v368
      %v629 = vunpack.c.l.b16 %v369
      %v630 = vunpack.c.l.b16 %v370
      %v631 = vunpack.c.l.b16 %v371
      %v632 = vunpack.c.l.b16 %v372
      %v633 = vunpack.c.l.b16 %v373
      %v634 = vunpack.c.l.b16 %v374
      %v635 = vunpack.c.l.b16 %v375
      %v636 = vunpack.c.l.b16 %v376
      %v637 = vunpack.c.l.b16 %v377
      %v638 = vunpack.c.l.b16 %v378
      %v639 = vunpack.c.l.b16 %v379
      %v640 = vunpack.c.l.b16 %v380
      %v641 = vunpack.c.l.b16 %v381
      %v642 = vunpack.c.l.b16 %v382
      %v643 = vunpack.c.l.b16 %v383
      %v644 = vunpack.c.l.b16 %v384
      %v645 = vunpack.c.l.b16 %v385
      %v646 = vunpack.c.l.b16 %v386
      %v647 = vunpack.c.l.b16 %v387
      %v648 = vunpack.c.l.b16 %v388
      %v649 = vunpack.c.l.b16 %v389
      %v650 = vunpack.c.l.b16 %v390
      %v651 = vunpack.c.l.b16 %v391
      %v652 = vunpack.c.l.b16 %v392
      %v653 = vunpack.c.l.b16 %v393
      %v654 = vunpack.c.l.b16 %v394
      %v655 = vunpack.c.l.b16 %v395
      %v656 = vunpack.c.l.b16 %v396
      %v657 = vunpack.c.l.b16 %v397
      %v658 = vunpack.c.l.b16 %v398
      %v659 = vunpack.c.l.b16 %v399
      %v660 = vunpack.c.l.b16 %v400
      %v661 = vunpack.c.l.b16 %v401
      %v662 = vunpack.c.l.b16 %v402
      %v663 = vunpack.c.l.b16 %v403
      %v664 = vunpack.c.l.b16 %v404
      %v665 = vunpack.c.l.b16 %v405
      %v666 = vunpack.c.l.b16 %v406
      %v667 = vunpack.c.l.b16 %v407
      %v668 = vunpack.c.l.b16 %v408
      %v669 = vunpack.c.l.b16 %v409
      %v670 = vunpack.c.l.b16 %v410
      %v671 = vunpack.c.l.b16 %v411
      %v672 = vunpack.c.l.b16 %v412
      %v673 = vunpack.c.l.b16 %v413
      %v674 = vunpack.c.l.b16 %v414
      %v675 = vunpack.c.l.b16 %v415
      %v676 = vunpack.c.l.b16 %v416
      %v677 = vunpack.c.l.b16 %v417
      %v678 = vunpack.c.l.b16 %v418
      %v679 = vunpack.c.l.b16 %v419
      %v680 = vunpack.c.l.b16 %v420
      %v681 = vunpack.c.l.b16 %v421
      %v682 = vunpack.c.l.b16 %v422
      %v683 = vunpack.c.l.b16 %v423
      %v684 = vunpack.c.l.b16 %v424
      %v685 = vunpack.c.l.b16 %v425
      %v686 = vunpack.c.l.b16 %v426
      %v687 = vunpack.c.l.b16 %v427
      %v688 = vunpack.c.l.b16 %v428
      %v689 = vunpack.c.l.b16 %v429
      %v690 = vunpack.c.l.b16 %v430
      %v691 = vunpack.c.l.b16 %v431
      %v692 = vunpack.c.l.b16 %v432
      %v693 = vunpack.c.l.b16 %v433
      %v694 = vunpack.c.l.b16 %v434
      %v695 = vunpack.c.l.b16 %v435
      %v696 = vunpack.c.l.b16 %v436
      %v697 = vunpack.c.l.b16 %v437
      %v698 = vunpack.c.l.b16 %v438
      %v699 = vunpack.c.l.b16 %v439
      %v700 = vunpack.c.l.b16 %v440
      %v701 = vunpack.c.l.b16 %v441
      %v702 = vunpack.c.l.b16 %v442
      %v703 = vunpack.c.l.b16 %v443
      %v704 = vunpack.c.l.b16 %v444
      %v705 = vunpack.c.l.b16 %v445
      %v706 = vunpack.c.l.b16 %v446
      %v707 = vunpack.c.l.b16 %v447
      %v708 = vunpack.c.l.b16 %v448
      %v709 = vunpack.c.l.b16 %v449
      %v710 = vunpack.c.l.b16 %v450
      %v711 = vunpack.c.l.b16 %v451
      %v712 = vunpack.c.l.b16 %v452
      %v713 = vunpack.c.l.b16 %v453
      %v714 = vunpack.c.l.b16 %v454
      %v715 = vunpack.c.l.b16 %v455
      %v716 = vunpack.c.l.b16 %v456
      %v717 = vunpack.c.l.b16 %v457
      %v718 = vunpack.c.l.b16 %v458
      %v719 = vunpack.c.l.b16 %v459
      %v720 = vunpack.c.l.b16 %v460
      %v721 = vunpack.c.l.b16 %v461
      %v722 = vpack.c.b16 %v595, %v594
      %v723 = vpack.c.b16 %v597, %v596
      %v724 = vpack.c.b16 %v599, %v598
      %v725 = vpack.c.b16 %v601, %v600
      %v726 = vpack.c.b16 %v603, %v602
      %v727 = vpack.c.b16 %v605, %v604
      %v728 = vpack.c.b16 %v607, %v606
      %v729 = vpack.c.b16 %v609, %v608
      %v730 = vpack.c.b16 %v611, %v610
      %v731 = vpack.c.b16 %v613, %v612
      %v732 = vpack.c.b16 %v615, %v614
      %v733 = vpack.c.b16 %v617, %v616
      %v734 = vpack.c.b16 %v619, %v618
      %v735 = vpack.c.b16 %v621, %v620
      %v736 = vpack.c.b16 %v623, %v622
      %v737 = vpack.c.b16 %v625, %v624
      %v738 = vpack.c.b16 %v627, %v626
      %v739 = vpack.c.b16 %v629, %v628
      %v740 = vpack.c.b16 %v631, %v630
      %v741 = vpack.c.b16 %v633, %v632
      %v742 = vpack.c.b16 %v635, %v634
      %v743 = vpack.c.b16 %v637, %v636
      %v744 = vpack.c.b16 %v639, %v638
      %v745 = vpack.c.b16 %v641, %v640
      %v746 = vpack.c.b16 %v643, %v642
      %v747 = vpack.c.b16 %v645, %v644
      %v748 = vpack.c.b16 %v647, %v646
      %v749 = vpack.c.b16 %v649, %v648
      %v750 = vpack.c.b16 %v651, %v650
      %v751 = vpack.c.b16 %v653, %v652
      %v752 = vpack.c.b16 %v655, %v654
      %v753 = vpack.c.b16 %v657, %v656
      %v754 = vpack.c.b16 %v659, %v658
      %v755 = vpack.c.b16 %v661, %v660
      %v756 = vpack.c.b16 %v663, %v662
      %v757 = vpack.c.b16 %v665, %v664
      %v758 = vpack.c.b16 %v667, %v666
      %v759 = vpack.c.b16 %v669, %v668
      %v760 = vpack.c.b16 %v671, %v670
      %v761 = vpack.c.b16 %v673, %v672
      %v762 = vpack.c.b16 %v675, %v674
      %v763 = vpack.c.b16 %v677, %v676
      %v764 = vpack.c.b16 %v679, %v678
      %v765 = vpack.c.b16 %v681, %v680
      %v766 = vpack.c.b16 %v683, %v682
      %v767 = vpack.c.b16 %v685, %v684
      %v768 = vpack.c.b16 %v687, %v686
      %v769 = vpack.c.b16 %v689, %v688
      %v770 = vpack.c.b16 %v691, %v690
      %v771 = vpack.c.b16 %v693, %v692
      %v772 = vpack.c.b16 %v695, %v694
      %v773 = vpack.c.b16 %v697, %v696
      %v774 = vpack.c.b16 %v699, %v698
      %v775 = vpack.c.b16 %v701, %v700
      %v776 = vpack.c.b16 %v703, %v702
      %v777 = vpack.c.b16 %v705, %v704
      %v778 = vpack.c.b16 %v707, %v706
      %v779 = vpack.c.b16 %v709, %v708
      %v780 = vpack.c.b16 %v711, %v710
      %v781 = vpack.c.b16 %v713, %v712
      %v782 = vpack.c.b16 %v715, %v714
      %v783 = vpack.c.b16 %v717, %v716
      %v784 = vpack.c.b16 %v719, %v718
      %v785 = vpack.c.b16 %v721, %v720
      %v790 = vunpack.c.l.b16 %v462
      %v791 = vunpack.c.l.b16 %v463
      %v792 = vunpack.c.l.b16 %v464
      %v793 = vunpack.c.l.b16 %v465
      %v794 = vpack.c.b16 %v791, %v790
      %v795 = vpack.c.b16 %v793, %v792
      %vm798 = vcmask 261120
      %v800 = vsel %vm798, %v722, 0
      %v803 = vsel %vm798, %v723, 0
      %v806 = vsel %vm798, %v724, 0
      %v809 = vsel %vm798, %v725, 0
      %v812 = vsel %vm798, %v726, 0
      %v815 = vsel %vm798, %v727, 0
      %v818 = vsel %vm798, %v728, 0
      %v821 = vsel %vm798, %v729, 0
      %v824 = vsel %vm798, %v730, 0
      %v827 = vsel %vm798, %v731, 0
      %v830 = vsel %vm798, %v732, 0
      %v833 = vsel %vm798, %v733, 0
      %v836 = vsel %vm798, %v734, 0
      %v839 = vsel %vm798, %v735, 0
      %v842 = vsel %vm798, %v736, 0
      %v845 = vsel %vm798, %v737, 0
      %v848 = vsel %vm798, %v738, 0
      %v851 = vsel %vm798, %v739, 0
      %v854 = vsel %vm798, %v740, 0
      %v857 = vsel %vm798, %v741, 0
      %v860 = vsel %vm798, %v742, 0
      %v863 = vsel %vm798, %v743, 0
      %v866 = vsel %vm798, %v744, 0
      %v869 = vsel %vm798, %v745, 0
      %v872 = vsel %vm798, %v746, 0
      %v875 = vsel %vm798, %v747, 0
      %v878 = vsel %vm798, %v748, 0
      %v881 = vsel %vm798, %v749, 0
      %v884 = vsel %vm798, %v750, 0
      %v887 = vsel %vm798, %v751, 0
      %v890 = vsel %vm798, %v752, 0
      %v893 = vsel %vm798, %v753, 0
      %v896 = vsel %vm798, %v754, 0
      %v899 = vsel %vm798, %v755, 0
      %v902 = vsel %vm798, %v756, 0
      %v905 = vsel %vm798, %v757, 0
      %v908 = vsel %vm798, %v758, 0
      %v911 = vsel %vm798, %v759, 0
      %v914 = vsel %vm798, %v760, 0
      %v917 = vsel %vm798, %v761, 0
      %v920 = vsel %vm798, %v762, 0
      %v923 = vsel %vm798, %v763, 0
      %v926 = vsel %vm798, %v764, 0
      %v929 = vsel %vm798, %v765, 0
      %v932 = vsel %vm798, %v766, 0
      %v935 = vsel %vm798, %v767, 0
      %v938 = vsel %vm798, %v768, 0
      %v941 = vsel %vm798, %v769, 0
      %v944 = vsel %vm798, %v770, 0
      %v947 = vsel %vm798, %v771, 0
      %v950 = vsel %vm798, %v772, 0
      %v953 = vsel %vm798, %v773, 0
      %v956 = vsel %vm798, %v774, 0
      %v959 = vsel %vm798, %v775, 0
      %v962 = vsel %vm798, %v776, 0
      %v965 = vsel %vm798, %v777, 0
      %v968 = vsel %vm798, %v778, 0
      %v971 = vsel %vm798, %v779, 0
      %v974 = vsel %vm798, %v780, 0
      %v977 = vsel %vm798, %v781, 0
      %v980 = vsel %vm798, %v782, 0
      %v983 = vsel %vm798, %v783, 0
      %v986 = vsel %vm798, %v784, 0
      %v989 = vsel %vm798, %v785, 0
      %991 = vmatpush.bf16.msra.mxu0 0
      %992 = vmatpush.bf16.msra.mxu0 0
      %993 = vmatpush.bf16.msra.mxu0 0
      %994 = vmatpush.bf16.msra.mxu0 0
      %995 = vmatpush.bf16.msra.mxu0 0
      %996 = vmatpush.bf16.msra.mxu0 0
      %997 = vmatpush.bf16.msra.mxu0 %v795
      %998 = vmatpush.bf16.msra.mxu0 %v794
      %999 = vmatmul.bf16.gmra.mxu0 %v800
      %v1000 = vpop.f32.mrf.mxu0
      %v1001 = vadd.f32 0.0, %v1000
      %v1002 = vpop.f32.mrf.mxu0
      %v1003 = vadd.f32 0.0, %v1002
      %1004 = vmatmul.bf16.gmra.mxu0 %v803
      %v1005 = vpop.f32.mrf.mxu0
      %v1006 = vadd.f32 0.0, %v1005
      %v1007 = vpop.f32.mrf.mxu0
      %v1008 = vadd.f32 0.0, %v1007
      %1009 = vmatmul.bf16.gmra.mxu0 %v806
      %v1010 = vpop.f32.mrf.mxu0
      %v1011 = vadd.f32 0.0, %v1010
      %v1012 = vpop.f32.mrf.mxu0
      %v1013 = vadd.f32 0.0, %v1012
      %1014 = vmatmul.bf16.gmra.mxu0 %v809
      %v1015 = vpop.f32.mrf.mxu0
      %v1016 = vadd.f32 0.0, %v1015
      %v1017 = vpop.f32.mrf.mxu0
      %v1018 = vadd.f32 0.0, %v1017
      %1019 = vmatmul.bf16.gmra.mxu0 %v812
      %v1020 = vpop.f32.mrf.mxu0
      %v1021 = vadd.f32 0.0, %v1020
      %v1022 = vpop.f32.mrf.mxu0
      %v1023 = vadd.f32 0.0, %v1022
      %1024 = vmatmul.bf16.gmra.mxu0 %v815
      %v1025 = vpop.f32.mrf.mxu0
      %v1026 = vadd.f32 0.0, %v1025
      %v1027 = vpop.f32.mrf.mxu0
      %v1028 = vadd.f32 0.0, %v1027
      %1029 = vmatmul.bf16.gmra.mxu0 %v818
      %v1030 = vpop.f32.mrf.mxu0
      %v1031 = vadd.f32 0.0, %v1030
      %v1032 = vpop.f32.mrf.mxu0
      %v1033 = vadd.f32 0.0, %v1032
      %1034 = vmatmul.bf16.gmra.mxu0 %v821
      %v1035 = vpop.f32.mrf.mxu0
      %v1036 = vadd.f32 0.0, %v1035
      %v1037 = vpop.f32.mrf.mxu0
      %v1038 = vadd.f32 0.0, %v1037
      %1039 = vmatmul.bf16.gmra.mxu0 %v824
      %v1040 = vpop.f32.mrf.mxu0
      %v1041 = vadd.f32 0.0, %v1040
      %v1042 = vpop.f32.mrf.mxu0
      %v1043 = vadd.f32 0.0, %v1042
      %1044 = vmatmul.bf16.gmra.mxu0 %v827
      %v1045 = vpop.f32.mrf.mxu0
      %v1046 = vadd.f32 0.0, %v1045
      %v1047 = vpop.f32.mrf.mxu0
      %v1048 = vadd.f32 0.0, %v1047
      %1049 = vmatmul.bf16.gmra.mxu0 %v830
      %v1050 = vpop.f32.mrf.mxu0
      %v1051 = vadd.f32 0.0, %v1050
      %v1052 = vpop.f32.mrf.mxu0
      %v1053 = vadd.f32 0.0, %v1052
      %1054 = vmatmul.bf16.gmra.mxu0 %v833
      %v1055 = vpop.f32.mrf.mxu0
      %v1056 = vadd.f32 0.0, %v1055
      %v1057 = vpop.f32.mrf.mxu0
      %v1058 = vadd.f32 0.0, %v1057
      %1059 = vmatmul.bf16.gmra.mxu0 %v836
      %v1060 = vpop.f32.mrf.mxu0
      %v1061 = vadd.f32 0.0, %v1060
      %v1062 = vpop.f32.mrf.mxu0
      %v1063 = vadd.f32 0.0, %v1062
      %1064 = vmatmul.bf16.gmra.mxu0 %v839
      %v1065 = vpop.f32.mrf.mxu0
      %v1066 = vadd.f32 0.0, %v1065
      %v1067 = vpop.f32.mrf.mxu0
      %v1068 = vadd.f32 0.0, %v1067
      %1069 = vmatmul.bf16.gmra.mxu0 %v842
      %v1070 = vpop.f32.mrf.mxu0
      %v1071 = vadd.f32 0.0, %v1070
      %v1072 = vpop.f32.mrf.mxu0
      %v1073 = vadd.f32 0.0, %v1072
      %1074 = vmatmul.bf16.gmra.mxu0 %v845
      %v1075 = vpop.f32.mrf.mxu0
      %v1076 = vadd.f32 0.0, %v1075
      %v1077 = vpop.f32.mrf.mxu0
      %v1078 = vadd.f32 0.0, %v1077
      %1079 = vmatmul.bf16.gmra.mxu0 %v848
      %v1080 = vpop.f32.mrf.mxu0
      %v1081 = vadd.f32 0.0, %v1080
      %v1082 = vpop.f32.mrf.mxu0
      %v1083 = vadd.f32 0.0, %v1082
      %1084 = vmatmul.bf16.gmra.mxu0 %v851
      %v1085 = vpop.f32.mrf.mxu0
      %v1086 = vadd.f32 0.0, %v1085
      %v1087 = vpop.f32.mrf.mxu0
      %v1088 = vadd.f32 0.0, %v1087
      %1089 = vmatmul.bf16.gmra.mxu0 %v854
      %v1090 = vpop.f32.mrf.mxu0
      %v1091 = vadd.f32 0.0, %v1090
      %v1092 = vpop.f32.mrf.mxu0
      %v1093 = vadd.f32 0.0, %v1092
      %1094 = vmatmul.bf16.gmra.mxu0 %v857
      %v1095 = vpop.f32.mrf.mxu0
      %v1096 = vadd.f32 0.0, %v1095
      %v1097 = vpop.f32.mrf.mxu0
      %v1098 = vadd.f32 0.0, %v1097
      %1099 = vmatmul.bf16.gmra.mxu0 %v860
      %v1100 = vpop.f32.mrf.mxu0
      %v1101 = vadd.f32 0.0, %v1100
      %v1102 = vpop.f32.mrf.mxu0
      %v1103 = vadd.f32 0.0, %v1102
      %1104 = vmatmul.bf16.gmra.mxu0 %v863
      %v1105 = vpop.f32.mrf.mxu0
      %v1106 = vadd.f32 0.0, %v1105
      %v1107 = vpop.f32.mrf.mxu0
      %v1108 = vadd.f32 0.0, %v1107
      %1109 = vmatmul.bf16.gmra.mxu0 %v866
      %v1110 = vpop.f32.mrf.mxu0
      %v1111 = vadd.f32 0.0, %v1110
      %v1112 = vpop.f32.mrf.mxu0
      %v1113 = vadd.f32 0.0, %v1112
      %1114 = vmatmul.bf16.gmra.mxu0 %v869
      %v1115 = vpop.f32.mrf.mxu0
      %v1116 = vadd.f32 0.0, %v1115
      %v1117 = vpop.f32.mrf.mxu0
      %v1118 = vadd.f32 0.0, %v1117
      %1119 = vmatmul.bf16.gmra.mxu0 %v872
      %v1120 = vpop.f32.mrf.mxu0
      %v1121 = vadd.f32 0.0, %v1120
      %v1122 = vpop.f32.mrf.mxu0
      %v1123 = vadd.f32 0.0, %v1122
      %1124 = vmatmul.bf16.gmra.mxu0 %v875
      %v1125 = vpop.f32.mrf.mxu0
      %v1126 = vadd.f32 0.0, %v1125
      %v1127 = vpop.f32.mrf.mxu0
      %v1128 = vadd.f32 0.0, %v1127
      %1129 = vmatmul.bf16.gmra.mxu0 %v878
      %v1130 = vpop.f32.mrf.mxu0
      %v1131 = vadd.f32 0.0, %v1130
      %v1132 = vpop.f32.mrf.mxu0
      %v1133 = vadd.f32 0.0, %v1132
      %1134 = vmatmul.bf16.gmra.mxu0 %v881
      %v1135 = vpop.f32.mrf.mxu0
      %v1136 = vadd.f32 0.0, %v1135
      %v1137 = vpop.f32.mrf.mxu0
      %v1138 = vadd.f32 0.0, %v1137
      %1139 = vmatmul.bf16.gmra.mxu0 %v884
      %v1140 = vpop.f32.mrf.mxu0
      %v1141 = vadd.f32 0.0, %v1140
      %v1142 = vpop.f32.mrf.mxu0
      %v1143 = vadd.f32 0.0, %v1142
      %1144 = vmatmul.bf16.gmra.mxu0 %v887
      %v1145 = vpop.f32.mrf.mxu0
      %v1146 = vadd.f32 0.0, %v1145
      %v1147 = vpop.f32.mrf.mxu0
      %v1148 = vadd.f32 0.0, %v1147
      %1149 = vmatmul.bf16.gmra.mxu0 %v890
      %v1150 = vpop.f32.mrf.mxu0
      %v1151 = vadd.f32 0.0, %v1150
      %v1152 = vpop.f32.mrf.mxu0
      %v1153 = vadd.f32 0.0, %v1152
      %1154 = vmatmul.bf16.gmra.mxu0 %v893
      %v1155 = vpop.f32.mrf.mxu0
      %v1156 = vadd.f32 0.0, %v1155
      %v1157 = vpop.f32.mrf.mxu0
      %v1158 = vadd.f32 0.0, %v1157
      %1159 = vmatmul.bf16.gmra.mxu0 %v896
      %v1160 = vpop.f32.mrf.mxu0
      %v1161 = vadd.f32 0.0, %v1160
      %v1162 = vpop.f32.mrf.mxu0
      %v1163 = vadd.f32 0.0, %v1162
      %1164 = vmatmul.bf16.gmra.mxu0 %v899
      %v1165 = vpop.f32.mrf.mxu0
      %v1166 = vadd.f32 0.0, %v1165
      %v1167 = vpop.f32.mrf.mxu0
      %v1168 = vadd.f32 0.0, %v1167
      %1169 = vmatmul.bf16.gmra.mxu0 %v902
      %v1170 = vpop.f32.mrf.mxu0
      %v1171 = vadd.f32 0.0, %v1170
      %v1172 = vpop.f32.mrf.mxu0
      %v1173 = vadd.f32 0.0, %v1172
      %1174 = vmatmul.bf16.gmra.mxu0 %v905
      %v1175 = vpop.f32.mrf.mxu0
      %v1176 = vadd.f32 0.0, %v1175
      %v1177 = vpop.f32.mrf.mxu0
      %v1178 = vadd.f32 0.0, %v1177
      %1179 = vmatmul.bf16.gmra.mxu0 %v908
      %v1180 = vpop.f32.mrf.mxu0
      %v1181 = vadd.f32 0.0, %v1180
      %v1182 = vpop.f32.mrf.mxu0
      %v1183 = vadd.f32 0.0, %v1182
      %1184 = vmatmul.bf16.gmra.mxu0 %v911
      %v1185 = vpop.f32.mrf.mxu0
      %v1186 = vadd.f32 0.0, %v1185
      %v1187 = vpop.f32.mrf.mxu0
      %v1188 = vadd.f32 0.0, %v1187
      %1189 = vmatmul.bf16.gmra.mxu0 %v914
      %v1190 = vpop.f32.mrf.mxu0
      %v1191 = vadd.f32 0.0, %v1190
      %v1192 = vpop.f32.mrf.mxu0
      %v1193 = vadd.f32 0.0, %v1192
      %1194 = vmatmul.bf16.gmra.mxu0 %v917
      %v1195 = vpop.f32.mrf.mxu0
      %v1196 = vadd.f32 0.0, %v1195
      %v1197 = vpop.f32.mrf.mxu0
      %v1198 = vadd.f32 0.0, %v1197
      %1199 = vmatmul.bf16.gmra.mxu0 %v920
      %v1200 = vpop.f32.mrf.mxu0
      %v1201 = vadd.f32 0.0, %v1200
      %v1202 = vpop.f32.mrf.mxu0
      %v1203 = vadd.f32 0.0, %v1202
      %1204 = vmatmul.bf16.gmra.mxu0 %v923
      %v1205 = vpop.f32.mrf.mxu0
      %v1206 = vadd.f32 0.0, %v1205
      %v1207 = vpop.f32.mrf.mxu0
      %v1208 = vadd.f32 0.0, %v1207
      %1209 = vmatmul.bf16.gmra.mxu0 %v926
      %v1210 = vpop.f32.mrf.mxu0
      %v1211 = vadd.f32 0.0, %v1210
      %v1212 = vpop.f32.mrf.mxu0
      %v1213 = vadd.f32 0.0, %v1212
      %1214 = vmatmul.bf16.gmra.mxu0 %v929
      %v1215 = vpop.f32.mrf.mxu0
      %v1216 = vadd.f32 0.0, %v1215
      %v1217 = vpop.f32.mrf.mxu0
      %v1218 = vadd.f32 0.0, %v1217
      %1219 = vmatmul.bf16.gmra.mxu0 %v932
      %v1220 = vpop.f32.mrf.mxu0
      %v1221 = vadd.f32 0.0, %v1220
      %v1222 = vpop.f32.mrf.mxu0
      %v1223 = vadd.f32 0.0, %v1222
      %1224 = vmatmul.bf16.gmra.mxu0 %v935
      %v1225 = vpop.f32.mrf.mxu0
      %v1226 = vadd.f32 0.0, %v1225
      %v1227 = vpop.f32.mrf.mxu0
      %v1228 = vadd.f32 0.0, %v1227
      %1229 = vmatmul.bf16.gmra.mxu0 %v938
      %v1230 = vpop.f32.mrf.mxu0
      %v1231 = vadd.f32 0.0, %v1230
      %v1232 = vpop.f32.mrf.mxu0
      %v1233 = vadd.f32 0.0, %v1232
      %1234 = vmatmul.bf16.gmra.mxu0 %v941
      %v1235 = vpop.f32.mrf.mxu0
      %v1236 = vadd.f32 0.0, %v1235
      %v1237 = vpop.f32.mrf.mxu0
      %v1238 = vadd.f32 0.0, %v1237
      %1239 = vmatmul.bf16.gmra.mxu0 %v944
      %v1240 = vpop.f32.mrf.mxu0
      %v1241 = vadd.f32 0.0, %v1240
      %v1242 = vpop.f32.mrf.mxu0
      %v1243 = vadd.f32 0.0, %v1242
      %1244 = vmatmul.bf16.gmra.mxu0 %v947
      %v1245 = vpop.f32.mrf.mxu0
      %v1246 = vadd.f32 0.0, %v1245
      %v1247 = vpop.f32.mrf.mxu0
      %v1248 = vadd.f32 0.0, %v1247
      %1249 = vmatmul.bf16.gmra.mxu0 %v950
      %v1250 = vpop.f32.mrf.mxu0
      %v1251 = vadd.f32 0.0, %v1250
      %v1252 = vpop.f32.mrf.mxu0
      %v1253 = vadd.f32 0.0, %v1252
      %1254 = vmatmul.bf16.gmra.mxu0 %v953
      %v1255 = vpop.f32.mrf.mxu0
      %v1256 = vadd.f32 0.0, %v1255
      %v1257 = vpop.f32.mrf.mxu0
      %v1258 = vadd.f32 0.0, %v1257
      %1259 = vmatmul.bf16.gmra.mxu0 %v956
      %v1260 = vpop.f32.mrf.mxu0
      %v1261 = vadd.f32 0.0, %v1260
      %v1262 = vpop.f32.mrf.mxu0
      %v1263 = vadd.f32 0.0, %v1262
      %1264 = vmatmul.bf16.gmra.mxu0 %v959
      %v1265 = vpop.f32.mrf.mxu0
      %v1266 = vadd.f32 0.0, %v1265
      %v1267 = vpop.f32.mrf.mxu0
      %v1268 = vadd.f32 0.0, %v1267
      %1269 = vmatmul.bf16.gmra.mxu0 %v962
      %v1270 = vpop.f32.mrf.mxu0
      %v1271 = vadd.f32 0.0, %v1270
      %v1272 = vpop.f32.mrf.mxu0
      %v1273 = vadd.f32 0.0, %v1272
      %1274 = vmatmul.bf16.gmra.mxu0 %v965
      %v1275 = vpop.f32.mrf.mxu0
      %v1276 = vadd.f32 0.0, %v1275
      %v1277 = vpop.f32.mrf.mxu0
      %v1278 = vadd.f32 0.0, %v1277
      %1279 = vmatmul.bf16.gmra.mxu0 %v968
      %v1280 = vpop.f32.mrf.mxu0
      %v1281 = vadd.f32 0.0, %v1280
      %v1282 = vpop.f32.mrf.mxu0
      %v1283 = vadd.f32 0.0, %v1282
      %1284 = vmatmul.bf16.gmra.mxu0 %v971
      %v1285 = vpop.f32.mrf.mxu0
      %v1286 = vadd.f32 0.0, %v1285
      %v1287 = vpop.f32.mrf.mxu0
      %v1288 = vadd.f32 0.0, %v1287
      %1289 = vmatmul.bf16.gmra.mxu0 %v974
      %v1290 = vpop.f32.mrf.mxu0
      %v1291 = vadd.f32 0.0, %v1290
      %v1292 = vpop.f32.mrf.mxu0
      %v1293 = vadd.f32 0.0, %v1292
      %1294 = vmatmul.bf16.gmra.mxu0 %v977
      %v1295 = vpop.f32.mrf.mxu0
      %v1296 = vadd.f32 0.0, %v1295
      %v1297 = vpop.f32.mrf.mxu0
      %v1298 = vadd.f32 0.0, %v1297
      %1299 = vmatmul.bf16.gmra.mxu0 %v980
      %v1300 = vpop.f32.mrf.mxu0
      %v1301 = vadd.f32 0.0, %v1300
      %v1302 = vpop.f32.mrf.mxu0
      %v1303 = vadd.f32 0.0, %v1302
      %1304 = vmatmul.bf16.gmra.mxu0 %v983
      %v1305 = vpop.f32.mrf.mxu0
      %v1306 = vadd.f32 0.0, %v1305
      %v1307 = vpop.f32.mrf.mxu0
      %v1308 = vadd.f32 0.0, %v1307
      %1309 = vmatmul.bf16.gmra.mxu0 %v986
      %v1310 = vpop.f32.mrf.mxu0
      %v1311 = vadd.f32 0.0, %v1310
      %v1312 = vpop.f32.mrf.mxu0
      %v1313 = vadd.f32 0.0, %v1312
      %1314 = vmatmul.bf16.gmra.mxu0 %v989
      %v1315 = vpop.f32.mrf.mxu0
      %v1316 = vadd.f32 0.0, %v1315
      %v1317 = vpop.f32.mrf.mxu0
      %v1318 = vadd.f32 0.0, %v1317
      %1319 = vdwg.mxu0
      %v1320 = vld [vmem:[%s2] sm:$0x1]
      %v1322 = vperm.slane %v1320, 0
      %v1324 = vmul.f32 %v1001, %v1322
      %v1325 = vmul.f32 %v1003, %v1322
      %v1326 = vmul.f32 %v1006, %v1322
      %v1327 = vmul.f32 %v1008, %v1322
      %v1328 = vmul.f32 %v1011, %v1322
      %v1329 = vmul.f32 %v1013, %v1322
      %v1330 = vmul.f32 %v1016, %v1322
      %v1331 = vmul.f32 %v1018, %v1322
      %v1332 = vmul.f32 %v1021, %v1322
      %v1333 = vmul.f32 %v1023, %v1322
      %v1334 = vmul.f32 %v1026, %v1322
      %v1335 = vmul.f32 %v1028, %v1322
      %v1336 = vmul.f32 %v1031, %v1322
      %v1337 = vmul.f32 %v1033, %v1322
      %v1338 = vmul.f32 %v1036, %v1322
      %v1339 = vmul.f32 %v1038, %v1322
      %v1340 = vmul.f32 %v1041, %v1322
      %v1341 = vmul.f32 %v1043, %v1322
      %v1342 = vmul.f32 %v1046, %v1322
      %v1343 = vmul.f32 %v1048, %v1322
      %v1344 = vmul.f32 %v1051, %v1322
      %v1345 = vmul.f32 %v1053, %v1322
      %v1346 = vmul.f32 %v1056, %v1322
      %v1347 = vmul.f32 %v1058, %v1322
      %v1348 = vmul.f32 %v1061, %v1322
      %v1349 = vmul.f32 %v1063, %v1322
      %v1350 = vmul.f32 %v1066, %v1322
      %v1351 = vmul.f32 %v1068, %v1322
      %v1352 = vmul.f32 %v1071, %v1322
      %v1353 = vmul.f32 %v1073, %v1322
      %v1354 = vmul.f32 %v1076, %v1322
      %v1355 = vmul.f32 %v1078, %v1322
      %v1356 = vmul.f32 %v1081, %v1322
      %v1357 = vmul.f32 %v1083, %v1322
      %v1358 = vmul.f32 %v1086, %v1322
      %v1359 = vmul.f32 %v1088, %v1322
      %v1360 = vmul.f32 %v1091, %v1322
      %v1361 = vmul.f32 %v1093, %v1322
      %v1362 = vmul.f32 %v1096, %v1322
      %v1363 = vmul.f32 %v1098, %v1322
      %v1364 = vmul.f32 %v1101, %v1322
      %v1365 = vmul.f32 %v1103, %v1322
      %v1366 = vmul.f32 %v1106, %v1322
      %v1367 = vmul.f32 %v1108, %v1322
      %v1368 = vmul.f32 %v1111, %v1322
      %v1369 = vmul.f32 %v1113, %v1322
      %v1370 = vmul.f32 %v1116, %v1322
      %v1371 = vmul.f32 %v1118, %v1322
      %v1372 = vmul.f32 %v1121, %v1322
      %v1373 = vmul.f32 %v1123, %v1322
      %v1374 = vmul.f32 %v1126, %v1322
      %v1375 = vmul.f32 %v1128, %v1322
      %v1376 = vmul.f32 %v1131, %v1322
      %v1377 = vmul.f32 %v1133, %v1322
      %v1378 = vmul.f32 %v1136, %v1322
      %v1379 = vmul.f32 %v1138, %v1322
      %v1380 = vmul.f32 %v1141, %v1322
      %v1381 = vmul.f32 %v1143, %v1322
      %v1382 = vmul.f32 %v1146, %v1322
      %v1383 = vmul.f32 %v1148, %v1322
      %v1384 = vmul.f32 %v1151, %v1322
      %v1385 = vmul.f32 %v1153, %v1322
      %v1386 = vmul.f32 %v1156, %v1322
      %v1387 = vmul.f32 %v1158, %v1322
      %v1388 = vmul.f32 %v1161, %v1322
      %v1389 = vmul.f32 %v1163, %v1322
      %v1390 = vmul.f32 %v1166, %v1322
      %v1391 = vmul.f32 %v1168, %v1322
      %v1392 = vmul.f32 %v1171, %v1322
      %v1393 = vmul.f32 %v1173, %v1322
      %v1394 = vmul.f32 %v1176, %v1322
      %v1395 = vmul.f32 %v1178, %v1322
      %v1396 = vmul.f32 %v1181, %v1322
      %v1397 = vmul.f32 %v1183, %v1322
      %v1398 = vmul.f32 %v1186, %v1322
      %v1399 = vmul.f32 %v1188, %v1322
      %v1400 = vmul.f32 %v1191, %v1322
      %v1401 = vmul.f32 %v1193, %v1322
      %v1402 = vmul.f32 %v1196, %v1322
      %v1403 = vmul.f32 %v1198, %v1322
      %v1404 = vmul.f32 %v1201, %v1322
      %v1405 = vmul.f32 %v1203, %v1322
      %v1406 = vmul.f32 %v1206, %v1322
      %v1407 = vmul.f32 %v1208, %v1322
      %v1408 = vmul.f32 %v1211, %v1322
      %v1409 = vmul.f32 %v1213, %v1322
      %v1410 = vmul.f32 %v1216, %v1322
      %v1411 = vmul.f32 %v1218, %v1322
      %v1412 = vmul.f32 %v1221, %v1322
      %v1413 = vmul.f32 %v1223, %v1322
      %v1414 = vmul.f32 %v1226, %v1322
      %v1415 = vmul.f32 %v1228, %v1322
      %v1416 = vmul.f32 %v1231, %v1322
      %v1417 = vmul.f32 %v1233, %v1322
      %v1418 = vmul.f32 %v1236, %v1322
      %v1419 = vmul.f32 %v1238, %v1322
      %v1420 = vmul.f32 %v1241, %v1322
      %v1421 = vmul.f32 %v1243, %v1322
      %v1422 = vmul.f32 %v1246, %v1322
      %v1423 = vmul.f32 %v1248, %v1322
      %v1424 = vmul.f32 %v1251, %v1322
      %v1425 = vmul.f32 %v1253, %v1322
      %v1426 = vmul.f32 %v1256, %v1322
      %v1427 = vmul.f32 %v1258, %v1322
      %v1428 = vmul.f32 %v1261, %v1322
      %v1429 = vmul.f32 %v1263, %v1322
      %v1430 = vmul.f32 %v1266, %v1322
      %v1431 = vmul.f32 %v1268, %v1322
      %v1432 = vmul.f32 %v1271, %v1322
      %v1433 = vmul.f32 %v1273, %v1322
      %v1434 = vmul.f32 %v1276, %v1322
      %v1435 = vmul.f32 %v1278, %v1322
      %v1436 = vmul.f32 %v1281, %v1322
      %v1437 = vmul.f32 %v1283, %v1322
      %v1438 = vmul.f32 %v1286, %v1322
      %v1439 = vmul.f32 %v1288, %v1322
      %v1440 = vmul.f32 %v1291, %v1322
      %v1441 = vmul.f32 %v1293, %v1322
      %v1442 = vmul.f32 %v1296, %v1322
      %v1443 = vmul.f32 %v1298, %v1322
      %v1444 = vmul.f32 %v1301, %v1322
      %v1445 = vmul.f32 %v1303, %v1322
      %v1446 = vmul.f32 %v1306, %v1322
      %v1447 = vmul.f32 %v1308, %v1322
      %v1448 = vmul.f32 %v1311, %v1322
      %v1449 = vmul.f32 %v1313, %v1322
      %v1450 = vmul.f32 %v1316, %v1322
      %v1451 = vmul.f32 %v1318, %v1322
      %v1452 = vld [vmem:[%s3] sm:$0x1]
      %v1454 = vperm.slane %v1452, 0
      %v1456 = vadd.f32 %v1324, %v1454
      %v1457 = vadd.f32 %v1325, %v1454
      %v1458 = vadd.f32 %v1326, %v1454
      %v1459 = vadd.f32 %v1327, %v1454
      %v1460 = vadd.f32 %v1328, %v1454
      %v1461 = vadd.f32 %v1329, %v1454
      %v1462 = vadd.f32 %v1330, %v1454
      %v1463 = vadd.f32 %v1331, %v1454
      %v1464 = vadd.f32 %v1332, %v1454
      %v1465 = vadd.f32 %v1333, %v1454
      %v1466 = vadd.f32 %v1334, %v1454
      %v1467 = vadd.f32 %v1335, %v1454
      %v1468 = vadd.f32 %v1336, %v1454
      %v1469 = vadd.f32 %v1337, %v1454
      %v1470 = vadd.f32 %v1338, %v1454
      %v1471 = vadd.f32 %v1339, %v1454
      %v1472 = vadd.f32 %v1340, %v1454
      %v1473 = vadd.f32 %v1341, %v1454
      %v1474 = vadd.f32 %v1342, %v1454
      %v1475 = vadd.f32 %v1343, %v1454
      %v1476 = vadd.f32 %v1344, %v1454
      %v1477 = vadd.f32 %v1345, %v1454
      %v1478 = vadd.f32 %v1346, %v1454
      %v1479 = vadd.f32 %v1347, %v1454
      %v1480 = vadd.f32 %v1348, %v1454
      %v1481 = vadd.f32 %v1349, %v1454
      %v1482 = vadd.f32 %v1350, %v1454
      %v1483 = vadd.f32 %v1351, %v1454
      %v1484 = vadd.f32 %v1352, %v1454
      %v1485 = vadd.f32 %v1353, %v1454
      %v1486 = vadd.f32 %v1354, %v1454
      %v1487 = vadd.f32 %v1355, %v1454
      %v1488 = vadd.f32 %v1356, %v1454
      %v1489 = vadd.f32 %v1357, %v1454
      %v1490 = vadd.f32 %v1358, %v1454
      %v1491 = vadd.f32 %v1359, %v1454
      %v1492 = vadd.f32 %v1360, %v1454
      %v1493 = vadd.f32 %v1361, %v1454
      %v1494 = vadd.f32 %v1362, %v1454
      %v1495 = vadd.f32 %v1363, %v1454
      %v1496 = vadd.f32 %v1364, %v1454
      %v1497 = vadd.f32 %v1365, %v1454
      %v1498 = vadd.f32 %v1366, %v1454
      %v1499 = vadd.f32 %v1367, %v1454
      %v1500 = vadd.f32 %v1368, %v1454
      %v1501 = vadd.f32 %v1369, %v1454
      %v1502 = vadd.f32 %v1370, %v1454
      %v1503 = vadd.f32 %v1371, %v1454
      %v1504 = vadd.f32 %v1372, %v1454
      %v1505 = vadd.f32 %v1373, %v1454
      %v1506 = vadd.f32 %v1374, %v1454
      %v1507 = vadd.f32 %v1375, %v1454
      %v1508 = vadd.f32 %v1376, %v1454
      %v1509 = vadd.f32 %v1377, %v1454
      %v1510 = vadd.f32 %v1378, %v1454
      %v1511 = vadd.f32 %v1379, %v1454
      %v1512 = vadd.f32 %v1380, %v1454
      %v1513 = vadd.f32 %v1381, %v1454
      %v1514 = vadd.f32 %v1382, %v1454
      %v1515 = vadd.f32 %v1383, %v1454
      %v1516 = vadd.f32 %v1384, %v1454
      %v1517 = vadd.f32 %v1385, %v1454
      %v1518 = vadd.f32 %v1386, %v1454
      %v1519 = vadd.f32 %v1387, %v1454
      %v1520 = vadd.f32 %v1388, %v1454
      %v1521 = vadd.f32 %v1389, %v1454
      %v1522 = vadd.f32 %v1390, %v1454
      %v1523 = vadd.f32 %v1391, %v1454
      %v1524 = vadd.f32 %v1392, %v1454
      %v1525 = vadd.f32 %v1393, %v1454
      %v1526 = vadd.f32 %v1394, %v1454
      %v1527 = vadd.f32 %v1395, %v1454
      %v1528 = vadd.f32 %v1396, %v1454
      %v1529 = vadd.f32 %v1397, %v1454
      %v1530 = vadd.f32 %v1398, %v1454
      %v1531 = vadd.f32 %v1399, %v1454
      %v1532 = vadd.f32 %v1400, %v1454
      %v1533 = vadd.f32 %v1401, %v1454
      %v1534 = vadd.f32 %v1402, %v1454
      %v1535 = vadd.f32 %v1403, %v1454
      %v1536 = vadd.f32 %v1404, %v1454
      %v1537 = vadd.f32 %v1405, %v1454
      %v1538 = vadd.f32 %v1406, %v1454
      %v1539 = vadd.f32 %v1407, %v1454
      %v1540 = vadd.f32 %v1408, %v1454
      %v1541 = vadd.f32 %v1409, %v1454
      %v1542 = vadd.f32 %v1410, %v1454
      %v1543 = vadd.f32 %v1411, %v1454
      %v1544 = vadd.f32 %v1412, %v1454
      %v1545 = vadd.f32 %v1413, %v1454
      %v1546 = vadd.f32 %v1414, %v1454
      %v1547 = vadd.f32 %v1415, %v1454
      %v1548 = vadd.f32 %v1416, %v1454
      %v1549 = vadd.f32 %v1417, %v1454
      %v1550 = vadd.f32 %v1418, %v1454
      %v1551 = vadd.f32 %v1419, %v1454
      %v1552 = vadd.f32 %v1420, %v1454
      %v1553 = vadd.f32 %v1421, %v1454
      %v1554 = vadd.f32 %v1422, %v1454
      %v1555 = vadd.f32 %v1423, %v1454
      %v1556 = vadd.f32 %v1424, %v1454
      %v1557 = vadd.f32 %v1425, %v1454
      %v1558 = vadd.f32 %v1426, %v1454
      %v1559 = vadd.f32 %v1427, %v1454
      %v1560 = vadd.f32 %v1428, %v1454
      %v1561 = vadd.f32 %v1429, %v1454
      %v1562 = vadd.f32 %v1430, %v1454
      %v1563 = vadd.f32 %v1431, %v1454
      %v1564 = vadd.f32 %v1432, %v1454
      %v1565 = vadd.f32 %v1433, %v1454
      %v1566 = vadd.f32 %v1434, %v1454
      %v1567 = vadd.f32 %v1435, %v1454
      %v1568 = vadd.f32 %v1436, %v1454
      %v1569 = vadd.f32 %v1437, %v1454
      %v1570 = vadd.f32 %v1438, %v1454
      %v1571 = vadd.f32 %v1439, %v1454
      %v1572 = vadd.f32 %v1440, %v1454
      %v1573 = vadd.f32 %v1441, %v1454
      %v1574 = vadd.f32 %v1442, %v1454
      %v1575 = vadd.f32 %v1443, %v1454
      %v1576 = vadd.f32 %v1444, %v1454
      %v1577 = vadd.f32 %v1445, %v1454
      %v1578 = vadd.f32 %v1446, %v1454
      %v1579 = vadd.f32 %v1447, %v1454
      %v1580 = vadd.f32 %v1448, %v1454
      %v1581 = vadd.f32 %v1449, %v1454
      %v1582 = vadd.f32 %v1450, %v1454
      %v1583 = vadd.f32 %v1451, %v1454
      %v1584 = vmax.f32 %v1456, 0.0
      %v1585 = vmax.f32 %v1457, 0.0
      %v1586 = vmax.f32 %v1458, 0.0
      %v1587 = vmax.f32 %v1459, 0.0
      %v1588 = vmax.f32 %v1460, 0.0
      %v1589 = vmax.f32 %v1461, 0.0
      %v1590 = vmax.f32 %v1462, 0.0
      %v1591 = vmax.f32 %v1463, 0.0
      %v1592 = vmax.f32 %v1464, 0.0
      %v1593 = vmax.f32 %v1465, 0.0
      %v1594 = vmax.f32 %v1466, 0.0
      %v1595 = vmax.f32 %v1467, 0.0
      %v1596 = vmax.f32 %v1468, 0.0
      %v1597 = vmax.f32 %v1469, 0.0
      %v1598 = vmax.f32 %v1470, 0.0
      %v1599 = vmax.f32 %v1471, 0.0
      %v1600 = vmax.f32 %v1472, 0.0
      %v1601 = vmax.f32 %v1473, 0.0
      %v1602 = vmax.f32 %v1474, 0.0
      %v1603 = vmax.f32 %v1475, 0.0
      %v1604 = vmax.f32 %v1476, 0.0
      %v1605 = vmax.f32 %v1477, 0.0
      %v1606 = vmax.f32 %v1478, 0.0
      %v1607 = vmax.f32 %v1479, 0.0
      %v1608 = vmax.f32 %v1480, 0.0
      %v1609 = vmax.f32 %v1481, 0.0
      %v1610 = vmax.f32 %v1482, 0.0
      %v1611 = vmax.f32 %v1483, 0.0
      %v1612 = vmax.f32 %v1484, 0.0
      %v1613 = vmax.f32 %v1485, 0.0
      %v1614 = vmax.f32 %v1486, 0.0
      %v1615 = vmax.f32 %v1487, 0.0
      %v1616 = vmax.f32 %v1488, 0.0
      %v1617 = vmax.f32 %v1489, 0.0
      %v1618 = vmax.f32 %v1490, 0.0
      %v1619 = vmax.f32 %v1491, 0.0
      %v1620 = vmax.f32 %v1492, 0.0
      %v1621 = vmax.f32 %v1493, 0.0
      %v1622 = vmax.f32 %v1494, 0.0
      %v1623 = vmax.f32 %v1495, 0.0
      %v1624 = vmax.f32 %v1496, 0.0
      %v1625 = vmax.f32 %v1497, 0.0
      %v1626 = vmax.f32 %v1498, 0.0
      %v1627 = vmax.f32 %v1499, 0.0
      %v1628 = vmax.f32 %v1500, 0.0
      %v1629 = vmax.f32 %v1501, 0.0
      %v1630 = vmax.f32 %v1502, 0.0
      %v1631 = vmax.f32 %v1503, 0.0
      %v1632 = vmax.f32 %v1504, 0.0
      %v1633 = vmax.f32 %v1505, 0.0
      %v1634 = vmax.f32 %v1506, 0.0
      %v1635 = vmax.f32 %v1507, 0.0
      %v1636 = vmax.f32 %v1508, 0.0
      %v1637 = vmax.f32 %v1509, 0.0
      %v1638 = vmax.f32 %v1510, 0.0
      %v1639 = vmax.f32 %v1511, 0.0
      %v1640 = vmax.f32 %v1512, 0.0
      %v1641 = vmax.f32 %v1513, 0.0
      %v1642 = vmax.f32 %v1514, 0.0
      %v1643 = vmax.f32 %v1515, 0.0
      %v1644 = vmax.f32 %v1516, 0.0
      %v1645 = vmax.f32 %v1517, 0.0
      %v1646 = vmax.f32 %v1518, 0.0
      %v1647 = vmax.f32 %v1519, 0.0
      %v1648 = vmax.f32 %v1520, 0.0
      %v1649 = vmax.f32 %v1521, 0.0
      %v1650 = vmax.f32 %v1522, 0.0
      %v1651 = vmax.f32 %v1523, 0.0
      %v1652 = vmax.f32 %v1524, 0.0
      %v1653 = vmax.f32 %v1525, 0.0
      %v1654 = vmax.f32 %v1526, 0.0
      %v1655 = vmax.f32 %v1527, 0.0
      %v1656 = vmax.f32 %v1528, 0.0
      %v1657 = vmax.f32 %v1529, 0.0
      %v1658 = vmax.f32 %v1530, 0.0
      %v1659 = vmax.f32 %v1531, 0.0
      %v1660 = vmax.f32 %v1532, 0.0
      %v1661 = vmax.f32 %v1533, 0.0
      %v1662 = vmax.f32 %v1534, 0.0
      %v1663 = vmax.f32 %v1535, 0.0
      %v1664 = vmax.f32 %v1536, 0.0
      %v1665 = vmax.f32 %v1537, 0.0
      %v1666 = vmax.f32 %v1538, 0.0
      %v1667 = vmax.f32 %v1539, 0.0
      %v1668 = vmax.f32 %v1540, 0.0
      %v1669 = vmax.f32 %v1541, 0.0
      %v1670 = vmax.f32 %v1542, 0.0
      %v1671 = vmax.f32 %v1543, 0.0
      %v1672 = vmax.f32 %v1544, 0.0
      %v1673 = vmax.f32 %v1545, 0.0
      %v1674 = vmax.f32 %v1546, 0.0
      %v1675 = vmax.f32 %v1547, 0.0
      %v1676 = vmax.f32 %v1548, 0.0
      %v1677 = vmax.f32 %v1549, 0.0
      %v1678 = vmax.f32 %v1550, 0.0
      %v1679 = vmax.f32 %v1551, 0.0
      %v1680 = vmax.f32 %v1552, 0.0
      %v1681 = vmax.f32 %v1553, 0.0
      %v1682 = vmax.f32 %v1554, 0.0
      %v1683 = vmax.f32 %v1555, 0.0
      %v1684 = vmax.f32 %v1556, 0.0
      %v1685 = vmax.f32 %v1557, 0.0
      %v1686 = vmax.f32 %v1558, 0.0
      %v1687 = vmax.f32 %v1559, 0.0
      %v1688 = vmax.f32 %v1560, 0.0
      %v1689 = vmax.f32 %v1561, 0.0
      %v1690 = vmax.f32 %v1562, 0.0
      %v1691 = vmax.f32 %v1563, 0.0
      %v1692 = vmax.f32 %v1564, 0.0
      %v1693 = vmax.f32 %v1565, 0.0
      %v1694 = vmax.f32 %v1566, 0.0
      %v1695 = vmax.f32 %v1567, 0.0
      %v1696 = vmax.f32 %v1568, 0.0
      %v1697 = vmax.f32 %v1569, 0.0
      %v1698 = vmax.f32 %v1570, 0.0
      %v1699 = vmax.f32 %v1571, 0.0
      %v1700 = vmax.f32 %v1572, 0.0
      %v1701 = vmax.f32 %v1573, 0.0
      %v1702 = vmax.f32 %v1574, 0.0
      %v1703 = vmax.f32 %v1575, 0.0
      %v1704 = vmax.f32 %v1576, 0.0
      %v1705 = vmax.f32 %v1577, 0.0
      %v1706 = vmax.f32 %v1578, 0.0
      %v1707 = vmax.f32 %v1579, 0.0
      %v1708 = vmax.f32 %v1580, 0.0
      %v1709 = vmax.f32 %v1581, 0.0
      %v1710 = vmax.f32 %v1582, 0.0
      %v1711 = vmax.f32 %v1583, 0.0
      %v1712 = vmax.f32 %v1584, %v1588
      %v1713 = vmax.f32 %v1585, %v1589
      %v1714 = vmax.f32 %v1586, %v1590
      %v1715 = vmax.f32 %v1587, %v1591
      %v1716 = vmax.f32 %v1592, %v1596
      %v1717 = vmax.f32 %v1593, %v1597
      %v1718 = vmax.f32 %v1594, %v1598
      %v1719 = vmax.f32 %v1595, %v1599
      %v1720 = vmax.f32 %v1600, %v1604
      %v1721 = vmax.f32 %v1601, %v1605
      %v1722 = vmax.f32 %v1602, %v1606
      %v1723 = vmax.f32 %v1603, %v1607
      %v1724 = vmax.f32 %v1608, %v1612
      %v1725 = vmax.f32 %v1609, %v1613
      %v1726 = vmax.f32 %v1610, %v1614
      %v1727 = vmax.f32 %v1611, %v1615
      %v1728 = vmax.f32 %v1616, %v1620
      %v1729 = vmax.f32 %v1617, %v1621
      %v1730 = vmax.f32 %v1618, %v1622
      %v1731 = vmax.f32 %v1619, %v1623
      %v1732 = vmax.f32 %v1624, %v1628
      %v1733 = vmax.f32 %v1625, %v1629
      %v1734 = vmax.f32 %v1626, %v1630
      %v1735 = vmax.f32 %v1627, %v1631
      %v1736 = vmax.f32 %v1632, %v1636
      %v1737 = vmax.f32 %v1633, %v1637
      %v1738 = vmax.f32 %v1634, %v1638
      %v1739 = vmax.f32 %v1635, %v1639
      %v1740 = vmax.f32 %v1640, %v1644
      %v1741 = vmax.f32 %v1641, %v1645
      %v1742 = vmax.f32 %v1642, %v1646
      %v1743 = vmax.f32 %v1643, %v1647
      %v1744 = vmax.f32 %v1648, %v1652
      %v1745 = vmax.f32 %v1649, %v1653
      %v1746 = vmax.f32 %v1650, %v1654
      %v1747 = vmax.f32 %v1651, %v1655
      %v1748 = vmax.f32 %v1656, %v1660
      %v1749 = vmax.f32 %v1657, %v1661
      %v1750 = vmax.f32 %v1658, %v1662
      %v1751 = vmax.f32 %v1659, %v1663
      %v1752 = vmax.f32 %v1664, %v1668
      %v1753 = vmax.f32 %v1665, %v1669
      %v1754 = vmax.f32 %v1666, %v1670
      %v1755 = vmax.f32 %v1667, %v1671
      %v1756 = vmax.f32 %v1672, %v1676
      %v1757 = vmax.f32 %v1673, %v1677
      %v1758 = vmax.f32 %v1674, %v1678
      %v1759 = vmax.f32 %v1675, %v1679
      %v1760 = vmax.f32 %v1680, %v1684
      %v1761 = vmax.f32 %v1681, %v1685
      %v1762 = vmax.f32 %v1682, %v1686
      %v1763 = vmax.f32 %v1683, %v1687
      %v1764 = vmax.f32 %v1688, %v1692
      %v1765 = vmax.f32 %v1689, %v1693
      %v1766 = vmax.f32 %v1690, %v1694
      %v1767 = vmax.f32 %v1691, %v1695
      %v1768 = vmax.f32 %v1696, %v1700
      %v1769 = vmax.f32 %v1697, %v1701
      %v1770 = vmax.f32 %v1698, %v1702
      %v1771 = vmax.f32 %v1699, %v1703
      %v1772 = vmax.f32 %v1704, %v1708
      %v1773 = vmax.f32 %v1705, %v1709
      %v1774 = vmax.f32 %v1706, %v1710
      %v1775 = vmax.f32 %v1707, %v1711
      %1776 = vst [vmem:[#allocation2] sm:$0xff] %v1712
      %1777 = vst [vmem:[#allocation2 + $0x8] sm:$0xff] %v1713
      %1778 = vst [vmem:[#allocation2 + $0x10] sm:$0xff] %v1714
      %1779 = vst [vmem:[#allocation2 + $0x18] sm:$0xff] %v1715
      %1780 = vst [vmem:[#allocation2 + $0x20] sm:$0xff] %v1716
      %1781 = vst [vmem:[#allocation2 + $0x28] sm:$0xff] %v1717
      %1782 = vst [vmem:[#allocation2 + $0x30] sm:$0xff] %v1718
      %1783 = vst [vmem:[#allocation2 + $0x38] sm:$0xff] %v1719
      %1784 = vst [vmem:[#allocation2 + $0x40] sm:$0xff] %v1720
      %1785 = vst [vmem:[#allocation2 + $0x48] sm:$0xff] %v1721
      %1786 = vst [vmem:[#allocation2 + $0x50] sm:$0xff] %v1722
      %1787 = vst [vmem:[#allocation2 + $0x58] sm:$0xff] %v1723
      %1788 = vst [vmem:[#allocation2 + $0x60] sm:$0xff] %v1724
      %1789 = vst [vmem:[#allocation2 + $0x68] sm:$0xff] %v1725
      %1790 = vst [vmem:[#allocation2 + $0x70] sm:$0xff] %v1726
      %1791 = vst [vmem:[#allocation2 + $0x78] sm:$0xff] %v1727
      %1792 = vst [vmem:[#allocation2 + $0x80] sm:$0xff] %v1728
      %1793 = vst [vmem:[#allocation2 + $0x88] sm:$0xff] %v1729
      %1794 = vst [vmem:[#allocation2 + $0x90] sm:$0xff] %v1730
      %1795 = vst [vmem:[#allocation2 + $0x98] sm:$0xff] %v1731
      %1796 = vst [vmem:[#allocation2 + $0xa0] sm:$0xff] %v1732
      %1797 = vst [vmem:[#allocation2 + $0xa8] sm:$0xff] %v1733
      %1798 = vst [vmem:[#allocation2 + $0xb0] sm:$0xff] %v1734
      %1799 = vst [vmem:[#allocation2 + $0xb8] sm:$0xff] %v1735
      %1800 = vst [vmem:[#allocation2 + $0xc0] sm:$0xff] %v1736
      %1801 = vst [vmem:[#allocation2 + $0xc8] sm:$0xff] %v1737
      %1802 = vst [vmem:[#allocation2 + $0xd0] sm:$0xff] %v1738
      %1803 = vst [vmem:[#allocation2 + $0xd8] sm:$0xff] %v1739
      %1804 = vst [vmem:[#allocation2 + $0xe0] sm:$0xff] %v1740
      %1805 = vst [vmem:[#allocation2 + $0xe8] sm:$0xff] %v1741
      %1806 = vst [vmem:[#allocation2 + $0xf0] sm:$0xff] %v1742
      %1807 = vst [vmem:[#allocation2 + $0xf8] sm:$0xff] %v1743
      %1808 = vst [vmem:[#allocation2 + $0x100] sm:$0xff] %v1744
      %1809 = vst [vmem:[#allocation2 + $0x108] sm:$0xff] %v1745
      %1810 = vst [vmem:[#allocation2 + $0x110] sm:$0xff] %v1746
      %1811 = vst [vmem:[#allocation2 + $0x118] sm:$0xff] %v1747
      %1812 = vst [vmem:[#allocation2 + $0x120] sm:$0xff] %v1748
      %1813 = vst [vmem:[#allocation2 + $0x128] sm:$0xff] %v1749
      %1814 = vst [vmem:[#allocation2 + $0x130] sm:$0xff] %v1750
      %1815 = vst [vmem:[#allocation2 + $0x138] sm:$0xff] %v1751
      %1816 = vst [vmem:[#allocation2 + $0x140] sm:$0xff] %v1752
      %1817 = vst [vmem:[#allocation2 + $0x148] sm:$0xff] %v1753
      %1818 = vst [vmem:[#allocation2 + $0x150] sm:$0xff] %v1754
      %1819 = vst [vmem:[#allocation2 + $0x158] sm:$0xff] %v1755
      %1820 = vst [vmem:[#allocation2 + $0x160] sm:$0xff] %v1756
      %1821 = vst [vmem:[#allocation2 + $0x168] sm:$0xff] %v1757
      %1822 = vst [vmem:[#allocation2 + $0x170] sm:$0xff] %v1758
      %1823 = vst [vmem:[#allocation2 + $0x178] sm:$0xff] %v1759
      %1824 = vst [vmem:[#allocation2 + $0x180] sm:$0xff] %v1760
      %1825 = vst [vmem:[#allocation2 + $0x188] sm:$0xff] %v1761
      %1826 = vst [vmem:[#allocation2 + $0x190] sm:$0xff] %v1762
      %1827 = vst [vmem:[#allocation2 + $0x198] sm:$0xff] %v1763
      %1828 = vst [vmem:[#allocation2 + $0x1a0] sm:$0xff] %v1764
      %1829 = vst [vmem:[#allocation2 + $0x1a8] sm:$0xff] %v1765
      %1830 = vst [vmem:[#allocation2 + $0x1b0] sm:$0xff] %v1766
      %1831 = vst [vmem:[#allocation2 + $0x1b8] sm:$0xff] %v1767
      %1832 = vst [vmem:[#allocation2 + $0x1c0] sm:$0xff] %v1768
      %1833 = vst [vmem:[#allocation2 + $0x1c8] sm:$0xff] %v1769
      %1834 = vst [vmem:[#allocation2 + $0x1d0] sm:$0xff] %v1770
      %1835 = vst [vmem:[#allocation2 + $0x1d8] sm:$0xff] %v1771
      %1836 = vst [vmem:[#allocation2 + $0x1e0] sm:$0xff] %v1772
      %1837 = vst [vmem:[#allocation2 + $0x1e8] sm:$0xff] %v1773
      %1838 = vst [vmem:[#allocation2 + $0x1f0] sm:$0xff] %v1774
      %1839 = vst [vmem:[#allocation2 + $0x1f8] sm:$0xff] %v1775
      %v1840 = vld [vmem:[#allocation2] ss:$2 sm:$0xff]
      %s1841 = scalar_lea.vmem [#allocation2], 16
      %v1842 = vld [vmem:[%s1841] ss:$2 sm:$0xff]
      %s1843 = scalar_lea.vmem [#allocation2], 32
      %v1844 = vld [vmem:[%s1843] ss:$2 sm:$0xff]
      %s1845 = scalar_lea.vmem [#allocation2], 48
      %v1846 = vld [vmem:[%s1845] ss:$2 sm:$0xff]
      %s1847 = scalar_lea.vmem [#allocation2], 64
      %v1848 = vld [vmem:[%s1847] ss:$2 sm:$0xff]
      %s1849 = scalar_lea.vmem [#allocation2], 80
      %v1850 = vld [vmem:[%s1849] ss:$2 sm:$0xff]
      %s1851 = scalar_lea.vmem [#allocation2], 96
      %v1852 = vld [vmem:[%s1851] ss:$2 sm:$0xff]
      %s1853 = scalar_lea.vmem [#allocation2], 112
      %v1854 = vld [vmem:[%s1853] ss:$2 sm:$0xff]
      %s1855 = scalar_lea.vmem [#allocation2], 128
      %v1856 = vld [vmem:[%s1855] ss:$2 sm:$0xff]
      %s1857 = scalar_lea.vmem [#allocation2], 144
      %v1858 = vld [vmem:[%s1857] ss:$2 sm:$0xff]
      %s1859 = scalar_lea.vmem [#allocation2], 160
      %v1860 = vld [vmem:[%s1859] ss:$2 sm:$0xff]
      %s1861 = scalar_lea.vmem [#allocation2], 176
      %v1862 = vld [vmem:[%s1861] ss:$2 sm:$0xff]
      %s1863 = scalar_lea.vmem [#allocation2], 192
      %v1864 = vld [vmem:[%s1863] ss:$2 sm:$0xff]
      %s1865 = scalar_lea.vmem [#allocation2], 208
      %v1866 = vld [vmem:[%s1865] ss:$2 sm:$0xff]
      %s1867 = scalar_lea.vmem [#allocation2], 224
      %v1868 = vld [vmem:[%s1867] ss:$2 sm:$0xff]
      %s1869 = scalar_lea.vmem [#allocation2], 240
      %v1870 = vld [vmem:[%s1869] ss:$2 sm:$0xff]
      %s1871 = scalar_lea.vmem [#allocation2], 256
      %v1872 = vld [vmem:[%s1871] ss:$2 sm:$0xff]
      %s1873 = scalar_lea.vmem [#allocation2], 272
      %v1874 = vld [vmem:[%s1873] ss:$2 sm:$0xff]
      %s1875 = scalar_lea.vmem [#allocation2], 288
      %v1876 = vld [vmem:[%s1875] ss:$2 sm:$0xff]
      %s1877 = scalar_lea.vmem [#allocation2], 304
      %v1878 = vld [vmem:[%s1877] ss:$2 sm:$0xff]
      %s1879 = scalar_lea.vmem [#allocation2], 320
      %v1880 = vld [vmem:[%s1879] ss:$2 sm:$0xff]
      %s1881 = scalar_lea.vmem [#allocation2], 336
      %v1882 = vld [vmem:[%s1881] ss:$2 sm:$0xff]
      %s1883 = scalar_lea.vmem [#allocation2], 352
      %v1884 = vld [vmem:[%s1883] ss:$2 sm:$0xff]
      %s1885 = scalar_lea.vmem [#allocation2], 368
      %v1886 = vld [vmem:[%s1885] ss:$2 sm:$0xff]
      %s1887 = scalar_lea.vmem [#allocation2], 384
      %v1888 = vld [vmem:[%s1887] ss:$2 sm:$0xff]
      %s1889 = scalar_lea.vmem [#allocation2], 400
      %v1890 = vld [vmem:[%s1889] ss:$2 sm:$0xff]
      %s1891 = scalar_lea.vmem [#allocation2], 416
      %v1892 = vld [vmem:[%s1891] ss:$2 sm:$0xff]
      %s1893 = scalar_lea.vmem [#allocation2], 432
      %v1894 = vld [vmem:[%s1893] ss:$2 sm:$0xff]
      %s1895 = scalar_lea.vmem [#allocation2], 448
      %v1896 = vld [vmem:[%s1895] ss:$2 sm:$0xff]
      %s1897 = scalar_lea.vmem [#allocation2], 464
      %v1898 = vld [vmem:[%s1897] ss:$2 sm:$0xff]
      %s1899 = scalar_lea.vmem [#allocation2], 480
      %v1900 = vld [vmem:[%s1899] ss:$2 sm:$0xff]
      %s1901 = scalar_lea.vmem [#allocation2], 496
      %v1902 = vld [vmem:[%s1901] ss:$2 sm:$0xff]
      %s1903 = scalar_lea.vmem [#allocation2], 1
      %v1904 = vld [vmem:[%s1903] ss:$2 sm:$0xff]
      %s1905 = scalar_lea.vmem [#allocation2], 17
      %v1906 = vld [vmem:[%s1905] ss:$2 sm:$0xff]
      %s1907 = scalar_lea.vmem [#allocation2], 33
      %v1908 = vld [vmem:[%s1907] ss:$2 sm:$0xff]
      %s1909 = scalar_lea.vmem [#allocation2], 49
      %v1910 = vld [vmem:[%s1909] ss:$2 sm:$0xff]
      %s1911 = scalar_lea.vmem [#allocation2], 65
      %v1912 = vld [vmem:[%s1911] ss:$2 sm:$0xff]
      %s1913 = scalar_lea.vmem [#allocation2], 81
      %v1914 = vld [vmem:[%s1913] ss:$2 sm:$0xff]
      %s1915 = scalar_lea.vmem [#allocation2], 97
      %v1916 = vld [vmem:[%s1915] ss:$2 sm:$0xff]
      %s1917 = scalar_lea.vmem [#allocation2], 113
      %v1918 = vld [vmem:[%s1917] ss:$2 sm:$0xff]
      %s1919 = scalar_lea.vmem [#allocation2], 129
      %v1920 = vld [vmem:[%s1919] ss:$2 sm:$0xff]
      %s1921 = scalar_lea.vmem [#allocation2], 145
      %v1922 = vld [vmem:[%s1921] ss:$2 sm:$0xff]
      %s1923 = scalar_lea.vmem [#allocation2], 161
      %v1924 = vld [vmem:[%s1923] ss:$2 sm:$0xff]
      %s1925 = scalar_lea.vmem [#allocation2], 177
      %v1926 = vld [vmem:[%s1925] ss:$2 sm:$0xff]
      %s1927 = scalar_lea.vmem [#allocation2], 193
      %v1928 = vld [vmem:[%s1927] ss:$2 sm:$0xff]
      %s1929 = scalar_lea.vmem [#allocation2], 209
      %v1930 = vld [vmem:[%s1929] ss:$2 sm:$0xff]
      %s1931 = scalar_lea.vmem [#allocation2], 225
      %v1932 = vld [vmem:[%s1931] ss:$2 sm:$0xff]
      %s1933 = scalar_lea.vmem [#allocation2], 241
      %v1934 = vld [vmem:[%s1933] ss:$2 sm:$0xff]
      %s1935 = scalar_lea.vmem [#allocation2], 257
      %v1936 = vld [vmem:[%s1935] ss:$2 sm:$0xff]
      %s1937 = scalar_lea.vmem [#allocation2], 273
      %v1938 = vld [vmem:[%s1937] ss:$2 sm:$0xff]
      %s1939 = scalar_lea.vmem [#allocation2], 289
      %v1940 = vld [vmem:[%s1939] ss:$2 sm:$0xff]
      %s1941 = scalar_lea.vmem [#allocation2], 305
      %v1942 = vld [vmem:[%s1941] ss:$2 sm:$0xff]
      %s1943 = scalar_lea.vmem [#allocation2], 321
      %v1944 = vld [vmem:[%s1943] ss:$2 sm:$0xff]
      %s1945 = scalar_lea.vmem [#allocation2], 337
      %v1946 = vld [vmem:[%s1945] ss:$2 sm:$0xff]
      %s1947 = scalar_lea.vmem [#allocation2], 353
      %v1948 = vld [vmem:[%s1947] ss:$2 sm:$0xff]
      %s1949 = scalar_lea.vmem [#allocation2], 369
      %v1950 = vld [vmem:[%s1949] ss:$2 sm:$0xff]
      %s1951 = scalar_lea.vmem [#allocation2], 385
      %v1952 = vld [vmem:[%s1951] ss:$2 sm:$0xff]
      %s1953 = scalar_lea.vmem [#allocation2], 401
      %v1954 = vld [vmem:[%s1953] ss:$2 sm:$0xff]
      %s1955 = scalar_lea.vmem [#allocation2], 417
      %v1956 = vld [vmem:[%s1955] ss:$2 sm:$0xff]
      %s1957 = scalar_lea.vmem [#allocation2], 433
      %v1958 = vld [vmem:[%s1957] ss:$2 sm:$0xff]
      %s1959 = scalar_lea.vmem [#allocation2], 449
      %v1960 = vld [vmem:[%s1959] ss:$2 sm:$0xff]
      %s1961 = scalar_lea.vmem [#allocation2], 465
      %v1962 = vld [vmem:[%s1961] ss:$2 sm:$0xff]
      %s1963 = scalar_lea.vmem [#allocation2], 481
      %v1964 = vld [vmem:[%s1963] ss:$2 sm:$0xff]
      %s1965 = scalar_lea.vmem [#allocation2], 497
      %v1966 = vld [vmem:[%s1965] ss:$2 sm:$0xff]
      %v1967 = vmax.f32 %v1840, %v1904
      %v1968 = vmax.f32 %v1842, %v1906
      %v1969 = vmax.f32 %v1844, %v1908
      %v1970 = vmax.f32 %v1846, %v1910
      %v1971 = vmax.f32 %v1848, %v1912
      %v1972 = vmax.f32 %v1850, %v1914
      %v1973 = vmax.f32 %v1852, %v1916
      %v1974 = vmax.f32 %v1854, %v1918
      %v1975 = vmax.f32 %v1856, %v1920
      %v1976 = vmax.f32 %v1858, %v1922
      %v1977 = vmax.f32 %v1860, %v1924
      %v1978 = vmax.f32 %v1862, %v1926
      %v1979 = vmax.f32 %v1864, %v1928
      %v1980 = vmax.f32 %v1866, %v1930
      %v1981 = vmax.f32 %v1868, %v1932
      %v1982 = vmax.f32 %v1870, %v1934
      %v1983 = vmax.f32 %v1872, %v1936
      %v1984 = vmax.f32 %v1874, %v1938
      %v1985 = vmax.f32 %v1876, %v1940
      %v1986 = vmax.f32 %v1878, %v1942
      %v1987 = vmax.f32 %v1880, %v1944
      %v1988 = vmax.f32 %v1882, %v1946
      %v1989 = vmax.f32 %v1884, %v1948
      %v1990 = vmax.f32 %v1886, %v1950
      %v1991 = vmax.f32 %v1888, %v1952
      %v1992 = vmax.f32 %v1890, %v1954
      %v1993 = vmax.f32 %v1892, %v1956
      %v1994 = vmax.f32 %v1894, %v1958
      %v1995 = vmax.f32 %v1896, %v1960
      %v1996 = vmax.f32 %v1898, %v1962
      %v1997 = vmax.f32 %v1900, %v1964
      %v1998 = vmax.f32 %v1902, %v1966
      %v1999 = vpack.c.bf16 %v1967, %v1967
      %v2000 = vpack.c.bf16 %v1968, %v1968
      %v2001 = vpack.c.bf16 %v1969, %v1969
      %v2002 = vpack.c.bf16 %v1970, %v1970
      %v2003 = vpack.c.bf16 %v1971, %v1971
      %v2004 = vpack.c.bf16 %v1972, %v1972
      %v2005 = vpack.c.bf16 %v1973, %v1973
      %v2006 = vpack.c.bf16 %v1974, %v1974
      %v2007 = vpack.c.bf16 %v1975, %v1975
      %v2008 = vpack.c.bf16 %v1976, %v1976
      %v2009 = vpack.c.bf16 %v1977, %v1977
      %v2010 = vpack.c.bf16 %v1978, %v1978
      %v2011 = vpack.c.bf16 %v1979, %v1979
      %v2012 = vpack.c.bf16 %v1980, %v1980
      %v2013 = vpack.c.bf16 %v1981, %v1981
      %v2014 = vpack.c.bf16 %v1982, %v1982
      %v2015 = vpack.c.bf16 %v1983, %v1983
      %v2016 = vpack.c.bf16 %v1984, %v1984
      %v2017 = vpack.c.bf16 %v1985, %v1985
      %v2018 = vpack.c.bf16 %v1986, %v1986
      %v2019 = vpack.c.bf16 %v1987, %v1987
      %v2020 = vpack.c.bf16 %v1988, %v1988
      %v2021 = vpack.c.bf16 %v1989, %v1989
      %v2022 = vpack.c.bf16 %v1990, %v1990
      %v2023 = vpack.c.bf16 %v1991, %v1991
      %v2024 = vpack.c.bf16 %v1992, %v1992
      %v2025 = vpack.c.bf16 %v1993, %v1993
      %v2026 = vpack.c.bf16 %v1994, %v1994
      %v2027 = vpack.c.bf16 %v1995, %v1995
      %v2028 = vpack.c.bf16 %v1996, %v1996
      %v2029 = vpack.c.bf16 %v1997, %v1997
      %v2030 = vpack.c.bf16 %v1998, %v1998
      %vm2031 = vsmask.f32 256
      %vm2032 = vsmask.f32 4368
      %vm2033 = vmor %vm2031, %vm2032
      %v2035 = vshrl.u32 %v1999, 16
      %v2037 = vrot.slane %v2035, 7
      %v2038 = vshll.u32 %v1999, 16
      %v2040 = vor.u32 %v2037, %v2038
      %v2041 = vrot.slane %v2037, 4
      %v2043 = vshrl.u32 %v2000, 16
      %v2045 = vrot.slane %v2043, 7
      %v2046 = vshll.u32 %v2000, 16
      %v2048 = vor.u32 %v2045, %v2046
      %v2049 = vsel %vm2033, %v2041, %v2048
      %v2050 = vrot.slane %v2045, 4
      %v2052 = vshrl.u32 %v2001, 16
      %v2054 = vrot.slane %v2052, 7
      %v2055 = vshll.u32 %v2001, 16
      %v2057 = vor.u32 %v2054, %v2055
      %v2058 = vrot.slane %v2054, 4
      %v2060 = vshrl.u32 %v2002, 16
      %v2062 = vrot.slane %v2060, 7
      %v2063 = vshll.u32 %v2002, 16
      %v2065 = vor.u32 %v2062, %v2063
      %v2066 = vsel %vm2033, %v2058, %v2065
      %v2067 = vrot.slane %v2062, 4
      %v2069 = vshrl.u32 %v2003, 16
      %v2071 = vrot.slane %v2069, 7
      %v2072 = vshll.u32 %v2003, 16
      %v2074 = vor.u32 %v2071, %v2072
      %v2075 = vrot.slane %v2071, 4
      %v2077 = vshrl.u32 %v2004, 16
      %v2079 = vrot.slane %v2077, 7
      %v2080 = vshll.u32 %v2004, 16
      %v2082 = vor.u32 %v2079, %v2080
      %v2083 = vsel %vm2033, %v2075, %v2082
      %v2084 = vrot.slane %v2079, 4
      %v2086 = vshrl.u32 %v2005, 16
      %v2088 = vrot.slane %v2086, 7
      %v2089 = vshll.u32 %v2005, 16
      %v2091 = vor.u32 %v2088, %v2089
      %v2092 = vrot.slane %v2088, 4
      %v2094 = vshrl.u32 %v2006, 16
      %v2096 = vrot.slane %v2094, 7
      %v2097 = vshll.u32 %v2006, 16
      %v2099 = vor.u32 %v2096, %v2097
      %v2100 = vsel %vm2033, %v2092, %v2099
      %v2101 = vrot.slane %v2096, 4
      %v2103 = vshrl.u32 %v2007, 16
      %v2105 = vrot.slane %v2103, 7
      %v2106 = vshll.u32 %v2007, 16
      %v2108 = vor.u32 %v2105, %v2106
      %v2109 = vrot.slane %v2105, 4
      %v2111 = vshrl.u32 %v2008, 16
      %v2113 = vrot.slane %v2111, 7
      %v2114 = vshll.u32 %v2008, 16
      %v2116 = vor.u32 %v2113, %v2114
      %v2117 = vsel %vm2033, %v2109, %v2116
      %v2118 = vrot.slane %v2113, 4
      %v2120 = vshrl.u32 %v2009, 16
      %v2122 = vrot.slane %v2120, 7
      %v2123 = vshll.u32 %v2009, 16
      %v2125 = vor.u32 %v2122, %v2123
      %v2126 = vrot.slane %v2122, 4
      %v2128 = vshrl.u32 %v2010, 16
      %v2130 = vrot.slane %v2128, 7
      %v2131 = vshll.u32 %v2010, 16
      %v2133 = vor.u32 %v2130, %v2131
      %v2134 = vsel %vm2033, %v2126, %v2133
      %v2135 = vrot.slane %v2130, 4
      %v2137 = vshrl.u32 %v2011, 16
      %v2139 = vrot.slane %v2137, 7
      %v2140 = vshll.u32 %v2011, 16
      %v2142 = vor.u32 %v2139, %v2140
      %v2143 = vrot.slane %v2139, 4
      %v2145 = vshrl.u32 %v2012, 16
      %v2147 = vrot.slane %v2145, 7
      %v2148 = vshll.u32 %v2012, 16
      %v2150 = vor.u32 %v2147, %v2148
      %v2151 = vsel %vm2033, %v2143, %v2150
      %v2152 = vrot.slane %v2147, 4
      %v2154 = vshrl.u32 %v2013, 16
      %v2156 = vrot.slane %v2154, 7
      %v2157 = vshll.u32 %v2013, 16
      %v2159 = vor.u32 %v2156, %v2157
      %v2160 = vrot.slane %v2156, 4
      %v2162 = vshrl.u32 %v2014, 16
      %v2164 = vrot.slane %v2162, 7
      %v2165 = vshll.u32 %v2014, 16
      %v2167 = vor.u32 %v2164, %v2165
      %v2168 = vsel %vm2033, %v2160, %v2167
      %v2169 = vrot.slane %v2164, 4
      %v2171 = vshrl.u32 %v2015, 16
      %v2173 = vrot.slane %v2171, 7
      %v2174 = vshll.u32 %v2015, 16
      %v2176 = vor.u32 %v2173, %v2174
      %v2177 = vrot.slane %v2173, 4
      %v2179 = vshrl.u32 %v2016, 16
      %v2181 = vrot.slane %v2179, 7
      %v2182 = vshll.u32 %v2016, 16
      %v2184 = vor.u32 %v2181, %v2182
      %v2185 = vsel %vm2033, %v2177, %v2184
      %v2186 = vrot.slane %v2181, 4
      %v2188 = vshrl.u32 %v2017, 16
      %v2190 = vrot.slane %v2188, 7
      %v2191 = vshll.u32 %v2017, 16
      %v2193 = vor.u32 %v2190, %v2191
      %v2194 = vrot.slane %v2190, 4
      %v2196 = vshrl.u32 %v2018, 16
      %v2198 = vrot.slane %v2196, 7
      %v2199 = vshll.u32 %v2018, 16
      %v2201 = vor.u32 %v2198, %v2199
      %v2202 = vsel %vm2033, %v2194, %v2201
      %v2203 = vrot.slane %v2198, 4
      %v2205 = vshrl.u32 %v2019, 16
      %v2207 = vrot.slane %v2205, 7
      %v2208 = vshll.u32 %v2019, 16
      %v2210 = vor.u32 %v2207, %v2208
      %v2211 = vrot.slane %v2207, 4
      %v2213 = vshrl.u32 %v2020, 16
      %v2215 = vrot.slane %v2213, 7
      %v2216 = vshll.u32 %v2020, 16
      %v2218 = vor.u32 %v2215, %v2216
      %v2219 = vsel %vm2033, %v2211, %v2218
      %v2220 = vrot.slane %v2215, 4
      %v2222 = vshrl.u32 %v2021, 16
      %v2224 = vrot.slane %v2222, 7
      %v2225 = vshll.u32 %v2021, 16
      %v2227 = vor.u32 %v2224, %v2225
      %v2228 = vrot.slane %v2224, 4
      %v2230 = vshrl.u32 %v2022, 16
      %v2232 = vrot.slane %v2230, 7
      %v2233 = vshll.u32 %v2022, 16
      %v2235 = vor.u32 %v2232, %v2233
      %v2236 = vsel %vm2033, %v2228, %v2235
      %v2237 = vrot.slane %v2232, 4
      %v2239 = vshrl.u32 %v2023, 16
      %v2241 = vrot.slane %v2239, 7
      %v2242 = vshll.u32 %v2023, 16
      %v2244 = vor.u32 %v2241, %v2242
      %v2245 = vrot.slane %v2241, 4
      %v2247 = vshrl.u32 %v2024, 16
      %v2249 = vrot.slane %v2247, 7
      %v2250 = vshll.u32 %v2024, 16
      %v2252 = vor.u32 %v2249, %v2250
      %v2253 = vsel %vm2033, %v2245, %v2252
      %v2254 = vrot.slane %v2249, 4
      %v2256 = vshrl.u32 %v2025, 16
      %v2258 = vrot.slane %v2256, 7
      %v2259 = vshll.u32 %v2025, 16
      %v2261 = vor.u32 %v2258, %v2259
      %v2262 = vrot.slane %v2258, 4
      %v2264 = vshrl.u32 %v2026, 16
      %v2266 = vrot.slane %v2264, 7
      %v2267 = vshll.u32 %v2026, 16
      %v2269 = vor.u32 %v2266, %v2267
      %v2270 = vsel %vm2033, %v2262, %v2269
      %v2271 = vrot.slane %v2266, 4
      %v2273 = vshrl.u32 %v2027, 16
      %v2275 = vrot.slane %v2273, 7
      %v2276 = vshll.u32 %v2027, 16
      %v2278 = vor.u32 %v2275, %v2276
      %v2279 = vrot.slane %v2275, 4
      %v2281 = vshrl.u32 %v2028, 16
      %v2283 = vrot.slane %v2281, 7
      %v2284 = vshll.u32 %v2028, 16
      %v2286 = vor.u32 %v2283, %v2284
      %v2287 = vsel %vm2033, %v2279, %v2286
      %v2288 = vrot.slane %v2283, 4
      %v2290 = vshrl.u32 %v2029, 16
      %v2292 = vrot.slane %v2290, 7
      %v2293 = vshll.u32 %v2029, 16
      %v2295 = vor.u32 %v2292, %v2293
      %v2296 = vrot.slane %v2292, 4
      %v2298 = vshrl.u32 %v2030, 16
      %v2300 = vrot.slane %v2298, 7
      %v2301 = vshll.u32 %v2030, 16
      %v2303 = vor.u32 %v2300, %v2301
      %v2304 = vsel %vm2033, %v2296, %v2303
      %v2305 = vrot.slane %v2300, 4
      %s2354 = scalar_lea.vmem [#allocation3], 12
      %vm2355 = vcmask 1043456
      %vm2356 = vsmask.f32 7938
      %vm2357 = vmand %vm2355, %vm2356
      %v2358 = vld [vmem:[%s2354] sm:$0xf]
      %v2359 = vsel %vm2357, %v2040, %v2358
      %2360 = vst [vmem:[%s2354] sm:$0xf] %v2359
      %2361 = vst [vmem:[%s2354 + $0x4] sm:$0xf] %v2049
      %vm2362 = vcmask 1040384
      %vm2363 = vmand %vm2362, %vm2031
      %v2364 = vld [vmem:[%s2354 + $0x8] sm:$0x1]
      %v2365 = vsel %vm2363, %v2050, %v2364
      %2366 = vst [vmem:[%s2354 + $0x8] sm:$0x1] %v2365
      %v2367 = vld [vmem:[%s2354 + $0xc] sm:$0xf]
      %v2368 = vsel %vm2357, %v2057, %v2367
      %2369 = vst [vmem:[%s2354 + $0xc] sm:$0xf] %v2368
      %2370 = vst [vmem:[%s2354 + $0x10] sm:$0xf] %v2066
      %v2371 = vld [vmem:[%s2354 + $0x14] sm:$0x1]
      %v2372 = vsel %vm2363, %v2067, %v2371
      %2373 = vst [vmem:[%s2354 + $0x14] sm:$0x1] %v2372
      %v2374 = vld [vmem:[%s2354 + $0x18] sm:$0xf]
      %v2375 = vsel %vm2357, %v2074, %v2374
      %2376 = vst [vmem:[%s2354 + $0x18] sm:$0xf] %v2375
      %2377 = vst [vmem:[%s2354 + $0x1c] sm:$0xf] %v2083
      %v2378 = vld [vmem:[%s2354 + $0x20] sm:$0x1]
      %v2379 = vsel %vm2363, %v2084, %v2378
      %2380 = vst [vmem:[%s2354 + $0x20] sm:$0x1] %v2379
      %v2381 = vld [vmem:[%s2354 + $0x24] sm:$0xf]
      %v2382 = vsel %vm2357, %v2091, %v2381
      %2383 = vst [vmem:[%s2354 + $0x24] sm:$0xf] %v2382
      %2384 = vst [vmem:[%s2354 + $0x28] sm:$0xf] %v2100
      %v2385 = vld [vmem:[%s2354 + $0x2c] sm:$0x1]
      %v2386 = vsel %vm2363, %v2101, %v2385
      %2387 = vst [vmem:[%s2354 + $0x2c] sm:$0x1] %v2386
      %v2388 = vld [vmem:[%s2354 + $0x30] sm:$0xf]
      %v2389 = vsel %vm2357, %v2108, %v2388
      %2390 = vst [vmem:[%s2354 + $0x30] sm:$0xf] %v2389
      %2391 = vst [vmem:[%s2354 + $0x34] sm:$0xf] %v2117
      %v2392 = vld [vmem:[%s2354 + $0x38] sm:$0x1]
      %v2393 = vsel %vm2363, %v2118, %v2392
      %2394 = vst [vmem:[%s2354 + $0x38] sm:$0x1] %v2393
      %v2395 = vld [vmem:[%s2354 + $0x3c] sm:$0xf]
      %v2396 = vsel %vm2357, %v2125, %v2395
      %2397 = vst [vmem:[%s2354 + $0x3c] sm:$0xf] %v2396
      %2398 = vst [vmem:[%s2354 + $0x40] sm:$0xf] %v2134
      %v2399 = vld [vmem:[%s2354 + $0x44] sm:$0x1]
      %v2400 = vsel %vm2363, %v2135, %v2399
      %2401 = vst [vmem:[%s2354 + $0x44] sm:$0x1] %v2400
      %v2402 = vld [vmem:[%s2354 + $0x48] sm:$0xf]
      %v2403 = vsel %vm2357, %v2142, %v2402
      %2404 = vst [vmem:[%s2354 + $0x48] sm:$0xf] %v2403
      %2405 = vst [vmem:[%s2354 + $0x4c] sm:$0xf] %v2151
      %v2406 = vld [vmem:[%s2354 + $0x50] sm:$0x1]
      %v2407 = vsel %vm2363, %v2152, %v2406
      %2408 = vst [vmem:[%s2354 + $0x50] sm:$0x1] %v2407
      %v2409 = vld [vmem:[%s2354 + $0x54] sm:$0xf]
      %v2410 = vsel %vm2357, %v2159, %v2409
      %2411 = vst [vmem:[%s2354 + $0x54] sm:$0xf] %v2410
      %2412 = vst [vmem:[%s2354 + $0x58] sm:$0xf] %v2168
      %v2413 = vld [vmem:[%s2354 + $0x5c] sm:$0x1]
      %v2414 = vsel %vm2363, %v2169, %v2413
      %2415 = vst [vmem:[%s2354 + $0x5c] sm:$0x1] %v2414
      %v2416 = vld [vmem:[%s2354 + $0x60] sm:$0xf]
      %v2417 = vsel %vm2357, %v2176, %v2416
      %2418 = vst [vmem:[%s2354 + $0x60] sm:$0xf] %v2417
      %2419 = vst [vmem:[%s2354 + $0x64] sm:$0xf] %v2185
      %v2420 = vld [vmem:[%s2354 + $0x68] sm:$0x1]
      %v2421 = vsel %vm2363, %v2186, %v2420
      %2422 = vst [vmem:[%s2354 + $0x68] sm:$0x1] %v2421
      %v2423 = vld [vmem:[%s2354 + $0x6c] sm:$0xf]
      %v2424 = vsel %vm2357, %v2193, %v2423
      %2425 = vst [vmem:[%s2354 + $0x6c] sm:$0xf] %v2424
      %2426 = vst [vmem:[%s2354 + $0x70] sm:$0xf] %v2202
      %v2427 = vld [vmem:[%s2354 + $0x74] sm:$0x1]
      %v2428 = vsel %vm2363, %v2203, %v2427
      %2429 = vst [vmem:[%s2354 + $0x74] sm:$0x1] %v2428
      %v2430 = vld [vmem:[%s2354 + $0x78] sm:$0xf]
      %v2431 = vsel %vm2357, %v2210, %v2430
      %2432 = vst [vmem:[%s2354 + $0x78] sm:$0xf] %v2431
      %2433 = vst [vmem:[%s2354 + $0x7c] sm:$0xf] %v2219
      %v2434 = vld [vmem:[%s2354 + $0x80] sm:$0x1]
      %v2435 = vsel %vm2363, %v2220, %v2434
      %2436 = vst [vmem:[%s2354 + $0x80] sm:$0x1] %v2435
      %v2437 = vld [vmem:[%s2354 + $0x84] sm:$0xf]
      %v2438 = vsel %vm2357, %v2227, %v2437
      %2439 = vst [vmem:[%s2354 + $0x84] sm:$0xf] %v2438
      %2440 = vst [vmem:[%s2354 + $0x88] sm:$0xf] %v2236
      %v2441 = vld [vmem:[%s2354 + $0x8c] sm:$0x1]
      %v2442 = vsel %vm2363, %v2237, %v2441
      %2443 = vst [vmem:[%s2354 + $0x8c] sm:$0x1] %v2442
      %v2444 = vld [vmem:[%s2354 + $0x90] sm:$0xf]
      %v2445 = vsel %vm2357, %v2244, %v2444
      %2446 = vst [vmem:[%s2354 + $0x90] sm:$0xf] %v2445
      %2447 = vst [vmem:[%s2354 + $0x94] sm:$0xf] %v2253
      %v2448 = vld [vmem:[%s2354 + $0x98] sm:$0x1]
      %v2449 = vsel %vm2363, %v2254, %v2448
      %2450 = vst [vmem:[%s2354 + $0x98] sm:$0x1] %v2449
      %v2451 = vld [vmem:[%s2354 + $0x9c] sm:$0xf]
      %v2452 = vsel %vm2357, %v2261, %v2451
      %2453 = vst [vmem:[%s2354 + $0x9c] sm:$0xf] %v2452
      %2454 = vst [vmem:[%s2354 + $0xa0] sm:$0xf] %v2270
      %v2455 = vld [vmem:[%s2354 + $0xa4] sm:$0x1]
      %v2456 = vsel %vm2363, %v2271, %v2455
      %2457 = vst [vmem:[%s2354 + $0xa4] sm:$0x1] %v2456
      %v2458 = vld [vmem:[%s2354 + $0xa8] sm:$0xf]
      %v2459 = vsel %vm2357, %v2278, %v2458
      %2460 = vst [vmem:[%s2354 + $0xa8] sm:$0xf] %v2459
      %2461 = vst [vmem:[%s2354 + $0xac] sm:$0xf] %v2287
      %v2462 = vld [vmem:[%s2354 + $0xb0] sm:$0x1]
      %v2463 = vsel %vm2363, %v2288, %v2462
      %2464 = vst [vmem:[%s2354 + $0xb0] sm:$0x1] %v2463
      %v2465 = vld [vmem:[%s2354 + $0xb4] sm:$0xf]
      %v2466 = vsel %vm2357, %v2295, %v2465
      %2467 = vst [vmem:[%s2354 + $0xb4] sm:$0xf] %v2466
      %2468 = vst [vmem:[%s2354 + $0xb8] sm:$0xf] %v2304
      %v2469 = vld [vmem:[%s2354 + $0xbc] sm:$0x1]
      %v2470 = vsel %vm2363, %v2305, %v2469
      %2471 = vst [vmem:[%s2354 + $0xbc] sm:$0x1] %v2470
      %v2472 = vld [vmem:[#allocation3] sm:$0xf]
      %v2473 = vld [vmem:[#allocation3 + $0x4] sm:$0xf]
      %v2474 = vld [vmem:[#allocation3 + $0xc] sm:$0xf]
      %v2475 = vld [vmem:[#allocation3 + $0x10] sm:$0xf]
      %v2476 = vld [vmem:[#allocation3 + $0x18] sm:$0xf]
      %v2477 = vld [vmem:[#allocation3 + $0x1c] sm:$0xf]
      %v2478 = vld [vmem:[#allocation3 + $0x24] sm:$0xf]
      %v2479 = vld [vmem:[#allocation3 + $0x28] sm:$0xf]
      %v2480 = vld [vmem:[#allocation3 + $0x30] sm:$0xf]
      %v2481 = vld [vmem:[#allocation3 + $0x34] sm:$0xf]
      %v2482 = vld [vmem:[#allocation3 + $0x3c] sm:$0xf]
      %v2483 = vld [vmem:[#allocation3 + $0x40] sm:$0xf]
      %v2484 = vld [vmem:[#allocation3 + $0x48] sm:$0xf]
      %v2485 = vld [vmem:[#allocation3 + $0x4c] sm:$0xf]
      %v2486 = vld [vmem:[#allocation3 + $0x54] sm:$0xf]
      %v2487 = vld [vmem:[#allocation3 + $0x58] sm:$0xf]
      %v2488 = vld [vmem:[#allocation3 + $0x60] sm:$0xf]
      %v2489 = vld [vmem:[#allocation3 + $0x64] sm:$0xf]
      %v2490 = vld [vmem:[#allocation3 + $0x6c] sm:$0xf]
      %v2491 = vld [vmem:[#allocation3 + $0x70] sm:$0xf]
      %v2492 = vld [vmem:[#allocation3 + $0x78] sm:$0xf]
      %v2493 = vld [vmem:[#allocation3 + $0x7c] sm:$0xf]
      %v2494 = vld [vmem:[#allocation3 + $0x84] sm:$0xf]
      %v2495 = vld [vmem:[#allocation3 + $0x88] sm:$0xf]
      %v2496 = vld [vmem:[#allocation3 + $0x90] sm:$0xf]
      %v2497 = vld [vmem:[#allocation3 + $0x94] sm:$0xf]
      %v2498 = vld [vmem:[#allocation3 + $0x9c] sm:$0xf]
      %v2499 = vld [vmem:[#allocation3 + $0xa0] sm:$0xf]
      %v2500 = vld [vmem:[#allocation3 + $0xa8] sm:$0xf]
      %v2501 = vld [vmem:[#allocation3 + $0xac] sm:$0xf]
      %v2502 = vld [vmem:[#allocation3 + $0xb4] sm:$0xf]
      %v2503 = vld [vmem:[#allocation3 + $0xb8] sm:$0xf]
      %2504 = vst [vmem:[#allocation4] sm:$0xf] %v2472
      %2505 = vst [vmem:[#allocation4 + $0x24] sm:$0xf] %v2473
      %2506 = vst [vmem:[#allocation4 + $0x48] sm:$0xf] %v2474
      %2507 = vst [vmem:[#allocation4 + $0x6c] sm:$0xf] %v2475
      %2508 = vst [vmem:[#allocation4 + $0x90] sm:$0xf] %v2476
      %2509 = vst [vmem:[#allocation4 + $0xb4] sm:$0xf] %v2477
      %2510 = vst [vmem:[#allocation4 + $0xd8] sm:$0xf] %v2478
      %2511 = vst [vmem:[#allocation4 + $0xfc] sm:$0xf] %v2479
      %2512 = vst [vmem:[#allocation4 + $0x120] sm:$0xf] %v2480
      %2513 = vst [vmem:[#allocation4 + $0x144] sm:$0xf] %v2481
      %2514 = vst [vmem:[#allocation4 + $0x168] sm:$0xf] %v2482
      %2515 = vst [vmem:[#allocation4 + $0x18c] sm:$0xf] %v2483
      %2516 = vst [vmem:[#allocation4 + $0x1b0] sm:$0xf] %v2484
      %2517 = vst [vmem:[#allocation4 + $0x1d4] sm:$0xf] %v2485
      %2518 = vst [vmem:[#allocation4 + $0x1f8] sm:$0xf] %v2486
      %2519 = vst [vmem:[#allocation4 + $0x21c] sm:$0xf] %v2487
      %2520 = vst [vmem:[#allocation4 + $0x240] sm:$0xf] %v2488
      %2521 = vst [vmem:[#allocation4 + $0x264] sm:$0xf] %v2489
      %2522 = vst [vmem:[#allocation4 + $0x288] sm:$0xf] %v2490
      %2523 = vst [vmem:[#allocation4 + $0x2ac] sm:$0xf] %v2491
      %2524 = vst [vmem:[#allocation4 + $0x2d0] sm:$0xf] %v2492
      %2525 = vst [vmem:[#allocation4 + $0x2f4] sm:$0xf] %v2493
      %2526 = vst [vmem:[#allocation4 + $0x318] sm:$0xf] %v2494
      %2527 = vst [vmem:[#allocation4 + $0x33c] sm:$0xf] %v2495
      %2528 = vst [vmem:[#allocation4 + $0x360] sm:$0xf] %v2496
      %2529 = vst [vmem:[#allocation4 + $0x384] sm:$0xf] %v2497
      %2530 = vst [vmem:[#allocation4 + $0x3a8] sm:$0xf] %v2498
      %2531 = vst [vmem:[#allocation4 + $0x3cc] sm:$0xf] %v2499
      %2532 = vst [vmem:[#allocation4 + $0x3f0] sm:$0xf] %v2500
      %2533 = vst [vmem:[#allocation4 + $0x414] sm:$0xf] %v2501
      %2534 = vst [vmem:[#allocation4 + $0x438] sm:$0xf] %v2502
      %2535 = vst [vmem:[#allocation4 + $0x45c] sm:$0xf] %v2503
      %v2536 = vld [vmem:[#allocation3] sm:$0xf]
      %v2537 = vld [vmem:[#allocation3 + $0x4] sm:$0xf]
      %v2538 = vld [vmem:[#allocation3 + $0x8] sm:$0x1]
      %v2539 = vld [vmem:[#allocation3 + $0xc] sm:$0xf]
      %v2540 = vld [vmem:[#allocation3 + $0x10] sm:$0xf]
      %v2541 = vld [vmem:[#allocation3 + $0x14] sm:$0x1]
      %v2542 = vld [vmem:[#allocation3 + $0x18] sm:$0xf]
      %v2543 = vld [vmem:[#allocation3 + $0x1c] sm:$0xf]
      %v2544 = vld [vmem:[#allocation3 + $0x20] sm:$0x1]
      %v2545 = vld [vmem:[#allocation3 + $0x24] sm:$0xf]
      %v2546 = vld [vmem:[#allocation3 + $0x28] sm:$0xf]
      %v2547 = vld [vmem:[#allocation3 + $0x2c] sm:$0x1]
      %v2548 = vld [vmem:[#allocation3 + $0x30] sm:$0xf]
      %v2549 = vld [vmem:[#allocation3 + $0x34] sm:$0xf]
      %v2550 = vld [vmem:[#allocation3 + $0x38] sm:$0x1]
      %v2551 = vld [vmem:[#allocation3 + $0x3c] sm:$0xf]
      %v2552 = vld [vmem:[#allocation3 + $0x40] sm:$0xf]
      %v2553 = vld [vmem:[#allocation3 + $0x44] sm:$0x1]
      %v2554 = vld [vmem:[#allocation3 + $0x48] sm:$0xf]
      %v2555 = vld [vmem:[#allocation3 + $0x4c] sm:$0xf]
      %v2556 = vld [vmem:[#allocation3 + $0x50] sm:$0x1]
      %v2557 = vld [vmem:[#allocation3 + $0x54] sm:$0xf]
      %v2558 = vld [vmem:[#allocation3 + $0x58] sm:$0xf]
      %v2559 = vld [vmem:[#allocation3 + $0x5c] sm:$0x1]
      %v2560 = vld [vmem:[#allocation3 + $0x60] sm:$0xf]
      %v2561 = vld [vmem:[#allocation3 + $0x64] sm:$0xf]
      %v2562 = vld [vmem:[#allocation3 + $0x68] sm:$0x1]
      %v2563 = vld [vmem:[#allocation3 + $0x6c] sm:$0xf]
      %v2564 = vld [vmem:[#allocation3 + $0x70] sm:$0xf]
      %v2565 = vld [vmem:[#allocation3 + $0x74] sm:$0x1]
      %v2566 = vld [vmem:[#allocation3 + $0x78] sm:$0xf]
      %v2567 = vld [vmem:[#allocation3 + $0x7c] sm:$0xf]
      %v2568 = vld [vmem:[#allocation3 + $0x80] sm:$0x1]
      %v2569 = vld [vmem:[#allocation3 + $0x84] sm:$0xf]
      %v2570 = vld [vmem:[#allocation3 + $0x88] sm:$0xf]
      %v2571 = vld [vmem:[#allocation3 + $0x8c] sm:$0x1]
      %v2572 = vld [vmem:[#allocation3 + $0x90] sm:$0xf]
      %v2573 = vld [vmem:[#allocation3 + $0x94] sm:$0xf]
      %v2574 = vld [vmem:[#allocation3 + $0x98] sm:$0x1]
      %v2575 = vld [vmem:[#allocation3 + $0x9c] sm:$0xf]
      %v2576 = vld [vmem:[#allocation3 + $0xa0] sm:$0xf]
      %v2577 = vld [vmem:[#allocation3 + $0xa4] sm:$0x1]
      %v2578 = vld [vmem:[#allocation3 + $0xa8] sm:$0xf]
      %v2579 = vld [vmem:[#allocation3 + $0xac] sm:$0xf]
      %v2580 = vld [vmem:[#allocation3 + $0xb0] sm:$0x1]
      %v2581 = vld [vmem:[#allocation3 + $0xb4] sm:$0xf]
      %v2582 = vld [vmem:[#allocation3 + $0xb8] sm:$0xf]
      %v2583 = vld [vmem:[#allocation3 + $0xbc] sm:$0x1]
      %vm2584 = vsmask.f32 3328
      %vm2585 = vsmask.f32 7440
      %vm2586 = vmor %vm2584, %vm2585
      %v2588 = vshrl.u32 %v2536, 16
      %v2590 = vrot.slane %v2588, 4
      %v2591 = vshll.u32 %v2536, 16
      %v2593 = vrot.slane %v2591, 5
      %v2594 = vor.u32 %v2590, %v2593
      %v2595 = vrot.slane %v2594, 4
      %v2597 = vshll.u32 %v2537, 16
      %v2599 = vrot.slane %v2597, 5
      %v2600 = vsel %vm2586, %v2595, %v2599
      %v2601 = vshrl.u32 %v2537, 16
      %v2603 = vrot.slane %v2601, 4
      %v2604 = vor.u32 %v2603, %v2599
      %v2605 = vrot.slane %v2604, 4
      %v2607 = vshll.u32 %v2538, 16
      %v2609 = vrot.slane %v2607, 5
      %v2610 = vsel %vm2586, %v2605, %v2609
      %v2612 = vshrl.u32 %v2539, 16
      %v2614 = vrot.slane %v2612, 4
      %v2615 = vshll.u32 %v2539, 16
      %v2617 = vrot.slane %v2615, 5
      %v2618 = vor.u32 %v2614, %v2617
      %v2619 = vrot.slane %v2618, 4
      %v2621 = vshll.u32 %v2540, 16
      %v2623 = vrot.slane %v2621, 5
      %v2624 = vsel %vm2586, %v2619, %v2623
      %v2625 = vshrl.u32 %v2540, 16
      %v2627 = vrot.slane %v2625, 4
      %v2628 = vor.u32 %v2627, %v2623
      %v2629 = vrot.slane %v2628, 4
      %v2631 = vshll.u32 %v2541, 16
      %v2633 = vrot.slane %v2631, 5
      %v2634 = vsel %vm2586, %v2629, %v2633
      %v2636 = vshrl.u32 %v2542, 16
      %v2638 = vrot.slane %v2636, 4
      %v2639 = vshll.u32 %v2542, 16
      %v2641 = vrot.slane %v2639, 5
      %v2642 = vor.u32 %v2638, %v2641
      %v2643 = vrot.slane %v2642, 4
      %v2645 = vshll.u32 %v2543, 16
      %v2647 = vrot.slane %v2645, 5
      %v2648 = vsel %vm2586, %v2643, %v2647
      %v2649 = vshrl.u32 %v2543, 16
      %v2651 = vrot.slane %v2649, 4
      %v2652 = vor.u32 %v2651, %v2647
      %v2653 = vrot.slane %v2652, 4
      %v2655 = vshll.u32 %v2544, 16
      %v2657 = vrot.slane %v2655, 5
      %v2658 = vsel %vm2586, %v2653, %v2657
      %v2660 = vshrl.u32 %v2545, 16
      %v2662 = vrot.slane %v2660, 4
      %v2663 = vshll.u32 %v2545, 16
      %v2665 = vrot.slane %v2663, 5
      %v2666 = vor.u32 %v2662, %v2665
      %v2667 = vrot.slane %v2666, 4
      %v2669 = vshll.u32 %v2546, 16
      %v2671 = vrot.slane %v2669, 5
      %v2672 = vsel %vm2586, %v2667, %v2671
      %v2673 = vshrl.u32 %v2546, 16
      %v2675 = vrot.slane %v2673, 4
      %v2676 = vor.u32 %v2675, %v2671
      %v2677 = vrot.slane %v2676, 4
      %v2679 = vshll.u32 %v2547, 16
      %v2681 = vrot.slane %v2679, 5
      %v2682 = vsel %vm2586, %v2677, %v2681
      %v2684 = vshrl.u32 %v2548, 16
      %v2686 = vrot.slane %v2684, 4
      %v2687 = vshll.u32 %v2548, 16
      %v2689 = vrot.slane %v2687, 5
      %v2690 = vor.u32 %v2686, %v2689
      %v2691 = vrot.slane %v2690, 4
      %v2693 = vshll.u32 %v2549, 16
      %v2695 = vrot.slane %v2693, 5
      %v2696 = vsel %vm2586, %v2691, %v2695
      %v2697 = vshrl.u32 %v2549, 16
      %v2699 = vrot.slane %v2697, 4
      %v2700 = vor.u32 %v2699, %v2695
      %v2701 = vrot.slane %v2700, 4
      %v2703 = vshll.u32 %v2550, 16
      %v2705 = vrot.slane %v2703, 5
      %v2706 = vsel %vm2586, %v2701, %v2705
      %v2708 = vshrl.u32 %v2551, 16
      %v2710 = vrot.slane %v2708, 4
      %v2711 = vshll.u32 %v2551, 16
      %v2713 = vrot.slane %v2711, 5
      %v2714 = vor.u32 %v2710, %v2713
      %v2715 = vrot.slane %v2714, 4
      %v2717 = vshll.u32 %v2552, 16
      %v2719 = vrot.slane %v2717, 5
      %v2720 = vsel %vm2586, %v2715, %v2719
      %v2721 = vshrl.u32 %v2552, 16
      %v2723 = vrot.slane %v2721, 4
      %v2724 = vor.u32 %v2723, %v2719
      %v2725 = vrot.slane %v2724, 4
      %v2727 = vshll.u32 %v2553, 16
      %v2729 = vrot.slane %v2727, 5
      %v2730 = vsel %vm2586, %v2725, %v2729
      %v2732 = vshrl.u32 %v2554, 16
      %v2734 = vrot.slane %v2732, 4
      %v2735 = vshll.u32 %v2554, 16
      %v2737 = vrot.slane %v2735, 5
      %v2738 = vor.u32 %v2734, %v2737
      %v2739 = vrot.slane %v2738, 4
      %v2741 = vshll.u32 %v2555, 16
      %v2743 = vrot.slane %v2741, 5
      %v2744 = vsel %vm2586, %v2739, %v2743
      %v2745 = vshrl.u32 %v2555, 16
      %v2747 = vrot.slane %v2745, 4
      %v2748 = vor.u32 %v2747, %v2743
      %v2749 = vrot.slane %v2748, 4
      %v2751 = vshll.u32 %v2556, 16
      %v2753 = vrot.slane %v2751, 5
      %v2754 = vsel %vm2586, %v2749, %v2753
      %v2756 = vshrl.u32 %v2557, 16
      %v2758 = vrot.slane %v2756, 4
      %v2759 = vshll.u32 %v2557, 16
      %v2761 = vrot.slane %v2759, 5
      %v2762 = vor.u32 %v2758, %v2761
      %v2763 = vrot.slane %v2762, 4
      %v2765 = vshll.u32 %v2558, 16
      %v2767 = vrot.slane %v2765, 5
      %v2768 = vsel %vm2586, %v2763, %v2767
      %v2769 = vshrl.u32 %v2558, 16
      %v2771 = vrot.slane %v2769, 4
      %v2772 = vor.u32 %v2771, %v2767
      %v2773 = vrot.slane %v2772, 4
      %v2775 = vshll.u32 %v2559, 16
      %v2777 = vrot.slane %v2775, 5
      %v2778 = vsel %vm2586, %v2773, %v2777
      %v2780 = vshrl.u32 %v2560, 16
      %v2782 = vrot.slane %v2780, 4
      %v2783 = vshll.u32 %v2560, 16
      %v2785 = vrot.slane %v2783, 5
      %v2786 = vor.u32 %v2782, %v2785
      %v2787 = vrot.slane %v2786, 4
      %v2789 = vshll.u32 %v2561, 16
      %v2791 = vrot.slane %v2789, 5
      %v2792 = vsel %vm2586, %v2787, %v2791
      %v2793 = vshrl.u32 %v2561, 16
      %v2795 = vrot.slane %v2793, 4
      %v2796 = vor.u32 %v2795, %v2791
      %v2797 = vrot.slane %v2796, 4
      %v2799 = vshll.u32 %v2562, 16
      %v2801 = vrot.slane %v2799, 5
      %v2802 = vsel %vm2586, %v2797, %v2801
      %v2804 = vshrl.u32 %v2563, 16
      %v2806 = vrot.slane %v2804, 4
      %v2807 = vshll.u32 %v2563, 16
      %v2809 = vrot.slane %v2807, 5
      %v2810 = vor.u32 %v2806, %v2809
      %v2811 = vrot.slane %v2810, 4
      %v2813 = vshll.u32 %v2564, 16
      %v2815 = vrot.slane %v2813, 5
      %v2816 = vsel %vm2586, %v2811, %v2815
      %v2817 = vshrl.u32 %v2564, 16
      %v2819 = vrot.slane %v2817, 4
      %v2820 = vor.u32 %v2819, %v2815
      %v2821 = vrot.slane %v2820, 4
      %v2823 = vshll.u32 %v2565, 16
      %v2825 = vrot.slane %v2823, 5
      %v2826 = vsel %vm2586, %v2821, %v2825
      %v2828 = vshrl.u32 %v2566, 16
      %v2830 = vrot.slane %v2828, 4
      %v2831 = vshll.u32 %v2566, 16
      %v2833 = vrot.slane %v2831, 5
      %v2834 = vor.u32 %v2830, %v2833
      %v2835 = vrot.slane %v2834, 4
      %v2837 = vshll.u32 %v2567, 16
      %v2839 = vrot.slane %v2837, 5
      %v2840 = vsel %vm2586, %v2835, %v2839
      %v2841 = vshrl.u32 %v2567, 16
      %v2843 = vrot.slane %v2841, 4
      %v2844 = vor.u32 %v2843, %v2839
      %v2845 = vrot.slane %v2844, 4
      %v2847 = vshll.u32 %v2568, 16
      %v2849 = vrot.slane %v2847, 5
      %v2850 = vsel %vm2586, %v2845, %v2849
      %v2852 = vshrl.u32 %v2569, 16
      %v2854 = vrot.slane %v2852, 4
      %v2855 = vshll.u32 %v2569, 16
      %v2857 = vrot.slane %v2855, 5
      %v2858 = vor.u32 %v2854, %v2857
      %v2859 = vrot.slane %v2858, 4
      %v2861 = vshll.u32 %v2570, 16
      %v2863 = vrot.slane %v2861, 5
      %v2864 = vsel %vm2586, %v2859, %v2863
      %v2865 = vshrl.u32 %v2570, 16
      %v2867 = vrot.slane %v2865, 4
      %v2868 = vor.u32 %v2867, %v2863
      %v2869 = vrot.slane %v2868, 4
      %v2871 = vshll.u32 %v2571, 16
      %v2873 = vrot.slane %v2871, 5
      %v2874 = vsel %vm2586, %v2869, %v2873
      %v2876 = vshrl.u32 %v2572, 16
      %v2878 = vrot.slane %v2876, 4
      %v2879 = vshll.u32 %v2572, 16
      %v2881 = vrot.slane %v2879, 5
      %v2882 = vor.u32 %v2878, %v2881
      %v2883 = vrot.slane %v2882, 4
      %v2885 = vshll.u32 %v2573, 16
      %v2887 = vrot.slane %v2885, 5
      %v2888 = vsel %vm2586, %v2883, %v2887
      %v2889 = vshrl.u32 %v2573, 16
      %v2891 = vrot.slane %v2889, 4
      %v2892 = vor.u32 %v2891, %v2887
      %v2893 = vrot.slane %v2892, 4
      %v2895 = vshll.u32 %v2574, 16
      %v2897 = vrot.slane %v2895, 5
      %v2898 = vsel %vm2586, %v2893, %v2897
      %v2900 = vshrl.u32 %v2575, 16
      %v2902 = vrot.slane %v2900, 4
      %v2903 = vshll.u32 %v2575, 16
      %v2905 = vrot.slane %v2903, 5
      %v2906 = vor.u32 %v2902, %v2905
      %v2907 = vrot.slane %v2906, 4
      %v2909 = vshll.u32 %v2576, 16
      %v2911 = vrot.slane %v2909, 5
      %v2912 = vsel %vm2586, %v2907, %v2911
      %v2913 = vshrl.u32 %v2576, 16
      %v2915 = vrot.slane %v2913, 4
      %v2916 = vor.u32 %v2915, %v2911
      %v2917 = vrot.slane %v2916, 4
      %v2919 = vshll.u32 %v2577, 16
      %v2921 = vrot.slane %v2919, 5
      %v2922 = vsel %vm2586, %v2917, %v2921
      %v2924 = vshrl.u32 %v2578, 16
      %v2926 = vrot.slane %v2924, 4
      %v2927 = vshll.u32 %v2578, 16
      %v2929 = vrot.slane %v2927, 5
      %v2930 = vor.u32 %v2926, %v2929
      %v2931 = vrot.slane %v2930, 4
      %v2933 = vshll.u32 %v2579, 16
      %v2935 = vrot.slane %v2933, 5
      %v2936 = vsel %vm2586, %v2931, %v2935
      %v2937 = vshrl.u32 %v2579, 16
      %v2939 = vrot.slane %v2937, 4
      %v2940 = vor.u32 %v2939, %v2935
      %v2941 = vrot.slane %v2940, 4
      %v2943 = vshll.u32 %v2580, 16
      %v2945 = vrot.slane %v2943, 5
      %v2946 = vsel %vm2586, %v2941, %v2945
      %v2948 = vshrl.u32 %v2581, 16
      %v2950 = vrot.slane %v2948, 4
      %v2951 = vshll.u32 %v2581, 16
      %v2953 = vrot.slane %v2951, 5
      %v2954 = vor.u32 %v2950, %v2953
      %v2955 = vrot.slane %v2954, 4
      %v2957 = vshll.u32 %v2582, 16
      %v2959 = vrot.slane %v2957, 5
      %v2960 = vsel %vm2586, %v2955, %v2959
      %v2961 = vshrl.u32 %v2582, 16
      %v2963 = vrot.slane %v2961, 4
      %v2964 = vor.u32 %v2963, %v2959
      %v2965 = vrot.slane %v2964, 4
      %v2967 = vshll.u32 %v2583, 16
      %v2969 = vrot.slane %v2967, 5
      %v2970 = vsel %vm2586, %v2965, %v2969
      %3003 = vst [vmem:[#allocation4 + $0x4] sm:$0xf] %v2600
      %3004 = vst [vmem:[#allocation4 + $0x28] sm:$0xf] %v2610
      %3005 = vst [vmem:[#allocation4 + $0x4c] sm:$0xf] %v2624
      %3006 = vst [vmem:[#allocation4 + $0x70] sm:$0xf] %v2634
      %3007 = vst [vmem:[#allocation4 + $0x94] sm:$0xf] %v2648
      %3008 = vst [vmem:[#allocation4 + $0xb8] sm:$0xf] %v2658
      %3009 = vst [vmem:[#allocation4 + $0xdc] sm:$0xf] %v2672
      %3010 = vst [vmem:[#allocation4 + $0x100] sm:$0xf] %v2682
      %3011 = vst [vmem:[#allocation4 + $0x124] sm:$0xf] %v2696
      %3012 = vst [vmem:[#allocation4 + $0x148] sm:$0xf] %v2706
      %3013 = vst [vmem:[#allocation4 + $0x16c] sm:$0xf] %v2720
      %3014 = vst [vmem:[#allocation4 + $0x190] sm:$0xf] %v2730
      %3015 = vst [vmem:[#allocation4 + $0x1b4] sm:$0xf] %v2744
      %3016 = vst [vmem:[#allocation4 + $0x1d8] sm:$0xf] %v2754
      %3017 = vst [vmem:[#allocation4 + $0x1fc] sm:$0xf] %v2768
      %3018 = vst [vmem:[#allocation4 + $0x220] sm:$0xf] %v2778
      %3019 = vst [vmem:[#allocation4 + $0x244] sm:$0xf] %v2792
      %3020 = vst [vmem:[#allocation4 + $0x268] sm:$0xf] %v2802
      %3021 = vst [vmem:[#allocation4 + $0x28c] sm:$0xf] %v2816
      %3022 = vst [vmem:[#allocation4 + $0x2b0] sm:$0xf] %v2826
      %3023 = vst [vmem:[#allocation4 + $0x2d4] sm:$0xf] %v2840
      %3024 = vst [vmem:[#allocation4 + $0x2f8] sm:$0xf] %v2850
      %3025 = vst [vmem:[#allocation4 + $0x31c] sm:$0xf] %v2864
      %3026 = vst [vmem:[#allocation4 + $0x340] sm:$0xf] %v2874
      %3027 = vst [vmem:[#allocation4 + $0x364] sm:$0xf] %v2888
      %3028 = vst [vmem:[#allocation4 + $0x388] sm:$0xf] %v2898
      %3029 = vst [vmem:[#allocation4 + $0x3ac] sm:$0xf] %v2912
      %3030 = vst [vmem:[#allocation4 + $0x3d0] sm:$0xf] %v2922
      %3031 = vst [vmem:[#allocation4 + $0x3f4] sm:$0xf] %v2936
      %3032 = vst [vmem:[#allocation4 + $0x418] sm:$0xf] %v2946
      %3033 = vst [vmem:[#allocation4 + $0x43c] sm:$0xf] %v2960
      %3034 = vst [vmem:[#allocation4 + $0x460] sm:$0xf] %v2970
      %v3035 = vld [vmem:[#allocation3] sm:$0xe]
      %v3036 = vld [vmem:[#allocation3 + $0x4] sm:$0xf]
      %v3037 = vld [vmem:[#allocation3 + $0x8] sm:$0x1]
      %v3038 = vld [vmem:[#allocation3 + $0xc] sm:$0xe]
      %v3039 = vld [vmem:[#allocation3 + $0x10] sm:$0xf]
      %v3040 = vld [vmem:[#allocation3 + $0x14] sm:$0x1]
      %v3041 = vld [vmem:[#allocation3 + $0x18] sm:$0xe]
      %v3042 = vld [vmem:[#allocation3 + $0x1c] sm:$0xf]
      %v3043 = vld [vmem:[#allocation3 + $0x20] sm:$0x1]
      %v3044 = vld [vmem:[#allocation3 + $0x24] sm:$0xe]
      %v3045 = vld [vmem:[#allocation3 + $0x28] sm:$0xf]
      %v3046 = vld [vmem:[#allocation3 + $0x2c] sm:$0x1]
      %v3047 = vld [vmem:[#allocation3 + $0x30] sm:$0xe]
      %v3048 = vld [vmem:[#allocation3 + $0x34] sm:$0xf]
      %v3049 = vld [vmem:[#allocation3 + $0x38] sm:$0x1]
      %v3050 = vld [vmem:[#allocation3 + $0x3c] sm:$0xe]
      %v3051 = vld [vmem:[#allocation3 + $0x40] sm:$0xf]
      %v3052 = vld [vmem:[#allocation3 + $0x44] sm:$0x1]
      %v3053 = vld [vmem:[#allocation3 + $0x48] sm:$0xe]
      %v3054 = vld [vmem:[#allocation3 + $0x4c] sm:$0xf]
      %v3055 = vld [vmem:[#allocation3 + $0x50] sm:$0x1]
      %v3056 = vld [vmem:[#allocation3 + $0x54] sm:$0xe]
      %v3057 = vld [vmem:[#allocation3 + $0x58] sm:$0xf]
      %v3058 = vld [vmem:[#allocation3 + $0x5c] sm:$0x1]
      %v3059 = vld [vmem:[#allocation3 + $0x60] sm:$0xe]
      %v3060 = vld [vmem:[#allocation3 + $0x64] sm:$0xf]
      %v3061 = vld [vmem:[#allocation3 + $0x68] sm:$0x1]
      %v3062 = vld [vmem:[#allocation3 + $0x6c] sm:$0xe]
      %v3063 = vld [vmem:[#allocation3 + $0x70] sm:$0xf]
      %v3064 = vld [vmem:[#allocation3 + $0x74] sm:$0x1]
      %v3065 = vld [vmem:[#allocation3 + $0x78] sm:$0xe]
      %v3066 = vld [vmem:[#allocation3 + $0x7c] sm:$0xf]
      %v3067 = vld [vmem:[#allocation3 + $0x80] sm:$0x1]
      %v3068 = vld [vmem:[#allocation3 + $0x84] sm:$0xe]
      %v3069 = vld [vmem:[#allocation3 + $0x88] sm:$0xf]
      %v3070 = vld [vmem:[#allocation3 + $0x8c] sm:$0x1]
      %v3071 = vld [vmem:[#allocation3 + $0x90] sm:$0xe]
      %v3072 = vld [vmem:[#allocation3 + $0x94] sm:$0xf]
      %v3073 = vld [vmem:[#allocation3 + $0x98] sm:$0x1]
      %v3074 = vld [vmem:[#allocation3 + $0x9c] sm:$0xe]
      %v3075 = vld [vmem:[#allocation3 + $0xa0] sm:$0xf]
      %v3076 = vld [vmem:[#allocation3 + $0xa4] sm:$0x1]
      %v3077 = vld [vmem:[#allocation3 + $0xa8] sm:$0xe]
      %v3078 = vld [vmem:[#allocation3 + $0xac] sm:$0xf]
      %v3079 = vld [vmem:[#allocation3 + $0xb0] sm:$0x1]
      %v3080 = vld [vmem:[#allocation3 + $0xb4] sm:$0xe]
      %v3081 = vld [vmem:[#allocation3 + $0xb8] sm:$0xf]
      %v3082 = vld [vmem:[#allocation3 + $0xbc] sm:$0x1]
      %vm3131 = vcmask 1042432
      %vm3132 = vcmask 1046532
      %vm3133 = vmor %vm3131, %vm3132
      %v3134 = vrot.slane %v3035, 5
      %v3135 = vrot.slane %v3134, 4
      %v3136 = vrot.slane %v3036, 5
      %v3137 = vsel %vm3133, %v3135, %v3136
      %v3138 = vrot.slane %v3136, 4
      %v3139 = vrot.slane %v3037, 5
      %v3140 = vsel %vm3133, %v3138, %v3139
      %v3141 = vrot.slane %v3038, 5
      %v3142 = vrot.slane %v3141, 4
      %v3143 = vrot.slane %v3039, 5
      %v3144 = vsel %vm3133, %v3142, %v3143
      %v3145 = vrot.slane %v3143, 4
      %v3146 = vrot.slane %v3040, 5
      %v3147 = vsel %vm3133, %v3145, %v3146
      %v3148 = vrot.slane %v3041, 5
      %v3149 = vrot.slane %v3148, 4
      %v3150 = vrot.slane %v3042, 5
      %v3151 = vsel %vm3133, %v3149, %v3150
      %v3152 = vrot.slane %v3150, 4
      %v3153 = vrot.slane %v3043, 5
      %v3154 = vsel %vm3133, %v3152, %v3153
      %v3155 = vrot.slane %v3044, 5
      %v3156 = vrot.slane %v3155, 4
      %v3157 = vrot.slane %v3045, 5
      %v3158 = vsel %vm3133, %v3156, %v3157
      %v3159 = vrot.slane %v3157, 4
      %v3160 = vrot.slane %v3046, 5
      %v3161 = vsel %vm3133, %v3159, %v3160
      %v3162 = vrot.slane %v3047, 5
      %v3163 = vrot.slane %v3162, 4
      %v3164 = vrot.slane %v3048, 5
      %v3165 = vsel %vm3133, %v3163, %v3164
      %v3166 = vrot.slane %v3164, 4
      %v3167 = vrot.slane %v3049, 5
      %v3168 = vsel %vm3133, %v3166, %v3167
      %v3169 = vrot.slane %v3050, 5
      %v3170 = vrot.slane %v3169, 4
      %v3171 = vrot.slane %v3051, 5
      %v3172 = vsel %vm3133, %v3170, %v3171
      %v3173 = vrot.slane %v3171, 4
      %v3174 = vrot.slane %v3052, 5
      %v3175 = vsel %vm3133, %v3173, %v3174
      %v3176 = vrot.slane %v3053, 5
      %v3177 = vrot.slane %v3176, 4
      %v3178 = vrot.slane %v3054, 5
      %v3179 = vsel %vm3133, %v3177, %v3178
      %v3180 = vrot.slane %v3178, 4
      %v3181 = vrot.slane %v3055, 5
      %v3182 = vsel %vm3133, %v3180, %v3181
      %v3183 = vrot.slane %v3056, 5
      %v3184 = vrot.slane %v3183, 4
      %v3185 = vrot.slane %v3057, 5
      %v3186 = vsel %vm3133, %v3184, %v3185
      %v3187 = vrot.slane %v3185, 4
      %v3188 = vrot.slane %v3058, 5
      %v3189 = vsel %vm3133, %v3187, %v3188
      %v3190 = vrot.slane %v3059, 5
      %v3191 = vrot.slane %v3190, 4
      %v3192 = vrot.slane %v3060, 5
      %v3193 = vsel %vm3133, %v3191, %v3192
      %v3194 = vrot.slane %v3192, 4
      %v3195 = vrot.slane %v3061, 5
      %v3196 = vsel %vm3133, %v3194, %v3195
      %v3197 = vrot.slane %v3062, 5
      %v3198 = vrot.slane %v3197, 4
      %v3199 = vrot.slane %v3063, 5
      %v3200 = vsel %vm3133, %v3198, %v3199
      %v3201 = vrot.slane %v3199, 4
      %v3202 = vrot.slane %v3064, 5
      %v3203 = vsel %vm3133, %v3201, %v3202
      %v3204 = vrot.slane %v3065, 5
      %v3205 = vrot.slane %v3204, 4
      %v3206 = vrot.slane %v3066, 5
      %v3207 = vsel %vm3133, %v3205, %v3206
      %v3208 = vrot.slane %v3206, 4
      %v3209 = vrot.slane %v3067, 5
      %v3210 = vsel %vm3133, %v3208, %v3209
      %v3211 = vrot.slane %v3068, 5
      %v3212 = vrot.slane %v3211, 4
      %v3213 = vrot.slane %v3069, 5
      %v3214 = vsel %vm3133, %v3212, %v3213
      %v3215 = vrot.slane %v3213, 4
      %v3216 = vrot.slane %v3070, 5
      %v3217 = vsel %vm3133, %v3215, %v3216
      %v3218 = vrot.slane %v3071, 5
      %v3219 = vrot.slane %v3218, 4
      %v3220 = vrot.slane %v3072, 5
      %v3221 = vsel %vm3133, %v3219, %v3220
      %v3222 = vrot.slane %v3220, 4
      %v3223 = vrot.slane %v3073, 5
      %v3224 = vsel %vm3133, %v3222, %v3223
      %v3225 = vrot.slane %v3074, 5
      %v3226 = vrot.slane %v3225, 4
      %v3227 = vrot.slane %v3075, 5
      %v3228 = vsel %vm3133, %v3226, %v3227
      %v3229 = vrot.slane %v3227, 4
      %v3230 = vrot.slane %v3076, 5
      %v3231 = vsel %vm3133, %v3229, %v3230
      %v3232 = vrot.slane %v3077, 5
      %v3233 = vrot.slane %v3232, 4
      %v3234 = vrot.slane %v3078, 5
      %v3235 = vsel %vm3133, %v3233, %v3234
      %v3236 = vrot.slane %v3234, 4
      %v3237 = vrot.slane %v3079, 5
      %v3238 = vsel %vm3133, %v3236, %v3237
      %v3239 = vrot.slane %v3080, 5
      %v3240 = vrot.slane %v3239, 4
      %v3241 = vrot.slane %v3081, 5
      %v3242 = vsel %vm3133, %v3240, %v3241
      %v3243 = vrot.slane %v3241, 4
      %v3244 = vrot.slane %v3082, 5
      %v3245 = vsel %vm3133, %v3243, %v3244
      %3278 = vst [vmem:[#allocation4 + $0x8] sm:$0xf] %v3137
      %3279 = vst [vmem:[#allocation4 + $0x2c] sm:$0xf] %v3140
      %3280 = vst [vmem:[#allocation4 + $0x50] sm:$0xf] %v3144
      %3281 = vst [vmem:[#allocation4 + $0x74] sm:$0xf] %v3147
      %3282 = vst [vmem:[#allocation4 + $0x98] sm:$0xf] %v3151
      %3283 = vst [vmem:[#allocation4 + $0xbc] sm:$0xf] %v3154
      %3284 = vst [vmem:[#allocation4 + $0xe0] sm:$0xf] %v3158
      %3285 = vst [vmem:[#allocation4 + $0x104] sm:$0xf] %v3161
      %3286 = vst [vmem:[#allocation4 + $0x128] sm:$0xf] %v3165
      %3287 = vst [vmem:[#allocation4 + $0x14c] sm:$0xf] %v3168
      %3288 = vst [vmem:[#allocation4 + $0x170] sm:$0xf] %v3172
      %3289 = vst [vmem:[#allocation4 + $0x194] sm:$0xf] %v3175
      %3290 = vst [vmem:[#allocation4 + $0x1b8] sm:$0xf] %v3179
      %3291 = vst [vmem:[#allocation4 + $0x1dc] sm:$0xf] %v3182
      %3292 = vst [vmem:[#allocation4 + $0x200] sm:$0xf] %v3186
      %3293 = vst [vmem:[#allocation4 + $0x224] sm:$0xf] %v3189
      %3294 = vst [vmem:[#allocation4 + $0x248] sm:$0xf] %v3193
      %3295 = vst [vmem:[#allocation4 + $0x26c] sm:$0xf] %v3196
      %3296 = vst [vmem:[#allocation4 + $0x290] sm:$0xf] %v3200
      %3297 = vst [vmem:[#allocation4 + $0x2b4] sm:$0xf] %v3203
      %3298 = vst [vmem:[#allocation4 + $0x2d8] sm:$0xf] %v3207
      %3299 = vst [vmem:[#allocation4 + $0x2fc] sm:$0xf] %v3210
      %3300 = vst [vmem:[#allocation4 + $0x320] sm:$0xf] %v3214
      %3301 = vst [vmem:[#allocation4 + $0x344] sm:$0xf] %v3217
      %3302 = vst [vmem:[#allocation4 + $0x368] sm:$0xf] %v3221
      %3303 = vst [vmem:[#allocation4 + $0x38c] sm:$0xf] %v3224
      %3304 = vst [vmem:[#allocation4 + $0x3b0] sm:$0xf] %v3228
      %3305 = vst [vmem:[#allocation4 + $0x3d4] sm:$0xf] %v3231
      %3306 = vst [vmem:[#allocation4 + $0x3f8] sm:$0xf] %v3235
      %3307 = vst [vmem:[#allocation4 + $0x41c] sm:$0xf] %v3238
      %3308 = vst [vmem:[#allocation4 + $0x440] sm:$0xf] %v3242
      %3309 = vst [vmem:[#allocation4 + $0x464] sm:$0xf] %v3245
      %v3310 = vld [vmem:[%s2354] sm:$0xf]
      %v3311 = vld [vmem:[%s2354 + $0x4] sm:$0xf]
      %v3312 = vld [vmem:[%s2354 + $0xc] sm:$0xf]
      %v3313 = vld [vmem:[%s2354 + $0x10] sm:$0xf]
      %v3314 = vld [vmem:[%s2354 + $0x18] sm:$0xf]
      %v3315 = vld [vmem:[%s2354 + $0x1c] sm:$0xf]
      %v3316 = vld [vmem:[%s2354 + $0x24] sm:$0xf]
      %v3317 = vld [vmem:[%s2354 + $0x28] sm:$0xf]
      %v3318 = vld [vmem:[%s2354 + $0x30] sm:$0xf]
      %v3319 = vld [vmem:[%s2354 + $0x34] sm:$0xf]
      %v3320 = vld [vmem:[%s2354 + $0x3c] sm:$0xf]
      %v3321 = vld [vmem:[%s2354 + $0x40] sm:$0xf]
      %v3322 = vld [vmem:[%s2354 + $0x48] sm:$0xf]
      %v3323 = vld [vmem:[%s2354 + $0x4c] sm:$0xf]
      %v3324 = vld [vmem:[%s2354 + $0x54] sm:$0xf]
      %v3325 = vld [vmem:[%s2354 + $0x58] sm:$0xf]
      %v3326 = vld [vmem:[%s2354 + $0x60] sm:$0xf]
      %v3327 = vld [vmem:[%s2354 + $0x64] sm:$0xf]
      %v3328 = vld [vmem:[%s2354 + $0x6c] sm:$0xf]
      %v3329 = vld [vmem:[%s2354 + $0x70] sm:$0xf]
      %v3330 = vld [vmem:[%s2354 + $0x78] sm:$0xf]
      %v3331 = vld [vmem:[%s2354 + $0x7c] sm:$0xf]
      %v3332 = vld [vmem:[%s2354 + $0x84] sm:$0xf]
      %v3333 = vld [vmem:[%s2354 + $0x88] sm:$0xf]
      %v3334 = vld [vmem:[%s2354 + $0x90] sm:$0xf]
      %v3335 = vld [vmem:[%s2354 + $0x94] sm:$0xf]
      %v3336 = vld [vmem:[%s2354 + $0x9c] sm:$0xf]
      %v3337 = vld [vmem:[%s2354 + $0xa0] sm:$0xf]
      %v3338 = vld [vmem:[%s2354 + $0xa8] sm:$0xf]
      %v3339 = vld [vmem:[%s2354 + $0xac] sm:$0xf]
      %v3340 = vld [vmem:[%s2354 + $0xb4] sm:$0xf]
      %v3341 = vld [vmem:[%s2354 + $0xb8] sm:$0xf]
      %3342 = vst [vmem:[#allocation4 + $0xc] sm:$0xf] %v3310
      %3343 = vst [vmem:[#allocation4 + $0x30] sm:$0xf] %v3311
      %3344 = vst [vmem:[#allocation4 + $0x54] sm:$0xf] %v3312
      %3345 = vst [vmem:[#allocation4 + $0x78] sm:$0xf] %v3313
      %3346 = vst [vmem:[#allocation4 + $0x9c] sm:$0xf] %v3314
      %3347 = vst [vmem:[#allocation4 + $0xc0] sm:$0xf] %v3315
      %3348 = vst [vmem:[#allocation4 + $0xe4] sm:$0xf] %v3316
      %3349 = vst [vmem:[#allocation4 + $0x108] sm:$0xf] %v3317
      %3350 = vst [vmem:[#allocation4 + $0x12c] sm:$0xf] %v3318
      %3351 = vst [vmem:[#allocation4 + $0x150] sm:$0xf] %v3319
      %3352 = vst [vmem:[#allocation4 + $0x174] sm:$0xf] %v3320
      %3353 = vst [vmem:[#allocation4 + $0x198] sm:$0xf] %v3321
      %3354 = vst [vmem:[#allocation4 + $0x1bc] sm:$0xf] %v3322
      %3355 = vst [vmem:[#allocation4 + $0x1e0] sm:$0xf] %v3323
      %3356 = vst [vmem:[#allocation4 + $0x204] sm:$0xf] %v3324
      %3357 = vst [vmem:[#allocation4 + $0x228] sm:$0xf] %v3325
      %3358 = vst [vmem:[#allocation4 + $0x24c] sm:$0xf] %v3326
      %3359 = vst [vmem:[#allocation4 + $0x270] sm:$0xf] %v3327
      %3360 = vst [vmem:[#allocation4 + $0x294] sm:$0xf] %v3328
      %3361 = vst [vmem:[#allocation4 + $0x2b8] sm:$0xf] %v3329
      %3362 = vst [vmem:[#allocation4 + $0x2dc] sm:$0xf] %v3330
      %3363 = vst [vmem:[#allocation4 + $0x300] sm:$0xf] %v3331
      %3364 = vst [vmem:[#allocation4 + $0x324] sm:$0xf] %v3332
      %3365 = vst [vmem:[#allocation4 + $0x348] sm:$0xf] %v3333
      %3366 = vst [vmem:[#allocation4 + $0x36c] sm:$0xf] %v3334
      %3367 = vst [vmem:[#allocation4 + $0x390] sm:$0xf] %v3335
      %3368 = vst [vmem:[#allocation4 + $0x3b4] sm:$0xf] %v3336
      %3369 = vst [vmem:[#allocation4 + $0x3d8] sm:$0xf] %v3337
      %3370 = vst [vmem:[#allocation4 + $0x3fc] sm:$0xf] %v3338
      %3371 = vst [vmem:[#allocation4 + $0x420] sm:$0xf] %v3339
      %3372 = vst [vmem:[#allocation4 + $0x444] sm:$0xf] %v3340
      %3373 = vst [vmem:[#allocation4 + $0x468] sm:$0xf] %v3341
      %v3374 = vld [vmem:[%s2354] sm:$0xf]
      %v3375 = vld [vmem:[%s2354 + $0x4] sm:$0xf]
      %v3376 = vld [vmem:[%s2354 + $0x8] sm:$0x1]
      %v3377 = vld [vmem:[%s2354 + $0xc] sm:$0xf]
      %v3378 = vld [vmem:[%s2354 + $0x10] sm:$0xf]
      %v3379 = vld [vmem:[%s2354 + $0x14] sm:$0x1]
      %v3380 = vld [vmem:[%s2354 + $0x18] sm:$0xf]
      %v3381 = vld [vmem:[%s2354 + $0x1c] sm:$0xf]
      %v3382 = vld [vmem:[%s2354 + $0x20] sm:$0x1]
      %v3383 = vld [vmem:[%s2354 + $0x24] sm:$0xf]
      %v3384 = vld [vmem:[%s2354 + $0x28] sm:$0xf]
      %v3385 = vld [vmem:[%s2354 + $0x2c] sm:$0x1]
      %v3386 = vld [vmem:[%s2354 + $0x30] sm:$0xf]
      %v3387 = vld [vmem:[%s2354 + $0x34] sm:$0xf]
      %v3388 = vld [vmem:[%s2354 + $0x38] sm:$0x1]
      %v3389 = vld [vmem:[%s2354 + $0x3c] sm:$0xf]
      %v3390 = vld [vmem:[%s2354 + $0x40] sm:$0xf]
      %v3391 = vld [vmem:[%s2354 + $0x44] sm:$0x1]
      %v3392 = vld [vmem:[%s2354 + $0x48] sm:$0xf]
      %v3393 = vld [vmem:[%s2354 + $0x4c] sm:$0xf]
      %v3394 = vld [vmem:[%s2354 + $0x50] sm:$0x1]
      %v3395 = vld [vmem:[%s2354 + $0x54] sm:$0xf]
      %v3396 = vld [vmem:[%s2354 + $0x58] sm:$0xf]
      %v3397 = vld [vmem:[%s2354 + $0x5c] sm:$0x1]
      %v3398 = vld [vmem:[%s2354 + $0x60] sm:$0xf]
      %v3399 = vld [vmem:[%s2354 + $0x64] sm:$0xf]
      %v3400 = vld [vmem:[%s2354 + $0x68] sm:$0x1]
      %v3401 = vld [vmem:[%s2354 + $0x6c] sm:$0xf]
      %v3402 = vld [vmem:[%s2354 + $0x70] sm:$0xf]
      %v3403 = vld [vmem:[%s2354 + $0x74] sm:$0x1]
      %v3404 = vld [vmem:[%s2354 + $0x78] sm:$0xf]
      %v3405 = vld [vmem:[%s2354 + $0x7c] sm:$0xf]
      %v3406 = vld [vmem:[%s2354 + $0x80] sm:$0x1]
      %v3407 = vld [vmem:[%s2354 + $0x84] sm:$0xf]
      %v3408 = vld [vmem:[%s2354 + $0x88] sm:$0xf]
      %v3409 = vld [vmem:[%s2354 + $0x8c] sm:$0x1]
      %v3410 = vld [vmem:[%s2354 + $0x90] sm:$0xf]
      %v3411 = vld [vmem:[%s2354 + $0x94] sm:$0xf]
      %v3412 = vld [vmem:[%s2354 + $0x98] sm:$0x1]
      %v3413 = vld [vmem:[%s2354 + $0x9c] sm:$0xf]
      %v3414 = vld [vmem:[%s2354 + $0xa0] sm:$0xf]
      %v3415 = vld [vmem:[%s2354 + $0xa4] sm:$0x1]
      %v3416 = vld [vmem:[%s2354 + $0xa8] sm:$0xf]
      %v3417 = vld [vmem:[%s2354 + $0xac] sm:$0xf]
      %v3418 = vld [vmem:[%s2354 + $0xb0] sm:$0x1]
      %v3419 = vld [vmem:[%s2354 + $0xb4] sm:$0xf]
      %v3420 = vld [vmem:[%s2354 + $0xb8] sm:$0xf]
      %v3421 = vld [vmem:[%s2354 + $0xbc] sm:$0x1]
      %v3423 = vshrl.u32 %v3374, 16
      %v3425 = vrot.slane %v3423, 4
      %v3426 = vshll.u32 %v3374, 16
      %v3428 = vrot.slane %v3426, 5
      %v3429 = vor.u32 %v3425, %v3428
      %v3430 = vrot.slane %v3429, 4
      %v3432 = vshll.u32 %v3375, 16
      %v3434 = vrot.slane %v3432, 5
      %v3435 = vsel %vm2586, %v3430, %v3434
      %v3436 = vshrl.u32 %v3375, 16
      %v3438 = vrot.slane %v3436, 4
      %v3439 = vor.u32 %v3438, %v3434
      %v3440 = vrot.slane %v3439, 4
      %v3442 = vshll.u32 %v3376, 16
      %v3444 = vrot.slane %v3442, 5
      %v3445 = vsel %vm2586, %v3440, %v3444
      %v3447 = vshrl.u32 %v3377, 16
      %v3449 = vrot.slane %v3447, 4
      %v3450 = vshll.u32 %v3377, 16
      %v3452 = vrot.slane %v3450, 5
      %v3453 = vor.u32 %v3449, %v3452
      %v3454 = vrot.slane %v3453, 4
      %v3456 = vshll.u32 %v3378, 16
      %v3458 = vrot.slane %v3456, 5
      %v3459 = vsel %vm2586, %v3454, %v3458
      %v3460 = vshrl.u32 %v3378, 16
      %v3462 = vrot.slane %v3460, 4
      %v3463 = vor.u32 %v3462, %v3458
      %v3464 = vrot.slane %v3463, 4
      %v3466 = vshll.u32 %v3379, 16
      %v3468 = vrot.slane %v3466, 5
      %v3469 = vsel %vm2586, %v3464, %v3468
      %v3471 = vshrl.u32 %v3380, 16
      %v3473 = vrot.slane %v3471, 4
      %v3474 = vshll.u32 %v3380, 16
      %v3476 = vrot.slane %v3474, 5
      %v3477 = vor.u32 %v3473, %v3476
      %v3478 = vrot.slane %v3477, 4
      %v3480 = vshll.u32 %v3381, 16
      %v3482 = vrot.slane %v3480, 5
      %v3483 = vsel %vm2586, %v3478, %v3482
      %v3484 = vshrl.u32 %v3381, 16
      %v3486 = vrot.slane %v3484, 4
      %v3487 = vor.u32 %v3486, %v3482
      %v3488 = vrot.slane %v3487, 4
      %v3490 = vshll.u32 %v3382, 16
      %v3492 = vrot.slane %v3490, 5
      %v3493 = vsel %vm2586, %v3488, %v3492
      %v3495 = vshrl.u32 %v3383, 16
      %v3497 = vrot.slane %v3495, 4
      %v3498 = vshll.u32 %v3383, 16
      %v3500 = vrot.slane %v3498, 5
      %v3501 = vor.u32 %v3497, %v3500
      %v3502 = vrot.slane %v3501, 4
      %v3504 = vshll.u32 %v3384, 16
      %v3506 = vrot.slane %v3504, 5
      %v3507 = vsel %vm2586, %v3502, %v3506
      %v3508 = vshrl.u32 %v3384, 16
      %v3510 = vrot.slane %v3508, 4
      %v3511 = vor.u32 %v3510, %v3506
      %v3512 = vrot.slane %v3511, 4
      %v3514 = vshll.u32 %v3385, 16
      %v3516 = vrot.slane %v3514, 5
      %v3517 = vsel %vm2586, %v3512, %v3516
      %v3519 = vshrl.u32 %v3386, 16
      %v3521 = vrot.slane %v3519, 4
      %v3522 = vshll.u32 %v3386, 16
      %v3524 = vrot.slane %v3522, 5
      %v3525 = vor.u32 %v3521, %v3524
      %v3526 = vrot.slane %v3525, 4
      %v3528 = vshll.u32 %v3387, 16
      %v3530 = vrot.slane %v3528, 5
      %v3531 = vsel %vm2586, %v3526, %v3530
      %v3532 = vshrl.u32 %v3387, 16
      %v3534 = vrot.slane %v3532, 4
      %v3535 = vor.u32 %v3534, %v3530
      %v3536 = vrot.slane %v3535, 4
      %v3538 = vshll.u32 %v3388, 16
      %v3540 = vrot.slane %v3538, 5
      %v3541 = vsel %vm2586, %v3536, %v3540
      %v3543 = vshrl.u32 %v3389, 16
      %v3545 = vrot.slane %v3543, 4
      %v3546 = vshll.u32 %v3389, 16
      %v3548 = vrot.slane %v3546, 5
      %v3549 = vor.u32 %v3545, %v3548
      %v3550 = vrot.slane %v3549, 4
      %v3552 = vshll.u32 %v3390, 16
      %v3554 = vrot.slane %v3552, 5
      %v3555 = vsel %vm2586, %v3550, %v3554
      %v3556 = vshrl.u32 %v3390, 16
      %v3558 = vrot.slane %v3556, 4
      %v3559 = vor.u32 %v3558, %v3554
      %v3560 = vrot.slane %v3559, 4
      %v3562 = vshll.u32 %v3391, 16
      %v3564 = vrot.slane %v3562, 5
      %v3565 = vsel %vm2586, %v3560, %v3564
      %v3567 = vshrl.u32 %v3392, 16
      %v3569 = vrot.slane %v3567, 4
      %v3570 = vshll.u32 %v3392, 16
      %v3572 = vrot.slane %v3570, 5
      %v3573 = vor.u32 %v3569, %v3572
      %v3574 = vrot.slane %v3573, 4
      %v3576 = vshll.u32 %v3393, 16
      %v3578 = vrot.slane %v3576, 5
      %v3579 = vsel %vm2586, %v3574, %v3578
      %v3580 = vshrl.u32 %v3393, 16
      %v3582 = vrot.slane %v3580, 4
      %v3583 = vor.u32 %v3582, %v3578
      %v3584 = vrot.slane %v3583, 4
      %v3586 = vshll.u32 %v3394, 16
      %v3588 = vrot.slane %v3586, 5
      %v3589 = vsel %vm2586, %v3584, %v3588
      %v3591 = vshrl.u32 %v3395, 16
      %v3593 = vrot.slane %v3591, 4
      %v3594 = vshll.u32 %v3395, 16
      %v3596 = vrot.slane %v3594, 5
      %v3597 = vor.u32 %v3593, %v3596
      %v3598 = vrot.slane %v3597, 4
      %v3600 = vshll.u32 %v3396, 16
      %v3602 = vrot.slane %v3600, 5
      %v3603 = vsel %vm2586, %v3598, %v3602
      %v3604 = vshrl.u32 %v3396, 16
      %v3606 = vrot.slane %v3604, 4
      %v3607 = vor.u32 %v3606, %v3602
      %v3608 = vrot.slane %v3607, 4
      %v3610 = vshll.u32 %v3397, 16
      %v3612 = vrot.slane %v3610, 5
      %v3613 = vsel %vm2586, %v3608, %v3612
      %v3615 = vshrl.u32 %v3398, 16
      %v3617 = vrot.slane %v3615, 4
      %v3618 = vshll.u32 %v3398, 16
      %v3620 = vrot.slane %v3618, 5
      %v3621 = vor.u32 %v3617, %v3620
      %v3622 = vrot.slane %v3621, 4
      %v3624 = vshll.u32 %v3399, 16
      %v3626 = vrot.slane %v3624, 5
      %v3627 = vsel %vm2586, %v3622, %v3626
      %v3628 = vshrl.u32 %v3399, 16
      %v3630 = vrot.slane %v3628, 4
      %v3631 = vor.u32 %v3630, %v3626
      %v3632 = vrot.slane %v3631, 4
      %v3634 = vshll.u32 %v3400, 16
      %v3636 = vrot.slane %v3634, 5
      %v3637 = vsel %vm2586, %v3632, %v3636
      %v3639 = vshrl.u32 %v3401, 16
      %v3641 = vrot.slane %v3639, 4
      %v3642 = vshll.u32 %v3401, 16
      %v3644 = vrot.slane %v3642, 5
      %v3645 = vor.u32 %v3641, %v3644
      %v3646 = vrot.slane %v3645, 4
      %v3648 = vshll.u32 %v3402, 16
      %v3650 = vrot.slane %v3648, 5
      %v3651 = vsel %vm2586, %v3646, %v3650
      %v3652 = vshrl.u32 %v3402, 16
      %v3654 = vrot.slane %v3652, 4
      %v3655 = vor.u32 %v3654, %v3650
      %v3656 = vrot.slane %v3655, 4
      %v3658 = vshll.u32 %v3403, 16
      %v3660 = vrot.slane %v3658, 5
      %v3661 = vsel %vm2586, %v3656, %v3660
      %v3663 = vshrl.u32 %v3404, 16
      %v3665 = vrot.slane %v3663, 4
      %v3666 = vshll.u32 %v3404, 16
      %v3668 = vrot.slane %v3666, 5
      %v3669 = vor.u32 %v3665, %v3668
      %v3670 = vrot.slane %v3669, 4
      %v3672 = vshll.u32 %v3405, 16
      %v3674 = vrot.slane %v3672, 5
      %v3675 = vsel %vm2586, %v3670, %v3674
      %v3676 = vshrl.u32 %v3405, 16
      %v3678 = vrot.slane %v3676, 4
      %v3679 = vor.u32 %v3678, %v3674
      %v3680 = vrot.slane %v3679, 4
      %v3682 = vshll.u32 %v3406, 16
      %v3684 = vrot.slane %v3682, 5
      %v3685 = vsel %vm2586, %v3680, %v3684
      %v3687 = vshrl.u32 %v3407, 16
      %v3689 = vrot.slane %v3687, 4
      %v3690 = vshll.u32 %v3407, 16
      %v3692 = vrot.slane %v3690, 5
      %v3693 = vor.u32 %v3689, %v3692
      %v3694 = vrot.slane %v3693, 4
      %v3696 = vshll.u32 %v3408, 16
      %v3698 = vrot.slane %v3696, 5
      %v3699 = vsel %vm2586, %v3694, %v3698
      %v3700 = vshrl.u32 %v3408, 16
      %v3702 = vrot.slane %v3700, 4
      %v3703 = vor.u32 %v3702, %v3698
      %v3704 = vrot.slane %v3703, 4
      %v3706 = vshll.u32 %v3409, 16
      %v3708 = vrot.slane %v3706, 5
      %v3709 = vsel %vm2586, %v3704, %v3708
      %v3711 = vshrl.u32 %v3410, 16
      %v3713 = vrot.slane %v3711, 4
      %v3714 = vshll.u32 %v3410, 16
      %v3716 = vrot.slane %v3714, 5
      %v3717 = vor.u32 %v3713, %v3716
      %v3718 = vrot.slane %v3717, 4
      %v3720 = vshll.u32 %v3411, 16
      %v3722 = vrot.slane %v3720, 5
      %v3723 = vsel %vm2586, %v3718, %v3722
      %v3724 = vshrl.u32 %v3411, 16
      %v3726 = vrot.slane %v3724, 4
      %v3727 = vor.u32 %v3726, %v3722
      %v3728 = vrot.slane %v3727, 4
      %v3730 = vshll.u32 %v3412, 16
      %v3732 = vrot.slane %v3730, 5
      %v3733 = vsel %vm2586, %v3728, %v3732
      %v3735 = vshrl.u32 %v3413, 16
      %v3737 = vrot.slane %v3735, 4
      %v3738 = vshll.u32 %v3413, 16
      %v3740 = vrot.slane %v3738, 5
      %v3741 = vor.u32 %v3737, %v3740
      %v3742 = vrot.slane %v3741, 4
      %v3744 = vshll.u32 %v3414, 16
      %v3746 = vrot.slane %v3744, 5
      %v3747 = vsel %vm2586, %v3742, %v3746
      %v3748 = vshrl.u32 %v3414, 16
      %v3750 = vrot.slane %v3748, 4
      %v3751 = vor.u32 %v3750, %v3746
      %v3752 = vrot.slane %v3751, 4
      %v3754 = vshll.u32 %v3415, 16
      %v3756 = vrot.slane %v3754, 5
      %v3757 = vsel %vm2586, %v3752, %v3756
      %v3759 = vshrl.u32 %v3416, 16
      %v3761 = vrot.slane %v3759, 4
      %v3762 = vshll.u32 %v3416, 16
      %v3764 = vrot.slane %v3762, 5
      %v3765 = vor.u32 %v3761, %v3764
      %v3766 = vrot.slane %v3765, 4
      %v3768 = vshll.u32 %v3417, 16
      %v3770 = vrot.slane %v3768, 5
      %v3771 = vsel %vm2586, %v3766, %v3770
      %v3772 = vshrl.u32 %v3417, 16
      %v3774 = vrot.slane %v3772, 4
      %v3775 = vor.u32 %v3774, %v3770
      %v3776 = vrot.slane %v3775, 4
      %v3778 = vshll.u32 %v3418, 16
      %v3780 = vrot.slane %v3778, 5
      %v3781 = vsel %vm2586, %v3776, %v3780
      %v3783 = vshrl.u32 %v3419, 16
      %v3785 = vrot.slane %v3783, 4
      %v3786 = vshll.u32 %v3419, 16
      %v3788 = vrot.slane %v3786, 5
      %v3789 = vor.u32 %v3785, %v3788
      %v3790 = vrot.slane %v3789, 4
      %v3792 = vshll.u32 %v3420, 16
      %v3794 = vrot.slane %v3792, 5
      %v3795 = vsel %vm2586, %v3790, %v3794
      %v3796 = vshrl.u32 %v3420, 16
      %v3798 = vrot.slane %v3796, 4
      %v3799 = vor.u32 %v3798, %v3794
      %v3800 = vrot.slane %v3799, 4
      %v3802 = vshll.u32 %v3421, 16
      %v3804 = vrot.slane %v3802, 5
      %v3805 = vsel %vm2586, %v3800, %v3804
      %3838 = vst [vmem:[#allocation4 + $0x10] sm:$0xf] %v3435
      %3839 = vst [vmem:[#allocation4 + $0x34] sm:$0xf] %v3445
      %3840 = vst [vmem:[#allocation4 + $0x58] sm:$0xf] %v3459
      %3841 = vst [vmem:[#allocation4 + $0x7c] sm:$0xf] %v3469
      %3842 = vst [vmem:[#allocation4 + $0xa0] sm:$0xf] %v3483
      %3843 = vst [vmem:[#allocation4 + $0xc4] sm:$0xf] %v3493
      %3844 = vst [vmem:[#allocation4 + $0xe8] sm:$0xf] %v3507
      %3845 = vst [vmem:[#allocation4 + $0x10c] sm:$0xf] %v3517
      %3846 = vst [vmem:[#allocation4 + $0x130] sm:$0xf] %v3531
      %3847 = vst [vmem:[#allocation4 + $0x154] sm:$0xf] %v3541
      %3848 = vst [vmem:[#allocation4 + $0x178] sm:$0xf] %v3555
      %3849 = vst [vmem:[#allocation4 + $0x19c] sm:$0xf] %v3565
      %3850 = vst [vmem:[#allocation4 + $0x1c0] sm:$0xf] %v3579
      %3851 = vst [vmem:[#allocation4 + $0x1e4] sm:$0xf] %v3589
      %3852 = vst [vmem:[#allocation4 + $0x208] sm:$0xf] %v3603
      %3853 = vst [vmem:[#allocation4 + $0x22c] sm:$0xf] %v3613
      %3854 = vst [vmem:[#allocation4 + $0x250] sm:$0xf] %v3627
      %3855 = vst [vmem:[#allocation4 + $0x274] sm:$0xf] %v3637
      %3856 = vst [vmem:[#allocation4 + $0x298] sm:$0xf] %v3651
      %3857 = vst [vmem:[#allocation4 + $0x2bc] sm:$0xf] %v3661
      %3858 = vst [vmem:[#allocation4 + $0x2e0] sm:$0xf] %v3675
      %3859 = vst [vmem:[#allocation4 + $0x304] sm:$0xf] %v3685
      %3860 = vst [vmem:[#allocation4 + $0x328] sm:$0xf] %v3699
      %3861 = vst [vmem:[#allocation4 + $0x34c] sm:$0xf] %v3709
      %3862 = vst [vmem:[#allocation4 + $0x370] sm:$0xf] %v3723
      %3863 = vst [vmem:[#allocation4 + $0x394] sm:$0xf] %v3733
      %3864 = vst [vmem:[#allocation4 + $0x3b8] sm:$0xf] %v3747
      %3865 = vst [vmem:[#allocation4 + $0x3dc] sm:$0xf] %v3757
      %3866 = vst [vmem:[#allocation4 + $0x400] sm:$0xf] %v3771
      %3867 = vst [vmem:[#allocation4 + $0x424] sm:$0xf] %v3781
      %3868 = vst [vmem:[#allocation4 + $0x448] sm:$0xf] %v3795
      %3869 = vst [vmem:[#allocation4 + $0x46c] sm:$0xf] %v3805
      %v3870 = vld [vmem:[%s2354] sm:$0xe]
      %v3871 = vld [vmem:[%s2354 + $0x4] sm:$0xf]
      %v3872 = vld [vmem:[%s2354 + $0x8] sm:$0x1]
      %v3873 = vld [vmem:[%s2354 + $0xc] sm:$0xe]
      %v3874 = vld [vmem:[%s2354 + $0x10] sm:$0xf]
      %v3875 = vld [vmem:[%s2354 + $0x14] sm:$0x1]
      %v3876 = vld [vmem:[%s2354 + $0x18] sm:$0xe]
      %v3877 = vld [vmem:[%s2354 + $0x1c] sm:$0xf]
      %v3878 = vld [vmem:[%s2354 + $0x20] sm:$0x1]
      %v3879 = vld [vmem:[%s2354 + $0x24] sm:$0xe]
      %v3880 = vld [vmem:[%s2354 + $0x28] sm:$0xf]
      %v3881 = vld [vmem:[%s2354 + $0x2c] sm:$0x1]
      %v3882 = vld [vmem:[%s2354 + $0x30] sm:$0xe]
      %v3883 = vld [vmem:[%s2354 + $0x34] sm:$0xf]
      %v3884 = vld [vmem:[%s2354 + $0x38] sm:$0x1]
      %v3885 = vld [vmem:[%s2354 + $0x3c] sm:$0xe]
      %v3886 = vld [vmem:[%s2354 + $0x40] sm:$0xf]
      %v3887 = vld [vmem:[%s2354 + $0x44] sm:$0x1]
      %v3888 = vld [vmem:[%s2354 + $0x48] sm:$0xe]
      %v3889 = vld [vmem:[%s2354 + $0x4c] sm:$0xf]
      %v3890 = vld [vmem:[%s2354 + $0x50] sm:$0x1]
      %v3891 = vld [vmem:[%s2354 + $0x54] sm:$0xe]
      %v3892 = vld [vmem:[%s2354 + $0x58] sm:$0xf]
      %v3893 = vld [vmem:[%s2354 + $0x5c] sm:$0x1]
      %v3894 = vld [vmem:[%s2354 + $0x60] sm:$0xe]
      %v3895 = vld [vmem:[%s2354 + $0x64] sm:$0xf]
      %v3896 = vld [vmem:[%s2354 + $0x68] sm:$0x1]
      %v3897 = vld [vmem:[%s2354 + $0x6c] sm:$0xe]
      %v3898 = vld [vmem:[%s2354 + $0x70] sm:$0xf]
      %v3899 = vld [vmem:[%s2354 + $0x74] sm:$0x1]
      %v3900 = vld [vmem:[%s2354 + $0x78] sm:$0xe]
      %v3901 = vld [vmem:[%s2354 + $0x7c] sm:$0xf]
      %v3902 = vld [vmem:[%s2354 + $0x80] sm:$0x1]
      %v3903 = vld [vmem:[%s2354 + $0x84] sm:$0xe]
      %v3904 = vld [vmem:[%s2354 + $0x88] sm:$0xf]
      %v3905 = vld [vmem:[%s2354 + $0x8c] sm:$0x1]
      %v3906 = vld [vmem:[%s2354 + $0x90] sm:$0xe]
      %v3907 = vld [vmem:[%s2354 + $0x94] sm:$0xf]
      %v3908 = vld [vmem:[%s2354 + $0x98] sm:$0x1]
      %v3909 = vld [vmem:[%s2354 + $0x9c] sm:$0xe]
      %v3910 = vld [vmem:[%s2354 + $0xa0] sm:$0xf]
      %v3911 = vld [vmem:[%s2354 + $0xa4] sm:$0x1]
      %v3912 = vld [vmem:[%s2354 + $0xa8] sm:$0xe]
      %v3913 = vld [vmem:[%s2354 + $0xac] sm:$0xf]
      %v3914 = vld [vmem:[%s2354 + $0xb0] sm:$0x1]
      %v3915 = vld [vmem:[%s2354 + $0xb4] sm:$0xe]
      %v3916 = vld [vmem:[%s2354 + $0xb8] sm:$0xf]
      %v3917 = vld [vmem:[%s2354 + $0xbc] sm:$0x1]
      %v3966 = vrot.slane %v3870, 5
      %v3967 = vrot.slane %v3966, 4
      %v3968 = vrot.slane %v3871, 5
      %v3969 = vsel %vm3133, %v3967, %v3968
      %v3970 = vrot.slane %v3968, 4
      %v3971 = vrot.slane %v3872, 5
      %v3972 = vsel %vm3133, %v3970, %v3971
      %v3973 = vrot.slane %v3873, 5
      %v3974 = vrot.slane %v3973, 4
      %v3975 = vrot.slane %v3874, 5
      %v3976 = vsel %vm3133, %v3974, %v3975
      %v3977 = vrot.slane %v3975, 4
      %v3978 = vrot.slane %v3875, 5
      %v3979 = vsel %vm3133, %v3977, %v3978
      %v3980 = vrot.slane %v3876, 5
      %v3981 = vrot.slane %v3980, 4
      %v3982 = vrot.slane %v3877, 5
      %v3983 = vsel %vm3133, %v3981, %v3982
      %v3984 = vrot.slane %v3982, 4
      %v3985 = vrot.slane %v3878, 5
      %v3986 = vsel %vm3133, %v3984, %v3985
      %v3987 = vrot.slane %v3879, 5
      %v3988 = vrot.slane %v3987, 4
      %v3989 = vrot.slane %v3880, 5
      %v3990 = vsel %vm3133, %v3988, %v3989
      %v3991 = vrot.slane %v3989, 4
      %v3992 = vrot.slane %v3881, 5
      %v3993 = vsel %vm3133, %v3991, %v3992
      %v3994 = vrot.slane %v3882, 5
      %v3995 = vrot.slane %v3994, 4
      %v3996 = vrot.slane %v3883, 5
      %v3997 = vsel %vm3133, %v3995, %v3996
      %v3998 = vrot.slane %v3996, 4
      %v3999 = vrot.slane %v3884, 5
      %v4000 = vsel %vm3133, %v3998, %v3999
      %v4001 = vrot.slane %v3885, 5
      %v4002 = vrot.slane %v4001, 4
      %v4003 = vrot.slane %v3886, 5
      %v4004 = vsel %vm3133, %v4002, %v4003
      %v4005 = vrot.slane %v4003, 4
      %v4006 = vrot.slane %v3887, 5
      %v4007 = vsel %vm3133, %v4005, %v4006
      %v4008 = vrot.slane %v3888, 5
      %v4009 = vrot.slane %v4008, 4
      %v4010 = vrot.slane %v3889, 5
      %v4011 = vsel %vm3133, %v4009, %v4010
      %v4012 = vrot.slane %v4010, 4
      %v4013 = vrot.slane %v3890, 5
      %v4014 = vsel %vm3133, %v4012, %v4013
      %v4015 = vrot.slane %v3891, 5
      %v4016 = vrot.slane %v4015, 4
      %v4017 = vrot.slane %v3892, 5
      %v4018 = vsel %vm3133, %v4016, %v4017
      %v4019 = vrot.slane %v4017, 4
      %v4020 = vrot.slane %v3893, 5
      %v4021 = vsel %vm3133, %v4019, %v4020
      %v4022 = vrot.slane %v3894, 5
      %v4023 = vrot.slane %v4022, 4
      %v4024 = vrot.slane %v3895, 5
      %v4025 = vsel %vm3133, %v4023, %v4024
      %v4026 = vrot.slane %v4024, 4
      %v4027 = vrot.slane %v3896, 5
      %v4028 = vsel %vm3133, %v4026, %v4027
      %v4029 = vrot.slane %v3897, 5
      %v4030 = vrot.slane %v4029, 4
      %v4031 = vrot.slane %v3898, 5
      %v4032 = vsel %vm3133, %v4030, %v4031
      %v4033 = vrot.slane %v4031, 4
      %v4034 = vrot.slane %v3899, 5
      %v4035 = vsel %vm3133, %v4033, %v4034
      %v4036 = vrot.slane %v3900, 5
      %v4037 = vrot.slane %v4036, 4
      %v4038 = vrot.slane %v3901, 5
      %v4039 = vsel %vm3133, %v4037, %v4038
      %v4040 = vrot.slane %v4038, 4
      %v4041 = vrot.slane %v3902, 5
      %v4042 = vsel %vm3133, %v4040, %v4041
      %v4043 = vrot.slane %v3903, 5
      %v4044 = vrot.slane %v4043, 4
      %v4045 = vrot.slane %v3904, 5
      %v4046 = vsel %vm3133, %v4044, %v4045
      %v4047 = vrot.slane %v4045, 4
      %v4048 = vrot.slane %v3905, 5
      %v4049 = vsel %vm3133, %v4047, %v4048
      %v4050 = vrot.slane %v3906, 5
      %v4051 = vrot.slane %v4050, 4
      %v4052 = vrot.slane %v3907, 5
      %v4053 = vsel %vm3133, %v4051, %v4052
      %v4054 = vrot.slane %v4052, 4
      %v4055 = vrot.slane %v3908, 5
      %v4056 = vsel %vm3133, %v4054, %v4055
      %v4057 = vrot.slane %v3909, 5
      %v4058 = vrot.slane %v4057, 4
      %v4059 = vrot.slane %v3910, 5
      %v4060 = vsel %vm3133, %v4058, %v4059
      %v4061 = vrot.slane %v4059, 4
      %v4062 = vrot.slane %v3911, 5
      %v4063 = vsel %vm3133, %v4061, %v4062
      %v4064 = vrot.slane %v3912, 5
      %v4065 = vrot.slane %v4064, 4
      %v4066 = vrot.slane %v3913, 5
      %v4067 = vsel %vm3133, %v4065, %v4066
      %v4068 = vrot.slane %v4066, 4
      %v4069 = vrot.slane %v3914, 5
      %v4070 = vsel %vm3133, %v4068, %v4069
      %v4071 = vrot.slane %v3915, 5
      %v4072 = vrot.slane %v4071, 4
      %v4073 = vrot.slane %v3916, 5
      %v4074 = vsel %vm3133, %v4072, %v4073
      %v4075 = vrot.slane %v4073, 4
      %v4076 = vrot.slane %v3917, 5
      %v4077 = vsel %vm3133, %v4075, %v4076
      %4110 = vst [vmem:[#allocation4 + $0x14] sm:$0xf] %v3969
      %4111 = vst [vmem:[#allocation4 + $0x38] sm:$0xf] %v3972
      %4112 = vst [vmem:[#allocation4 + $0x5c] sm:$0xf] %v3976
      %4113 = vst [vmem:[#allocation4 + $0x80] sm:$0xf] %v3979
      %4114 = vst [vmem:[#allocation4 + $0xa4] sm:$0xf] %v3983
      %4115 = vst [vmem:[#allocation4 + $0xc8] sm:$0xf] %v3986
      %4116 = vst [vmem:[#allocation4 + $0xec] sm:$0xf] %v3990
      %4117 = vst [vmem:[#allocation4 + $0x110] sm:$0xf] %v3993
      %4118 = vst [vmem:[#allocation4 + $0x134] sm:$0xf] %v3997
      %4119 = vst [vmem:[#allocation4 + $0x158] sm:$0xf] %v4000
      %4120 = vst [vmem:[#allocation4 + $0x17c] sm:$0xf] %v4004
      %4121 = vst [vmem:[#allocation4 + $0x1a0] sm:$0xf] %v4007
      %4122 = vst [vmem:[#allocation4 + $0x1c4] sm:$0xf] %v4011
      %4123 = vst [vmem:[#allocation4 + $0x1e8] sm:$0xf] %v4014
      %4124 = vst [vmem:[#allocation4 + $0x20c] sm:$0xf] %v4018
      %4125 = vst [vmem:[#allocation4 + $0x230] sm:$0xf] %v4021
      %4126 = vst [vmem:[#allocation4 + $0x254] sm:$0xf] %v4025
      %4127 = vst [vmem:[#allocation4 + $0x278] sm:$0xf] %v4028
      %4128 = vst [vmem:[#allocation4 + $0x29c] sm:$0xf] %v4032
      %4129 = vst [vmem:[#allocation4 + $0x2c0] sm:$0xf] %v4035
      %4130 = vst [vmem:[#allocation4 + $0x2e4] sm:$0xf] %v4039
      %4131 = vst [vmem:[#allocation4 + $0x308] sm:$0xf] %v4042
      %4132 = vst [vmem:[#allocation4 + $0x32c] sm:$0xf] %v4046
      %4133 = vst [vmem:[#allocation4 + $0x350] sm:$0xf] %v4049
      %4134 = vst [vmem:[#allocation4 + $0x374] sm:$0xf] %v4053
      %4135 = vst [vmem:[#allocation4 + $0x398] sm:$0xf] %v4056
      %4136 = vst [vmem:[#allocation4 + $0x3bc] sm:$0xf] %v4060
      %4137 = vst [vmem:[#allocation4 + $0x3e0] sm:$0xf] %v4063
      %4138 = vst [vmem:[#allocation4 + $0x404] sm:$0xf] %v4067
      %4139 = vst [vmem:[#allocation4 + $0x428] sm:$0xf] %v4070
      %4140 = vst [vmem:[#allocation4 + $0x44c] sm:$0xf] %v4074
      %4141 = vst [vmem:[#allocation4 + $0x470] sm:$0xf] %v4077
      %s4142 = scalar_lea.vmem [#allocation3], 24
      %v4143 = vld [vmem:[%s4142] sm:$0xf]
      %v4144 = vld [vmem:[%s4142 + $0x4] sm:$0xf]
      %v4145 = vld [vmem:[%s4142 + $0xc] sm:$0xf]
      %v4146 = vld [vmem:[%s4142 + $0x10] sm:$0xf]
      %v4147 = vld [vmem:[%s4142 + $0x18] sm:$0xf]
      %v4148 = vld [vmem:[%s4142 + $0x1c] sm:$0xf]
      %v4149 = vld [vmem:[%s4142 + $0x24] sm:$0xf]
      %v4150 = vld [vmem:[%s4142 + $0x28] sm:$0xf]
      %v4151 = vld [vmem:[%s4142 + $0x30] sm:$0xf]
      %v4152 = vld [vmem:[%s4142 + $0x34] sm:$0xf]
      %v4153 = vld [vmem:[%s4142 + $0x3c] sm:$0xf]
      %v4154 = vld [vmem:[%s4142 + $0x40] sm:$0xf]
      %v4155 = vld [vmem:[%s4142 + $0x48] sm:$0xf]
      %v4156 = vld [vmem:[%s4142 + $0x4c] sm:$0xf]
      %v4157 = vld [vmem:[%s4142 + $0x54] sm:$0xf]
      %v4158 = vld [vmem:[%s4142 + $0x58] sm:$0xf]
      %v4159 = vld [vmem:[%s4142 + $0x60] sm:$0xf]
      %v4160 = vld [vmem:[%s4142 + $0x64] sm:$0xf]
      %v4161 = vld [vmem:[%s4142 + $0x6c] sm:$0xf]
      %v4162 = vld [vmem:[%s4142 + $0x70] sm:$0xf]
      %v4163 = vld [vmem:[%s4142 + $0x78] sm:$0xf]
      %v4164 = vld [vmem:[%s4142 + $0x7c] sm:$0xf]
      %v4165 = vld [vmem:[%s4142 + $0x84] sm:$0xf]
      %v4166 = vld [vmem:[%s4142 + $0x88] sm:$0xf]
      %v4167 = vld [vmem:[%s4142 + $0x90] sm:$0xf]
      %v4168 = vld [vmem:[%s4142 + $0x94] sm:$0xf]
      %v4169 = vld [vmem:[%s4142 + $0x9c] sm:$0xf]
      %v4170 = vld [vmem:[%s4142 + $0xa0] sm:$0xf]
      %v4171 = vld [vmem:[%s4142 + $0xa8] sm:$0xf]
      %v4172 = vld [vmem:[%s4142 + $0xac] sm:$0xf]
      %v4173 = vld [vmem:[%s4142 + $0xb4] sm:$0xf]
      %v4174 = vld [vmem:[%s4142 + $0xb8] sm:$0xf]
      %4175 = vst [vmem:[#allocation4 + $0x18] sm:$0xf] %v4143
      %4176 = vst [vmem:[#allocation4 + $0x3c] sm:$0xf] %v4144
      %4177 = vst [vmem:[#allocation4 + $0x60] sm:$0xf] %v4145
      %4178 = vst [vmem:[#allocation4 + $0x84] sm:$0xf] %v4146
      %4179 = vst [vmem:[#allocation4 + $0xa8] sm:$0xf] %v4147
      %4180 = vst [vmem:[#allocation4 + $0xcc] sm:$0xf] %v4148
      %4181 = vst [vmem:[#allocation4 + $0xf0] sm:$0xf] %v4149
      %4182 = vst [vmem:[#allocation4 + $0x114] sm:$0xf] %v4150
      %4183 = vst [vmem:[#allocation4 + $0x138] sm:$0xf] %v4151
      %4184 = vst [vmem:[#allocation4 + $0x15c] sm:$0xf] %v4152
      %4185 = vst [vmem:[#allocation4 + $0x180] sm:$0xf] %v4153
      %4186 = vst [vmem:[#allocation4 + $0x1a4] sm:$0xf] %v4154
      %4187 = vst [vmem:[#allocation4 + $0x1c8] sm:$0xf] %v4155
      %4188 = vst [vmem:[#allocation4 + $0x1ec] sm:$0xf] %v4156
      %4189 = vst [vmem:[#allocation4 + $0x210] sm:$0xf] %v4157
      %4190 = vst [vmem:[#allocation4 + $0x234] sm:$0xf] %v4158
      %4191 = vst [vmem:[#allocation4 + $0x258] sm:$0xf] %v4159
      %4192 = vst [vmem:[#allocation4 + $0x27c] sm:$0xf] %v4160
      %4193 = vst [vmem:[#allocation4 + $0x2a0] sm:$0xf] %v4161
      %4194 = vst [vmem:[#allocation4 + $0x2c4] sm:$0xf] %v4162
      %4195 = vst [vmem:[#allocation4 + $0x2e8] sm:$0xf] %v4163
      %4196 = vst [vmem:[#allocation4 + $0x30c] sm:$0xf] %v4164
      %4197 = vst [vmem:[#allocation4 + $0x330] sm:$0xf] %v4165
      %4198 = vst [vmem:[#allocation4 + $0x354] sm:$0xf] %v4166
      %4199 = vst [vmem:[#allocation4 + $0x378] sm:$0xf] %v4167
      %4200 = vst [vmem:[#allocation4 + $0x39c] sm:$0xf] %v4168
      %4201 = vst [vmem:[#allocation4 + $0x3c0] sm:$0xf] %v4169
      %4202 = vst [vmem:[#allocation4 + $0x3e4] sm:$0xf] %v4170
      %4203 = vst [vmem:[#allocation4 + $0x408] sm:$0xf] %v4171
      %4204 = vst [vmem:[#allocation4 + $0x42c] sm:$0xf] %v4172
      %4205 = vst [vmem:[#allocation4 + $0x450] sm:$0xf] %v4173
      %4206 = vst [vmem:[#allocation4 + $0x474] sm:$0xf] %v4174
      %v4207 = vld [vmem:[%s4142] sm:$0xf]
      %v4208 = vld [vmem:[%s4142 + $0x4] sm:$0xf]
      %v4209 = vld [vmem:[%s4142 + $0x8] sm:$0x1]
      %v4210 = vld [vmem:[%s4142 + $0xc] sm:$0xf]
      %v4211 = vld [vmem:[%s4142 + $0x10] sm:$0xf]
      %v4212 = vld [vmem:[%s4142 + $0x14] sm:$0x1]
      %v4213 = vld [vmem:[%s4142 + $0x18] sm:$0xf]
      %v4214 = vld [vmem:[%s4142 + $0x1c] sm:$0xf]
      %v4215 = vld [vmem:[%s4142 + $0x20] sm:$0x1]
      %v4216 = vld [vmem:[%s4142 + $0x24] sm:$0xf]
      %v4217 = vld [vmem:[%s4142 + $0x28] sm:$0xf]
      %v4218 = vld [vmem:[%s4142 + $0x2c] sm:$0x1]
      %v4219 = vld [vmem:[%s4142 + $0x30] sm:$0xf]
      %v4220 = vld [vmem:[%s4142 + $0x34] sm:$0xf]
      %v4221 = vld [vmem:[%s4142 + $0x38] sm:$0x1]
      %v4222 = vld [vmem:[%s4142 + $0x3c] sm:$0xf]
      %v4223 = vld [vmem:[%s4142 + $0x40] sm:$0xf]
      %v4224 = vld [vmem:[%s4142 + $0x44] sm:$0x1]
      %v4225 = vld [vmem:[%s4142 + $0x48] sm:$0xf]
      %v4226 = vld [vmem:[%s4142 + $0x4c] sm:$0xf]
      %v4227 = vld [vmem:[%s4142 + $0x50] sm:$0x1]
      %v4228 = vld [vmem:[%s4142 + $0x54] sm:$0xf]
      %v4229 = vld [vmem:[%s4142 + $0x58] sm:$0xf]
      %v4230 = vld [vmem:[%s4142 + $0x5c] sm:$0x1]
      %v4231 = vld [vmem:[%s4142 + $0x60] sm:$0xf]
      %v4232 = vld [vmem:[%s4142 + $0x64] sm:$0xf]
      %v4233 = vld [vmem:[%s4142 + $0x68] sm:$0x1]
      %v4234 = vld [vmem:[%s4142 + $0x6c] sm:$0xf]
      %v4235 = vld [vmem:[%s4142 + $0x70] sm:$0xf]
      %v4236 = vld [vmem:[%s4142 + $0x74] sm:$0x1]
      %v4237 = vld [vmem:[%s4142 + $0x78] sm:$0xf]
      %v4238 = vld [vmem:[%s4142 + $0x7c] sm:$0xf]
      %v4239 = vld [vmem:[%s4142 + $0x80] sm:$0x1]
      %v4240 = vld [vmem:[%s4142 + $0x84] sm:$0xf]
      %v4241 = vld [vmem:[%s4142 + $0x88] sm:$0xf]
      %v4242 = vld [vmem:[%s4142 + $0x8c] sm:$0x1]
      %v4243 = vld [vmem:[%s4142 + $0x90] sm:$0xf]
      %v4244 = vld [vmem:[%s4142 + $0x94] sm:$0xf]
      %v4245 = vld [vmem:[%s4142 + $0x98] sm:$0x1]
      %v4246 = vld [vmem:[%s4142 + $0x9c] sm:$0xf]
      %v4247 = vld [vmem:[%s4142 + $0xa0] sm:$0xf]
      %v4248 = vld [vmem:[%s4142 + $0xa4] sm:$0x1]
      %v4249 = vld [vmem:[%s4142 + $0xa8] sm:$0xf]
      %v4250 = vld [vmem:[%s4142 + $0xac] sm:$0xf]
      %v4251 = vld [vmem:[%s4142 + $0xb0] sm:$0x1]
      %v4252 = vld [vmem:[%s4142 + $0xb4] sm:$0xf]
      %v4253 = vld [vmem:[%s4142 + $0xb8] sm:$0xf]
      %v4254 = vld [vmem:[%s4142 + $0xbc] sm:$0x1]
      %v4256 = vshrl.u32 %v4207, 16
      %v4258 = vrot.slane %v4256, 4
      %v4259 = vshll.u32 %v4207, 16
      %v4261 = vrot.slane %v4259, 5
      %v4262 = vor.u32 %v4258, %v4261
      %v4263 = vrot.slane %v4262, 4
      %v4265 = vshll.u32 %v4208, 16
      %v4267 = vrot.slane %v4265, 5
      %v4268 = vsel %vm2586, %v4263, %v4267
      %v4269 = vshrl.u32 %v4208, 16
      %v4271 = vrot.slane %v4269, 4
      %v4272 = vor.u32 %v4271, %v4267
      %v4273 = vrot.slane %v4272, 4
      %v4275 = vshll.u32 %v4209, 16
      %v4277 = vrot.slane %v4275, 5
      %v4278 = vsel %vm2586, %v4273, %v4277
      %v4280 = vshrl.u32 %v4210, 16
      %v4282 = vrot.slane %v4280, 4
      %v4283 = vshll.u32 %v4210, 16
      %v4285 = vrot.slane %v4283, 5
      %v4286 = vor.u32 %v4282, %v4285
      %v4287 = vrot.slane %v4286, 4
      %v4289 = vshll.u32 %v4211, 16
      %v4291 = vrot.slane %v4289, 5
      %v4292 = vsel %vm2586, %v4287, %v4291
      %v4293 = vshrl.u32 %v4211, 16
      %v4295 = vrot.slane %v4293, 4
      %v4296 = vor.u32 %v4295, %v4291
      %v4297 = vrot.slane %v4296, 4
      %v4299 = vshll.u32 %v4212, 16
      %v4301 = vrot.slane %v4299, 5
      %v4302 = vsel %vm2586, %v4297, %v4301
      %v4304 = vshrl.u32 %v4213, 16
      %v4306 = vrot.slane %v4304, 4
      %v4307 = vshll.u32 %v4213, 16
      %v4309 = vrot.slane %v4307, 5
      %v4310 = vor.u32 %v4306, %v4309
      %v4311 = vrot.slane %v4310, 4
      %v4313 = vshll.u32 %v4214, 16
      %v4315 = vrot.slane %v4313, 5
      %v4316 = vsel %vm2586, %v4311, %v4315
      %v4317 = vshrl.u32 %v4214, 16
      %v4319 = vrot.slane %v4317, 4
      %v4320 = vor.u32 %v4319, %v4315
      %v4321 = vrot.slane %v4320, 4
      %v4323 = vshll.u32 %v4215, 16
      %v4325 = vrot.slane %v4323, 5
      %v4326 = vsel %vm2586, %v4321, %v4325
      %v4328 = vshrl.u32 %v4216, 16
      %v4330 = vrot.slane %v4328, 4
      %v4331 = vshll.u32 %v4216, 16
      %v4333 = vrot.slane %v4331, 5
      %v4334 = vor.u32 %v4330, %v4333
      %v4335 = vrot.slane %v4334, 4
      %v4337 = vshll.u32 %v4217, 16
      %v4339 = vrot.slane %v4337, 5
      %v4340 = vsel %vm2586, %v4335, %v4339
      %v4341 = vshrl.u32 %v4217, 16
      %v4343 = vrot.slane %v4341, 4
      %v4344 = vor.u32 %v4343, %v4339
      %v4345 = vrot.slane %v4344, 4
      %v4347 = vshll.u32 %v4218, 16
      %v4349 = vrot.slane %v4347, 5
      %v4350 = vsel %vm2586, %v4345, %v4349
      %v4352 = vshrl.u32 %v4219, 16
      %v4354 = vrot.slane %v4352, 4
      %v4355 = vshll.u32 %v4219, 16
      %v4357 = vrot.slane %v4355, 5
      %v4358 = vor.u32 %v4354, %v4357
      %v4359 = vrot.slane %v4358, 4
      %v4361 = vshll.u32 %v4220, 16
      %v4363 = vrot.slane %v4361, 5
      %v4364 = vsel %vm2586, %v4359, %v4363
      %v4365 = vshrl.u32 %v4220, 16
      %v4367 = vrot.slane %v4365, 4
      %v4368 = vor.u32 %v4367, %v4363
      %v4369 = vrot.slane %v4368, 4
      %v4371 = vshll.u32 %v4221, 16
      %v4373 = vrot.slane %v4371, 5
      %v4374 = vsel %vm2586, %v4369, %v4373
      %v4376 = vshrl.u32 %v4222, 16
      %v4378 = vrot.slane %v4376, 4
      %v4379 = vshll.u32 %v4222, 16
      %v4381 = vrot.slane %v4379, 5
      %v4382 = vor.u32 %v4378, %v4381
      %v4383 = vrot.slane %v4382, 4
      %v4385 = vshll.u32 %v4223, 16
      %v4387 = vrot.slane %v4385, 5
      %v4388 = vsel %vm2586, %v4383, %v4387
      %v4389 = vshrl.u32 %v4223, 16
      %v4391 = vrot.slane %v4389, 4
      %v4392 = vor.u32 %v4391, %v4387
      %v4393 = vrot.slane %v4392, 4
      %v4395 = vshll.u32 %v4224, 16
      %v4397 = vrot.slane %v4395, 5
      %v4398 = vsel %vm2586, %v4393, %v4397
      %v4400 = vshrl.u32 %v4225, 16
      %v4402 = vrot.slane %v4400, 4
      %v4403 = vshll.u32 %v4225, 16
      %v4405 = vrot.slane %v4403, 5
      %v4406 = vor.u32 %v4402, %v4405
      %v4407 = vrot.slane %v4406, 4
      %v4409 = vshll.u32 %v4226, 16
      %v4411 = vrot.slane %v4409, 5
      %v4412 = vsel %vm2586, %v4407, %v4411
      %v4413 = vshrl.u32 %v4226, 16
      %v4415 = vrot.slane %v4413, 4
      %v4416 = vor.u32 %v4415, %v4411
      %v4417 = vrot.slane %v4416, 4
      %v4419 = vshll.u32 %v4227, 16
      %v4421 = vrot.slane %v4419, 5
      %v4422 = vsel %vm2586, %v4417, %v4421
      %v4424 = vshrl.u32 %v4228, 16
      %v4426 = vrot.slane %v4424, 4
      %v4427 = vshll.u32 %v4228, 16
      %v4429 = vrot.slane %v4427, 5
      %v4430 = vor.u32 %v4426, %v4429
      %v4431 = vrot.slane %v4430, 4
      %v4433 = vshll.u32 %v4229, 16
      %v4435 = vrot.slane %v4433, 5
      %v4436 = vsel %vm2586, %v4431, %v4435
      %v4437 = vshrl.u32 %v4229, 16
      %v4439 = vrot.slane %v4437, 4
      %v4440 = vor.u32 %v4439, %v4435
      %v4441 = vrot.slane %v4440, 4
      %v4443 = vshll.u32 %v4230, 16
      %v4445 = vrot.slane %v4443, 5
      %v4446 = vsel %vm2586, %v4441, %v4445
      %v4448 = vshrl.u32 %v4231, 16
      %v4450 = vrot.slane %v4448, 4
      %v4451 = vshll.u32 %v4231, 16
      %v4453 = vrot.slane %v4451, 5
      %v4454 = vor.u32 %v4450, %v4453
      %v4455 = vrot.slane %v4454, 4
      %v4457 = vshll.u32 %v4232, 16
      %v4459 = vrot.slane %v4457, 5
      %v4460 = vsel %vm2586, %v4455, %v4459
      %v4461 = vshrl.u32 %v4232, 16
      %v4463 = vrot.slane %v4461, 4
      %v4464 = vor.u32 %v4463, %v4459
      %v4465 = vrot.slane %v4464, 4
      %v4467 = vshll.u32 %v4233, 16
      %v4469 = vrot.slane %v4467, 5
      %v4470 = vsel %vm2586, %v4465, %v4469
      %v4472 = vshrl.u32 %v4234, 16
      %v4474 = vrot.slane %v4472, 4
      %v4475 = vshll.u32 %v4234, 16
      %v4477 = vrot.slane %v4475, 5
      %v4478 = vor.u32 %v4474, %v4477
      %v4479 = vrot.slane %v4478, 4
      %v4481 = vshll.u32 %v4235, 16
      %v4483 = vrot.slane %v4481, 5
      %v4484 = vsel %vm2586, %v4479, %v4483
      %v4485 = vshrl.u32 %v4235, 16
      %v4487 = vrot.slane %v4485, 4
      %v4488 = vor.u32 %v4487, %v4483
      %v4489 = vrot.slane %v4488, 4
      %v4491 = vshll.u32 %v4236, 16
      %v4493 = vrot.slane %v4491, 5
      %v4494 = vsel %vm2586, %v4489, %v4493
      %v4496 = vshrl.u32 %v4237, 16
      %v4498 = vrot.slane %v4496, 4
      %v4499 = vshll.u32 %v4237, 16
      %v4501 = vrot.slane %v4499, 5
      %v4502 = vor.u32 %v4498, %v4501
      %v4503 = vrot.slane %v4502, 4
      %v4505 = vshll.u32 %v4238, 16
      %v4507 = vrot.slane %v4505, 5
      %v4508 = vsel %vm2586, %v4503, %v4507
      %v4509 = vshrl.u32 %v4238, 16
      %v4511 = vrot.slane %v4509, 4
      %v4512 = vor.u32 %v4511, %v4507
      %v4513 = vrot.slane %v4512, 4
      %v4515 = vshll.u32 %v4239, 16
      %v4517 = vrot.slane %v4515, 5
      %v4518 = vsel %vm2586, %v4513, %v4517
      %v4520 = vshrl.u32 %v4240, 16
      %v4522 = vrot.slane %v4520, 4
      %v4523 = vshll.u32 %v4240, 16
      %v4525 = vrot.slane %v4523, 5
      %v4526 = vor.u32 %v4522, %v4525
      %v4527 = vrot.slane %v4526, 4
      %v4529 = vshll.u32 %v4241, 16
      %v4531 = vrot.slane %v4529, 5
      %v4532 = vsel %vm2586, %v4527, %v4531
      %v4533 = vshrl.u32 %v4241, 16
      %v4535 = vrot.slane %v4533, 4
      %v4536 = vor.u32 %v4535, %v4531
      %v4537 = vrot.slane %v4536, 4
      %v4539 = vshll.u32 %v4242, 16
      %v4541 = vrot.slane %v4539, 5
      %v4542 = vsel %vm2586, %v4537, %v4541
      %v4544 = vshrl.u32 %v4243, 16
      %v4546 = vrot.slane %v4544, 4
      %v4547 = vshll.u32 %v4243, 16
      %v4549 = vrot.slane %v4547, 5
      %v4550 = vor.u32 %v4546, %v4549
      %v4551 = vrot.slane %v4550, 4
      %v4553 = vshll.u32 %v4244, 16
      %v4555 = vrot.slane %v4553, 5
      %v4556 = vsel %vm2586, %v4551, %v4555
      %v4557 = vshrl.u32 %v4244, 16
      %v4559 = vrot.slane %v4557, 4
      %v4560 = vor.u32 %v4559, %v4555
      %v4561 = vrot.slane %v4560, 4
      %v4563 = vshll.u32 %v4245, 16
      %v4565 = vrot.slane %v4563, 5
      %v4566 = vsel %vm2586, %v4561, %v4565
      %v4568 = vshrl.u32 %v4246, 16
      %v4570 = vrot.slane %v4568, 4
      %v4571 = vshll.u32 %v4246, 16
      %v4573 = vrot.slane %v4571, 5
      %v4574 = vor.u32 %v4570, %v4573
      %v4575 = vrot.slane %v4574, 4
      %v4577 = vshll.u32 %v4247, 16
      %v4579 = vrot.slane %v4577, 5
      %v4580 = vsel %vm2586, %v4575, %v4579
      %v4581 = vshrl.u32 %v4247, 16
      %v4583 = vrot.slane %v4581, 4
      %v4584 = vor.u32 %v4583, %v4579
      %v4585 = vrot.slane %v4584, 4
      %v4587 = vshll.u32 %v4248, 16
      %v4589 = vrot.slane %v4587, 5
      %v4590 = vsel %vm2586, %v4585, %v4589
      %v4592 = vshrl.u32 %v4249, 16
      %v4594 = vrot.slane %v4592, 4
      %v4595 = vshll.u32 %v4249, 16
      %v4597 = vrot.slane %v4595, 5
      %v4598 = vor.u32 %v4594, %v4597
      %v4599 = vrot.slane %v4598, 4
      %v4601 = vshll.u32 %v4250, 16
      %v4603 = vrot.slane %v4601, 5
      %v4604 = vsel %vm2586, %v4599, %v4603
      %v4605 = vshrl.u32 %v4250, 16
      %v4607 = vrot.slane %v4605, 4
      %v4608 = vor.u32 %v4607, %v4603
      %v4609 = vrot.slane %v4608, 4
      %v4611 = vshll.u32 %v4251, 16
      %v4613 = vrot.slane %v4611, 5
      %v4614 = vsel %vm2586, %v4609, %v4613
      %v4616 = vshrl.u32 %v4252, 16
      %v4618 = vrot.slane %v4616, 4
      %v4619 = vshll.u32 %v4252, 16
      %v4621 = vrot.slane %v4619, 5
      %v4622 = vor.u32 %v4618, %v4621
      %v4623 = vrot.slane %v4622, 4
      %v4625 = vshll.u32 %v4253, 16
      %v4627 = vrot.slane %v4625, 5
      %v4628 = vsel %vm2586, %v4623, %v4627
      %v4629 = vshrl.u32 %v4253, 16
      %v4631 = vrot.slane %v4629, 4
      %v4632 = vor.u32 %v4631, %v4627
      %v4633 = vrot.slane %v4632, 4
      %v4635 = vshll.u32 %v4254, 16
      %v4637 = vrot.slane %v4635, 5
      %v4638 = vsel %vm2586, %v4633, %v4637
      %4671 = vst [vmem:[#allocation4 + $0x1c] sm:$0xf] %v4268
      %4672 = vst [vmem:[#allocation4 + $0x40] sm:$0xf] %v4278
      %4673 = vst [vmem:[#allocation4 + $0x64] sm:$0xf] %v4292
      %4674 = vst [vmem:[#allocation4 + $0x88] sm:$0xf] %v4302
      %4675 = vst [vmem:[#allocation4 + $0xac] sm:$0xf] %v4316
      %4676 = vst [vmem:[#allocation4 + $0xd0] sm:$0xf] %v4326
      %4677 = vst [vmem:[#allocation4 + $0xf4] sm:$0xf] %v4340
      %4678 = vst [vmem:[#allocation4 + $0x118] sm:$0xf] %v4350
      %4679 = vst [vmem:[#allocation4 + $0x13c] sm:$0xf] %v4364
      %4680 = vst [vmem:[#allocation4 + $0x160] sm:$0xf] %v4374
      %4681 = vst [vmem:[#allocation4 + $0x184] sm:$0xf] %v4388
      %4682 = vst [vmem:[#allocation4 + $0x1a8] sm:$0xf] %v4398
      %4683 = vst [vmem:[#allocation4 + $0x1cc] sm:$0xf] %v4412
      %4684 = vst [vmem:[#allocation4 + $0x1f0] sm:$0xf] %v4422
      %4685 = vst [vmem:[#allocation4 + $0x214] sm:$0xf] %v4436
      %4686 = vst [vmem:[#allocation4 + $0x238] sm:$0xf] %v4446
      %4687 = vst [vmem:[#allocation4 + $0x25c] sm:$0xf] %v4460
      %4688 = vst [vmem:[#allocation4 + $0x280] sm:$0xf] %v4470
      %4689 = vst [vmem:[#allocation4 + $0x2a4] sm:$0xf] %v4484
      %4690 = vst [vmem:[#allocation4 + $0x2c8] sm:$0xf] %v4494
      %4691 = vst [vmem:[#allocation4 + $0x2ec] sm:$0xf] %v4508
      %4692 = vst [vmem:[#allocation4 + $0x310] sm:$0xf] %v4518
      %4693 = vst [vmem:[#allocation4 + $0x334] sm:$0xf] %v4532
      %4694 = vst [vmem:[#allocation4 + $0x358] sm:$0xf] %v4542
      %4695 = vst [vmem:[#allocation4 + $0x37c] sm:$0xf] %v4556
      %4696 = vst [vmem:[#allocation4 + $0x3a0] sm:$0xf] %v4566
      %4697 = vst [vmem:[#allocation4 + $0x3c4] sm:$0xf] %v4580
      %4698 = vst [vmem:[#allocation4 + $0x3e8] sm:$0xf] %v4590
      %4699 = vst [vmem:[#allocation4 + $0x40c] sm:$0xf] %v4604
      %4700 = vst [vmem:[#allocation4 + $0x430] sm:$0xf] %v4614
      %4701 = vst [vmem:[#allocation4 + $0x454] sm:$0xf] %v4628
      %4702 = vst [vmem:[#allocation4 + $0x478] sm:$0xf] %v4638
      %v4703 = vld [vmem:[%s4142] sm:$0xe]
      %v4704 = vld [vmem:[%s4142 + $0x4] sm:$0xf]
      %v4705 = vld [vmem:[%s4142 + $0x8] sm:$0x1]
      %v4706 = vld [vmem:[%s4142 + $0xc] sm:$0xe]
      %v4707 = vld [vmem:[%s4142 + $0x10] sm:$0xf]
      %v4708 = vld [vmem:[%s4142 + $0x14] sm:$0x1]
      %v4709 = vld [vmem:[%s4142 + $0x18] sm:$0xe]
      %v4710 = vld [vmem:[%s4142 + $0x1c] sm:$0xf]
      %v4711 = vld [vmem:[%s4142 + $0x20] sm:$0x1]
      %v4712 = vld [vmem:[%s4142 + $0x24] sm:$0xe]
      %v4713 = vld [vmem:[%s4142 + $0x28] sm:$0xf]
      %v4714 = vld [vmem:[%s4142 + $0x2c] sm:$0x1]
      %v4715 = vld [vmem:[%s4142 + $0x30] sm:$0xe]
      %v4716 = vld [vmem:[%s4142 + $0x34] sm:$0xf]
      %v4717 = vld [vmem:[%s4142 + $0x38] sm:$0x1]
      %v4718 = vld [vmem:[%s4142 + $0x3c] sm:$0xe]
      %v4719 = vld [vmem:[%s4142 + $0x40] sm:$0xf]
      %v4720 = vld [vmem:[%s4142 + $0x44] sm:$0x1]
      %v4721 = vld [vmem:[%s4142 + $0x48] sm:$0xe]
      %v4722 = vld [vmem:[%s4142 + $0x4c] sm:$0xf]
      %v4723 = vld [vmem:[%s4142 + $0x50] sm:$0x1]
      %v4724 = vld [vmem:[%s4142 + $0x54] sm:$0xe]
      %v4725 = vld [vmem:[%s4142 + $0x58] sm:$0xf]
      %v4726 = vld [vmem:[%s4142 + $0x5c] sm:$0x1]
      %v4727 = vld [vmem:[%s4142 + $0x60] sm:$0xe]
      %v4728 = vld [vmem:[%s4142 + $0x64] sm:$0xf]
      %v4729 = vld [vmem:[%s4142 + $0x68] sm:$0x1]
      %v4730 = vld [vmem:[%s4142 + $0x6c] sm:$0xe]
      %v4731 = vld [vmem:[%s4142 + $0x70] sm:$0xf]
      %v4732 = vld [vmem:[%s4142 + $0x74] sm:$0x1]
      %v4733 = vld [vmem:[%s4142 + $0x78] sm:$0xe]
      %v4734 = vld [vmem:[%s4142 + $0x7c] sm:$0xf]
      %v4735 = vld [vmem:[%s4142 + $0x80] sm:$0x1]
      %v4736 = vld [vmem:[%s4142 + $0x84] sm:$0xe]
      %v4737 = vld [vmem:[%s4142 + $0x88] sm:$0xf]
      %v4738 = vld [vmem:[%s4142 + $0x8c] sm:$0x1]
      %v4739 = vld [vmem:[%s4142 + $0x90] sm:$0xe]
      %v4740 = vld [vmem:[%s4142 + $0x94] sm:$0xf]
      %v4741 = vld [vmem:[%s4142 + $0x98] sm:$0x1]
      %v4742 = vld [vmem:[%s4142 + $0x9c] sm:$0xe]
      %v4743 = vld [vmem:[%s4142 + $0xa0] sm:$0xf]
      %v4744 = vld [vmem:[%s4142 + $0xa4] sm:$0x1]
      %v4745 = vld [vmem:[%s4142 + $0xa8] sm:$0xe]
      %v4746 = vld [vmem:[%s4142 + $0xac] sm:$0xf]
      %v4747 = vld [vmem:[%s4142 + $0xb0] sm:$0x1]
      %v4748 = vld [vmem:[%s4142 + $0xb4] sm:$0xe]
      %v4749 = vld [vmem:[%s4142 + $0xb8] sm:$0xf]
      %v4750 = vld [vmem:[%s4142 + $0xbc] sm:$0x1]
      %v4799 = vrot.slane %v4703, 5
      %v4800 = vrot.slane %v4799, 4
      %v4801 = vrot.slane %v4704, 5
      %v4802 = vsel %vm3133, %v4800, %v4801
      %v4803 = vrot.slane %v4801, 4
      %v4804 = vrot.slane %v4705, 5
      %v4805 = vsel %vm3133, %v4803, %v4804
      %v4806 = vrot.slane %v4706, 5
      %v4807 = vrot.slane %v4806, 4
      %v4808 = vrot.slane %v4707, 5
      %v4809 = vsel %vm3133, %v4807, %v4808
      %v4810 = vrot.slane %v4808, 4
      %v4811 = vrot.slane %v4708, 5
      %v4812 = vsel %vm3133, %v4810, %v4811
      %v4813 = vrot.slane %v4709, 5
      %v4814 = vrot.slane %v4813, 4
      %v4815 = vrot.slane %v4710, 5
      %v4816 = vsel %vm3133, %v4814, %v4815
      %v4817 = vrot.slane %v4815, 4
      %v4818 = vrot.slane %v4711, 5
      %v4819 = vsel %vm3133, %v4817, %v4818
      %v4820 = vrot.slane %v4712, 5
      %v4821 = vrot.slane %v4820, 4
      %v4822 = vrot.slane %v4713, 5
      %v4823 = vsel %vm3133, %v4821, %v4822
      %v4824 = vrot.slane %v4822, 4
      %v4825 = vrot.slane %v4714, 5
      %v4826 = vsel %vm3133, %v4824, %v4825
      %v4827 = vrot.slane %v4715, 5
      %v4828 = vrot.slane %v4827, 4
      %v4829 = vrot.slane %v4716, 5
      %v4830 = vsel %vm3133, %v4828, %v4829
      %v4831 = vrot.slane %v4829, 4
      %v4832 = vrot.slane %v4717, 5
      %v4833 = vsel %vm3133, %v4831, %v4832
      %v4834 = vrot.slane %v4718, 5
      %v4835 = vrot.slane %v4834, 4
      %v4836 = vrot.slane %v4719, 5
      %v4837 = vsel %vm3133, %v4835, %v4836
      %v4838 = vrot.slane %v4836, 4
      %v4839 = vrot.slane %v4720, 5
      %v4840 = vsel %vm3133, %v4838, %v4839
      %v4841 = vrot.slane %v4721, 5
      %v4842 = vrot.slane %v4841, 4
      %v4843 = vrot.slane %v4722, 5
      %v4844 = vsel %vm3133, %v4842, %v4843
      %v4845 = vrot.slane %v4843, 4
      %v4846 = vrot.slane %v4723, 5
      %v4847 = vsel %vm3133, %v4845, %v4846
      %v4848 = vrot.slane %v4724, 5
      %v4849 = vrot.slane %v4848, 4
      %v4850 = vrot.slane %v4725, 5
      %v4851 = vsel %vm3133, %v4849, %v4850
      %v4852 = vrot.slane %v4850, 4
      %v4853 = vrot.slane %v4726, 5
      %v4854 = vsel %vm3133, %v4852, %v4853
      %v4855 = vrot.slane %v4727, 5
      %v4856 = vrot.slane %v4855, 4
      %v4857 = vrot.slane %v4728, 5
      %v4858 = vsel %vm3133, %v4856, %v4857
      %v4859 = vrot.slane %v4857, 4
      %v4860 = vrot.slane %v4729, 5
      %v4861 = vsel %vm3133, %v4859, %v4860
      %v4862 = vrot.slane %v4730, 5
      %v4863 = vrot.slane %v4862, 4
      %v4864 = vrot.slane %v4731, 5
      %v4865 = vsel %vm3133, %v4863, %v4864
      %v4866 = vrot.slane %v4864, 4
      %v4867 = vrot.slane %v4732, 5
      %v4868 = vsel %vm3133, %v4866, %v4867
      %v4869 = vrot.slane %v4733, 5
      %v4870 = vrot.slane %v4869, 4
      %v4871 = vrot.slane %v4734, 5
      %v4872 = vsel %vm3133, %v4870, %v4871
      %v4873 = vrot.slane %v4871, 4
      %v4874 = vrot.slane %v4735, 5
      %v4875 = vsel %vm3133, %v4873, %v4874
      %v4876 = vrot.slane %v4736, 5
      %v4877 = vrot.slane %v4876, 4
      %v4878 = vrot.slane %v4737, 5
      %v4879 = vsel %vm3133, %v4877, %v4878
      %v4880 = vrot.slane %v4878, 4
      %v4881 = vrot.slane %v4738, 5
      %v4882 = vsel %vm3133, %v4880, %v4881
      %v4883 = vrot.slane %v4739, 5
      %v4884 = vrot.slane %v4883, 4
      %v4885 = vrot.slane %v4740, 5
      %v4886 = vsel %vm3133, %v4884, %v4885
      %v4887 = vrot.slane %v4885, 4
      %v4888 = vrot.slane %v4741, 5
      %v4889 = vsel %vm3133, %v4887, %v4888
      %v4890 = vrot.slane %v4742, 5
      %v4891 = vrot.slane %v4890, 4
      %v4892 = vrot.slane %v4743, 5
      %v4893 = vsel %vm3133, %v4891, %v4892
      %v4894 = vrot.slane %v4892, 4
      %v4895 = vrot.slane %v4744, 5
      %v4896 = vsel %vm3133, %v4894, %v4895
      %v4897 = vrot.slane %v4745, 5
      %v4898 = vrot.slane %v4897, 4
      %v4899 = vrot.slane %v4746, 5
      %v4900 = vsel %vm3133, %v4898, %v4899
      %v4901 = vrot.slane %v4899, 4
      %v4902 = vrot.slane %v4747, 5
      %v4903 = vsel %vm3133, %v4901, %v4902
      %v4904 = vrot.slane %v4748, 5
      %v4905 = vrot.slane %v4904, 4
      %v4906 = vrot.slane %v4749, 5
      %v4907 = vsel %vm3133, %v4905, %v4906
      %v4908 = vrot.slane %v4906, 4
      %v4909 = vrot.slane %v4750, 5
      %v4910 = vsel %vm3133, %v4908, %v4909
      %4943 = vst [vmem:[#allocation4 + $0x20] sm:$0xf] %v4802
      %4944 = vst [vmem:[#allocation4 + $0x44] sm:$0xf] %v4805
      %4945 = vst [vmem:[#allocation4 + $0x68] sm:$0xf] %v4809
      %4946 = vst [vmem:[#allocation4 + $0x8c] sm:$0xf] %v4812
      %4947 = vst [vmem:[#allocation4 + $0xb0] sm:$0xf] %v4816
      %4948 = vst [vmem:[#allocation4 + $0xd4] sm:$0xf] %v4819
      %4949 = vst [vmem:[#allocation4 + $0xf8] sm:$0xf] %v4823
      %4950 = vst [vmem:[#allocation4 + $0x11c] sm:$0xf] %v4826
      %4951 = vst [vmem:[#allocation4 + $0x140] sm:$0xf] %v4830
      %4952 = vst [vmem:[#allocation4 + $0x164] sm:$0xf] %v4833
      %4953 = vst [vmem:[#allocation4 + $0x188] sm:$0xf] %v4837
      %4954 = vst [vmem:[#allocation4 + $0x1ac] sm:$0xf] %v4840
      %4955 = vst [vmem:[#allocation4 + $0x1d0] sm:$0xf] %v4844
      %4956 = vst [vmem:[#allocation4 + $0x1f4] sm:$0xf] %v4847
      %4957 = vst [vmem:[#allocation4 + $0x218] sm:$0xf] %v4851
      %4958 = vst [vmem:[#allocation4 + $0x23c] sm:$0xf] %v4854
      %4959 = vst [vmem:[#allocation4 + $0x260] sm:$0xf] %v4858
      %4960 = vst [vmem:[#allocation4 + $0x284] sm:$0xf] %v4861
      %4961 = vst [vmem:[#allocation4 + $0x2a8] sm:$0xf] %v4865
      %4962 = vst [vmem:[#allocation4 + $0x2cc] sm:$0xf] %v4868
      %4963 = vst [vmem:[#allocation4 + $0x2f0] sm:$0xf] %v4872
      %4964 = vst [vmem:[#allocation4 + $0x314] sm:$0xf] %v4875
      %4965 = vst [vmem:[#allocation4 + $0x338] sm:$0xf] %v4879
      %4966 = vst [vmem:[#allocation4 + $0x35c] sm:$0xf] %v4882
      %4967 = vst [vmem:[#allocation4 + $0x380] sm:$0xf] %v4886
      %4968 = vst [vmem:[#allocation4 + $0x3a4] sm:$0xf] %v4889
      %4969 = vst [vmem:[#allocation4 + $0x3c8] sm:$0xf] %v4893
      %4970 = vst [vmem:[#allocation4 + $0x3ec] sm:$0xf] %v4896
      %4971 = vst [vmem:[#allocation4 + $0x410] sm:$0xf] %v4900
      %4972 = vst [vmem:[#allocation4 + $0x434] sm:$0xf] %v4903
      %4973 = vst [vmem:[#allocation4 + $0x458] sm:$0xf] %v4907
      %4974 = vst [vmem:[#allocation4 + $0x47c] sm:$0xf] %v4910
      %v4975 = vld [vmem:[#allocation4] sm:$0xff]
      %v4976 = vld [vmem:[#allocation4 + $0x8] sm:$0xff]
      %v4977 = vld [vmem:[#allocation4 + $0x10] sm:$0xff]
      %v4978 = vld [vmem:[#allocation4 + $0x18] sm:$0xff]
      %v4979 = vld [vmem:[#allocation4 + $0x20] sm:$0xf]
      %v4980 = vld [vmem:[#allocation4 + $0x24] sm:$0xff]
      %v4981 = vld [vmem:[#allocation4 + $0x2c] sm:$0xff]
      %v4982 = vld [vmem:[#allocation4 + $0x34] sm:$0xff]
      %v4983 = vld [vmem:[#allocation4 + $0x3c] sm:$0xff]
      %v4984 = vld [vmem:[#allocation4 + $0x44] sm:$0xf]
      %v4985 = vld [vmem:[#allocation4 + $0x48] sm:$0xff]
      %v4986 = vld [vmem:[#allocation4 + $0x50] sm:$0xff]
      %v4987 = vld [vmem:[#allocation4 + $0x58] sm:$0xff]
      %v4988 = vld [vmem:[#allocation4 + $0x60] sm:$0xff]
      %v4989 = vld [vmem:[#allocation4 + $0x68] sm:$0xf]
      %v4990 = vld [vmem:[#allocation4 + $0x6c] sm:$0xff]
      %v4991 = vld [vmem:[#allocation4 + $0x74] sm:$0xff]
      %v4992 = vld [vmem:[#allocation4 + $0x7c] sm:$0xff]
      %v4993 = vld [vmem:[#allocation4 + $0x84] sm:$0xff]
      %v4994 = vld [vmem:[#allocation4 + $0x8c] sm:$0xf]
      %v4995 = vld [vmem:[#allocation4 + $0x90] sm:$0xff]
      %v4996 = vld [vmem:[#allocation4 + $0x98] sm:$0xff]
      %v4997 = vld [vmem:[#allocation4 + $0xa0] sm:$0xff]
      %v4998 = vld [vmem:[#allocation4 + $0xa8] sm:$0xff]
      %v4999 = vld [vmem:[#allocation4 + $0xb0] sm:$0xf]
      %v5000 = vld [vmem:[#allocation4 + $0xb4] sm:$0xff]
      %v5001 = vld [vmem:[#allocation4 + $0xbc] sm:$0xff]
      %v5002 = vld [vmem:[#allocation4 + $0xc4] sm:$0xff]
      %v5003 = vld [vmem:[#allocation4 + $0xcc] sm:$0xff]
      %v5004 = vld [vmem:[#allocation4 + $0xd4] sm:$0xf]
      %v5005 = vld [vmem:[#allocation4 + $0xd8] sm:$0xff]
      %v5006 = vld [vmem:[#allocation4 + $0xe0] sm:$0xff]
      %v5007 = vld [vmem:[#allocation4 + $0xe8] sm:$0xff]
      %v5008 = vld [vmem:[#allocation4 + $0xf0] sm:$0xff]
      %v5009 = vld [vmem:[#allocation4 + $0xf8] sm:$0xf]
      %v5010 = vld [vmem:[#allocation4 + $0xfc] sm:$0xff]
      %v5011 = vld [vmem:[#allocation4 + $0x104] sm:$0xff]
      %v5012 = vld [vmem:[#allocation4 + $0x10c] sm:$0xff]
      %v5013 = vld [vmem:[#allocation4 + $0x114] sm:$0xff]
      %v5014 = vld [vmem:[#allocation4 + $0x11c] sm:$0xf]
      %v5015 = vld [vmem:[#allocation4 + $0x120] sm:$0xff]
      %v5016 = vld [vmem:[#allocation4 + $0x128] sm:$0xff]
      %v5017 = vld [vmem:[#allocation4 + $0x130] sm:$0xff]
      %v5018 = vld [vmem:[#allocation4 + $0x138] sm:$0xff]
      %v5019 = vld [vmem:[#allocation4 + $0x140] sm:$0xf]
      %v5020 = vld [vmem:[#allocation4 + $0x144] sm:$0xff]
      %v5021 = vld [vmem:[#allocation4 + $0x14c] sm:$0xff]
      %v5022 = vld [vmem:[#allocation4 + $0x154] sm:$0xff]
      %v5023 = vld [vmem:[#allocation4 + $0x15c] sm:$0xff]
      %v5024 = vld [vmem:[#allocation4 + $0x164] sm:$0xf]
      %v5025 = vld [vmem:[#allocation4 + $0x168] sm:$0xff]
      %v5026 = vld [vmem:[#allocation4 + $0x170] sm:$0xff]
      %v5027 = vld [vmem:[#allocation4 + $0x178] sm:$0xff]
      %v5028 = vld [vmem:[#allocation4 + $0x180] sm:$0xff]
      %v5029 = vld [vmem:[#allocation4 + $0x188] sm:$0xf]
      %v5030 = vld [vmem:[#allocation4 + $0x18c] sm:$0xff]
      %v5031 = vld [vmem:[#allocation4 + $0x194] sm:$0xff]
      %v5032 = vld [vmem:[#allocation4 + $0x19c] sm:$0xff]
      %v5033 = vld [vmem:[#allocation4 + $0x1a4] sm:$0xff]
      %v5034 = vld [vmem:[#allocation4 + $0x1ac] sm:$0xf]
      %v5035 = vld [vmem:[#allocation4 + $0x1b0] sm:$0xff]
      %v5036 = vld [vmem:[#allocation4 + $0x1b8] sm:$0xff]
      %v5037 = vld [vmem:[#allocation4 + $0x1c0] sm:$0xff]
      %v5038 = vld [vmem:[#allocation4 + $0x1c8] sm:$0xff]
      %v5039 = vld [vmem:[#allocation4 + $0x1d0] sm:$0xf]
      %v5040 = vld [vmem:[#allocation4 + $0x1d4] sm:$0xff]
      %v5041 = vld [vmem:[#allocation4 + $0x1dc] sm:$0xff]
      %v5042 = vld [vmem:[#allocation4 + $0x1e4] sm:$0xff]
      %v5043 = vld [vmem:[#allocation4 + $0x1ec] sm:$0xff]
      %v5044 = vld [vmem:[#allocation4 + $0x1f4] sm:$0xf]
      %v5045 = vld [vmem:[#allocation4 + $0x1f8] sm:$0xff]
      %v5046 = vld [vmem:[#allocation4 + $0x200] sm:$0xff]
      %v5047 = vld [vmem:[#allocation4 + $0x208] sm:$0xff]
      %v5048 = vld [vmem:[#allocation4 + $0x210] sm:$0xff]
      %v5049 = vld [vmem:[#allocation4 + $0x218] sm:$0xf]
      %v5050 = vld [vmem:[#allocation4 + $0x21c] sm:$0xff]
      %v5051 = vld [vmem:[#allocation4 + $0x224] sm:$0xff]
      %v5052 = vld [vmem:[#allocation4 + $0x22c] sm:$0xff]
      %v5053 = vld [vmem:[#allocation4 + $0x234] sm:$0xff]
      %v5054 = vld [vmem:[#allocation4 + $0x23c] sm:$0xf]
      %v5055 = vld [vmem:[#allocation4 + $0x240] sm:$0xff]
      %v5056 = vld [vmem:[#allocation4 + $0x248] sm:$0xff]
      %v5057 = vld [vmem:[#allocation4 + $0x250] sm:$0xff]
      %v5058 = vld [vmem:[#allocation4 + $0x258] sm:$0xff]
      %v5059 = vld [vmem:[#allocation4 + $0x260] sm:$0xf]
      %v5060 = vld [vmem:[#allocation4 + $0x264] sm:$0xff]
      %v5061 = vld [vmem:[#allocation4 + $0x26c] sm:$0xff]
      %v5062 = vld [vmem:[#allocation4 + $0x274] sm:$0xff]
      %v5063 = vld [vmem:[#allocation4 + $0x27c] sm:$0xff]
      %v5064 = vld [vmem:[#allocation4 + $0x284] sm:$0xf]
      %v5065 = vld [vmem:[#allocation4 + $0x288] sm:$0xff]
      %v5066 = vld [vmem:[#allocation4 + $0x290] sm:$0xff]
      %v5067 = vld [vmem:[#allocation4 + $0x298] sm:$0xff]
      %v5068 = vld [vmem:[#allocation4 + $0x2a0] sm:$0xff]
      %v5069 = vld [vmem:[#allocation4 + $0x2a8] sm:$0xf]
      %v5070 = vld [vmem:[#allocation4 + $0x2ac] sm:$0xff]
      %v5071 = vld [vmem:[#allocation4 + $0x2b4] sm:$0xff]
      %v5072 = vld [vmem:[#allocation4 + $0x2bc] sm:$0xff]
      %v5073 = vld [vmem:[#allocation4 + $0x2c4] sm:$0xff]
      %v5074 = vld [vmem:[#allocation4 + $0x2cc] sm:$0xf]
      %v5075 = vld [vmem:[#allocation4 + $0x2d0] sm:$0xff]
      %v5076 = vld [vmem:[#allocation4 + $0x2d8] sm:$0xff]
      %v5077 = vld [vmem:[#allocation4 + $0x2e0] sm:$0xff]
      %v5078 = vld [vmem:[#allocation4 + $0x2e8] sm:$0xff]
      %v5079 = vld [vmem:[#allocation4 + $0x2f0] sm:$0xf]
      %v5080 = vld [vmem:[#allocation4 + $0x2f4] sm:$0xff]
      %v5081 = vld [vmem:[#allocation4 + $0x2fc] sm:$0xff]
      %v5082 = vld [vmem:[#allocation4 + $0x304] sm:$0xff]
      %v5083 = vld [vmem:[#allocation4 + $0x30c] sm:$0xff]
      %v5084 = vld [vmem:[#allocation4 + $0x314] sm:$0xf]
      %v5085 = vld [vmem:[#allocation4 + $0x318] sm:$0xff]
      %v5086 = vld [vmem:[#allocation4 + $0x320] sm:$0xff]
      %v5087 = vld [vmem:[#allocation4 + $0x328] sm:$0xff]
      %v5088 = vld [vmem:[#allocation4 + $0x330] sm:$0xff]
      %v5089 = vld [vmem:[#allocation4 + $0x338] sm:$0xf]
      %v5090 = vld [vmem:[#allocation4 + $0x33c] sm:$0xff]
      %v5091 = vld [vmem:[#allocation4 + $0x344] sm:$0xff]
      %v5092 = vld [vmem:[#allocation4 + $0x34c] sm:$0xff]
      %v5093 = vld [vmem:[#allocation4 + $0x354] sm:$0xff]
      %v5094 = vld [vmem:[#allocation4 + $0x35c] sm:$0xf]
      %v5095 = vld [vmem:[#allocation4 + $0x360] sm:$0xff]
      %v5096 = vld [vmem:[#allocation4 + $0x368] sm:$0xff]
      %v5097 = vld [vmem:[#allocation4 + $0x370] sm:$0xff]
      %v5098 = vld [vmem:[#allocation4 + $0x378] sm:$0xff]
      %v5099 = vld [vmem:[#allocation4 + $0x380] sm:$0xf]
      %v5100 = vld [vmem:[#allocation4 + $0x384] sm:$0xff]
      %v5101 = vld [vmem:[#allocation4 + $0x38c] sm:$0xff]
      %v5102 = vld [vmem:[#allocation4 + $0x394] sm:$0xff]
      %v5103 = vld [vmem:[#allocation4 + $0x39c] sm:$0xff]
      %v5104 = vld [vmem:[#allocation4 + $0x3a4] sm:$0xf]
      %v5105 = vld [vmem:[#allocation4 + $0x3a8] sm:$0xff]
      %v5106 = vld [vmem:[#allocation4 + $0x3b0] sm:$0xff]
      %v5107 = vld [vmem:[#allocation4 + $0x3b8] sm:$0xff]
      %v5108 = vld [vmem:[#allocation4 + $0x3c0] sm:$0xff]
      %v5109 = vld [vmem:[#allocation4 + $0x3c8] sm:$0xf]
      %v5110 = vld [vmem:[#allocation4 + $0x3cc] sm:$0xff]
      %v5111 = vld [vmem:[#allocation4 + $0x3d4] sm:$0xff]
      %v5112 = vld [vmem:[#allocation4 + $0x3dc] sm:$0xff]
      %v5113 = vld [vmem:[#allocation4 + $0x3e4] sm:$0xff]
      %v5114 = vld [vmem:[#allocation4 + $0x3ec] sm:$0xf]
      %v5115 = vld [vmem:[#allocation4 + $0x3f0] sm:$0xff]
      %v5116 = vld [vmem:[#allocation4 + $0x3f8] sm:$0xff]
      %v5117 = vld [vmem:[#allocation4 + $0x400] sm:$0xff]
      %v5118 = vld [vmem:[#allocation4 + $0x408] sm:$0xff]
      %v5119 = vld [vmem:[#allocation4 + $0x410] sm:$0xf]
      %v5120 = vld [vmem:[#allocation4 + $0x414] sm:$0xff]
      %v5121 = vld [vmem:[#allocation4 + $0x41c] sm:$0xff]
      %v5122 = vld [vmem:[#allocation4 + $0x424] sm:$0xff]
      %v5123 = vld [vmem:[#allocation4 + $0x42c] sm:$0xff]
      %v5124 = vld [vmem:[#allocation4 + $0x434] sm:$0xf]
      %v5125 = vld [vmem:[#allocation4 + $0x438] sm:$0xff]
      %v5126 = vld [vmem:[#allocation4 + $0x440] sm:$0xff]
      %v5127 = vld [vmem:[#allocation4 + $0x448] sm:$0xff]
      %v5128 = vld [vmem:[#allocation4 + $0x450] sm:$0xff]
      %v5129 = vld [vmem:[#allocation4 + $0x458] sm:$0xf]
      %v5130 = vld [vmem:[#allocation4 + $0x45c] sm:$0xff]
      %v5131 = vld [vmem:[#allocation4 + $0x464] sm:$0xff]
      %v5132 = vld [vmem:[#allocation4 + $0x46c] sm:$0xff]
      %v5133 = vld [vmem:[#allocation4 + $0x474] sm:$0xff]
      %v5134 = vld [vmem:[#allocation4 + $0x47c] sm:$0xf]
      %v5135 = vld [vmem:[%s4] sm:$0xf]
      %v5136 = vld [vmem:[%s4 + $0x4] sm:$0xf]
      %v5137 = vld [vmem:[%s4 + $0x8] sm:$0xf]
      %v5138 = vld [vmem:[%s4 + $0xc] sm:$0xf]
      %v5139 = vld [vmem:[%s4 + $0x10] sm:$0xf]
      %v5140 = vld [vmem:[%s4 + $0x14] sm:$0xf]
      %v5141 = vld [vmem:[%s4 + $0x18] sm:$0xf]
      %v5142 = vld [vmem:[%s4 + $0x1c] sm:$0xf]
      %v5143 = vld [vmem:[%s4 + $0x20] sm:$0xf]
      %v5144 = vld [vmem:[%s4 + $0x24] sm:$0xf]
      %v5145 = vld [vmem:[%s4 + $0x28] sm:$0xf]
      %v5146 = vld [vmem:[%s4 + $0x2c] sm:$0xf]
      %v5147 = vld [vmem:[%s4 + $0x30] sm:$0xf]
      %v5148 = vld [vmem:[%s4 + $0x34] sm:$0xf]
      %v5149 = vld [vmem:[%s4 + $0x38] sm:$0xf]
      %v5150 = vld [vmem:[%s4 + $0x3c] sm:$0xf]
      %v5151 = vld [vmem:[%s4 + $0x40] sm:$0xf]
      %v5152 = vld [vmem:[%s4 + $0x44] sm:$0xf]
      %v5153 = vld [vmem:[%s4 + $0x48] sm:$0xf]
      %v5154 = vld [vmem:[%s4 + $0x4c] sm:$0xf]
      %v5155 = vld [vmem:[%s4 + $0x50] sm:$0xf]
      %v5156 = vld [vmem:[%s4 + $0x54] sm:$0xf]
      %v5157 = vld [vmem:[%s4 + $0x58] sm:$0xf]
      %v5158 = vld [vmem:[%s4 + $0x5c] sm:$0xf]
      %v5159 = vld [vmem:[%s4 + $0x60] sm:$0xf]
      %v5160 = vld [vmem:[%s4 + $0x64] sm:$0xf]
      %v5161 = vld [vmem:[%s4 + $0x68] sm:$0xf]
      %v5162 = vld [vmem:[%s4 + $0x6c] sm:$0xf]
      %v5163 = vld [vmem:[%s4 + $0x70] sm:$0xf]
      %v5164 = vld [vmem:[%s4 + $0x74] sm:$0xf]
      %v5165 = vld [vmem:[%s4 + $0x78] sm:$0xf]
      %v5166 = vld [vmem:[%s4 + $0x7c] sm:$0xf]
      %v5167 = vld [vmem:[%s4 + $0x80] sm:$0xf]
      %v5168 = vld [vmem:[%s4 + $0x84] sm:$0xf]
      %v5169 = vld [vmem:[%s4 + $0x88] sm:$0xf]
      %v5170 = vld [vmem:[%s4 + $0x8c] sm:$0xf]
      %v5171 = vld [vmem:[%s4 + $0x90] sm:$0xf]
      %v5172 = vld [vmem:[%s4 + $0x94] sm:$0xf]
      %v5173 = vld [vmem:[%s4 + $0x98] sm:$0xf]
      %v5174 = vld [vmem:[%s4 + $0x9c] sm:$0xf]
      %v5175 = vld [vmem:[%s4 + $0xa0] sm:$0xf]
      %v5176 = vld [vmem:[%s4 + $0xa4] sm:$0xf]
      %v5177 = vld [vmem:[%s4 + $0xa8] sm:$0xf]
      %v5178 = vld [vmem:[%s4 + $0xac] sm:$0xf]
      %v5179 = vld [vmem:[%s4 + $0xb0] sm:$0xf]
      %v5180 = vld [vmem:[%s4 + $0xb4] sm:$0xf]
      %v5181 = vld [vmem:[%s4 + $0xb8] sm:$0xf]
      %v5182 = vld [vmem:[%s4 + $0xbc] sm:$0xf]
      %v5183 = vld [vmem:[%s4 + $0xc0] sm:$0xf]
      %v5184 = vld [vmem:[%s4 + $0xc4] sm:$0xf]
      %v5185 = vld [vmem:[%s4 + $0xc8] sm:$0xf]
      %v5186 = vld [vmem:[%s4 + $0xcc] sm:$0xf]
      %v5187 = vld [vmem:[%s4 + $0xd0] sm:$0xf]
      %v5188 = vld [vmem:[%s4 + $0xd4] sm:$0xf]
      %v5189 = vld [vmem:[%s4 + $0xd8] sm:$0xf]
      %v5190 = vld [vmem:[%s4 + $0xdc] sm:$0xf]
      %v5191 = vld [vmem:[%s4 + $0xe0] sm:$0xf]
      %v5192 = vld [vmem:[%s4 + $0xe4] sm:$0xf]
      %v5193 = vld [vmem:[%s4 + $0xe8] sm:$0xf]
      %v5194 = vld [vmem:[%s4 + $0xec] sm:$0xf]
      %v5195 = vld [vmem:[%s4 + $0xf0] sm:$0xf]
      %v5196 = vld [vmem:[%s4 + $0xf4] sm:$0xf]
      %v5197 = vld [vmem:[%s4 + $0xf8] sm:$0xf]
      %v5198 = vld [vmem:[%s4 + $0xfc] sm:$0xf]
      %v5199 = vld [vmem:[%s4 + $0x100] sm:$0xf]
      %v5200 = vld [vmem:[%s4 + $0x104] sm:$0xf]
      %v5201 = vld [vmem:[%s4 + $0x108] sm:$0xf]
      %v5202 = vld [vmem:[%s4 + $0x10c] sm:$0xf]
      %v5203 = vld [vmem:[%s4 + $0x110] sm:$0xf]
      %v5204 = vld [vmem:[%s4 + $0x114] sm:$0xf]
      %v5205 = vld [vmem:[%s4 + $0x118] sm:$0xf]
      %v5206 = vld [vmem:[%s4 + $0x11c] sm:$0xf]
      %v5207 = vld [vmem:[%s4 + $0x120] sm:$0xf]
      %v5208 = vld [vmem:[%s4 + $0x124] sm:$0xf]
      %v5209 = vld [vmem:[%s4 + $0x128] sm:$0xf]
      %v5210 = vld [vmem:[%s4 + $0x12c] sm:$0xf]
      %v5211 = vld [vmem:[%s4 + $0x130] sm:$0xf]
      %v5212 = vld [vmem:[%s4 + $0x134] sm:$0xf]
      %v5213 = vld [vmem:[%s4 + $0x138] sm:$0xf]
      %v5214 = vld [vmem:[%s4 + $0x13c] sm:$0xf]
      %v5215 = vld [vmem:[%s4 + $0x140] sm:$0xf]
      %v5216 = vld [vmem:[%s4 + $0x144] sm:$0xf]
      %v5217 = vld [vmem:[%s4 + $0x148] sm:$0xf]
      %v5218 = vld [vmem:[%s4 + $0x14c] sm:$0xf]
      %v5219 = vld [vmem:[%s4 + $0x150] sm:$0xf]
      %v5220 = vld [vmem:[%s4 + $0x154] sm:$0xf]
      %v5221 = vld [vmem:[%s4 + $0x158] sm:$0xf]
      %v5222 = vld [vmem:[%s4 + $0x15c] sm:$0xf]
      %v5223 = vld [vmem:[%s4 + $0x160] sm:$0xf]
      %v5224 = vld [vmem:[%s4 + $0x164] sm:$0xf]
      %v5225 = vld [vmem:[%s4 + $0x168] sm:$0xf]
      %v5226 = vld [vmem:[%s4 + $0x16c] sm:$0xf]
      %v5227 = vld [vmem:[%s4 + $0x170] sm:$0xf]
      %v5228 = vld [vmem:[%s4 + $0x174] sm:$0xf]
      %v5229 = vld [vmem:[%s4 + $0x178] sm:$0xf]
      %v5230 = vld [vmem:[%s4 + $0x17c] sm:$0xf]
      %v5231 = vld [vmem:[%s4 + $0x180] sm:$0xf]
      %v5232 = vld [vmem:[%s4 + $0x184] sm:$0xf]
      %v5233 = vld [vmem:[%s4 + $0x188] sm:$0xf]
      %v5234 = vld [vmem:[%s4 + $0x18c] sm:$0xf]
      %v5235 = vld [vmem:[%s4 + $0x190] sm:$0xf]
      %v5236 = vld [vmem:[%s4 + $0x194] sm:$0xf]
      %v5237 = vld [vmem:[%s4 + $0x198] sm:$0xf]
      %v5238 = vld [vmem:[%s4 + $0x19c] sm:$0xf]
      %v5239 = vld [vmem:[%s4 + $0x1a0] sm:$0xf]
      %v5240 = vld [vmem:[%s4 + $0x1a4] sm:$0xf]
      %v5241 = vld [vmem:[%s4 + $0x1a8] sm:$0xf]
      %v5242 = vld [vmem:[%s4 + $0x1ac] sm:$0xf]
      %v5243 = vld [vmem:[%s4 + $0x1b0] sm:$0xf]
      %v5244 = vld [vmem:[%s4 + $0x1b4] sm:$0xf]
      %v5245 = vld [vmem:[%s4 + $0x1b8] sm:$0xf]
      %v5246 = vld [vmem:[%s4 + $0x1bc] sm:$0xf]
      %v5247 = vld [vmem:[%s4 + $0x1c0] sm:$0xf]
      %v5248 = vld [vmem:[%s4 + $0x1c4] sm:$0xf]
      %v5249 = vld [vmem:[%s4 + $0x1c8] sm:$0xf]
      %v5250 = vld [vmem:[%s4 + $0x1cc] sm:$0xf]
      %v5251 = vld [vmem:[%s4 + $0x1d0] sm:$0xf]
      %v5252 = vld [vmem:[%s4 + $0x1d4] sm:$0xf]
      %v5253 = vld [vmem:[%s4 + $0x1d8] sm:$0xf]
      %v5254 = vld [vmem:[%s4 + $0x1dc] sm:$0xf]
      %v5255 = vld [vmem:[%s4 + $0x1e0] sm:$0xf]
      %v5256 = vld [vmem:[%s4 + $0x1e4] sm:$0xf]
      %v5257 = vld [vmem:[%s4 + $0x1e8] sm:$0xf]
      %v5258 = vld [vmem:[%s4 + $0x1ec] sm:$0xf]
      %v5259 = vld [vmem:[%s4 + $0x1f0] sm:$0xf]
      %v5260 = vld [vmem:[%s4 + $0x1f4] sm:$0xf]
      %v5261 = vld [vmem:[%s4 + $0x1f8] sm:$0xf]
      %v5262 = vld [vmem:[%s4 + $0x1fc] sm:$0xf]
      %v5263 = vld [vmem:[%s4 + $0x200] sm:$0xf]
      %v5264 = vld [vmem:[%s4 + $0x204] sm:$0xf]
      %v5265 = vld [vmem:[%s4 + $0x208] sm:$0xf]
      %v5266 = vld [vmem:[%s4 + $0x20c] sm:$0xf]
      %v5267 = vld [vmem:[%s4 + $0x210] sm:$0xf]
      %v5268 = vld [vmem:[%s4 + $0x214] sm:$0xf]
      %v5269 = vld [vmem:[%s4 + $0x218] sm:$0xf]
      %v5270 = vld [vmem:[%s4 + $0x21c] sm:$0xf]
      %v5271 = vld [vmem:[%s4 + $0x220] sm:$0xf]
      %v5272 = vld [vmem:[%s4 + $0x224] sm:$0xf]
      %v5273 = vld [vmem:[%s4 + $0x228] sm:$0xf]
      %v5274 = vld [vmem:[%s4 + $0x22c] sm:$0xf]
      %v5275 = vld [vmem:[%s4 + $0x230] sm:$0xf]
      %v5276 = vld [vmem:[%s4 + $0x234] sm:$0xf]
      %v5277 = vld [vmem:[%s4 + $0x238] sm:$0xf]
      %v5278 = vld [vmem:[%s4 + $0x23c] sm:$0xf]
      %v5439 = vunpack.c.l.b16 %v4975
      %v5440 = vunpack.c.h.b16 %v4975
      %v5441 = vunpack.c.l.b16 %v4976
      %v5442 = vunpack.c.h.b16 %v4976
      %v5443 = vunpack.c.l.b16 %v4977
      %v5444 = vunpack.c.h.b16 %v4977
      %v5445 = vunpack.c.l.b16 %v4978
      %v5446 = vunpack.c.h.b16 %v4978
      %v5447 = vunpack.c.l.b16 %v4979
      %v5448 = vunpack.c.l.b16 %v4980
      %v5449 = vunpack.c.h.b16 %v4980
      %v5450 = vunpack.c.l.b16 %v4981
      %v5451 = vunpack.c.h.b16 %v4981
      %v5452 = vunpack.c.l.b16 %v4982
      %v5453 = vunpack.c.h.b16 %v4982
      %v5454 = vunpack.c.l.b16 %v4983
      %v5455 = vunpack.c.h.b16 %v4983
      %v5456 = vunpack.c.l.b16 %v4984
      %v5457 = vunpack.c.l.b16 %v4985
      %v5458 = vunpack.c.h.b16 %v4985
      %v5459 = vunpack.c.l.b16 %v4986
      %v5460 = vunpack.c.h.b16 %v4986
      %v5461 = vunpack.c.l.b16 %v4987
      %v5462 = vunpack.c.h.b16 %v4987
      %v5463 = vunpack.c.l.b16 %v4988
      %v5464 = vunpack.c.h.b16 %v4988
      %v5465 = vunpack.c.l.b16 %v4989
      %v5466 = vunpack.c.l.b16 %v4990
      %v5467 = vunpack.c.h.b16 %v4990
      %v5468 = vunpack.c.l.b16 %v4991
      %v5469 = vunpack.c.h.b16 %v4991
      %v5470 = vunpack.c.l.b16 %v4992
      %v5471 = vunpack.c.h.b16 %v4992
      %v5472 = vunpack.c.l.b16 %v4993
      %v5473 = vunpack.c.h.b16 %v4993
      %v5474 = vunpack.c.l.b16 %v4994
      %v5475 = vunpack.c.l.b16 %v4995
      %v5476 = vunpack.c.h.b16 %v4995
      %v5477 = vunpack.c.l.b16 %v4996
      %v5478 = vunpack.c.h.b16 %v4996
      %v5479 = vunpack.c.l.b16 %v4997
      %v5480 = vunpack.c.h.b16 %v4997
      %v5481 = vunpack.c.l.b16 %v4998
      %v5482 = vunpack.c.h.b16 %v4998
      %v5483 = vunpack.c.l.b16 %v4999
      %v5484 = vunpack.c.l.b16 %v5000
      %v5485 = vunpack.c.h.b16 %v5000
      %v5486 = vunpack.c.l.b16 %v5001
      %v5487 = vunpack.c.h.b16 %v5001
      %v5488 = vunpack.c.l.b16 %v5002
      %v5489 = vunpack.c.h.b16 %v5002
      %v5490 = vunpack.c.l.b16 %v5003
      %v5491 = vunpack.c.h.b16 %v5003
      %v5492 = vunpack.c.l.b16 %v5004
      %v5493 = vunpack.c.l.b16 %v5005
      %v5494 = vunpack.c.h.b16 %v5005
      %v5495 = vunpack.c.l.b16 %v5006
      %v5496 = vunpack.c.h.b16 %v5006
      %v5497 = vunpack.c.l.b16 %v5007
      %v5498 = vunpack.c.h.b16 %v5007
      %v5499 = vunpack.c.l.b16 %v5008
      %v5500 = vunpack.c.h.b16 %v5008
      %v5501 = vunpack.c.l.b16 %v5009
      %v5502 = vunpack.c.l.b16 %v5010
      %v5503 = vunpack.c.h.b16 %v5010
      %v5504 = vunpack.c.l.b16 %v5011
      %v5505 = vunpack.c.h.b16 %v5011
      %v5506 = vunpack.c.l.b16 %v5012
      %v5507 = vunpack.c.h.b16 %v5012
      %v5508 = vunpack.c.l.b16 %v5013
      %v5509 = vunpack.c.h.b16 %v5013
      %v5510 = vunpack.c.l.b16 %v5014
      %v5511 = vunpack.c.l.b16 %v5015
      %v5512 = vunpack.c.h.b16 %v5015
      %v5513 = vunpack.c.l.b16 %v5016
      %v5514 = vunpack.c.h.b16 %v5016
      %v5515 = vunpack.c.l.b16 %v5017
      %v5516 = vunpack.c.h.b16 %v5017
      %v5517 = vunpack.c.l.b16 %v5018
      %v5518 = vunpack.c.h.b16 %v5018
      %v5519 = vunpack.c.l.b16 %v5019
      %v5520 = vunpack.c.l.b16 %v5020
      %v5521 = vunpack.c.h.b16 %v5020
      %v5522 = vunpack.c.l.b16 %v5021
      %v5523 = vunpack.c.h.b16 %v5021
      %v5524 = vunpack.c.l.b16 %v5022
      %v5525 = vunpack.c.h.b16 %v5022
      %v5526 = vunpack.c.l.b16 %v5023
      %v5527 = vunpack.c.h.b16 %v5023
      %v5528 = vunpack.c.l.b16 %v5024
      %v5529 = vunpack.c.l.b16 %v5025
      %v5530 = vunpack.c.h.b16 %v5025
      %v5531 = vunpack.c.l.b16 %v5026
      %v5532 = vunpack.c.h.b16 %v5026
      %v5533 = vunpack.c.l.b16 %v5027
      %v5534 = vunpack.c.h.b16 %v5027
      %v5535 = vunpack.c.l.b16 %v5028
      %v5536 = vunpack.c.h.b16 %v5028
      %v5537 = vunpack.c.l.b16 %v5029
      %v5538 = vunpack.c.l.b16 %v5030
      %v5539 = vunpack.c.h.b16 %v5030
      %v5540 = vunpack.c.l.b16 %v5031
      %v5541 = vunpack.c.h.b16 %v5031
      %v5542 = vunpack.c.l.b16 %v5032
      %v5543 = vunpack.c.h.b16 %v5032
      %v5544 = vunpack.c.l.b16 %v5033
      %v5545 = vunpack.c.h.b16 %v5033
      %v5546 = vunpack.c.l.b16 %v5034
      %v5547 = vunpack.c.l.b16 %v5035
      %v5548 = vunpack.c.h.b16 %v5035
      %v5549 = vunpack.c.l.b16 %v5036
      %v5550 = vunpack.c.h.b16 %v5036
      %v5551 = vunpack.c.l.b16 %v5037
      %v5552 = vunpack.c.h.b16 %v5037
      %v5553 = vunpack.c.l.b16 %v5038
      %v5554 = vunpack.c.h.b16 %v5038
      %v5555 = vunpack.c.l.b16 %v5039
      %v5556 = vunpack.c.l.b16 %v5040
      %v5557 = vunpack.c.h.b16 %v5040
      %v5558 = vunpack.c.l.b16 %v5041
      %v5559 = vunpack.c.h.b16 %v5041
      %v5560 = vunpack.c.l.b16 %v5042
      %v5561 = vunpack.c.h.b16 %v5042
      %v5562 = vunpack.c.l.b16 %v5043
      %v5563 = vunpack.c.h.b16 %v5043
      %v5564 = vunpack.c.l.b16 %v5044
      %v5565 = vunpack.c.l.b16 %v5045
      %v5566 = vunpack.c.h.b16 %v5045
      %v5567 = vunpack.c.l.b16 %v5046
      %v5568 = vunpack.c.h.b16 %v5046
      %v5569 = vunpack.c.l.b16 %v5047
      %v5570 = vunpack.c.h.b16 %v5047
      %v5571 = vunpack.c.l.b16 %v5048
      %v5572 = vunpack.c.h.b16 %v5048
      %v5573 = vunpack.c.l.b16 %v5049
      %v5574 = vunpack.c.l.b16 %v5050
      %v5575 = vunpack.c.h.b16 %v5050
      %v5576 = vunpack.c.l.b16 %v5051
      %v5577 = vunpack.c.h.b16 %v5051
      %v5578 = vunpack.c.l.b16 %v5052
      %v5579 = vunpack.c.h.b16 %v5052
      %v5580 = vunpack.c.l.b16 %v5053
      %v5581 = vunpack.c.h.b16 %v5053
      %v5582 = vunpack.c.l.b16 %v5054
      %v5583 = vunpack.c.l.b16 %v5055
      %v5584 = vunpack.c.h.b16 %v5055
      %v5585 = vunpack.c.l.b16 %v5056
      %v5586 = vunpack.c.h.b16 %v5056
      %v5587 = vunpack.c.l.b16 %v5057
      %v5588 = vunpack.c.h.b16 %v5057
      %v5589 = vunpack.c.l.b16 %v5058
      %v5590 = vunpack.c.h.b16 %v5058
      %v5591 = vunpack.c.l.b16 %v5059
      %v5592 = vunpack.c.l.b16 %v5060
      %v5593 = vunpack.c.h.b16 %v5060
      %v5594 = vunpack.c.l.b16 %v5061
      %v5595 = vunpack.c.h.b16 %v5061
      %v5596 = vunpack.c.l.b16 %v5062
      %v5597 = vunpack.c.h.b16 %v5062
      %v5598 = vunpack.c.l.b16 %v5063
      %v5599 = vunpack.c.h.b16 %v5063
      %v5600 = vunpack.c.l.b16 %v5064
      %v5601 = vunpack.c.l.b16 %v5065
      %v5602 = vunpack.c.h.b16 %v5065
      %v5603 = vunpack.c.l.b16 %v5066
      %v5604 = vunpack.c.h.b16 %v5066
      %v5605 = vunpack.c.l.b16 %v5067
      %v5606 = vunpack.c.h.b16 %v5067
      %v5607 = vunpack.c.l.b16 %v5068
      %v5608 = vunpack.c.h.b16 %v5068
      %v5609 = vunpack.c.l.b16 %v5069
      %v5610 = vunpack.c.l.b16 %v5070
      %v5611 = vunpack.c.h.b16 %v5070
      %v5612 = vunpack.c.l.b16 %v5071
      %v5613 = vunpack.c.h.b16 %v5071
      %v5614 = vunpack.c.l.b16 %v5072
      %v5615 = vunpack.c.h.b16 %v5072
      %v5616 = vunpack.c.l.b16 %v5073
      %v5617 = vunpack.c.h.b16 %v5073
      %v5618 = vunpack.c.l.b16 %v5074
      %v5619 = vunpack.c.l.b16 %v5075
      %v5620 = vunpack.c.h.b16 %v5075
      %v5621 = vunpack.c.l.b16 %v5076
      %v5622 = vunpack.c.h.b16 %v5076
      %v5623 = vunpack.c.l.b16 %v5077
      %v5624 = vunpack.c.h.b16 %v5077
      %v5625 = vunpack.c.l.b16 %v5078
      %v5626 = vunpack.c.h.b16 %v5078
      %v5627 = vunpack.c.l.b16 %v5079
      %v5628 = vunpack.c.l.b16 %v5080
      %v5629 = vunpack.c.h.b16 %v5080
      %v5630 = vunpack.c.l.b16 %v5081
      %v5631 = vunpack.c.h.b16 %v5081
      %v5632 = vunpack.c.l.b16 %v5082
      %v5633 = vunpack.c.h.b16 %v5082
      %v5634 = vunpack.c.l.b16 %v5083
      %v5635 = vunpack.c.h.b16 %v5083
      %v5636 = vunpack.c.l.b16 %v5084
      %v5637 = vunpack.c.l.b16 %v5085
      %v5638 = vunpack.c.h.b16 %v5085
      %v5639 = vunpack.c.l.b16 %v5086
      %v5640 = vunpack.c.h.b16 %v5086
      %v5641 = vunpack.c.l.b16 %v5087
      %v5642 = vunpack.c.h.b16 %v5087
      %v5643 = vunpack.c.l.b16 %v5088
      %v5644 = vunpack.c.h.b16 %v5088
      %v5645 = vunpack.c.l.b16 %v5089
      %v5646 = vunpack.c.l.b16 %v5090
      %v5647 = vunpack.c.h.b16 %v5090
      %v5648 = vunpack.c.l.b16 %v5091
      %v5649 = vunpack.c.h.b16 %v5091
      %v5650 = vunpack.c.l.b16 %v5092
      %v5651 = vunpack.c.h.b16 %v5092
      %v5652 = vunpack.c.l.b16 %v5093
      %v5653 = vunpack.c.h.b16 %v5093
      %v5654 = vunpack.c.l.b16 %v5094
      %v5655 = vunpack.c.l.b16 %v5095
      %v5656 = vunpack.c.h.b16 %v5095
      %v5657 = vunpack.c.l.b16 %v5096
      %v5658 = vunpack.c.h.b16 %v5096
      %v5659 = vunpack.c.l.b16 %v5097
      %v5660 = vunpack.c.h.b16 %v5097
      %v5661 = vunpack.c.l.b16 %v5098
      %v5662 = vunpack.c.h.b16 %v5098
      %v5663 = vunpack.c.l.b16 %v5099
      %v5664 = vunpack.c.l.b16 %v5100
      %v5665 = vunpack.c.h.b16 %v5100
      %v5666 = vunpack.c.l.b16 %v5101
      %v5667 = vunpack.c.h.b16 %v5101
      %v5668 = vunpack.c.l.b16 %v5102
      %v5669 = vunpack.c.h.b16 %v5102
      %v5670 = vunpack.c.l.b16 %v5103
      %v5671 = vunpack.c.h.b16 %v5103
      %v5672 = vunpack.c.l.b16 %v5104
      %v5673 = vunpack.c.l.b16 %v5105
      %v5674 = vunpack.c.h.b16 %v5105
      %v5675 = vunpack.c.l.b16 %v5106
      %v5676 = vunpack.c.h.b16 %v5106
      %v5677 = vunpack.c.l.b16 %v5107
      %v5678 = vunpack.c.h.b16 %v5107
      %v5679 = vunpack.c.l.b16 %v5108
      %v5680 = vunpack.c.h.b16 %v5108
      %v5681 = vunpack.c.l.b16 %v5109
      %v5682 = vunpack.c.l.b16 %v5110
      %v5683 = vunpack.c.h.b16 %v5110
      %v5684 = vunpack.c.l.b16 %v5111
      %v5685 = vunpack.c.h.b16 %v5111
      %v5686 = vunpack.c.l.b16 %v5112
      %v5687 = vunpack.c.h.b16 %v5112
      %v5688 = vunpack.c.l.b16 %v5113
      %v5689 = vunpack.c.h.b16 %v5113
      %v5690 = vunpack.c.l.b16 %v5114
      %v5691 = vunpack.c.l.b16 %v5115
      %v5692 = vunpack.c.h.b16 %v5115
      %v5693 = vunpack.c.l.b16 %v5116
      %v5694 = vunpack.c.h.b16 %v5116
      %v5695 = vunpack.c.l.b16 %v5117
      %v5696 = vunpack.c.h.b16 %v5117
      %v5697 = vunpack.c.l.b16 %v5118
      %v5698 = vunpack.c.h.b16 %v5118
      %v5699 = vunpack.c.l.b16 %v5119
      %v5700 = vunpack.c.l.b16 %v5120
      %v5701 = vunpack.c.h.b16 %v5120
      %v5702 = vunpack.c.l.b16 %v5121
      %v5703 = vunpack.c.h.b16 %v5121
      %v5704 = vunpack.c.l.b16 %v5122
      %v5705 = vunpack.c.h.b16 %v5122
      %v5706 = vunpack.c.l.b16 %v5123
      %v5707 = vunpack.c.h.b16 %v5123
      %v5708 = vunpack.c.l.b16 %v5124
      %v5709 = vunpack.c.l.b16 %v5125
      %v5710 = vunpack.c.h.b16 %v5125
      %v5711 = vunpack.c.l.b16 %v5126
      %v5712 = vunpack.c.h.b16 %v5126
      %v5713 = vunpack.c.l.b16 %v5127
      %v5714 = vunpack.c.h.b16 %v5127
      %v5715 = vunpack.c.l.b16 %v5128
      %v5716 = vunpack.c.h.b16 %v5128
      %v5717 = vunpack.c.l.b16 %v5129
      %v5718 = vunpack.c.l.b16 %v5130
      %v5719 = vunpack.c.h.b16 %v5130
      %v5720 = vunpack.c.l.b16 %v5131
      %v5721 = vunpack.c.h.b16 %v5131
      %v5722 = vunpack.c.l.b16 %v5132
      %v5723 = vunpack.c.h.b16 %v5132
      %v5724 = vunpack.c.l.b16 %v5133
      %v5725 = vunpack.c.h.b16 %v5133
      %v5726 = vunpack.c.l.b16 %v5134
      %v5727 = vpack.c.b16 %v5448, %v5439
      %v5728 = vpack.c.b16 %v5449, %v5440
      %v5729 = vpack.c.b16 %v5450, %v5441
      %v5730 = vpack.c.b16 %v5451, %v5442
      %v5731 = vpack.c.b16 %v5452, %v5443
      %v5732 = vpack.c.b16 %v5453, %v5444
      %v5733 = vpack.c.b16 %v5454, %v5445
      %v5734 = vpack.c.b16 %v5455, %v5446
      %v5735 = vpack.c.b16 %v5456, %v5447
      %v5736 = vpack.c.b16 %v5466, %v5457
      %v5737 = vpack.c.b16 %v5467, %v5458
      %v5738 = vpack.c.b16 %v5468, %v5459
      %v5739 = vpack.c.b16 %v5469, %v5460
      %v5740 = vpack.c.b16 %v5470, %v5461
      %v5741 = vpack.c.b16 %v5471, %v5462
      %v5742 = vpack.c.b16 %v5472, %v5463
      %v5743 = vpack.c.b16 %v5473, %v5464
      %v5744 = vpack.c.b16 %v5474, %v5465
      %v5745 = vpack.c.b16 %v5484, %v5475
      %v5746 = vpack.c.b16 %v5485, %v5476
      %v5747 = vpack.c.b16 %v5486, %v5477
      %v5748 = vpack.c.b16 %v5487, %v5478
      %v5749 = vpack.c.b16 %v5488, %v5479
      %v5750 = vpack.c.b16 %v5489, %v5480
      %v5751 = vpack.c.b16 %v5490, %v5481
      %v5752 = vpack.c.b16 %v5491, %v5482
      %v5753 = vpack.c.b16 %v5492, %v5483
      %v5754 = vpack.c.b16 %v5502, %v5493
      %v5755 = vpack.c.b16 %v5503, %v5494
      %v5756 = vpack.c.b16 %v5504, %v5495
      %v5757 = vpack.c.b16 %v5505, %v5496
      %v5758 = vpack.c.b16 %v5506, %v5497
      %v5759 = vpack.c.b16 %v5507, %v5498
      %v5760 = vpack.c.b16 %v5508, %v5499
      %v5761 = vpack.c.b16 %v5509, %v5500
      %v5762 = vpack.c.b16 %v5510, %v5501
      %v5763 = vpack.c.b16 %v5520, %v5511
      %v5764 = vpack.c.b16 %v5521, %v5512
      %v5765 = vpack.c.b16 %v5522, %v5513
      %v5766 = vpack.c.b16 %v5523, %v5514
      %v5767 = vpack.c.b16 %v5524, %v5515
      %v5768 = vpack.c.b16 %v5525, %v5516
      %v5769 = vpack.c.b16 %v5526, %v5517
      %v5770 = vpack.c.b16 %v5527, %v5518
      %v5771 = vpack.c.b16 %v5528, %v5519
      %v5772 = vpack.c.b16 %v5538, %v5529
      %v5773 = vpack.c.b16 %v5539, %v5530
      %v5774 = vpack.c.b16 %v5540, %v5531
      %v5775 = vpack.c.b16 %v5541, %v5532
      %v5776 = vpack.c.b16 %v5542, %v5533
      %v5777 = vpack.c.b16 %v5543, %v5534
      %v5778 = vpack.c.b16 %v5544, %v5535
      %v5779 = vpack.c.b16 %v5545, %v5536
      %v5780 = vpack.c.b16 %v5546, %v5537
      %v5781 = vpack.c.b16 %v5556, %v5547
      %v5782 = vpack.c.b16 %v5557, %v5548
      %v5783 = vpack.c.b16 %v5558, %v5549
      %v5784 = vpack.c.b16 %v5559, %v5550
      %v5785 = vpack.c.b16 %v5560, %v5551
      %v5786 = vpack.c.b16 %v5561, %v5552
      %v5787 = vpack.c.b16 %v5562, %v5553
      %v5788 = vpack.c.b16 %v5563, %v5554
      %v5789 = vpack.c.b16 %v5564, %v5555
      %v5790 = vpack.c.b16 %v5574, %v5565
      %v5791 = vpack.c.b16 %v5575, %v5566
      %v5792 = vpack.c.b16 %v5576, %v5567
      %v5793 = vpack.c.b16 %v5577, %v5568
      %v5794 = vpack.c.b16 %v5578, %v5569
      %v5795 = vpack.c.b16 %v5579, %v5570
      %v5796 = vpack.c.b16 %v5580, %v5571
      %v5797 = vpack.c.b16 %v5581, %v5572
      %v5798 = vpack.c.b16 %v5582, %v5573
      %v5799 = vpack.c.b16 %v5592, %v5583
      %v5800 = vpack.c.b16 %v5593, %v5584
      %v5801 = vpack.c.b16 %v5594, %v5585
      %v5802 = vpack.c.b16 %v5595, %v5586
      %v5803 = vpack.c.b16 %v5596, %v5587
      %v5804 = vpack.c.b16 %v5597, %v5588
      %v5805 = vpack.c.b16 %v5598, %v5589
      %v5806 = vpack.c.b16 %v5599, %v5590
      %v5807 = vpack.c.b16 %v5600, %v5591
      %v5808 = vpack.c.b16 %v5610, %v5601
      %v5809 = vpack.c.b16 %v5611, %v5602
      %v5810 = vpack.c.b16 %v5612, %v5603
      %v5811 = vpack.c.b16 %v5613, %v5604
      %v5812 = vpack.c.b16 %v5614, %v5605
      %v5813 = vpack.c.b16 %v5615, %v5606
      %v5814 = vpack.c.b16 %v5616, %v5607
      %v5815 = vpack.c.b16 %v5617, %v5608
      %v5816 = vpack.c.b16 %v5618, %v5609
      %v5817 = vpack.c.b16 %v5628, %v5619
      %v5818 = vpack.c.b16 %v5629, %v5620
      %v5819 = vpack.c.b16 %v5630, %v5621
      %v5820 = vpack.c.b16 %v5631, %v5622
      %v5821 = vpack.c.b16 %v5632, %v5623
      %v5822 = vpack.c.b16 %v5633, %v5624
      %v5823 = vpack.c.b16 %v5634, %v5625
      %v5824 = vpack.c.b16 %v5635, %v5626
      %v5825 = vpack.c.b16 %v5636, %v5627
      %v5826 = vpack.c.b16 %v5646, %v5637
      %v5827 = vpack.c.b16 %v5647, %v5638
      %v5828 = vpack.c.b16 %v5648, %v5639
      %v5829 = vpack.c.b16 %v5649, %v5640
      %v5830 = vpack.c.b16 %v5650, %v5641
      %v5831 = vpack.c.b16 %v5651, %v5642
      %v5832 = vpack.c.b16 %v5652, %v5643
      %v5833 = vpack.c.b16 %v5653, %v5644
      %v5834 = vpack.c.b16 %v5654, %v5645
      %v5835 = vpack.c.b16 %v5664, %v5655
      %v5836 = vpack.c.b16 %v5665, %v5656
      %v5837 = vpack.c.b16 %v5666, %v5657
      %v5838 = vpack.c.b16 %v5667, %v5658
      %v5839 = vpack.c.b16 %v5668, %v5659
      %v5840 = vpack.c.b16 %v5669, %v5660
      %v5841 = vpack.c.b16 %v5670, %v5661
      %v5842 = vpack.c.b16 %v5671, %v5662
      %v5843 = vpack.c.b16 %v5672, %v5663
      %v5844 = vpack.c.b16 %v5682, %v5673
      %v5845 = vpack.c.b16 %v5683, %v5674
      %v5846 = vpack.c.b16 %v5684, %v5675
      %v5847 = vpack.c.b16 %v5685, %v5676
      %v5848 = vpack.c.b16 %v5686, %v5677
      %v5849 = vpack.c.b16 %v5687, %v5678
      %v5850 = vpack.c.b16 %v5688, %v5679
      %v5851 = vpack.c.b16 %v5689, %v5680
      %v5852 = vpack.c.b16 %v5690, %v5681
      %v5853 = vpack.c.b16 %v5700, %v5691
      %v5854 = vpack.c.b16 %v5701, %v5692
      %v5855 = vpack.c.b16 %v5702, %v5693
      %v5856 = vpack.c.b16 %v5703, %v5694
      %v5857 = vpack.c.b16 %v5704, %v5695
      %v5858 = vpack.c.b16 %v5705, %v5696
      %v5859 = vpack.c.b16 %v5706, %v5697
      %v5860 = vpack.c.b16 %v5707, %v5698
      %v5861 = vpack.c.b16 %v5708, %v5699
      %v5862 = vpack.c.b16 %v5718, %v5709
      %v5863 = vpack.c.b16 %v5719, %v5710
      %v5864 = vpack.c.b16 %v5720, %v5711
      %v5865 = vpack.c.b16 %v5721, %v5712
      %v5866 = vpack.c.b16 %v5722, %v5713
      %v5867 = vpack.c.b16 %v5723, %v5714
      %v5868 = vpack.c.b16 %v5724, %v5715
      %v5869 = vpack.c.b16 %v5725, %v5716
      %v5870 = vpack.c.b16 %v5726, %v5717
      %v6159 = vunpack.c.l.b16 %v5135
      %v6160 = vunpack.c.l.b16 %v5136
      %v6161 = vunpack.c.l.b16 %v5137
      %v6162 = vunpack.c.l.b16 %v5138
      %v6163 = vunpack.c.l.b16 %v5139
      %v6164 = vunpack.c.l.b16 %v5140
      %v6165 = vunpack.c.l.b16 %v5141
      %v6166 = vunpack.c.l.b16 %v5142
      %v6167 = vunpack.c.l.b16 %v5143
      %v6168 = vunpack.c.l.b16 %v5144
      %v6169 = vunpack.c.l.b16 %v5145
      %v6170 = vunpack.c.l.b16 %v5146
      %v6171 = vunpack.c.l.b16 %v5147
      %v6172 = vunpack.c.l.b16 %v5148
      %v6173 = vunpack.c.l.b16 %v5149
      %v6174 = vunpack.c.l.b16 %v5150
      %v6175 = vunpack.c.l.b16 %v5151
      %v6176 = vunpack.c.l.b16 %v5152
      %v6177 = vunpack.c.l.b16 %v5153
      %v6178 = vunpack.c.l.b16 %v5154
      %v6179 = vunpack.c.l.b16 %v5155
      %v6180 = vunpack.c.l.b16 %v5156
      %v6181 = vunpack.c.l.b16 %v5157
      %v6182 = vunpack.c.l.b16 %v5158
      %v6183 = vunpack.c.l.b16 %v5159
      %v6184 = vunpack.c.l.b16 %v5160
      %v6185 = vunpack.c.l.b16 %v5161
      %v6186 = vunpack.c.l.b16 %v5162
      %v6187 = vunpack.c.l.b16 %v5163
      %v6188 = vunpack.c.l.b16 %v5164
      %v6189 = vunpack.c.l.b16 %v5165
      %v6190 = vunpack.c.l.b16 %v5166
      %v6191 = vunpack.c.l.b16 %v5167
      %v6192 = vunpack.c.l.b16 %v5168
      %v6193 = vunpack.c.l.b16 %v5169
      %v6194 = vunpack.c.l.b16 %v5170
      %v6195 = vunpack.c.l.b16 %v5171
      %v6196 = vunpack.c.l.b16 %v5172
      %v6197 = vunpack.c.l.b16 %v5173
      %v6198 = vunpack.c.l.b16 %v5174
      %v6199 = vunpack.c.l.b16 %v5175
      %v6200 = vunpack.c.l.b16 %v5176
      %v6201 = vunpack.c.l.b16 %v5177
      %v6202 = vunpack.c.l.b16 %v5178
      %v6203 = vunpack.c.l.b16 %v5179
      %v6204 = vunpack.c.l.b16 %v5180
      %v6205 = vunpack.c.l.b16 %v5181
      %v6206 = vunpack.c.l.b16 %v5182
      %v6207 = vunpack.c.l.b16 %v5183
      %v6208 = vunpack.c.l.b16 %v5184
      %v6209 = vunpack.c.l.b16 %v5185
      %v6210 = vunpack.c.l.b16 %v5186
      %v6211 = vunpack.c.l.b16 %v5187
      %v6212 = vunpack.c.l.b16 %v5188
      %v6213 = vunpack.c.l.b16 %v5189
      %v6214 = vunpack.c.l.b16 %v5190
      %v6215 = vunpack.c.l.b16 %v5191
      %v6216 = vunpack.c.l.b16 %v5192
      %v6217 = vunpack.c.l.b16 %v5193
      %v6218 = vunpack.c.l.b16 %v5194
      %v6219 = vunpack.c.l.b16 %v5195
      %v6220 = vunpack.c.l.b16 %v5196
      %v6221 = vunpack.c.l.b16 %v5197
      %v6222 = vunpack.c.l.b16 %v5198
      %v6223 = vunpack.c.l.b16 %v5199
      %v6224 = vunpack.c.l.b16 %v5200
      %v6225 = vunpack.c.l.b16 %v5201
      %v6226 = vunpack.c.l.b16 %v5202
      %v6227 = vunpack.c.l.b16 %v5203
      %v6228 = vunpack.c.l.b16 %v5204
      %v6229 = vunpack.c.l.b16 %v5205
      %v6230 = vunpack.c.l.b16 %v5206
      %v6231 = vunpack.c.l.b16 %v5207
      %v6232 = vunpack.c.l.b16 %v5208
      %v6233 = vunpack.c.l.b16 %v5209
      %v6234 = vunpack.c.l.b16 %v5210
      %v6235 = vunpack.c.l.b16 %v5211
      %v6236 = vunpack.c.l.b16 %v5212
      %v6237 = vunpack.c.l.b16 %v5213
      %v6238 = vunpack.c.l.b16 %v5214
      %v6239 = vunpack.c.l.b16 %v5215
      %v6240 = vunpack.c.l.b16 %v5216
      %v6241 = vunpack.c.l.b16 %v5217
      %v6242 = vunpack.c.l.b16 %v5218
      %v6243 = vunpack.c.l.b16 %v5219
      %v6244 = vunpack.c.l.b16 %v5220
      %v6245 = vunpack.c.l.b16 %v5221
      %v6246 = vunpack.c.l.b16 %v5222
      %v6247 = vunpack.c.l.b16 %v5223
      %v6248 = vunpack.c.l.b16 %v5224
      %v6249 = vunpack.c.l.b16 %v5225
      %v6250 = vunpack.c.l.b16 %v5226
      %v6251 = vunpack.c.l.b16 %v5227
      %v6252 = vunpack.c.l.b16 %v5228
      %v6253 = vunpack.c.l.b16 %v5229
      %v6254 = vunpack.c.l.b16 %v5230
      %v6255 = vunpack.c.l.b16 %v5231
      %v6256 = vunpack.c.l.b16 %v5232
      %v6257 = vunpack.c.l.b16 %v5233
      %v6258 = vunpack.c.l.b16 %v5234
      %v6259 = vunpack.c.l.b16 %v5235
      %v6260 = vunpack.c.l.b16 %v5236
      %v6261 = vunpack.c.l.b16 %v5237
      %v6262 = vunpack.c.l.b16 %v5238
      %v6263 = vunpack.c.l.b16 %v5239
      %v6264 = vunpack.c.l.b16 %v5240
      %v6265 = vunpack.c.l.b16 %v5241
      %v6266 = vunpack.c.l.b16 %v5242
      %v6267 = vunpack.c.l.b16 %v5243
      %v6268 = vunpack.c.l.b16 %v5244
      %v6269 = vunpack.c.l.b16 %v5245
      %v6270 = vunpack.c.l.b16 %v5246
      %v6271 = vunpack.c.l.b16 %v5247
      %v6272 = vunpack.c.l.b16 %v5248
      %v6273 = vunpack.c.l.b16 %v5249
      %v6274 = vunpack.c.l.b16 %v5250
      %v6275 = vunpack.c.l.b16 %v5251
      %v6276 = vunpack.c.l.b16 %v5252
      %v6277 = vunpack.c.l.b16 %v5253
      %v6278 = vunpack.c.l.b16 %v5254
      %v6279 = vunpack.c.l.b16 %v5255
      %v6280 = vunpack.c.l.b16 %v5256
      %v6281 = vunpack.c.l.b16 %v5257
      %v6282 = vunpack.c.l.b16 %v5258
      %v6283 = vunpack.c.l.b16 %v5259
      %v6284 = vunpack.c.l.b16 %v5260
      %v6285 = vunpack.c.l.b16 %v5261
      %v6286 = vunpack.c.l.b16 %v5262
      %v6287 = vunpack.c.l.b16 %v5263
      %v6288 = vunpack.c.l.b16 %v5264
      %v6289 = vunpack.c.l.b16 %v5265
      %v6290 = vunpack.c.l.b16 %v5266
      %v6291 = vunpack.c.l.b16 %v5267
      %v6292 = vunpack.c.l.b16 %v5268
      %v6293 = vunpack.c.l.b16 %v5269
      %v6294 = vunpack.c.l.b16 %v5270
      %v6295 = vunpack.c.l.b16 %v5271
      %v6296 = vunpack.c.l.b16 %v5272
      %v6297 = vunpack.c.l.b16 %v5273
      %v6298 = vunpack.c.l.b16 %v5274
      %v6299 = vunpack.c.l.b16 %v5275
      %v6300 = vunpack.c.l.b16 %v5276
      %v6301 = vunpack.c.l.b16 %v5277
      %v6302 = vunpack.c.l.b16 %v5278
      %v6303 = vpack.c.b16 %v6160, %v6159
      %v6304 = vpack.c.b16 %v6162, %v6161
      %v6305 = vpack.c.b16 %v6164, %v6163
      %v6306 = vpack.c.b16 %v6166, %v6165
      %v6307 = vpack.c.b16 %v6168, %v6167
      %v6308 = vpack.c.b16 %v6170, %v6169
      %v6309 = vpack.c.b16 %v6172, %v6171
      %v6310 = vpack.c.b16 %v6174, %v6173
      %v6311 = vpack.c.b16 %v6176, %v6175
      %v6312 = vpack.c.b16 %v6178, %v6177
      %v6313 = vpack.c.b16 %v6180, %v6179
      %v6314 = vpack.c.b16 %v6182, %v6181
      %v6315 = vpack.c.b16 %v6184, %v6183
      %v6316 = vpack.c.b16 %v6186, %v6185
      %v6317 = vpack.c.b16 %v6188, %v6187
      %v6318 = vpack.c.b16 %v6190, %v6189
      %v6319 = vpack.c.b16 %v6192, %v6191
      %v6320 = vpack.c.b16 %v6194, %v6193
      %v6321 = vpack.c.b16 %v6196, %v6195
      %v6322 = vpack.c.b16 %v6198, %v6197
      %v6323 = vpack.c.b16 %v6200, %v6199
      %v6324 = vpack.c.b16 %v6202, %v6201
      %v6325 = vpack.c.b16 %v6204, %v6203
      %v6326 = vpack.c.b16 %v6206, %v6205
      %v6327 = vpack.c.b16 %v6208, %v6207
      %v6328 = vpack.c.b16 %v6210, %v6209
      %v6329 = vpack.c.b16 %v6212, %v6211
      %v6330 = vpack.c.b16 %v6214, %v6213
      %v6331 = vpack.c.b16 %v6216, %v6215
      %v6332 = vpack.c.b16 %v6218, %v6217
      %v6333 = vpack.c.b16 %v6220, %v6219
      %v6334 = vpack.c.b16 %v6222, %v6221
      %v6335 = vpack.c.b16 %v6224, %v6223
      %v6336 = vpack.c.b16 %v6226, %v6225
      %v6337 = vpack.c.b16 %v6228, %v6227
      %v6338 = vpack.c.b16 %v6230, %v6229
      %v6339 = vpack.c.b16 %v6232, %v6231
      %v6340 = vpack.c.b16 %v6234, %v6233
      %v6341 = vpack.c.b16 %v6236, %v6235
      %v6342 = vpack.c.b16 %v6238, %v6237
      %v6343 = vpack.c.b16 %v6240, %v6239
      %v6344 = vpack.c.b16 %v6242, %v6241
      %v6345 = vpack.c.b16 %v6244, %v6243
      %v6346 = vpack.c.b16 %v6246, %v6245
      %v6347 = vpack.c.b16 %v6248, %v6247
      %v6348 = vpack.c.b16 %v6250, %v6249
      %v6349 = vpack.c.b16 %v6252, %v6251
      %v6350 = vpack.c.b16 %v6254, %v6253
      %v6351 = vpack.c.b16 %v6256, %v6255
      %v6352 = vpack.c.b16 %v6258, %v6257
      %v6353 = vpack.c.b16 %v6260, %v6259
      %v6354 = vpack.c.b16 %v6262, %v6261
      %v6355 = vpack.c.b16 %v6264, %v6263
      %v6356 = vpack.c.b16 %v6266, %v6265
      %v6357 = vpack.c.b16 %v6268, %v6267
      %v6358 = vpack.c.b16 %v6270, %v6269
      %v6359 = vpack.c.b16 %v6272, %v6271
      %v6360 = vpack.c.b16 %v6274, %v6273
      %v6361 = vpack.c.b16 %v6276, %v6275
      %v6362 = vpack.c.b16 %v6278, %v6277
      %v6363 = vpack.c.b16 %v6280, %v6279
      %v6364 = vpack.c.b16 %v6282, %v6281
      %v6365 = vpack.c.b16 %v6284, %v6283
      %v6366 = vpack.c.b16 %v6286, %v6285
      %v6367 = vpack.c.b16 %v6288, %v6287
      %v6368 = vpack.c.b16 %v6290, %v6289
      %v6369 = vpack.c.b16 %v6292, %v6291
      %v6370 = vpack.c.b16 %v6294, %v6293
      %v6371 = vpack.c.b16 %v6296, %v6295
      %v6372 = vpack.c.b16 %v6298, %v6297
      %v6373 = vpack.c.b16 %v6300, %v6299
      %v6374 = vpack.c.b16 %v6302, %v6301
      %6447 = vmatpush.bf16.msra.mxu0 %v6310
      %6448 = vmatpush.bf16.msra.mxu0 %v6309
      %6449 = vmatpush.bf16.msra.mxu0 %v6308
      %6450 = vmatpush.bf16.msra.mxu0 %v6307
      %6451 = vmatpush.bf16.msra.mxu0 %v6306
      %6452 = vmatpush.bf16.msra.mxu0 %v6305
      %6453 = vmatpush.bf16.msra.mxu0 %v6304
      %6454 = vmatpush.bf16.msra.mxu0 %v6303
      %6455 = vmatmul.bf16.gmra.mxu0 %v5727
      %v6456 = vpop.f32.mrf.mxu0
      %v6457 = vadd.f32 0.0, %v6456
      %v6458 = vpop.f32.mrf.mxu0
      %v6459 = vadd.f32 0.0, %v6458
      %6460 = vmatmul.bf16.gmra.mxu0 %v5736
      %v6461 = vpop.f32.mrf.mxu0
      %v6462 = vadd.f32 0.0, %v6461
      %v6463 = vpop.f32.mrf.mxu0
      %v6464 = vadd.f32 0.0, %v6463
      %6465 = vmatmul.bf16.gmra.mxu0 %v5745
      %v6466 = vpop.f32.mrf.mxu0
      %v6467 = vadd.f32 0.0, %v6466
      %v6468 = vpop.f32.mrf.mxu0
      %v6469 = vadd.f32 0.0, %v6468
      %6470 = vmatmul.bf16.gmra.mxu0 %v5754
      %v6471 = vpop.f32.mrf.mxu0
      %v6472 = vadd.f32 0.0, %v6471
      %v6473 = vpop.f32.mrf.mxu0
      %v6474 = vadd.f32 0.0, %v6473
      %6475 = vmatmul.bf16.gmra.mxu0 %v5763
      %v6476 = vpop.f32.mrf.mxu0
      %v6477 = vadd.f32 0.0, %v6476
      %v6478 = vpop.f32.mrf.mxu0
      %v6479 = vadd.f32 0.0, %v6478
      %6480 = vmatmul.bf16.gmra.mxu0 %v5772
      %v6481 = vpop.f32.mrf.mxu0
      %v6482 = vadd.f32 0.0, %v6481
      %v6483 = vpop.f32.mrf.mxu0
      %v6484 = vadd.f32 0.0, %v6483
      %6485 = vmatmul.bf16.gmra.mxu0 %v5781
      %v6486 = vpop.f32.mrf.mxu0
      %v6487 = vadd.f32 0.0, %v6486
      %v6488 = vpop.f32.mrf.mxu0
      %v6489 = vadd.f32 0.0, %v6488
      %6490 = vmatmul.bf16.gmra.mxu0 %v5790
      %v6491 = vpop.f32.mrf.mxu0
      %v6492 = vadd.f32 0.0, %v6491
      %v6493 = vpop.f32.mrf.mxu0
      %v6494 = vadd.f32 0.0, %v6493
      %6495 = vmatmul.bf16.gmra.mxu0 %v5799
      %v6496 = vpop.f32.mrf.mxu0
      %v6497 = vadd.f32 0.0, %v6496
      %v6498 = vpop.f32.mrf.mxu0
      %v6499 = vadd.f32 0.0, %v6498
      %6500 = vmatmul.bf16.gmra.mxu0 %v5808
      %v6501 = vpop.f32.mrf.mxu0
      %v6502 = vadd.f32 0.0, %v6501
      %v6503 = vpop.f32.mrf.mxu0
      %v6504 = vadd.f32 0.0, %v6503
      %6505 = vmatmul.bf16.gmra.mxu0 %v5817
      %v6506 = vpop.f32.mrf.mxu0
      %v6507 = vadd.f32 0.0, %v6506
      %v6508 = vpop.f32.mrf.mxu0
      %v6509 = vadd.f32 0.0, %v6508
      %6510 = vmatmul.bf16.gmra.mxu0 %v5826
      %v6511 = vpop.f32.mrf.mxu0
      %v6512 = vadd.f32 0.0, %v6511
      %v6513 = vpop.f32.mrf.mxu0
      %v6514 = vadd.f32 0.0, %v6513
      %6515 = vmatmul.bf16.gmra.mxu0 %v5835
      %v6516 = vpop.f32.mrf.mxu0
      %v6517 = vadd.f32 0.0, %v6516
      %v6518 = vpop.f32.mrf.mxu0
      %v6519 = vadd.f32 0.0, %v6518
      %6520 = vmatmul.bf16.gmra.mxu0 %v5844
      %v6521 = vpop.f32.mrf.mxu0
      %v6522 = vadd.f32 0.0, %v6521
      %v6523 = vpop.f32.mrf.mxu0
      %v6524 = vadd.f32 0.0, %v6523
      %6525 = vmatmul.bf16.gmra.mxu0 %v5853
      %v6526 = vpop.f32.mrf.mxu0
      %v6527 = vadd.f32 0.0, %v6526
      %v6528 = vpop.f32.mrf.mxu0
      %v6529 = vadd.f32 0.0, %v6528
      %6530 = vmatmul.bf16.gmra.mxu0 %v5862
      %v6531 = vpop.f32.mrf.mxu0
      %v6532 = vadd.f32 0.0, %v6531
      %v6533 = vpop.f32.mrf.mxu0
      %v6534 = vadd.f32 0.0, %v6533
      %6535 = vdwg.mxu0
      %6536 = vmatpush.bf16.msra.mxu0 %v6318
      %6537 = vmatpush.bf16.msra.mxu0 %v6317
      %6538 = vmatpush.bf16.msra.mxu0 %v6316
      %6539 = vmatpush.bf16.msra.mxu0 %v6315
      %6540 = vmatpush.bf16.msra.mxu0 %v6314
      %6541 = vmatpush.bf16.msra.mxu0 %v6313
      %6542 = vmatpush.bf16.msra.mxu0 %v6312
      %6543 = vmatpush.bf16.msra.mxu0 %v6311
      %6544 = vmatmul.bf16.gmra.mxu0 %v5728
      %v6545 = vpop.f32.mrf.mxu0
      %v6546 = vadd.f32 %v6457, %v6545
      %v6547 = vpop.f32.mrf.mxu0
      %v6548 = vadd.f32 %v6459, %v6547
      %6549 = vmatmul.bf16.gmra.mxu0 %v5737
      %v6550 = vpop.f32.mrf.mxu0
      %v6551 = vadd.f32 %v6462, %v6550
      %v6552 = vpop.f32.mrf.mxu0
      %v6553 = vadd.f32 %v6464, %v6552
      %6554 = vmatmul.bf16.gmra.mxu0 %v5746
      %v6555 = vpop.f32.mrf.mxu0
      %v6556 = vadd.f32 %v6467, %v6555
      %v6557 = vpop.f32.mrf.mxu0
      %v6558 = vadd.f32 %v6469, %v6557
      %6559 = vmatmul.bf16.gmra.mxu0 %v5755
      %v6560 = vpop.f32.mrf.mxu0
      %v6561 = vadd.f32 %v6472, %v6560
      %v6562 = vpop.f32.mrf.mxu0
      %v6563 = vadd.f32 %v6474, %v6562
      %6564 = vmatmul.bf16.gmra.mxu0 %v5764
      %v6565 = vpop.f32.mrf.mxu0
      %v6566 = vadd.f32 %v6477, %v6565
      %v6567 = vpop.f32.mrf.mxu0
      %v6568 = vadd.f32 %v6479, %v6567
      %6569 = vmatmul.bf16.gmra.mxu0 %v5773
      %v6570 = vpop.f32.mrf.mxu0
      %v6571 = vadd.f32 %v6482, %v6570
      %v6572 = vpop.f32.mrf.mxu0
      %v6573 = vadd.f32 %v6484, %v6572
      %6574 = vmatmul.bf16.gmra.mxu0 %v5782
      %v6575 = vpop.f32.mrf.mxu0
      %v6576 = vadd.f32 %v6487, %v6575
      %v6577 = vpop.f32.mrf.mxu0
      %v6578 = vadd.f32 %v6489, %v6577
      %6579 = vmatmul.bf16.gmra.mxu0 %v5791
      %v6580 = vpop.f32.mrf.mxu0
      %v6581 = vadd.f32 %v6492, %v6580
      %v6582 = vpop.f32.mrf.mxu0
      %v6583 = vadd.f32 %v6494, %v6582
      %6584 = vmatmul.bf16.gmra.mxu0 %v5800
      %v6585 = vpop.f32.mrf.mxu0
      %v6586 = vadd.f32 %v6497, %v6585
      %v6587 = vpop.f32.mrf.mxu0
      %v6588 = vadd.f32 %v6499, %v6587
      %6589 = vmatmul.bf16.gmra.mxu0 %v5809
      %v6590 = vpop.f32.mrf.mxu0
      %v6591 = vadd.f32 %v6502, %v6590
      %v6592 = vpop.f32.mrf.mxu0
      %v6593 = vadd.f32 %v6504, %v6592
      %6594 = vmatmul.bf16.gmra.mxu0 %v5818
      %v6595 = vpop.f32.mrf.mxu0
      %v6596 = vadd.f32 %v6507, %v6595
      %v6597 = vpop.f32.mrf.mxu0
      %v6598 = vadd.f32 %v6509, %v6597
      %6599 = vmatmul.bf16.gmra.mxu0 %v5827
      %v6600 = vpop.f32.mrf.mxu0
      %v6601 = vadd.f32 %v6512, %v6600
      %v6602 = vpop.f32.mrf.mxu0
      %v6603 = vadd.f32 %v6514, %v6602
      %6604 = vmatmul.bf16.gmra.mxu0 %v5836
      %v6605 = vpop.f32.mrf.mxu0
      %v6606 = vadd.f32 %v6517, %v6605
      %v6607 = vpop.f32.mrf.mxu0
      %v6608 = vadd.f32 %v6519, %v6607
      %6609 = vmatmul.bf16.gmra.mxu0 %v5845
      %v6610 = vpop.f32.mrf.mxu0
      %v6611 = vadd.f32 %v6522, %v6610
      %v6612 = vpop.f32.mrf.mxu0
      %v6613 = vadd.f32 %v6524, %v6612
      %6614 = vmatmul.bf16.gmra.mxu0 %v5854
      %v6615 = vpop.f32.mrf.mxu0
      %v6616 = vadd.f32 %v6527, %v6615
      %v6617 = vpop.f32.mrf.mxu0
      %v6618 = vadd.f32 %v6529, %v6617
      %6619 = vmatmul.bf16.gmra.mxu0 %v5863
      %v6620 = vpop.f32.mrf.mxu0
      %v6621 = vadd.f32 %v6532, %v6620
      %v6622 = vpop.f32.mrf.mxu0
      %v6623 = vadd.f32 %v6534, %v6622
      %6624 = vdwg.mxu0
      %6625 = vmatpush.bf16.msra.mxu0 %v6326
      %6626 = vmatpush.bf16.msra.mxu0 %v6325
      %6627 = vmatpush.bf16.msra.mxu0 %v6324
      %6628 = vmatpush.bf16.msra.mxu0 %v6323
      %6629 = vmatpush.bf16.msra.mxu0 %v6322
      %6630 = vmatpush.bf16.msra.mxu0 %v6321
      %6631 = vmatpush.bf16.msra.mxu0 %v6320
      %6632 = vmatpush.bf16.msra.mxu0 %v6319
      %6633 = vmatmul.bf16.gmra.mxu0 %v5729
      %v6634 = vpop.f32.mrf.mxu0
      %v6635 = vadd.f32 %v6546, %v6634
      %v6636 = vpop.f32.mrf.mxu0
      %v6637 = vadd.f32 %v6548, %v6636
      %6638 = vmatmul.bf16.gmra.mxu0 %v5738
      %v6639 = vpop.f32.mrf.mxu0
      %v6640 = vadd.f32 %v6551, %v6639
      %v6641 = vpop.f32.mrf.mxu0
      %v6642 = vadd.f32 %v6553, %v6641
      %6643 = vmatmul.bf16.gmra.mxu0 %v5747
      %v6644 = vpop.f32.mrf.mxu0
      %v6645 = vadd.f32 %v6556, %v6644
      %v6646 = vpop.f32.mrf.mxu0
      %v6647 = vadd.f32 %v6558, %v6646
      %6648 = vmatmul.bf16.gmra.mxu0 %v5756
      %v6649 = vpop.f32.mrf.mxu0
      %v6650 = vadd.f32 %v6561, %v6649
      %v6651 = vpop.f32.mrf.mxu0
      %v6652 = vadd.f32 %v6563, %v6651
      %6653 = vmatmul.bf16.gmra.mxu0 %v5765
      %v6654 = vpop.f32.mrf.mxu0
      %v6655 = vadd.f32 %v6566, %v6654
      %v6656 = vpop.f32.mrf.mxu0
      %v6657 = vadd.f32 %v6568, %v6656
      %6658 = vmatmul.bf16.gmra.mxu0 %v5774
      %v6659 = vpop.f32.mrf.mxu0
      %v6660 = vadd.f32 %v6571, %v6659
      %v6661 = vpop.f32.mrf.mxu0
      %v6662 = vadd.f32 %v6573, %v6661
      %6663 = vmatmul.bf16.gmra.mxu0 %v5783
      %v6664 = vpop.f32.mrf.mxu0
      %v6665 = vadd.f32 %v6576, %v6664
      %v6666 = vpop.f32.mrf.mxu0
      %v6667 = vadd.f32 %v6578, %v6666
      %6668 = vmatmul.bf16.gmra.mxu0 %v5792
      %v6669 = vpop.f32.mrf.mxu0
      %v6670 = vadd.f32 %v6581, %v6669
      %v6671 = vpop.f32.mrf.mxu0
      %v6672 = vadd.f32 %v6583, %v6671
      %6673 = vmatmul.bf16.gmra.mxu0 %v5801
      %v6674 = vpop.f32.mrf.mxu0
      %v6675 = vadd.f32 %v6586, %v6674
      %v6676 = vpop.f32.mrf.mxu0
      %v6677 = vadd.f32 %v6588, %v6676
      %6678 = vmatmul.bf16.gmra.mxu0 %v5810
      %v6679 = vpop.f32.mrf.mxu0
      %v6680 = vadd.f32 %v6591, %v6679
      %v6681 = vpop.f32.mrf.mxu0
      %v6682 = vadd.f32 %v6593, %v6681
      %6683 = vmatmul.bf16.gmra.mxu0 %v5819
      %v6684 = vpop.f32.mrf.mxu0
      %v6685 = vadd.f32 %v6596, %v6684
      %v6686 = vpop.f32.mrf.mxu0
      %v6687 = vadd.f32 %v6598, %v6686
      %6688 = vmatmul.bf16.gmra.mxu0 %v5828
      %v6689 = vpop.f32.mrf.mxu0
      %v6690 = vadd.f32 %v6601, %v6689
      %v6691 = vpop.f32.mrf.mxu0
      %v6692 = vadd.f32 %v6603, %v6691
      %6693 = vmatmul.bf16.gmra.mxu0 %v5837
      %v6694 = vpop.f32.mrf.mxu0
      %v6695 = vadd.f32 %v6606, %v6694
      %v6696 = vpop.f32.mrf.mxu0
      %v6697 = vadd.f32 %v6608, %v6696
      %6698 = vmatmul.bf16.gmra.mxu0 %v5846
      %v6699 = vpop.f32.mrf.mxu0
      %v6700 = vadd.f32 %v6611, %v6699
      %v6701 = vpop.f32.mrf.mxu0
      %v6702 = vadd.f32 %v6613, %v6701
      %6703 = vmatmul.bf16.gmra.mxu0 %v5855
      %v6704 = vpop.f32.mrf.mxu0
      %v6705 = vadd.f32 %v6616, %v6704
      %v6706 = vpop.f32.mrf.mxu0
      %v6707 = vadd.f32 %v6618, %v6706
      %6708 = vmatmul.bf16.gmra.mxu0 %v5864
      %v6709 = vpop.f32.mrf.mxu0
      %v6710 = vadd.f32 %v6621, %v6709
      %v6711 = vpop.f32.mrf.mxu0
      %v6712 = vadd.f32 %v6623, %v6711
      %6713 = vdwg.mxu0
      %6714 = vmatpush.bf16.msra.mxu0 %v6334
      %6715 = vmatpush.bf16.msra.mxu0 %v6333
      %6716 = vmatpush.bf16.msra.mxu0 %v6332
      %6717 = vmatpush.bf16.msra.mxu0 %v6331
      %6718 = vmatpush.bf16.msra.mxu0 %v6330
      %6719 = vmatpush.bf16.msra.mxu0 %v6329
      %6720 = vmatpush.bf16.msra.mxu0 %v6328
      %6721 = vmatpush.bf16.msra.mxu0 %v6327
      %6722 = vmatmul.bf16.gmra.mxu0 %v5730
      %v6723 = vpop.f32.mrf.mxu0
      %v6724 = vadd.f32 %v6635, %v6723
      %v6725 = vpop.f32.mrf.mxu0
      %v6726 = vadd.f32 %v6637, %v6725
      %6727 = vmatmul.bf16.gmra.mxu0 %v5739
      %v6728 = vpop.f32.mrf.mxu0
      %v6729 = vadd.f32 %v6640, %v6728
      %v6730 = vpop.f32.mrf.mxu0
      %v6731 = vadd.f32 %v6642, %v6730
      %6732 = vmatmul.bf16.gmra.mxu0 %v5748
      %v6733 = vpop.f32.mrf.mxu0
      %v6734 = vadd.f32 %v6645, %v6733
      %v6735 = vpop.f32.mrf.mxu0
      %v6736 = vadd.f32 %v6647, %v6735
      %6737 = vmatmul.bf16.gmra.mxu0 %v5757
      %v6738 = vpop.f32.mrf.mxu0
      %v6739 = vadd.f32 %v6650, %v6738
      %v6740 = vpop.f32.mrf.mxu0
      %v6741 = vadd.f32 %v6652, %v6740
      %6742 = vmatmul.bf16.gmra.mxu0 %v5766
      %v6743 = vpop.f32.mrf.mxu0
      %v6744 = vadd.f32 %v6655, %v6743
      %v6745 = vpop.f32.mrf.mxu0
      %v6746 = vadd.f32 %v6657, %v6745
      %6747 = vmatmul.bf16.gmra.mxu0 %v5775
      %v6748 = vpop.f32.mrf.mxu0
      %v6749 = vadd.f32 %v6660, %v6748
      %v6750 = vpop.f32.mrf.mxu0
      %v6751 = vadd.f32 %v6662, %v6750
      %6752 = vmatmul.bf16.gmra.mxu0 %v5784
      %v6753 = vpop.f32.mrf.mxu0
      %v6754 = vadd.f32 %v6665, %v6753
      %v6755 = vpop.f32.mrf.mxu0
      %v6756 = vadd.f32 %v6667, %v6755
      %6757 = vmatmul.bf16.gmra.mxu0 %v5793
      %v6758 = vpop.f32.mrf.mxu0
      %v6759 = vadd.f32 %v6670, %v6758
      %v6760 = vpop.f32.mrf.mxu0
      %v6761 = vadd.f32 %v6672, %v6760
      %6762 = vmatmul.bf16.gmra.mxu0 %v5802
      %v6763 = vpop.f32.mrf.mxu0
      %v6764 = vadd.f32 %v6675, %v6763
      %v6765 = vpop.f32.mrf.mxu0
      %v6766 = vadd.f32 %v6677, %v6765
      %6767 = vmatmul.bf16.gmra.mxu0 %v5811
      %v6768 = vpop.f32.mrf.mxu0
      %v6769 = vadd.f32 %v6680, %v6768
      %v6770 = vpop.f32.mrf.mxu0
      %v6771 = vadd.f32 %v6682, %v6770
      %6772 = vmatmul.bf16.gmra.mxu0 %v5820
      %v6773 = vpop.f32.mrf.mxu0
      %v6774 = vadd.f32 %v6685, %v6773
      %v6775 = vpop.f32.mrf.mxu0
      %v6776 = vadd.f32 %v6687, %v6775
      %6777 = vmatmul.bf16.gmra.mxu0 %v5829
      %v6778 = vpop.f32.mrf.mxu0
      %v6779 = vadd.f32 %v6690, %v6778
      %v6780 = vpop.f32.mrf.mxu0
      %v6781 = vadd.f32 %v6692, %v6780
      %6782 = vmatmul.bf16.gmra.mxu0 %v5838
      %v6783 = vpop.f32.mrf.mxu0
      %v6784 = vadd.f32 %v6695, %v6783
      %v6785 = vpop.f32.mrf.mxu0
      %v6786 = vadd.f32 %v6697, %v6785
      %6787 = vmatmul.bf16.gmra.mxu0 %v5847
      %v6788 = vpop.f32.mrf.mxu0
      %v6789 = vadd.f32 %v6700, %v6788
      %v6790 = vpop.f32.mrf.mxu0
      %v6791 = vadd.f32 %v6702, %v6790
      %6792 = vmatmul.bf16.gmra.mxu0 %v5856
      %v6793 = vpop.f32.mrf.mxu0
      %v6794 = vadd.f32 %v6705, %v6793
      %v6795 = vpop.f32.mrf.mxu0
      %v6796 = vadd.f32 %v6707, %v6795
      %6797 = vmatmul.bf16.gmra.mxu0 %v5865
      %v6798 = vpop.f32.mrf.mxu0
      %v6799 = vadd.f32 %v6710, %v6798
      %v6800 = vpop.f32.mrf.mxu0
      %v6801 = vadd.f32 %v6712, %v6800
      %6802 = vdwg.mxu0
      %6803 = vmatpush.bf16.msra.mxu0 %v6342
      %6804 = vmatpush.bf16.msra.mxu0 %v6341
      %6805 = vmatpush.bf16.msra.mxu0 %v6340
      %6806 = vmatpush.bf16.msra.mxu0 %v6339
      %6807 = vmatpush.bf16.msra.mxu0 %v6338
      %6808 = vmatpush.bf16.msra.mxu0 %v6337
      %6809 = vmatpush.bf16.msra.mxu0 %v6336
      %6810 = vmatpush.bf16.msra.mxu0 %v6335
      %6811 = vmatmul.bf16.gmra.mxu0 %v5731
      %v6812 = vpop.f32.mrf.mxu0
      %v6813 = vadd.f32 %v6724, %v6812
      %v6814 = vpop.f32.mrf.mxu0
      %v6815 = vadd.f32 %v6726, %v6814
      %6816 = vmatmul.bf16.gmra.mxu0 %v5740
      %v6817 = vpop.f32.mrf.mxu0
      %v6818 = vadd.f32 %v6729, %v6817
      %v6819 = vpop.f32.mrf.mxu0
      %v6820 = vadd.f32 %v6731, %v6819
      %6821 = vmatmul.bf16.gmra.mxu0 %v5749
      %v6822 = vpop.f32.mrf.mxu0
      %v6823 = vadd.f32 %v6734, %v6822
      %v6824 = vpop.f32.mrf.mxu0
      %v6825 = vadd.f32 %v6736, %v6824
      %6826 = vmatmul.bf16.gmra.mxu0 %v5758
      %v6827 = vpop.f32.mrf.mxu0
      %v6828 = vadd.f32 %v6739, %v6827
      %v6829 = vpop.f32.mrf.mxu0
      %v6830 = vadd.f32 %v6741, %v6829
      %6831 = vmatmul.bf16.gmra.mxu0 %v5767
      %v6832 = vpop.f32.mrf.mxu0
      %v6833 = vadd.f32 %v6744, %v6832
      %v6834 = vpop.f32.mrf.mxu0
      %v6835 = vadd.f32 %v6746, %v6834
      %6836 = vmatmul.bf16.gmra.mxu0 %v5776
      %v6837 = vpop.f32.mrf.mxu0
      %v6838 = vadd.f32 %v6749, %v6837
      %v6839 = vpop.f32.mrf.mxu0
      %v6840 = vadd.f32 %v6751, %v6839
      %6841 = vmatmul.bf16.gmra.mxu0 %v5785
      %v6842 = vpop.f32.mrf.mxu0
      %v6843 = vadd.f32 %v6754, %v6842
      %v6844 = vpop.f32.mrf.mxu0
      %v6845 = vadd.f32 %v6756, %v6844
      %6846 = vmatmul.bf16.gmra.mxu0 %v5794
      %v6847 = vpop.f32.mrf.mxu0
      %v6848 = vadd.f32 %v6759, %v6847
      %v6849 = vpop.f32.mrf.mxu0
      %v6850 = vadd.f32 %v6761, %v6849
      %6851 = vmatmul.bf16.gmra.mxu0 %v5803
      %v6852 = vpop.f32.mrf.mxu0
      %v6853 = vadd.f32 %v6764, %v6852
      %v6854 = vpop.f32.mrf.mxu0
      %v6855 = vadd.f32 %v6766, %v6854
      %6856 = vmatmul.bf16.gmra.mxu0 %v5812
      %v6857 = vpop.f32.mrf.mxu0
      %v6858 = vadd.f32 %v6769, %v6857
      %v6859 = vpop.f32.mrf.mxu0
      %v6860 = vadd.f32 %v6771, %v6859
      %6861 = vmatmul.bf16.gmra.mxu0 %v5821
      %v6862 = vpop.f32.mrf.mxu0
      %v6863 = vadd.f32 %v6774, %v6862
      %v6864 = vpop.f32.mrf.mxu0
      %v6865 = vadd.f32 %v6776, %v6864
      %6866 = vmatmul.bf16.gmra.mxu0 %v5830
      %v6867 = vpop.f32.mrf.mxu0
      %v6868 = vadd.f32 %v6779, %v6867
      %v6869 = vpop.f32.mrf.mxu0
      %v6870 = vadd.f32 %v6781, %v6869
      %6871 = vmatmul.bf16.gmra.mxu0 %v5839
      %v6872 = vpop.f32.mrf.mxu0
      %v6873 = vadd.f32 %v6784, %v6872
      %v6874 = vpop.f32.mrf.mxu0
      %v6875 = vadd.f32 %v6786, %v6874
      %6876 = vmatmul.bf16.gmra.mxu0 %v5848
      %v6877 = vpop.f32.mrf.mxu0
      %v6878 = vadd.f32 %v6789, %v6877
      %v6879 = vpop.f32.mrf.mxu0
      %v6880 = vadd.f32 %v6791, %v6879
      %6881 = vmatmul.bf16.gmra.mxu0 %v5857
      %v6882 = vpop.f32.mrf.mxu0
      %v6883 = vadd.f32 %v6794, %v6882
      %v6884 = vpop.f32.mrf.mxu0
      %v6885 = vadd.f32 %v6796, %v6884
      %6886 = vmatmul.bf16.gmra.mxu0 %v5866
      %v6887 = vpop.f32.mrf.mxu0
      %v6888 = vadd.f32 %v6799, %v6887
      %v6889 = vpop.f32.mrf.mxu0
      %v6890 = vadd.f32 %v6801, %v6889
      %6891 = vdwg.mxu0
      %6892 = vmatpush.bf16.msra.mxu0 %v6350
      %6893 = vmatpush.bf16.msra.mxu0 %v6349
      %6894 = vmatpush.bf16.msra.mxu0 %v6348
      %6895 = vmatpush.bf16.msra.mxu0 %v6347
      %6896 = vmatpush.bf16.msra.mxu0 %v6346
      %6897 = vmatpush.bf16.msra.mxu0 %v6345
      %6898 = vmatpush.bf16.msra.mxu0 %v6344
      %6899 = vmatpush.bf16.msra.mxu0 %v6343
      %6900 = vmatmul.bf16.gmra.mxu0 %v5732
      %v6901 = vpop.f32.mrf.mxu0
      %v6902 = vadd.f32 %v6813, %v6901
      %v6903 = vpop.f32.mrf.mxu0
      %v6904 = vadd.f32 %v6815, %v6903
      %6905 = vmatmul.bf16.gmra.mxu0 %v5741
      %v6906 = vpop.f32.mrf.mxu0
      %v6907 = vadd.f32 %v6818, %v6906
      %v6908 = vpop.f32.mrf.mxu0
      %v6909 = vadd.f32 %v6820, %v6908
      %6910 = vmatmul.bf16.gmra.mxu0 %v5750
      %v6911 = vpop.f32.mrf.mxu0
      %v6912 = vadd.f32 %v6823, %v6911
      %v6913 = vpop.f32.mrf.mxu0
      %v6914 = vadd.f32 %v6825, %v6913
      %6915 = vmatmul.bf16.gmra.mxu0 %v5759
      %v6916 = vpop.f32.mrf.mxu0
      %v6917 = vadd.f32 %v6828, %v6916
      %v6918 = vpop.f32.mrf.mxu0
      %v6919 = vadd.f32 %v6830, %v6918
      %6920 = vmatmul.bf16.gmra.mxu0 %v5768
      %v6921 = vpop.f32.mrf.mxu0
      %v6922 = vadd.f32 %v6833, %v6921
      %v6923 = vpop.f32.mrf.mxu0
      %v6924 = vadd.f32 %v6835, %v6923
      %6925 = vmatmul.bf16.gmra.mxu0 %v5777
      %v6926 = vpop.f32.mrf.mxu0
      %v6927 = vadd.f32 %v6838, %v6926
      %v6928 = vpop.f32.mrf.mxu0
      %v6929 = vadd.f32 %v6840, %v6928
      %6930 = vmatmul.bf16.gmra.mxu0 %v5786
      %v6931 = vpop.f32.mrf.mxu0
      %v6932 = vadd.f32 %v6843, %v6931
      %v6933 = vpop.f32.mrf.mxu0
      %v6934 = vadd.f32 %v6845, %v6933
      %6935 = vmatmul.bf16.gmra.mxu0 %v5795
      %v6936 = vpop.f32.mrf.mxu0
      %v6937 = vadd.f32 %v6848, %v6936
      %v6938 = vpop.f32.mrf.mxu0
      %v6939 = vadd.f32 %v6850, %v6938
      %6940 = vmatmul.bf16.gmra.mxu0 %v5804
      %v6941 = vpop.f32.mrf.mxu0
      %v6942 = vadd.f32 %v6853, %v6941
      %v6943 = vpop.f32.mrf.mxu0
      %v6944 = vadd.f32 %v6855, %v6943
      %6945 = vmatmul.bf16.gmra.mxu0 %v5813
      %v6946 = vpop.f32.mrf.mxu0
      %v6947 = vadd.f32 %v6858, %v6946
      %v6948 = vpop.f32.mrf.mxu0
      %v6949 = vadd.f32 %v6860, %v6948
      %6950 = vmatmul.bf16.gmra.mxu0 %v5822
      %v6951 = vpop.f32.mrf.mxu0
      %v6952 = vadd.f32 %v6863, %v6951
      %v6953 = vpop.f32.mrf.mxu0
      %v6954 = vadd.f32 %v6865, %v6953
      %6955 = vmatmul.bf16.gmra.mxu0 %v5831
      %v6956 = vpop.f32.mrf.mxu0
      %v6957 = vadd.f32 %v6868, %v6956
      %v6958 = vpop.f32.mrf.mxu0
      %v6959 = vadd.f32 %v6870, %v6958
      %6960 = vmatmul.bf16.gmra.mxu0 %v5840
      %v6961 = vpop.f32.mrf.mxu0
      %v6962 = vadd.f32 %v6873, %v6961
      %v6963 = vpop.f32.mrf.mxu0
      %v6964 = vadd.f32 %v6875, %v6963
      %6965 = vmatmul.bf16.gmra.mxu0 %v5849
      %v6966 = vpop.f32.mrf.mxu0
      %v6967 = vadd.f32 %v6878, %v6966
      %v6968 = vpop.f32.mrf.mxu0
      %v6969 = vadd.f32 %v6880, %v6968
      %6970 = vmatmul.bf16.gmra.mxu0 %v5858
      %v6971 = vpop.f32.mrf.mxu0
      %v6972 = vadd.f32 %v6883, %v6971
      %v6973 = vpop.f32.mrf.mxu0
      %v6974 = vadd.f32 %v6885, %v6973
      %6975 = vmatmul.bf16.gmra.mxu0 %v5867
      %v6976 = vpop.f32.mrf.mxu0
      %v6977 = vadd.f32 %v6888, %v6976
      %v6978 = vpop.f32.mrf.mxu0
      %v6979 = vadd.f32 %v6890, %v6978
      %6980 = vdwg.mxu0
      %6981 = vmatpush.bf16.msra.mxu0 %v6358
      %6982 = vmatpush.bf16.msra.mxu0 %v6357
      %6983 = vmatpush.bf16.msra.mxu0 %v6356
      %6984 = vmatpush.bf16.msra.mxu0 %v6355
      %6985 = vmatpush.bf16.msra.mxu0 %v6354
      %6986 = vmatpush.bf16.msra.mxu0 %v6353
      %6987 = vmatpush.bf16.msra.mxu0 %v6352
      %6988 = vmatpush.bf16.msra.mxu0 %v6351
      %6989 = vmatmul.bf16.gmra.mxu0 %v5733
      %v6990 = vpop.f32.mrf.mxu0
      %v6991 = vadd.f32 %v6902, %v6990
      %v6992 = vpop.f32.mrf.mxu0
      %v6993 = vadd.f32 %v6904, %v6992
      %6994 = vmatmul.bf16.gmra.mxu0 %v5742
      %v6995 = vpop.f32.mrf.mxu0
      %v6996 = vadd.f32 %v6907, %v6995
      %v6997 = vpop.f32.mrf.mxu0
      %v6998 = vadd.f32 %v6909, %v6997
      %6999 = vmatmul.bf16.gmra.mxu0 %v5751
      %v7000 = vpop.f32.mrf.mxu0
      %v7001 = vadd.f32 %v6912, %v7000
      %v7002 = vpop.f32.mrf.mxu0
      %v7003 = vadd.f32 %v6914, %v7002
      %7004 = vmatmul.bf16.gmra.mxu0 %v5760
      %v7005 = vpop.f32.mrf.mxu0
      %v7006 = vadd.f32 %v6917, %v7005
      %v7007 = vpop.f32.mrf.mxu0
      %v7008 = vadd.f32 %v6919, %v7007
      %7009 = vmatmul.bf16.gmra.mxu0 %v5769
      %v7010 = vpop.f32.mrf.mxu0
      %v7011 = vadd.f32 %v6922, %v7010
      %v7012 = vpop.f32.mrf.mxu0
      %v7013 = vadd.f32 %v6924, %v7012
      %7014 = vmatmul.bf16.gmra.mxu0 %v5778
      %v7015 = vpop.f32.mrf.mxu0
      %v7016 = vadd.f32 %v6927, %v7015
      %v7017 = vpop.f32.mrf.mxu0
      %v7018 = vadd.f32 %v6929, %v7017
      %7019 = vmatmul.bf16.gmra.mxu0 %v5787
      %v7020 = vpop.f32.mrf.mxu0
      %v7021 = vadd.f32 %v6932, %v7020
      %v7022 = vpop.f32.mrf.mxu0
      %v7023 = vadd.f32 %v6934, %v7022
      %7024 = vmatmul.bf16.gmra.mxu0 %v5796
      %v7025 = vpop.f32.mrf.mxu0
      %v7026 = vadd.f32 %v6937, %v7025
      %v7027 = vpop.f32.mrf.mxu0
      %v7028 = vadd.f32 %v6939, %v7027
      %7029 = vmatmul.bf16.gmra.mxu0 %v5805
      %v7030 = vpop.f32.mrf.mxu0
      %v7031 = vadd.f32 %v6942, %v7030
      %v7032 = vpop.f32.mrf.mxu0
      %v7033 = vadd.f32 %v6944, %v7032
      %7034 = vmatmul.bf16.gmra.mxu0 %v5814
      %v7035 = vpop.f32.mrf.mxu0
      %v7036 = vadd.f32 %v6947, %v7035
      %v7037 = vpop.f32.mrf.mxu0
      %v7038 = vadd.f32 %v6949, %v7037
      %7039 = vmatmul.bf16.gmra.mxu0 %v5823
      %v7040 = vpop.f32.mrf.mxu0
      %v7041 = vadd.f32 %v6952, %v7040
      %v7042 = vpop.f32.mrf.mxu0
      %v7043 = vadd.f32 %v6954, %v7042
      %7044 = vmatmul.bf16.gmra.mxu0 %v5832
      %v7045 = vpop.f32.mrf.mxu0
      %v7046 = vadd.f32 %v6957, %v7045
      %v7047 = vpop.f32.mrf.mxu0
      %v7048 = vadd.f32 %v6959, %v7047
      %7049 = vmatmul.bf16.gmra.mxu0 %v5841
      %v7050 = vpop.f32.mrf.mxu0
      %v7051 = vadd.f32 %v6962, %v7050
      %v7052 = vpop.f32.mrf.mxu0
      %v7053 = vadd.f32 %v6964, %v7052
      %7054 = vmatmul.bf16.gmra.mxu0 %v5850
      %v7055 = vpop.f32.mrf.mxu0
      %v7056 = vadd.f32 %v6967, %v7055
      %v7057 = vpop.f32.mrf.mxu0
      %v7058 = vadd.f32 %v6969, %v7057
      %7059 = vmatmul.bf16.gmra.mxu0 %v5859
      %v7060 = vpop.f32.mrf.mxu0
      %v7061 = vadd.f32 %v6972, %v7060
      %v7062 = vpop.f32.mrf.mxu0
      %v7063 = vadd.f32 %v6974, %v7062
      %7064 = vmatmul.bf16.gmra.mxu0 %v5868
      %v7065 = vpop.f32.mrf.mxu0
      %v7066 = vadd.f32 %v6977, %v7065
      %v7067 = vpop.f32.mrf.mxu0
      %v7068 = vadd.f32 %v6979, %v7067
      %7069 = vdwg.mxu0
      %7070 = vmatpush.bf16.msra.mxu0 %v6366
      %7071 = vmatpush.bf16.msra.mxu0 %v6365
      %7072 = vmatpush.bf16.msra.mxu0 %v6364
      %7073 = vmatpush.bf16.msra.mxu0 %v6363
      %7074 = vmatpush.bf16.msra.mxu0 %v6362
      %7075 = vmatpush.bf16.msra.mxu0 %v6361
      %7076 = vmatpush.bf16.msra.mxu0 %v6360
      %7077 = vmatpush.bf16.msra.mxu0 %v6359
      %7078 = vmatmul.bf16.gmra.mxu0 %v5734
      %v7079 = vpop.f32.mrf.mxu0
      %v7080 = vadd.f32 %v6991, %v7079
      %v7081 = vpop.f32.mrf.mxu0
      %v7082 = vadd.f32 %v6993, %v7081
      %7083 = vmatmul.bf16.gmra.mxu0 %v5743
      %v7084 = vpop.f32.mrf.mxu0
      %v7085 = vadd.f32 %v6996, %v7084
      %v7086 = vpop.f32.mrf.mxu0
      %v7087 = vadd.f32 %v6998, %v7086
      %7088 = vmatmul.bf16.gmra.mxu0 %v5752
      %v7089 = vpop.f32.mrf.mxu0
      %v7090 = vadd.f32 %v7001, %v7089
      %v7091 = vpop.f32.mrf.mxu0
      %v7092 = vadd.f32 %v7003, %v7091
      %7093 = vmatmul.bf16.gmra.mxu0 %v5761
      %v7094 = vpop.f32.mrf.mxu0
      %v7095 = vadd.f32 %v7006, %v7094
      %v7096 = vpop.f32.mrf.mxu0
      %v7097 = vadd.f32 %v7008, %v7096
      %7098 = vmatmul.bf16.gmra.mxu0 %v5770
      %v7099 = vpop.f32.mrf.mxu0
      %v7100 = vadd.f32 %v7011, %v7099
      %v7101 = vpop.f32.mrf.mxu0
      %v7102 = vadd.f32 %v7013, %v7101
      %7103 = vmatmul.bf16.gmra.mxu0 %v5779
      %v7104 = vpop.f32.mrf.mxu0
      %v7105 = vadd.f32 %v7016, %v7104
      %v7106 = vpop.f32.mrf.mxu0
      %v7107 = vadd.f32 %v7018, %v7106
      %7108 = vmatmul.bf16.gmra.mxu0 %v5788
      %v7109 = vpop.f32.mrf.mxu0
      %v7110 = vadd.f32 %v7021, %v7109
      %v7111 = vpop.f32.mrf.mxu0
      %v7112 = vadd.f32 %v7023, %v7111
      %7113 = vmatmul.bf16.gmra.mxu0 %v5797
      %v7114 = vpop.f32.mrf.mxu0
      %v7115 = vadd.f32 %v7026, %v7114
      %v7116 = vpop.f32.mrf.mxu0
      %v7117 = vadd.f32 %v7028, %v7116
      %7118 = vmatmul.bf16.gmra.mxu0 %v5806
      %v7119 = vpop.f32.mrf.mxu0
      %v7120 = vadd.f32 %v7031, %v7119
      %v7121 = vpop.f32.mrf.mxu0
      %v7122 = vadd.f32 %v7033, %v7121
      %7123 = vmatmul.bf16.gmra.mxu0 %v5815
      %v7124 = vpop.f32.mrf.mxu0
      %v7125 = vadd.f32 %v7036, %v7124
      %v7126 = vpop.f32.mrf.mxu0
      %v7127 = vadd.f32 %v7038, %v7126
      %7128 = vmatmul.bf16.gmra.mxu0 %v5824
      %v7129 = vpop.f32.mrf.mxu0
      %v7130 = vadd.f32 %v7041, %v7129
      %v7131 = vpop.f32.mrf.mxu0
      %v7132 = vadd.f32 %v7043, %v7131
      %7133 = vmatmul.bf16.gmra.mxu0 %v5833
      %v7134 = vpop.f32.mrf.mxu0
      %v7135 = vadd.f32 %v7046, %v7134
      %v7136 = vpop.f32.mrf.mxu0
      %v7137 = vadd.f32 %v7048, %v7136
      %7138 = vmatmul.bf16.gmra.mxu0 %v5842
      %v7139 = vpop.f32.mrf.mxu0
      %v7140 = vadd.f32 %v7051, %v7139
      %v7141 = vpop.f32.mrf.mxu0
      %v7142 = vadd.f32 %v7053, %v7141
      %7143 = vmatmul.bf16.gmra.mxu0 %v5851
      %v7144 = vpop.f32.mrf.mxu0
      %v7145 = vadd.f32 %v7056, %v7144
      %v7146 = vpop.f32.mrf.mxu0
      %v7147 = vadd.f32 %v7058, %v7146
      %7148 = vmatmul.bf16.gmra.mxu0 %v5860
      %v7149 = vpop.f32.mrf.mxu0
      %v7150 = vadd.f32 %v7061, %v7149
      %v7151 = vpop.f32.mrf.mxu0
      %v7152 = vadd.f32 %v7063, %v7151
      %7153 = vmatmul.bf16.gmra.mxu0 %v5869
      %v7154 = vpop.f32.mrf.mxu0
      %v7155 = vadd.f32 %v7066, %v7154
      %v7156 = vpop.f32.mrf.mxu0
      %v7157 = vadd.f32 %v7068, %v7156
      %7158 = vdwg.mxu0
      %7159 = vmatpush.bf16.msra.mxu0 %v6374
      %7160 = vmatpush.bf16.msra.mxu0 %v6373
      %7161 = vmatpush.bf16.msra.mxu0 %v6372
      %7162 = vmatpush.bf16.msra.mxu0 %v6371
      %7163 = vmatpush.bf16.msra.mxu0 %v6370
      %7164 = vmatpush.bf16.msra.mxu0 %v6369
      %7165 = vmatpush.bf16.msra.mxu0 %v6368
      %7166 = vmatpush.bf16.msra.mxu0 %v6367
      %7167 = vmatmul.bf16.gmra.mxu0 %v5735
      %v7168 = vpop.f32.mrf.mxu0
      %v7169 = vadd.f32 %v7080, %v7168
      %v7170 = vpop.f32.mrf.mxu0
      %v7171 = vadd.f32 %v7082, %v7170
      %7172 = vmatmul.bf16.gmra.mxu0 %v5744
      %v7173 = vpop.f32.mrf.mxu0
      %v7174 = vadd.f32 %v7085, %v7173
      %v7175 = vpop.f32.mrf.mxu0
      %v7176 = vadd.f32 %v7087, %v7175
      %7177 = vmatmul.bf16.gmra.mxu0 %v5753
      %v7178 = vpop.f32.mrf.mxu0
      %v7179 = vadd.f32 %v7090, %v7178
      %v7180 = vpop.f32.mrf.mxu0
      %v7181 = vadd.f32 %v7092, %v7180
      %7182 = vmatmul.bf16.gmra.mxu0 %v5762
      %v7183 = vpop.f32.mrf.mxu0
      %v7184 = vadd.f32 %v7095, %v7183
      %v7185 = vpop.f32.mrf.mxu0
      %v7186 = vadd.f32 %v7097, %v7185
      %7187 = vmatmul.bf16.gmra.mxu0 %v5771
      %v7188 = vpop.f32.mrf.mxu0
      %v7189 = vadd.f32 %v7100, %v7188
      %v7190 = vpop.f32.mrf.mxu0
      %v7191 = vadd.f32 %v7102, %v7190
      %7192 = vmatmul.bf16.gmra.mxu0 %v5780
      %v7193 = vpop.f32.mrf.mxu0
      %v7194 = vadd.f32 %v7105, %v7193
      %v7195 = vpop.f32.mrf.mxu0
      %v7196 = vadd.f32 %v7107, %v7195
      %7197 = vmatmul.bf16.gmra.mxu0 %v5789
      %v7198 = vpop.f32.mrf.mxu0
      %v7199 = vadd.f32 %v7110, %v7198
      %v7200 = vpop.f32.mrf.mxu0
      %v7201 = vadd.f32 %v7112, %v7200
      %7202 = vmatmul.bf16.gmra.mxu0 %v5798
      %v7203 = vpop.f32.mrf.mxu0
      %v7204 = vadd.f32 %v7115, %v7203
      %v7205 = vpop.f32.mrf.mxu0
      %v7206 = vadd.f32 %v7117, %v7205
      %7207 = vmatmul.bf16.gmra.mxu0 %v5807
      %v7208 = vpop.f32.mrf.mxu0
      %v7209 = vadd.f32 %v7120, %v7208
      %v7210 = vpop.f32.mrf.mxu0
      %v7211 = vadd.f32 %v7122, %v7210
      %7212 = vmatmul.bf16.gmra.mxu0 %v5816
      %v7213 = vpop.f32.mrf.mxu0
      %v7214 = vadd.f32 %v7125, %v7213
      %v7215 = vpop.f32.mrf.mxu0
      %v7216 = vadd.f32 %v7127, %v7215
      %7217 = vmatmul.bf16.gmra.mxu0 %v5825
      %v7218 = vpop.f32.mrf.mxu0
      %v7219 = vadd.f32 %v7130, %v7218
      %v7220 = vpop.f32.mrf.mxu0
      %v7221 = vadd.f32 %v7132, %v7220
      %7222 = vmatmul.bf16.gmra.mxu0 %v5834
      %v7223 = vpop.f32.mrf.mxu0
      %v7224 = vadd.f32 %v7135, %v7223
      %v7225 = vpop.f32.mrf.mxu0
      %v7226 = vadd.f32 %v7137, %v7225
      %7227 = vmatmul.bf16.gmra.mxu0 %v5843
      %v7228 = vpop.f32.mrf.mxu0
      %v7229 = vadd.f32 %v7140, %v7228
      %v7230 = vpop.f32.mrf.mxu0
      %v7231 = vadd.f32 %v7142, %v7230
      %7232 = vmatmul.bf16.gmra.mxu0 %v5852
      %v7233 = vpop.f32.mrf.mxu0
      %v7234 = vadd.f32 %v7145, %v7233
      %v7235 = vpop.f32.mrf.mxu0
      %v7236 = vadd.f32 %v7147, %v7235
      %7237 = vmatmul.bf16.gmra.mxu0 %v5861
      %v7238 = vpop.f32.mrf.mxu0
      %v7239 = vadd.f32 %v7150, %v7238
      %v7240 = vpop.f32.mrf.mxu0
      %v7241 = vadd.f32 %v7152, %v7240
      %7242 = vmatmul.bf16.gmra.mxu0 %v5870
      %v7243 = vpop.f32.mrf.mxu0
      %v7244 = vadd.f32 %v7155, %v7243
      %v7245 = vpop.f32.mrf.mxu0
      %v7246 = vadd.f32 %v7157, %v7245
      %7247 = vdwg.mxu0
      %v7248 = vld [vmem:[%s5] sm:$0x1]
      %v7250 = vperm.slane %v7248, 0
      %v7252 = vmul.f32 %v7169, %v7250
      %v7253 = vmul.f32 %v7171, %v7250
      %v7254 = vmul.f32 %v7174, %v7250
      %v7255 = vmul.f32 %v7176, %v7250
      %v7256 = vmul.f32 %v7179, %v7250
      %v7257 = vmul.f32 %v7181, %v7250
      %v7258 = vmul.f32 %v7184, %v7250
      %v7259 = vmul.f32 %v7186, %v7250
      %v7260 = vmul.f32 %v7189, %v7250
      %v7261 = vmul.f32 %v7191, %v7250
      %v7262 = vmul.f32 %v7194, %v7250
      %v7263 = vmul.f32 %v7196, %v7250
      %v7264 = vmul.f32 %v7199, %v7250
      %v7265 = vmul.f32 %v7201, %v7250
      %v7266 = vmul.f32 %v7204, %v7250
      %v7267 = vmul.f32 %v7206, %v7250
      %v7268 = vmul.f32 %v7209, %v7250
      %v7269 = vmul.f32 %v7211, %v7250
      %v7270 = vmul.f32 %v7214, %v7250
      %v7271 = vmul.f32 %v7216, %v7250
      %v7272 = vmul.f32 %v7219, %v7250
      %v7273 = vmul.f32 %v7221, %v7250
      %v7274 = vmul.f32 %v7224, %v7250
      %v7275 = vmul.f32 %v7226, %v7250
      %v7276 = vmul.f32 %v7229, %v7250
      %v7277 = vmul.f32 %v7231, %v7250
      %v7278 = vmul.f32 %v7234, %v7250
      %v7279 = vmul.f32 %v7236, %v7250
      %v7280 = vmul.f32 %v7239, %v7250
      %v7281 = vmul.f32 %v7241, %v7250
      %v7282 = vmul.f32 %v7244, %v7250
      %v7283 = vmul.f32 %v7246, %v7250
      %v7284 = vld [vmem:[%s6] sm:$0x1]
      %v7286 = vperm.slane %v7284, 0
      %v7288 = vadd.f32 %v7252, %v7286
      %v7289 = vadd.f32 %v7253, %v7286
      %v7290 = vadd.f32 %v7254, %v7286
      %v7291 = vadd.f32 %v7255, %v7286
      %v7292 = vadd.f32 %v7256, %v7286
      %v7293 = vadd.f32 %v7257, %v7286
      %v7294 = vadd.f32 %v7258, %v7286
      %v7295 = vadd.f32 %v7259, %v7286
      %v7296 = vadd.f32 %v7260, %v7286
      %v7297 = vadd.f32 %v7261, %v7286
      %v7298 = vadd.f32 %v7262, %v7286
      %v7299 = vadd.f32 %v7263, %v7286
      %v7300 = vadd.f32 %v7264, %v7286
      %v7301 = vadd.f32 %v7265, %v7286
      %v7302 = vadd.f32 %v7266, %v7286
      %v7303 = vadd.f32 %v7267, %v7286
      %v7304 = vadd.f32 %v7268, %v7286
      %v7305 = vadd.f32 %v7269, %v7286
      %v7306 = vadd.f32 %v7270, %v7286
      %v7307 = vadd.f32 %v7271, %v7286
      %v7308 = vadd.f32 %v7272, %v7286
      %v7309 = vadd.f32 %v7273, %v7286
      %v7310 = vadd.f32 %v7274, %v7286
      %v7311 = vadd.f32 %v7275, %v7286
      %v7312 = vadd.f32 %v7276, %v7286
      %v7313 = vadd.f32 %v7277, %v7286
      %v7314 = vadd.f32 %v7278, %v7286
      %v7315 = vadd.f32 %v7279, %v7286
      %v7316 = vadd.f32 %v7280, %v7286
      %v7317 = vadd.f32 %v7281, %v7286
      %v7318 = vadd.f32 %v7282, %v7286
      %v7319 = vadd.f32 %v7283, %v7286
      %v7320 = vmax.f32 %v7288, 0.0
      %v7321 = vmax.f32 %v7289, 0.0
      %v7322 = vmax.f32 %v7290, 0.0
      %v7323 = vmax.f32 %v7291, 0.0
      %v7324 = vmax.f32 %v7292, 0.0
      %v7325 = vmax.f32 %v7293, 0.0
      %v7326 = vmax.f32 %v7294, 0.0
      %v7327 = vmax.f32 %v7295, 0.0
      %v7328 = vmax.f32 %v7296, 0.0
      %v7329 = vmax.f32 %v7297, 0.0
      %v7330 = vmax.f32 %v7298, 0.0
      %v7331 = vmax.f32 %v7299, 0.0
      %v7332 = vmax.f32 %v7300, 0.0
      %v7333 = vmax.f32 %v7301, 0.0
      %v7334 = vmax.f32 %v7302, 0.0
      %v7335 = vmax.f32 %v7303, 0.0
      %v7336 = vmax.f32 %v7304, 0.0
      %v7337 = vmax.f32 %v7305, 0.0
      %v7338 = vmax.f32 %v7306, 0.0
      %v7339 = vmax.f32 %v7307, 0.0
      %v7340 = vmax.f32 %v7308, 0.0
      %v7341 = vmax.f32 %v7309, 0.0
      %v7342 = vmax.f32 %v7310, 0.0
      %v7343 = vmax.f32 %v7311, 0.0
      %v7344 = vmax.f32 %v7312, 0.0
      %v7345 = vmax.f32 %v7313, 0.0
      %v7346 = vmax.f32 %v7314, 0.0
      %v7347 = vmax.f32 %v7315, 0.0
      %v7348 = vmax.f32 %v7316, 0.0
      %v7349 = vmax.f32 %v7317, 0.0
      %v7350 = vmax.f32 %v7318, 0.0
      %v7351 = vmax.f32 %v7319, 0.0
      %v7352 = vmax.f32 %v7320, %v7322
      %v7353 = vmax.f32 %v7321, %v7323
      %v7354 = vmax.f32 %v7324, %v7326
      %v7355 = vmax.f32 %v7325, %v7327
      %v7356 = vmax.f32 %v7328, %v7330
      %v7357 = vmax.f32 %v7329, %v7331
      %v7358 = vmax.f32 %v7332, %v7334
      %v7359 = vmax.f32 %v7333, %v7335
      %v7360 = vmax.f32 %v7336, %v7338
      %v7361 = vmax.f32 %v7337, %v7339
      %v7362 = vmax.f32 %v7340, %v7342
      %v7363 = vmax.f32 %v7341, %v7343
      %v7364 = vmax.f32 %v7344, %v7346
      %v7365 = vmax.f32 %v7345, %v7347
      %v7366 = vmax.f32 %v7348, %v7350
      %v7367 = vmax.f32 %v7349, %v7351
      %7368 = vst [vmem:[#allocation5] sm:$0xff] %v7352
      %7369 = vst [vmem:[#allocation5 + $0x8] sm:$0xff] %v7353
      %7370 = vst [vmem:[#allocation5 + $0x10] sm:$0xff] %v7354
      %7371 = vst [vmem:[#allocation5 + $0x18] sm:$0xff] %v7355
      %7372 = vst [vmem:[#allocation5 + $0x20] sm:$0xff] %v7356
      %7373 = vst [vmem:[#allocation5 + $0x28] sm:$0xff] %v7357
      %7374 = vst [vmem:[#allocation5 + $0x30] sm:$0xff] %v7358
      %7375 = vst [vmem:[#allocation5 + $0x38] sm:$0xff] %v7359
      %7376 = vst [vmem:[#allocation5 + $0x40] sm:$0xff] %v7360
      %7377 = vst [vmem:[#allocation5 + $0x48] sm:$0xff] %v7361
      %7378 = vst [vmem:[#allocation5 + $0x50] sm:$0xff] %v7362
      %7379 = vst [vmem:[#allocation5 + $0x58] sm:$0xff] %v7363
      %7380 = vst [vmem:[#allocation5 + $0x60] sm:$0xff] %v7364
      %7381 = vst [vmem:[#allocation5 + $0x68] sm:$0xff] %v7365
      %7382 = vst [vmem:[#allocation5 + $0x70] sm:$0xff] %v7366
      %7383 = vst [vmem:[#allocation5 + $0x78] sm:$0xff] %v7367
      %v7384 = vld [vmem:[#allocation5] ss:$2 sm:$0xff]
      %s7385 = scalar_lea.vmem [#allocation5], 16
      %v7386 = vld [vmem:[%s7385] ss:$2 sm:$0xff]
      %s7387 = scalar_lea.vmem [#allocation5], 32
      %v7388 = vld [vmem:[%s7387] ss:$2 sm:$0xff]
      %s7389 = scalar_lea.vmem [#allocation5], 48
      %v7390 = vld [vmem:[%s7389] ss:$2 sm:$0xff]
      %s7391 = scalar_lea.vmem [#allocation5], 64
      %v7392 = vld [vmem:[%s7391] ss:$2 sm:$0xff]
      %s7393 = scalar_lea.vmem [#allocation5], 80
      %v7394 = vld [vmem:[%s7393] ss:$2 sm:$0xff]
      %s7395 = scalar_lea.vmem [#allocation5], 96
      %v7396 = vld [vmem:[%s7395] ss:$2 sm:$0xff]
      %s7397 = scalar_lea.vmem [#allocation5], 112
      %v7398 = vld [vmem:[%s7397] ss:$2 sm:$0xff]
      %s7399 = scalar_lea.vmem [#allocation5], 1
      %v7400 = vld [vmem:[%s7399] ss:$2 sm:$0xff]
      %s7401 = scalar_lea.vmem [#allocation5], 17
      %v7402 = vld [vmem:[%s7401] ss:$2 sm:$0xff]
      %s7403 = scalar_lea.vmem [#allocation5], 33
      %v7404 = vld [vmem:[%s7403] ss:$2 sm:$0xff]
      %s7405 = scalar_lea.vmem [#allocation5], 49
      %v7406 = vld [vmem:[%s7405] ss:$2 sm:$0xff]
      %s7407 = scalar_lea.vmem [#allocation5], 65
      %v7408 = vld [vmem:[%s7407] ss:$2 sm:$0xff]
      %s7409 = scalar_lea.vmem [#allocation5], 81
      %v7410 = vld [vmem:[%s7409] ss:$2 sm:$0xff]
      %s7411 = scalar_lea.vmem [#allocation5], 97
      %v7412 = vld [vmem:[%s7411] ss:$2 sm:$0xff]
      %s7413 = scalar_lea.vmem [#allocation5], 113
      %v7414 = vld [vmem:[%s7413] ss:$2 sm:$0xff]
      %v7415 = vmax.f32 %v7384, %v7400
      %v7416 = vmax.f32 %v7386, %v7402
      %v7417 = vmax.f32 %v7388, %v7404
      %v7418 = vmax.f32 %v7390, %v7406
      %v7419 = vmax.f32 %v7392, %v7408
      %v7420 = vmax.f32 %v7394, %v7410
      %v7421 = vmax.f32 %v7396, %v7412
      %v7422 = vmax.f32 %v7398, %v7414
      %v7423 = vpack.c.bf16 %v7415, %v7415
      %v7424 = vpack.c.bf16 %v7416, %v7416
      %v7425 = vpack.c.bf16 %v7417, %v7417
      %v7426 = vpack.c.bf16 %v7418, %v7418
      %v7427 = vpack.c.bf16 %v7419, %v7419
      %v7428 = vpack.c.bf16 %v7420, %v7420
      %v7429 = vpack.c.bf16 %v7421, %v7421
      %v7430 = vpack.c.bf16 %v7422, %v7422
      %7431 = vst [vmem:[%s278] sm:$0xf] %v7423
      %7432 = vst [vmem:[%s278 + $0x4] sm:$0xf] %v7424
      %7433 = vst [vmem:[%s278 + $0x8] sm:$0xf] %v7425
      %7434 = vst [vmem:[%s278 + $0xc] sm:$0xf] %v7426
      %7435 = vst [vmem:[%s278 + $0x10] sm:$0xf] %v7427
      %7436 = vst [vmem:[%s278 + $0x14] sm:$0xf] %v7428
      %7437 = vst [vmem:[%s278 + $0x18] sm:$0xf] %v7429
      %7438 = vst [vmem:[%s278 + $0x1c] sm:$0xf] %v7430
      %p7439 = scmp.lt.s32.totalorder %s18, 1
      %s7440 = scalar_select %p7439, %s18, 1
      %s7441 = smul.addr %s7440, 8
      %s7442 = smul.addr %s7441, 4
      %s7443 = scalar_lea.vmem %s7, %s7442
      // Predicated region
      $region49: #{_lambda_.2} parent=47 // pred_check
        %p7444 = pneg %p188
      $region50: #{_lambda_.2} parent=47 // pred_check_branch
        %7446 = sbr.rel (%p7444) target = $region52
      $region51: #{_lambda_.2} parent=47 // pred_region
        _
      $region52: #{_lambda_.2} parent=47 // pred_fallthru
        _
    $region48: #{_lambda_.2} parent=5 // pred_fallthru
      _
    %p7447 = scmp.le.s32.totalorder 2, %s13
    // Predicated region
    $region53: #{_lambda_.2} parent=5 // pred_check
      %p7448 = pneg %p7447
    $region54: #{_lambda_.2} parent=5 // pred_check_branch
      %7450 = sbr.rel (%p7448) target = $region56
    $region55: #{_lambda_.2} parent=5 // pred_region
      %s7451 = ssub.s32 %s13, 2
      // Predicated region
      $region57: #{_lambda_.2} parent=55 // pred_check
        %p7452 = pneg %p194
      $region58: #{_lambda_.2} parent=55 // pred_check_branch
        %7454 = sbr.rel (%p7452) target = $region60
      $region59: #{_lambda_.2} parent=55 // pred_region
        %p7455 = scmp.lt.s32.totalorder %s19, 1
        %s7456 = scalar_select %p7455, %s19, 1
        %s7457 = smul.addr %s7456, 8
        %s7458 = smul.addr %s7457, 4
        %s7459 = scalar_lea.vmem %s7, %s7458
      $region60: #{_lambda_.2} parent=55 // pred_fallthru
        _
    $region56: #{_lambda_.2} parent=5 // pred_fallthru
      _
  $region6: #{_lambda_.2} parent=0 // loop_footer
    %s17 = sadd.s32 1, %s13
  $region7: #{_lambda_.2} parent=0 // loop_footer_branch
    %12 = sbr.rel target = $region3
  $region8: #{_lambda_.2} parent=0 // loop_exit
    _

</llo_original>
